<compile_context>
chip_gen: v7x
topology: tpu7x:2x2x1
jax: 0.10.0
libtpu: 0.0.40
codegen_flags: <defaults>
</compile_context>

<pallas_src>
import functools

import jax
import jax.numpy as jnp
from jax import lax
from jax.experimental import pallas as pl
from jax.experimental.pallas import tpu as pltpu

MM_DTYPE = jnp.bfloat16   # MXU operand dtype; accumulation / elementwise is f32.
LANE = 128                # classifier output padded to one lane tile

_BLOCK_CFG = ((False, 1), (False, 1), (True, 2), (False, 1),
              (True, 2), (False, 1), (True, 2), (False, 1))
_BLOCK_NAMES = ("rb11", "rb12", "rb21", "rb22", "rb31", "rb32", "rb41", "rb42")


def _row_pad(l):
    """Padded row count for a valid length l (multiple of 16, >= 16)."""
    return max(16, ((l + 15) // 16) * 16)


# ----------------------------------------------------------------------------
# Fused forward kernel: one grid step == one batch sample.
# ----------------------------------------------------------------------------
def _fused_forward_kernel(*refs, q, length, block_cfg):
    it = iter(refs)
    x_ref = next(it)
    conv1_w, conv1_b = next(it), next(it)
    blocks = []
    for downsample, stride1 in block_cfg:
        w1, b1, w2, b2 = next(it), next(it), next(it), next(it)
        wd = next(it) if downsample else None
        blocks.append((w1, b1, w2, b2, wd, stride1))
    mlp_w, mlp_b = next(it), next(it)
    out_ref = next(it)

    # ---- hoisted / deduplicated constants (built once per unique key) ----
    sel_cache, iota_cache = {}, {}

    def row_iota(rows):
        if rows not in iota_cache:
            iota_cache[rows] = lax.broadcasted_iota(jnp.int32, (rows, 1), 0)
        return iota_cache[rows]

    def sel_matrix(stride, shift, l_out, l_in, rows_out, rows_in):
        """0/1 (rows_out, rows_in): row j selects input row stride*j+shift."""
        key = (stride, shift, l_out, l_in, rows_out, rows_in)
        if key not in sel_cache:
            j = lax.broadcasted_iota(jnp.int32, (rows_out, rows_in), 0)
            i = lax.broadcasted_iota(jnp.int32, (rows_out, rows_in), 1)
            keep = (i == stride * j + shift) & (j < l_out) & (i < l_in)
            sel_cache[key] = keep.astype(jnp.float32).astype(MM_DTYPE)
        return sel_cache[key]

    def shift_rows(v, s, l_in, rows):
        """g[j] = v[j+s] for 0 <= j+s < l_in else 0 (stride-1 tap, XLU roll)."""
        if s == 0:
            return v
        rolled = pltpu.roll(v, (-s) % rows, axis=0)
        src = row_iota(rows) + s
        return jnp.where(jnp.logical_and(src >= 0, src < l_in), rolled, 0.0)

    def mask_rows(x, l, rows):
        """Zero rows >= l so padded rows never carry junk downstream."""
        if l >= rows:
            return x
        return jnp.where(row_iota(rows) < l, x, 0.0)

    def conv(h, w_ref, b_ref, *, cout, ksize, stride, pad, qpow,
             l_in, l_out, rows_in, rows_out):
        """SelfONN1d / Conv1d on a (rows_in, Cin) f32 activation -> f32."""
        # powers computed ONCE per conv, in f32 (parity with PyTorch).
        if qpow == 1:
            xq = h
        else:
            parts, cur = [h], h
            for _ in range(qpow - 1):
                cur = cur * h
                parts.append(cur)
            xq = jnp.concatenate(parts, axis=-1)            # (rows_in, q*Cin)
        # single merged weight matmul: (rows_in, q*Cin) @ (q*Cin, K*Cout)
        y = jnp.dot(xq.astype(MM_DTYPE), w_ref[...],
                    preferred_element_type=jnp.float32)
        acc = None
        for t in range(ksize):
            s = t - pad
            v = y[:, t * cout:(t + 1) * cout]               # (rows_in, Cout)
            if stride == 1 and rows_in == rows_out:
                g = shift_rows(v, s, l_in, rows_in)          # XLU, stays f32
            else:
                sel = sel_matrix(stride, s, l_out, l_in, rows_out, rows_in)
                g = jnp.dot(sel, v.astype(MM_DTYPE),
                            preferred_element_type=jnp.float32)
            acc = g if acc is None else acc + g
        if b_ref is not None:
            acc = acc + b_ref[...]
        return acc

    def maxpool_k3s2p1(h, l_in, l_out, rows_in, rows_out):
        """MaxPool1d(3, 2, 1).  Out-of-range taps are filled with -1.0, which
        acts as -inf ONLY because the input is a tanh output in [-1, 1]."""
        hm = h.astype(MM_DTYPE)
        r = row_iota(rows_out)
        out = None
        for t in range(3):
            s = t - 1
            sel = sel_matrix(2, s, l_out, l_in, rows_out, rows_in)
            v = jnp.dot(sel, hm, preferred_element_type=jnp.float32)
            tgt = 2 * r + s
            oob = jnp.logical_or(tgt < 0, tgt >= l_in)
            v = jnp.where(oob, jnp.float32(-1.0), v)
            out = v if out is None else jnp.maximum(out, v)
        return out

    # ------------------------------- forward -------------------------------
    rows0 = x_ref.shape[1]
    h = x_ref[0]                                   # (rows0, Cin) f32, padded
    l = length

    # stem: SelfONN1d(k=7, s=2, p=3, q) + Tanh   (BatchNorm=False)
    cout = conv1_b.shape[-1]
    l_out = (l + 2 * 3 - 7) // 2 + 1
    r_out = _row_pad(l_out)
    h = jnp.tanh(conv(h, conv1_w, conv1_b, cout=cout, ksize=7, stride=2, pad=3,
                      qpow=q, l_in=l, l_out=l_out, rows_in=rows0, rows_out=r_out))
    h = mask_rows(h, l_out, r_out)
    l, rows = l_out, r_out

    # MaxPool1d(kernel_size=3, stride=2, padding=1)
    l_out = (l + 2 - 3) // 2 + 1
    r_out = _row_pad(l_out)
    h = mask_rows(maxpool_k3s2p1(h, l, l_out, rows, r_out), l_out, r_out)
    l, rows = l_out, r_out

    # residual blocks (BatchNorm=False, Atttention=False branches)
    for w1, b1, w2, b2, wd, stride1 in blocks:
        cout = b1.shape[-1]
        l_out = (l + 2 - 3) // stride1 + 1
        r_out = _row_pad(l_out)
        out = jnp.tanh(conv(h, w1, b1, cout=cout, ksize=3, stride=stride1,
                            pad=1, qpow=q, l_in=l, l_out=l_out,
                            rows_in=rows, rows_out=r_out))
        out = conv(out, w2, b2, cout=cout, ksize=3, stride=1, pad=1, qpow=q,
                   l_in=l_out, l_out=l_out, rows_in=r_out, rows_out=r_out)
        if wd is not None:    # nn.Conv1d(k=1, s=2, bias=False) downsample
            identity = conv(h, wd, None, cout=cout, ksize=1, stride=2, pad=0,
                            qpow=1, l_in=l, l_out=l_out,
                            rows_in=rows, rows_out=r_out)
        else:
            identity = h
        h = mask_rows(jnp.tanh(out + identity), l_out, r_out)
        l, rows = l_out, r_out

    # AdaptiveAvgPool1d(1) + Flatten + Linear + LogSoftmax
    pooled = jnp.sum(h, axis=0, keepdims=True) * (1.0 / float(l))   # (1, C)
    logits = jnp.dot(pooled.astype(MM_DTYPE), mlp_w[...],
                     preferred_element_type=jnp.float32) + mlp_b[...]
    m = jnp.max(logits, axis=-1, keepdims=True)
    z = logits - m
    logp = z - jnp.log(jnp.sum(jnp.exp(z), axis=-1, keepdims=True))  # (1, 128)
    out_ref[0] = jnp.broadcast_to(logp, out_ref.shape[1:])


# ----------------------------------------------------------------------------
# Host-side weight re-layout (tiny, runs once under jit)
# ----------------------------------------------------------------------------
def _merged_conv_weight(w):
    """PyTorch (Cout, q*Cin, K) -> (q*Cin, K*Cout) with taps folded into N."""
    cout, cinq, ksize = w.shape
    return jnp.transpose(w, (1, 2, 0)).reshape(cinq, ksize * cout).astype(MM_DTYPE)


def _bias_row(b):
    return b.astype(jnp.float32).reshape(1, -1)


def selfresnet_forward(x, params, *, q):
    """x: (B, Cin, L) float32 -> (B, class_num) log-probabilities."""
    num_batch, cin, length = x.shape
    class_num = params["mlp_b"].shape[0]
    assert class_num <= LANE

    rows0 = _row_pad(length)
    x_t = jnp.transpose(x, (0, 2, 1)).astype(jnp.float32)          # (B, L, Cin)
    x_pad = jnp.zeros((num_batch, rows0, cin), jnp.float32)
    x_pad = x_pad.at[:, :length, :].set(x_t)

    inputs = [x_pad,
              _merged_conv_weight(params["conv1_w"]),
              _bias_row(params["conv1_b"])]
    for name, (downsample, _) in zip(_BLOCK_NAMES, _BLOCK_CFG):
        p = params[name]
        inputs += [_merged_conv_weight(p["w1"]), _bias_row(p["b1"]),
                   _merged_conv_weight(p["w2"]), _bias_row(p["b2"])]
        if downsample:
            inputs.append(_merged_conv_weight(p["wd"]))
    feat = params["mlp_w"].shape[1]
    mlp_w = jnp.zeros((feat, LANE), jnp.float32)
    mlp_w = mlp_w.at[:, :class_num].set(params["mlp_w"].T).astype(MM_DTYPE)
    mlp_b = jnp.full((1, LANE), -1e9, jnp.float32)          # pad classes ~ -inf
    mlp_b = mlp_b.at[0, :class_num].set(params["mlp_b"].astype(jnp.float32))
    inputs += [mlp_w, mlp_b]

    kernel = functools.partial(_fused_forward_kernel, q=q, length=length,
                               block_cfg=_BLOCK_CFG)
    in_specs = [pl.BlockSpec((1, rows0, cin), lambda b: (b, 0, 0))]
    in_specs += [pl.BlockSpec(a.shape, lambda b, nd=a.ndim: (0,) * nd)
                 for a in inputs[1:]]
    out = pl.pallas_call(
        kernel,
        out_shape=jax.ShapeDtypeStruct((num_batch, 8, LANE), jnp.float32),
        grid=(num_batch,),
        in_specs=in_specs,
        out_specs=pl.BlockSpec((1, 8, LANE), lambda b: (b, 0, 0)),
        compiler_params=pltpu.CompilerParams(
            dimension_semantics=("parallel",)),
    )(*inputs)
    return out[:, 0, :class_num]


# ----------------------------------------------------------------------------
# Deterministic parameter initialization (shapes follow the PyTorch __init__)
# ----------------------------------------------------------------------------
def init_params(key, *, input_ch, class_num, q, in_ft):
    keys = iter(jax.random.split(key, 64))

    def rnd(shape, scale=0.1):
        return jax.random.normal(next(keys), shape, jnp.float32) * scale

    def selfonn_p(cin, cout, k):
        return rnd((cout, cin * q, k)), rnd((cout,))

    def resblock_p(cin, cout, downsample):
        p = {}
        p["w1"], p["b1"] = selfonn_p(cin, cout, 3)
        p["w2"], p["b2"] = selfonn_p(cout, cout, 3)
        if downsample:
            p["wd"] = rnd((cout, cin, 1))
        return p

    params = {}
    params["conv1_w"], params["conv1_b"] = selfonn_p(input_ch, in_ft, 7)
    params["rb11"] = resblock_p(in_ft, in_ft, False)
    params["rb12"] = resblock_p(in_ft, in_ft, False)
    params["rb21"] = resblock_p(in_ft, 2 * in_ft, True)
    params["rb22"] = resblock_p(2 * in_ft, 2 * in_ft, False)
    params["rb31"] = resblock_p(2 * in_ft, 4 * in_ft, True)
    params["rb32"] = resblock_p(4 * in_ft, 4 * in_ft, False)
    params["rb41"] = resblock_p(4 * in_ft, 8 * in_ft, True)
    params["rb42"] = resblock_p(8 * in_ft, 8 * in_ft, False)
    params["mlp_w"] = rnd((class_num, 8 * in_ft))
    params["mlp_b"] = rnd((class_num,))
    return params


if __name__ == "__main__":
    B, INPUT_CH, L = 2, 4, 64
    CLASS_NUM, Q_ORDER, IN_FT = 5, 2, 8

    x = jax.random.normal(jax.random.PRNGKey(0), (B, INPUT_CH, L), jnp.float32)
    params = init_params(jax.random.PRNGKey(1), input_ch=INPUT_CH,
                         class_num=CLASS_NUM, q=Q_ORDER, in_ft=IN_FT)

    fwd = jax.jit(functools.partial(selfresnet_forward, q=Q_ORDER))
    out = jax.block_until_ready(fwd(x, params))

    assert out.shape == (B, CLASS_NUM)
    assert bool(jnp.all(jnp.isfinite(out)))
    # log-softmax rows should sum to 1 in probability space
    assert bool(jnp.allclose(jnp.sum(jnp.exp(out), axis=1), 1.0, atol=1e-3))
    print("KERNEL_OK")
</pallas_src>

<mosaic_0001>
module attributes {stable_mosaic.version = 11 : i64} {
  func.func @_fused_forward_kernel(%arg0: i32, %arg1: memref<1x64x4xf32, #tpu.memory_space<vmem>>, %arg2: memref<8x56xbf16, #tpu.memory_space<vmem>>, %arg3: memref<1x8xf32, #tpu.memory_space<vmem>>, %arg4: memref<16x24xbf16, #tpu.memory_space<vmem>>, %arg5: memref<1x8xf32, #tpu.memory_space<vmem>>, %arg6: memref<16x24xbf16, #tpu.memory_space<vmem>>, %arg7: memref<1x8xf32, #tpu.memory_space<vmem>>, %arg8: memref<16x24xbf16, #tpu.memory_space<vmem>>, %arg9: memref<1x8xf32, #tpu.memory_space<vmem>>, %arg10: memref<16x24xbf16, #tpu.memory_space<vmem>>, %arg11: memref<1x8xf32, #tpu.memory_space<vmem>>, %arg12: memref<16x48xbf16, #tpu.memory_space<vmem>>, %arg13: memref<1x16xf32, #tpu.memory_space<vmem>>, %arg14: memref<32x48xbf16, #tpu.memory_space<vmem>>, %arg15: memref<1x16xf32, #tpu.memory_space<vmem>>, %arg16: memref<8x16xbf16, #tpu.memory_space<vmem>>, %arg17: memref<32x48xbf16, #tpu.memory_space<vmem>>, %arg18: memref<1x16xf32, #tpu.memory_space<vmem>>, %arg19: memref<32x48xbf16, #tpu.memory_space<vmem>>, %arg20: memref<1x16xf32, #tpu.memory_space<vmem>>, %arg21: memref<32x96xbf16, #tpu.memory_space<vmem>>, %arg22: memref<1x32xf32, #tpu.memory_space<vmem>>, %arg23: memref<64x96xbf16, #tpu.memory_space<vmem>>, %arg24: memref<1x32xf32, #tpu.memory_space<vmem>>, %arg25: memref<16x32xbf16, #tpu.memory_space<vmem>>, %arg26: memref<64x96xbf16, #tpu.memory_space<vmem>>, %arg27: memref<1x32xf32, #tpu.memory_space<vmem>>, %arg28: memref<64x96xbf16, #tpu.memory_space<vmem>>, %arg29: memref<1x32xf32, #tpu.memory_space<vmem>>, %arg30: memref<64x192xbf16, #tpu.memory_space<vmem>>, %arg31: memref<1x64xf32, #tpu.memory_space<vmem>>, %arg32: memref<128x192xbf16, #tpu.memory_space<vmem>>, %arg33: memref<1x64xf32, #tpu.memory_space<vmem>>, %arg34: memref<32x64xbf16, #tpu.memory_space<vmem>>, %arg35: memref<128x192xbf16, #tpu.memory_space<vmem>>, %arg36: memref<1x64xf32, #tpu.memory_space<vmem>>, %arg37: memref<128x192xbf16, #tpu.memory_space<vmem>>, %arg38: memref<1x64xf32, #tpu.memory_space<vmem>>, %arg39: memref<64x128xbf16, #tpu.memory_space<vmem>>, %arg40: memref<1x128xf32, #tpu.memory_space<vmem>>, %arg41: memref<1x8x128xf32, #tpu.memory_space<vmem>>) attributes {dimension_semantics = [#tpu.dimension_semantics<parallel>], iteration_bounds = array<i64: 2>, scalar_prefetch = 0 : i64, scratch_operands = 0 : i64, tpu.core_type = #tpu.core_type<tc>, window_params = [{transform_indices = @transform_0, window_bounds = array<i64: 1, 64, 4>}, {pipeline_mode = #tpu.pipeline_mode<synchronous>, transform_indices = @transform_1, window_bounds = array<i64: 8, 56>}, {pipeline_mode = #tpu.pipeline_mode<synchronous>, transform_indices = @transform_2, window_bounds = array<i64: 1, 8>}, {pipeline_mode = #tpu.pipeline_mode<synchronous>, transform_indices = @transform_3, window_bounds = array<i64: 16, 24>}, {pipeline_mode = #tpu.pipeline_mode<synchronous>, transform_indices = @transform_4, window_bounds = array<i64: 1, 8>}, {pipeline_mode = #tpu.pipeline_mode<synchronous>, transform_indices = @transform_5, window_bounds = array<i64: 16, 24>}, {pipeline_mode = #tpu.pipeline_mode<synchronous>, transform_indices = @transform_6, window_bounds = array<i64: 1, 8>}, {pipeline_mode = #tpu.pipeline_mode<synchronous>, transform_indices = @transform_7, window_bounds = array<i64: 16, 24>}, {pipeline_mode = #tpu.pipeline_mode<synchronous>, transform_indices = @transform_8, window_bounds = array<i64: 1, 8>}, {pipeline_mode = #tpu.pipeline_mode<synchronous>, transform_indices = @transform_9, window_bounds = array<i64: 16, 24>}, {pipeline_mode = #tpu.pipeline_mode<synchronous>, transform_indices = @transform_10, window_bounds = array<i64: 1, 8>}, {pipeline_mode = #tpu.pipeline_mode<synchronous>, transform_indices = @transform_11, window_bounds = array<i64: 16, 48>}, {pipeline_mode = #tpu.pipeline_mode<synchronous>, transform_indices = @transform_12, window_bounds = array<i64: 1, 16>}, {pipeline_mode = #tpu.pipeline_mode<synchronous>, transform_indices = @transform_13, window_bounds = array<i64: 32, 48>}, {pipeline_mode = #tpu.pipeline_mode<synchronous>, transform_indices = @transform_14, window_bounds = array<i64: 1, 16>}, {pipeline_mode = #tpu.pipeline_mode<synchronous>, transform_indices = @transform_15, window_bounds = array<i64: 8, 16>}, {pipeline_mode = #tpu.pipeline_mode<synchronous>, transform_indices = @transform_16, window_bounds = array<i64: 32, 48>}, {pipeline_mode = #tpu.pipeline_mode<synchronous>, transform_indices = @transform_17, window_bounds = array<i64: 1, 16>}, {pipeline_mode = #tpu.pipeline_mode<synchronous>, transform_indices = @transform_18, window_bounds = array<i64: 32, 48>}, {pipeline_mode = #tpu.pipeline_mode<synchronous>, transform_indices = @transform_19, window_bounds = array<i64: 1, 16>}, {pipeline_mode = #tpu.pipeline_mode<synchronous>, transform_indices = @transform_20, window_bounds = array<i64: 32, 96>}, {pipeline_mode = #tpu.pipeline_mode<synchronous>, transform_indices = @transform_21, window_bounds = array<i64: 1, 32>}, {pipeline_mode = #tpu.pipeline_mode<synchronous>, transform_indices = @transform_22, window_bounds = array<i64: 64, 96>}, {pipeline_mode = #tpu.pipeline_mode<synchronous>, transform_indices = @transform_23, window_bounds = array<i64: 1, 32>}, {pipeline_mode = #tpu.pipeline_mode<synchronous>, transform_indices = @transform_24, window_bounds = array<i64: 16, 32>}, {pipeline_mode = #tpu.pipeline_mode<synchronous>, transform_indices = @transform_25, window_bounds = array<i64: 64, 96>}, {pipeline_mode = #tpu.pipeline_mode<synchronous>, transform_indices = @transform_26, window_bounds = array<i64: 1, 32>}, {pipeline_mode = #tpu.pipeline_mode<synchronous>, transform_indices = @transform_27, window_bounds = array<i64: 64, 96>}, {pipeline_mode = #tpu.pipeline_mode<synchronous>, transform_indices = @transform_28, window_bounds = array<i64: 1, 32>}, {pipeline_mode = #tpu.pipeline_mode<synchronous>, transform_indices = @transform_29, window_bounds = array<i64: 64, 192>}, {pipeline_mode = #tpu.pipeline_mode<synchronous>, transform_indices = @transform_30, window_bounds = array<i64: 1, 64>}, {pipeline_mode = #tpu.pipeline_mode<synchronous>, transform_indices = @transform_31, window_bounds = array<i64: 128, 192>}, {pipeline_mode = #tpu.pipeline_mode<synchronous>, transform_indices = @transform_32, window_bounds = array<i64: 1, 64>}, {pipeline_mode = #tpu.pipeline_mode<synchronous>, transform_indices = @transform_33, window_bounds = array<i64: 32, 64>}, {pipeline_mode = #tpu.pipeline_mode<synchronous>, transform_indices = @transform_34, window_bounds = array<i64: 128, 192>}, {pipeline_mode = #tpu.pipeline_mode<synchronous>, transform_indices = @transform_35, window_bounds = array<i64: 1, 64>}, {pipeline_mode = #tpu.pipeline_mode<synchronous>, transform_indices = @transform_36, window_bounds = array<i64: 128, 192>}, {pipeline_mode = #tpu.pipeline_mode<synchronous>, transform_indices = @transform_37, window_bounds = array<i64: 1, 64>}, {pipeline_mode = #tpu.pipeline_mode<synchronous>, transform_indices = @transform_38, window_bounds = array<i64: 64, 128>}, {pipeline_mode = #tpu.pipeline_mode<synchronous>, transform_indices = @transform_39, window_bounds = array<i64: 1, 128>}, {transform_indices = @transform_40, window_bounds = array<i64: 1, 8, 128>}]} {
    %c0 = arith.constant 0 : index
    %c0_0 = arith.constant 0 : index
    %c0_1 = arith.constant 0 : index
    %0 = vector.load %arg1[%c0, %c0_0, %c0_1] : memref<1x64x4xf32, #tpu.memory_space<vmem>>, vector<1x64x4xf32>
    %1 = vector.shape_cast %0 : vector<1x64x4xf32> to vector<64x4xf32>
    %2 = arith.mulf %1, %1 : vector<64x4xf32>
    %3 = tpu.concatenate %1, %2 in 1 : vector<64x4xf32>, vector<64x4xf32> -> vector<64x8xf32>
    %4 = arith.truncf %3 : vector<64x8xf32> to vector<64x8xbf16>
    %c0_2 = arith.constant 0 : index
    %c0_3 = arith.constant 0 : index
    %5 = vector.load %arg2[%c0_2, %c0_3] : memref<8x56xbf16, #tpu.memory_space<vmem>>, vector<8x56xbf16>
    %cst = arith.constant dense<0.000000e+00> : vector<64x56xf32>
    %6 = tpu.matmul %4, %5, %cst {dimension_numbers = #tpu.dot_dimension_numbers<[1], [0], [0], [1], [0, 0, 1, 1], [], []>} : vector<64x8xbf16>, vector<8x56xbf16>, vector<64x56xf32> -> vector<64x56xf32>
    %7 = vector.extract_strided_slice %6 {offsets = [0, 0], sizes = [64, 8], strides = [1, 1]} : vector<64x56xf32> to vector<64x8xf32>
    %8 = tpu.iota {dimensions = array<i32: 0>} : vector<32x64xi32>
    %9 = tpu.iota {dimensions = array<i32: 1>} : vector<32x64xi32>
    %c2_i32 = arith.constant 2 : i32
    %10 = vector.broadcast %c2_i32 : i32 to vector<32x64xi32>
    %11 = arith.muli %10, %8 : vector<32x64xi32>
    %c-3_i32 = arith.constant -3 : i32
    %12 = vector.broadcast %c-3_i32 : i32 to vector<32x64xi32>
    %13 = arith.addi %11, %12 : vector<32x64xi32>
    %14 = arith.cmpi eq, %9, %13 : vector<32x64xi32>
    %c32_i32 = arith.constant 32 : i32
    %15 = vector.broadcast %c32_i32 : i32 to vector<32x64xi32>
    %16 = arith.cmpi slt, %8, %15 : vector<32x64xi32>
    %17 = arith.andi %14, %16 : vector<32x64xi1>
    %c64_i32 = arith.constant 64 : i32
    %18 = vector.broadcast %c64_i32 : i32 to vector<32x64xi32>
    %19 = arith.cmpi slt, %9, %18 : vector<32x64xi32>
    %20 = arith.andi %17, %19 : vector<32x64xi1>
    %21 = arith.extui %20 : vector<32x64xi1> to vector<32x64xi32>
    %22 = arith.sitofp %21 : vector<32x64xi32> to vector<32x64xf32>
    %23 = arith.truncf %22 : vector<32x64xf32> to vector<32x64xbf16>
    %24 = arith.truncf %7 : vector<64x8xf32> to vector<64x8xbf16>
    %cst_4 = arith.constant dense<0.000000e+00> : vector<32x8xf32>
    %25 = tpu.matmul %23, %24, %cst_4 {dimension_numbers = #tpu.dot_dimension_numbers<[1], [0], [0], [1], [0, 0, 1, 1], [], []>} : vector<32x64xbf16>, vector<64x8xbf16>, vector<32x8xf32> -> vector<32x8xf32>
    %26 = vector.extract_strided_slice %6 {offsets = [0, 8], sizes = [64, 8], strides = [1, 1]} : vector<64x56xf32> to vector<64x8xf32>
    %27 = tpu.iota {dimensions = array<i32: 0>} : vector<32x64xi32>
    %28 = tpu.iota {dimensions = array<i32: 1>} : vector<32x64xi32>
    %c2_i32_5 = arith.constant 2 : i32
    %29 = vector.broadcast %c2_i32_5 : i32 to vector<32x64xi32>
    %30 = arith.muli %29, %27 : vector<32x64xi32>
    %c-2_i32 = arith.constant -2 : i32
    %31 = vector.broadcast %c-2_i32 : i32 to vector<32x64xi32>
    %32 = arith.addi %30, %31 : vector<32x64xi32>
    %33 = arith.cmpi eq, %28, %32 : vector<32x64xi32>
    %c32_i32_6 = arith.constant 32 : i32
    %34 = vector.broadcast %c32_i32_6 : i32 to vector<32x64xi32>
    %35 = arith.cmpi slt, %27, %34 : vector<32x64xi32>
    %36 = arith.andi %33, %35 : vector<32x64xi1>
    %c64_i32_7 = arith.constant 64 : i32
    %37 = vector.broadcast %c64_i32_7 : i32 to vector<32x64xi32>
    %38 = arith.cmpi slt, %28, %37 : vector<32x64xi32>
    %39 = arith.andi %36, %38 : vector<32x64xi1>
    %40 = arith.extui %39 : vector<32x64xi1> to vector<32x64xi32>
    %41 = arith.sitofp %40 : vector<32x64xi32> to vector<32x64xf32>
    %42 = arith.truncf %41 : vector<32x64xf32> to vector<32x64xbf16>
    %43 = arith.truncf %26 : vector<64x8xf32> to vector<64x8xbf16>
    %cst_8 = arith.constant dense<0.000000e+00> : vector<32x8xf32>
    %44 = tpu.matmul %42, %43, %cst_8 {dimension_numbers = #tpu.dot_dimension_numbers<[1], [0], [0], [1], [0, 0, 1, 1], [], []>} : vector<32x64xbf16>, vector<64x8xbf16>, vector<32x8xf32> -> vector<32x8xf32>
    %45 = arith.addf %25, %44 : vector<32x8xf32>
    %46 = vector.extract_strided_slice %6 {offsets = [0, 16], sizes = [64, 8], strides = [1, 1]} : vector<64x56xf32> to vector<64x8xf32>
    %47 = tpu.iota {dimensions = array<i32: 0>} : vector<32x64xi32>
    %48 = tpu.iota {dimensions = array<i32: 1>} : vector<32x64xi32>
    %c2_i32_9 = arith.constant 2 : i32
    %49 = vector.broadcast %c2_i32_9 : i32 to vector<32x64xi32>
    %50 = arith.muli %49, %47 : vector<32x64xi32>
    %c-1_i32 = arith.constant -1 : i32
    %51 = vector.broadcast %c-1_i32 : i32 to vector<32x64xi32>
    %52 = arith.addi %50, %51 : vector<32x64xi32>
    %53 = arith.cmpi eq, %48, %52 : vector<32x64xi32>
    %c32_i32_10 = arith.constant 32 : i32
    %54 = vector.broadcast %c32_i32_10 : i32 to vector<32x64xi32>
    %55 = arith.cmpi slt, %47, %54 : vector<32x64xi32>
    %56 = arith.andi %53, %55 : vector<32x64xi1>
    %c64_i32_11 = arith.constant 64 : i32
    %57 = vector.broadcast %c64_i32_11 : i32 to vector<32x64xi32>
    %58 = arith.cmpi slt, %48, %57 : vector<32x64xi32>
    %59 = arith.andi %56, %58 : vector<32x64xi1>
    %60 = arith.extui %59 : vector<32x64xi1> to vector<32x64xi32>
    %61 = arith.sitofp %60 : vector<32x64xi32> to vector<32x64xf32>
    %62 = arith.truncf %61 : vector<32x64xf32> to vector<32x64xbf16>
    %63 = arith.truncf %46 : vector<64x8xf32> to vector<64x8xbf16>
    %cst_12 = arith.constant dense<0.000000e+00> : vector<32x8xf32>
    %64 = tpu.matmul %62, %63, %cst_12 {dimension_numbers = #tpu.dot_dimension_numbers<[1], [0], [0], [1], [0, 0, 1, 1], [], []>} : vector<32x64xbf16>, vector<64x8xbf16>, vector<32x8xf32> -> vector<32x8xf32>
    %65 = arith.addf %45, %64 : vector<32x8xf32>
    %66 = vector.extract_strided_slice %6 {offsets = [0, 24], sizes = [64, 8], strides = [1, 1]} : vector<64x56xf32> to vector<64x8xf32>
    %67 = tpu.iota {dimensions = array<i32: 0>} : vector<32x64xi32>
    %68 = tpu.iota {dimensions = array<i32: 1>} : vector<32x64xi32>
    %c2_i32_13 = arith.constant 2 : i32
    %69 = vector.broadcast %c2_i32_13 : i32 to vector<32x64xi32>
    %70 = arith.muli %69, %67 : vector<32x64xi32>
    %c0_i32 = arith.constant 0 : i32
    %71 = vector.broadcast %c0_i32 : i32 to vector<32x64xi32>
    %72 = arith.addi %70, %71 : vector<32x64xi32>
    %73 = arith.cmpi eq, %68, %72 : vector<32x64xi32>
    %c32_i32_14 = arith.constant 32 : i32
    %74 = vector.broadcast %c32_i32_14 : i32 to vector<32x64xi32>
    %75 = arith.cmpi slt, %67, %74 : vector<32x64xi32>
    %76 = arith.andi %73, %75 : vector<32x64xi1>
    %c64_i32_15 = arith.constant 64 : i32
    %77 = vector.broadcast %c64_i32_15 : i32 to vector<32x64xi32>
    %78 = arith.cmpi slt, %68, %77 : vector<32x64xi32>
    %79 = arith.andi %76, %78 : vector<32x64xi1>
    %80 = arith.extui %79 : vector<32x64xi1> to vector<32x64xi32>
    %81 = arith.sitofp %80 : vector<32x64xi32> to vector<32x64xf32>
    %82 = arith.truncf %81 : vector<32x64xf32> to vector<32x64xbf16>
    %83 = arith.truncf %66 : vector<64x8xf32> to vector<64x8xbf16>
    %cst_16 = arith.constant dense<0.000000e+00> : vector<32x8xf32>
    %84 = tpu.matmul %82, %83, %cst_16 {dimension_numbers = #tpu.dot_dimension_numbers<[1], [0], [0], [1], [0, 0, 1, 1], [], []>} : vector<32x64xbf16>, vector<64x8xbf16>, vector<32x8xf32> -> vector<32x8xf32>
    %85 = arith.addf %65, %84 : vector<32x8xf32>
    %86 = vector.extract_strided_slice %6 {offsets = [0, 32], sizes = [64, 8], strides = [1, 1]} : vector<64x56xf32> to vector<64x8xf32>
    %87 = tpu.iota {dimensions = array<i32: 0>} : vector<32x64xi32>
    %88 = tpu.iota {dimensions = array<i32: 1>} : vector<32x64xi32>
    %c2_i32_17 = arith.constant 2 : i32
    %89 = vector.broadcast %c2_i32_17 : i32 to vector<32x64xi32>
    %90 = arith.muli %89, %87 : vector<32x64xi32>
    %c1_i32 = arith.constant 1 : i32
    %91 = vector.broadcast %c1_i32 : i32 to vector<32x64xi32>
    %92 = arith.addi %90, %91 : vector<32x64xi32>
    %93 = arith.cmpi eq, %88, %92 : vector<32x64xi32>
    %c32_i32_18 = arith.constant 32 : i32
    %94 = vector.broadcast %c32_i32_18 : i32 to vector<32x64xi32>
    %95 = arith.cmpi slt, %87, %94 : vector<32x64xi32>
    %96 = arith.andi %93, %95 : vector<32x64xi1>
    %c64_i32_19 = arith.constant 64 : i32
    %97 = vector.broadcast %c64_i32_19 : i32 to vector<32x64xi32>
    %98 = arith.cmpi slt, %88, %97 : vector<32x64xi32>
    %99 = arith.andi %96, %98 : vector<32x64xi1>
    %100 = arith.extui %99 : vector<32x64xi1> to vector<32x64xi32>
    %101 = arith.sitofp %100 : vector<32x64xi32> to vector<32x64xf32>
    %102 = arith.truncf %101 : vector<32x64xf32> to vector<32x64xbf16>
    %103 = arith.truncf %86 : vector<64x8xf32> to vector<64x8xbf16>
    %cst_20 = arith.constant dense<0.000000e+00> : vector<32x8xf32>
    %104 = tpu.matmul %102, %103, %cst_20 {dimension_numbers = #tpu.dot_dimension_numbers<[1], [0], [0], [1], [0, 0, 1, 1], [], []>} : vector<32x64xbf16>, vector<64x8xbf16>, vector<32x8xf32> -> vector<32x8xf32>
    %105 = arith.addf %85, %104 : vector<32x8xf32>
    %106 = vector.extract_strided_slice %6 {offsets = [0, 40], sizes = [64, 8], strides = [1, 1]} : vector<64x56xf32> to vector<64x8xf32>
    %107 = tpu.iota {dimensions = array<i32: 0>} : vector<32x64xi32>
    %108 = tpu.iota {dimensions = array<i32: 1>} : vector<32x64xi32>
    %c2_i32_21 = arith.constant 2 : i32
    %109 = vector.broadcast %c2_i32_21 : i32 to vector<32x64xi32>
    %110 = arith.muli %109, %107 : vector<32x64xi32>
    %c2_i32_22 = arith.constant 2 : i32
    %111 = vector.broadcast %c2_i32_22 : i32 to vector<32x64xi32>
    %112 = arith.addi %110, %111 : vector<32x64xi32>
    %113 = arith.cmpi eq, %108, %112 : vector<32x64xi32>
    %c32_i32_23 = arith.constant 32 : i32
    %114 = vector.broadcast %c32_i32_23 : i32 to vector<32x64xi32>
    %115 = arith.cmpi slt, %107, %114 : vector<32x64xi32>
    %116 = arith.andi %113, %115 : vector<32x64xi1>
    %c64_i32_24 = arith.constant 64 : i32
    %117 = vector.broadcast %c64_i32_24 : i32 to vector<32x64xi32>
    %118 = arith.cmpi slt, %108, %117 : vector<32x64xi32>
    %119 = arith.andi %116, %118 : vector<32x64xi1>
    %120 = arith.extui %119 : vector<32x64xi1> to vector<32x64xi32>
    %121 = arith.sitofp %120 : vector<32x64xi32> to vector<32x64xf32>
    %122 = arith.truncf %121 : vector<32x64xf32> to vector<32x64xbf16>
    %123 = arith.truncf %106 : vector<64x8xf32> to vector<64x8xbf16>
    %cst_25 = arith.constant dense<0.000000e+00> : vector<32x8xf32>
    %124 = tpu.matmul %122, %123, %cst_25 {dimension_numbers = #tpu.dot_dimension_numbers<[1], [0], [0], [1], [0, 0, 1, 1], [], []>} : vector<32x64xbf16>, vector<64x8xbf16>, vector<32x8xf32> -> vector<32x8xf32>
    %125 = arith.addf %105, %124 : vector<32x8xf32>
    %126 = vector.extract_strided_slice %6 {offsets = [0, 48], sizes = [64, 8], strides = [1, 1]} : vector<64x56xf32> to vector<64x8xf32>
    %127 = tpu.iota {dimensions = array<i32: 0>} : vector<32x64xi32>
    %128 = tpu.iota {dimensions = array<i32: 1>} : vector<32x64xi32>
    %c2_i32_26 = arith.constant 2 : i32
    %129 = vector.broadcast %c2_i32_26 : i32 to vector<32x64xi32>
    %130 = arith.muli %129, %127 : vector<32x64xi32>
    %c3_i32 = arith.constant 3 : i32
    %131 = vector.broadcast %c3_i32 : i32 to vector<32x64xi32>
    %132 = arith.addi %130, %131 : vector<32x64xi32>
    %133 = arith.cmpi eq, %128, %132 : vector<32x64xi32>
    %c32_i32_27 = arith.constant 32 : i32
    %134 = vector.broadcast %c32_i32_27 : i32 to vector<32x64xi32>
    %135 = arith.cmpi slt, %127, %134 : vector<32x64xi32>
    %136 = arith.andi %133, %135 : vector<32x64xi1>
    %c64_i32_28 = arith.constant 64 : i32
    %137 = vector.broadcast %c64_i32_28 : i32 to vector<32x64xi32>
    %138 = arith.cmpi slt, %128, %137 : vector<32x64xi32>
    %139 = arith.andi %136, %138 : vector<32x64xi1>
    %140 = arith.extui %139 : vector<32x64xi1> to vector<32x64xi32>
    %141 = arith.sitofp %140 : vector<32x64xi32> to vector<32x64xf32>
    %142 = arith.truncf %141 : vector<32x64xf32> to vector<32x64xbf16>
    %143 = arith.truncf %126 : vector<64x8xf32> to vector<64x8xbf16>
    %cst_29 = arith.constant dense<0.000000e+00> : vector<32x8xf32>
    %144 = tpu.matmul %142, %143, %cst_29 {dimension_numbers = #tpu.dot_dimension_numbers<[1], [0], [0], [1], [0, 0, 1, 1], [], []>} : vector<32x64xbf16>, vector<64x8xbf16>, vector<32x8xf32> -> vector<32x8xf32>
    %145 = arith.addf %125, %144 : vector<32x8xf32>
    %c0_30 = arith.constant 0 : index
    %c0_31 = arith.constant 0 : index
    %146 = vector.load %arg3[%c0_30, %c0_31] : memref<1x8xf32, #tpu.memory_space<vmem>>, vector<1x8xf32>
    %147 = vector.broadcast %146 : vector<1x8xf32> to vector<32x8xf32>
    %148 = arith.addf %145, %147 : vector<32x8xf32>
    %149 = math.tanh %148 : vector<32x8xf32>
    %150 = arith.truncf %149 : vector<32x8xf32> to vector<32x8xbf16>
    %151 = tpu.iota {dimensions = array<i32: 0>} : vector<16x1xi32>
    %152 = tpu.iota {dimensions = array<i32: 0>} : vector<16x32xi32>
    %153 = tpu.iota {dimensions = array<i32: 1>} : vector<16x32xi32>
    %c2_i32_32 = arith.constant 2 : i32
    %154 = vector.broadcast %c2_i32_32 : i32 to vector<16x32xi32>
    %155 = arith.muli %154, %152 : vector<16x32xi32>
    %c-1_i32_33 = arith.constant -1 : i32
    %156 = vector.broadcast %c-1_i32_33 : i32 to vector<16x32xi32>
    %157 = arith.addi %155, %156 : vector<16x32xi32>
    %158 = arith.cmpi eq, %153, %157 : vector<16x32xi32>
    %c16_i32 = arith.constant 16 : i32
    %159 = vector.broadcast %c16_i32 : i32 to vector<16x32xi32>
    %160 = arith.cmpi slt, %152, %159 : vector<16x32xi32>
    %161 = arith.andi %158, %160 : vector<16x32xi1>
    %c32_i32_34 = arith.constant 32 : i32
    %162 = vector.broadcast %c32_i32_34 : i32 to vector<16x32xi32>
    %163 = arith.cmpi slt, %153, %162 : vector<16x32xi32>
    %164 = arith.andi %161, %163 : vector<16x32xi1>
    %165 = arith.extui %164 : vector<16x32xi1> to vector<16x32xi32>
    %166 = arith.sitofp %165 : vector<16x32xi32> to vector<16x32xf32>
    %167 = arith.truncf %166 : vector<16x32xf32> to vector<16x32xbf16>
    %cst_35 = arith.constant dense<0.000000e+00> : vector<16x8xf32>
    %168 = tpu.matmul %167, %150, %cst_35 {dimension_numbers = #tpu.dot_dimension_numbers<[1], [0], [0], [1], [0, 0, 1, 1], [], []>} : vector<16x32xbf16>, vector<32x8xbf16>, vector<16x8xf32> -> vector<16x8xf32>
    %c2_i32_36 = arith.constant 2 : i32
    %169 = vector.broadcast %c2_i32_36 : i32 to vector<16x1xi32>
    %170 = arith.muli %169, %151 : vector<16x1xi32>
    %c-1_i32_37 = arith.constant -1 : i32
    %171 = vector.broadcast %c-1_i32_37 : i32 to vector<16x1xi32>
    %172 = arith.addi %170, %171 : vector<16x1xi32>
    %c0_i32_38 = arith.constant 0 : i32
    %173 = vector.broadcast %c0_i32_38 : i32 to vector<16x1xi32>
    %174 = arith.cmpi slt, %172, %173 : vector<16x1xi32>
    %c32_i32_39 = arith.constant 32 : i32
    %175 = vector.broadcast %c32_i32_39 : i32 to vector<16x1xi32>
    %176 = arith.cmpi sge, %172, %175 : vector<16x1xi32>
    %177 = arith.ori %174, %176 : vector<16x1xi1>
    %cst_40 = arith.constant -1.000000e+00 : f32
    %178 = vector.shape_cast %177 : vector<16x1xi1> to vector<16x1xi1>
    %179 = vector.broadcast %178 : vector<16x1xi1> to vector<16x8xi1>
    %180 = vector.broadcast %cst_40 : f32 to vector<16x8xf32>
    %181 = arith.select %179, %180, %168 : vector<16x8xi1>, vector<16x8xf32>
    %182 = tpu.iota {dimensions = array<i32: 0>} : vector<16x32xi32>
    %183 = tpu.iota {dimensions = array<i32: 1>} : vector<16x32xi32>
    %c2_i32_41 = arith.constant 2 : i32
    %184 = vector.broadcast %c2_i32_41 : i32 to vector<16x32xi32>
    %185 = arith.muli %184, %182 : vector<16x32xi32>
    %c0_i32_42 = arith.constant 0 : i32
    %186 = vector.broadcast %c0_i32_42 : i32 to vector<16x32xi32>
    %187 = arith.addi %185, %186 : vector<16x32xi32>
    %188 = arith.cmpi eq, %183, %187 : vector<16x32xi32>
    %c16_i32_43 = arith.constant 16 : i32
    %189 = vector.broadcast %c16_i32_43 : i32 to vector<16x32xi32>
    %190 = arith.cmpi slt, %182, %189 : vector<16x32xi32>
    %191 = arith.andi %188, %190 : vector<16x32xi1>
    %c32_i32_44 = arith.constant 32 : i32
    %192 = vector.broadcast %c32_i32_44 : i32 to vector<16x32xi32>
    %193 = arith.cmpi slt, %183, %192 : vector<16x32xi32>
    %194 = arith.andi %191, %193 : vector<16x32xi1>
    %195 = arith.extui %194 : vector<16x32xi1> to vector<16x32xi32>
    %196 = arith.sitofp %195 : vector<16x32xi32> to vector<16x32xf32>
    %197 = arith.truncf %196 : vector<16x32xf32> to vector<16x32xbf16>
    %cst_45 = arith.constant dense<0.000000e+00> : vector<16x8xf32>
    %198 = tpu.matmul %197, %150, %cst_45 {dimension_numbers = #tpu.dot_dimension_numbers<[1], [0], [0], [1], [0, 0, 1, 1], [], []>} : vector<16x32xbf16>, vector<32x8xbf16>, vector<16x8xf32> -> vector<16x8xf32>
    %c2_i32_46 = arith.constant 2 : i32
    %199 = vector.broadcast %c2_i32_46 : i32 to vector<16x1xi32>
    %200 = arith.muli %199, %151 : vector<16x1xi32>
    %c0_i32_47 = arith.constant 0 : i32
    %201 = vector.broadcast %c0_i32_47 : i32 to vector<16x1xi32>
    %202 = arith.addi %200, %201 : vector<16x1xi32>
    %c0_i32_48 = arith.constant 0 : i32
    %203 = vector.broadcast %c0_i32_48 : i32 to vector<16x1xi32>
    %204 = arith.cmpi slt, %202, %203 : vector<16x1xi32>
    %c32_i32_49 = arith.constant 32 : i32
    %205 = vector.broadcast %c32_i32_49 : i32 to vector<16x1xi32>
    %206 = arith.cmpi sge, %202, %205 : vector<16x1xi32>
    %207 = arith.ori %204, %206 : vector<16x1xi1>
    %cst_50 = arith.constant -1.000000e+00 : f32
    %208 = vector.shape_cast %207 : vector<16x1xi1> to vector<16x1xi1>
    %209 = vector.broadcast %208 : vector<16x1xi1> to vector<16x8xi1>
    %210 = vector.broadcast %cst_50 : f32 to vector<16x8xf32>
    %211 = arith.select %209, %210, %198 : vector<16x8xi1>, vector<16x8xf32>
    %212 = arith.maximumf %181, %211 : vector<16x8xf32>
    %213 = tpu.iota {dimensions = array<i32: 0>} : vector<16x32xi32>
    %214 = tpu.iota {dimensions = array<i32: 1>} : vector<16x32xi32>
    %c2_i32_51 = arith.constant 2 : i32
    %215 = vector.broadcast %c2_i32_51 : i32 to vector<16x32xi32>
    %216 = arith.muli %215, %213 : vector<16x32xi32>
    %c1_i32_52 = arith.constant 1 : i32
    %217 = vector.broadcast %c1_i32_52 : i32 to vector<16x32xi32>
    %218 = arith.addi %216, %217 : vector<16x32xi32>
    %219 = arith.cmpi eq, %214, %218 : vector<16x32xi32>
    %c16_i32_53 = arith.constant 16 : i32
    %220 = vector.broadcast %c16_i32_53 : i32 to vector<16x32xi32>
    %221 = arith.cmpi slt, %213, %220 : vector<16x32xi32>
    %222 = arith.andi %219, %221 : vector<16x32xi1>
    %c32_i32_54 = arith.constant 32 : i32
    %223 = vector.broadcast %c32_i32_54 : i32 to vector<16x32xi32>
    %224 = arith.cmpi slt, %214, %223 : vector<16x32xi32>
    %225 = arith.andi %222, %224 : vector<16x32xi1>
    %226 = arith.extui %225 : vector<16x32xi1> to vector<16x32xi32>
    %227 = arith.sitofp %226 : vector<16x32xi32> to vector<16x32xf32>
    %228 = arith.truncf %227 : vector<16x32xf32> to vector<16x32xbf16>
    %cst_55 = arith.constant dense<0.000000e+00> : vector<16x8xf32>
    %229 = tpu.matmul %228, %150, %cst_55 {dimension_numbers = #tpu.dot_dimension_numbers<[1], [0], [0], [1], [0, 0, 1, 1], [], []>} : vector<16x32xbf16>, vector<32x8xbf16>, vector<16x8xf32> -> vector<16x8xf32>
    %c2_i32_56 = arith.constant 2 : i32
    %230 = vector.broadcast %c2_i32_56 : i32 to vector<16x1xi32>
    %231 = arith.muli %230, %151 : vector<16x1xi32>
    %c1_i32_57 = arith.constant 1 : i32
    %232 = vector.broadcast %c1_i32_57 : i32 to vector<16x1xi32>
    %233 = arith.addi %231, %232 : vector<16x1xi32>
    %c0_i32_58 = arith.constant 0 : i32
    %234 = vector.broadcast %c0_i32_58 : i32 to vector<16x1xi32>
    %235 = arith.cmpi slt, %233, %234 : vector<16x1xi32>
    %c32_i32_59 = arith.constant 32 : i32
    %236 = vector.broadcast %c32_i32_59 : i32 to vector<16x1xi32>
    %237 = arith.cmpi sge, %233, %236 : vector<16x1xi32>
    %238 = arith.ori %235, %237 : vector<16x1xi1>
    %cst_60 = arith.constant -1.000000e+00 : f32
    %239 = vector.shape_cast %238 : vector<16x1xi1> to vector<16x1xi1>
    %240 = vector.broadcast %239 : vector<16x1xi1> to vector<16x8xi1>
    %241 = vector.broadcast %cst_60 : f32 to vector<16x8xf32>
    %242 = arith.select %240, %241, %229 : vector<16x8xi1>, vector<16x8xf32>
    %243 = arith.maximumf %212, %242 : vector<16x8xf32>
    %244 = arith.mulf %243, %243 : vector<16x8xf32>
    %245 = tpu.concatenate %243, %244 in 1 : vector<16x8xf32>, vector<16x8xf32> -> vector<16x16xf32>
    %246 = arith.truncf %245 : vector<16x16xf32> to vector<16x16xbf16>
    %c0_61 = arith.constant 0 : index
    %c0_62 = arith.constant 0 : index
    %247 = vector.load %arg4[%c0_61, %c0_62] : memref<16x24xbf16, #tpu.memory_space<vmem>>, vector<16x24xbf16>
    %cst_63 = arith.constant dense<0.000000e+00> : vector<16x24xf32>
    %248 = tpu.matmul %246, %247, %cst_63 {dimension_numbers = #tpu.dot_dimension_numbers<[1], [0], [0], [1], [0, 0, 1, 1], [], []>} : vector<16x16xbf16>, vector<16x24xbf16>, vector<16x24xf32> -> vector<16x24xf32>
    %249 = vector.extract_strided_slice %248 {offsets = [0, 0], sizes = [16, 8], strides = [1, 1]} : vector<16x24xf32> to vector<16x8xf32>
    %c1_i32_64 = arith.constant 1 : i32
    %250 = tpu.dynamic_rotate %249 by %c1_i32_64 dim 0 : vector<16x8xf32>, i32 -> vector<16x8xf32>
    %c-1_i32_65 = arith.constant -1 : i32
    %251 = vector.broadcast %c-1_i32_65 : i32 to vector<16x1xi32>
    %252 = arith.addi %151, %251 : vector<16x1xi32>
    %c0_i32_66 = arith.constant 0 : i32
    %253 = vector.broadcast %c0_i32_66 : i32 to vector<16x1xi32>
    %254 = arith.cmpi sge, %252, %253 : vector<16x1xi32>
    %c16_i32_67 = arith.constant 16 : i32
    %255 = vector.broadcast %c16_i32_67 : i32 to vector<16x1xi32>
    %256 = arith.cmpi slt, %252, %255 : vector<16x1xi32>
    %257 = arith.andi %254, %256 : vector<16x1xi1>
    %cst_68 = arith.constant 0.000000e+00 : f32
    %258 = vector.shape_cast %257 : vector<16x1xi1> to vector<16x1xi1>
    %259 = vector.broadcast %258 : vector<16x1xi1> to vector<16x8xi1>
    %260 = vector.broadcast %cst_68 : f32 to vector<16x8xf32>
    %261 = arith.select %259, %250, %260 : vector<16x8xi1>, vector<16x8xf32>
    %262 = vector.extract_strided_slice %248 {offsets = [0, 8], sizes = [16, 8], strides = [1, 1]} : vector<16x24xf32> to vector<16x8xf32>
    %263 = arith.addf %261, %262 : vector<16x8xf32>
    %264 = vector.extract_strided_slice %248 {offsets = [0, 16], sizes = [16, 8], strides = [1, 1]} : vector<16x24xf32> to vector<16x8xf32>
    %c15_i32 = arith.constant 15 : i32
    %265 = tpu.dynamic_rotate %264 by %c15_i32 dim 0 : vector<16x8xf32>, i32 -> vector<16x8xf32>
    %c1_i32_69 = arith.constant 1 : i32
    %266 = vector.broadcast %c1_i32_69 : i32 to vector<16x1xi32>
    %267 = arith.addi %151, %266 : vector<16x1xi32>
    %c0_i32_70 = arith.constant 0 : i32
    %268 = vector.broadcast %c0_i32_70 : i32 to vector<16x1xi32>
    %269 = arith.cmpi sge, %267, %268 : vector<16x1xi32>
    %c16_i32_71 = arith.constant 16 : i32
    %270 = vector.broadcast %c16_i32_71 : i32 to vector<16x1xi32>
    %271 = arith.cmpi slt, %267, %270 : vector<16x1xi32>
    %272 = arith.andi %269, %271 : vector<16x1xi1>
    %cst_72 = arith.constant 0.000000e+00 : f32
    %273 = vector.shape_cast %272 : vector<16x1xi1> to vector<16x1xi1>
    %274 = vector.broadcast %273 : vector<16x1xi1> to vector<16x8xi1>
    %275 = vector.broadcast %cst_72 : f32 to vector<16x8xf32>
    %276 = arith.select %274, %265, %275 : vector<16x8xi1>, vector<16x8xf32>
    %277 = arith.addf %263, %276 : vector<16x8xf32>
    %c0_73 = arith.constant 0 : index
    %c0_74 = arith.constant 0 : index
    %278 = vector.load %arg5[%c0_73, %c0_74] : memref<1x8xf32, #tpu.memory_space<vmem>>, vector<1x8xf32>
    %279 = vector.broadcast %278 : vector<1x8xf32> to vector<16x8xf32>
    %280 = arith.addf %277, %279 : vector<16x8xf32>
    %281 = math.tanh %280 : vector<16x8xf32>
    %282 = arith.mulf %281, %281 : vector<16x8xf32>
    %283 = tpu.concatenate %281, %282 in 1 : vector<16x8xf32>, vector<16x8xf32> -> vector<16x16xf32>
    %284 = arith.truncf %283 : vector<16x16xf32> to vector<16x16xbf16>
    %c0_75 = arith.constant 0 : index
    %c0_76 = arith.constant 0 : index
    %285 = vector.load %arg6[%c0_75, %c0_76] : memref<16x24xbf16, #tpu.memory_space<vmem>>, vector<16x24xbf16>
    %cst_77 = arith.constant dense<0.000000e+00> : vector<16x24xf32>
    %286 = tpu.matmul %284, %285, %cst_77 {dimension_numbers = #tpu.dot_dimension_numbers<[1], [0], [0], [1], [0, 0, 1, 1], [], []>} : vector<16x16xbf16>, vector<16x24xbf16>, vector<16x24xf32> -> vector<16x24xf32>
    %287 = vector.extract_strided_slice %286 {offsets = [0, 0], sizes = [16, 8], strides = [1, 1]} : vector<16x24xf32> to vector<16x8xf32>
    %c1_i32_78 = arith.constant 1 : i32
    %288 = tpu.dynamic_rotate %287 by %c1_i32_78 dim 0 : vector<16x8xf32>, i32 -> vector<16x8xf32>
    %c-1_i32_79 = arith.constant -1 : i32
    %289 = vector.broadcast %c-1_i32_79 : i32 to vector<16x1xi32>
    %290 = arith.addi %151, %289 : vector<16x1xi32>
    %c0_i32_80 = arith.constant 0 : i32
    %291 = vector.broadcast %c0_i32_80 : i32 to vector<16x1xi32>
    %292 = arith.cmpi sge, %290, %291 : vector<16x1xi32>
    %c16_i32_81 = arith.constant 16 : i32
    %293 = vector.broadcast %c16_i32_81 : i32 to vector<16x1xi32>
    %294 = arith.cmpi slt, %290, %293 : vector<16x1xi32>
    %295 = arith.andi %292, %294 : vector<16x1xi1>
    %cst_82 = arith.constant 0.000000e+00 : f32
    %296 = vector.shape_cast %295 : vector<16x1xi1> to vector<16x1xi1>
    %297 = vector.broadcast %296 : vector<16x1xi1> to vector<16x8xi1>
    %298 = vector.broadcast %cst_82 : f32 to vector<16x8xf32>
    %299 = arith.select %297, %288, %298 : vector<16x8xi1>, vector<16x8xf32>
    %300 = vector.extract_strided_slice %286 {offsets = [0, 8], sizes = [16, 8], strides = [1, 1]} : vector<16x24xf32> to vector<16x8xf32>
    %301 = arith.addf %299, %300 : vector<16x8xf32>
    %302 = vector.extract_strided_slice %286 {offsets = [0, 16], sizes = [16, 8], strides = [1, 1]} : vector<16x24xf32> to vector<16x8xf32>
    %c15_i32_83 = arith.constant 15 : i32
    %303 = tpu.dynamic_rotate %302 by %c15_i32_83 dim 0 : vector<16x8xf32>, i32 -> vector<16x8xf32>
    %c1_i32_84 = arith.constant 1 : i32
    %304 = vector.broadcast %c1_i32_84 : i32 to vector<16x1xi32>
    %305 = arith.addi %151, %304 : vector<16x1xi32>
    %c0_i32_85 = arith.constant 0 : i32
    %306 = vector.broadcast %c0_i32_85 : i32 to vector<16x1xi32>
    %307 = arith.cmpi sge, %305, %306 : vector<16x1xi32>
    %c16_i32_86 = arith.constant 16 : i32
    %308 = vector.broadcast %c16_i32_86 : i32 to vector<16x1xi32>
    %309 = arith.cmpi slt, %305, %308 : vector<16x1xi32>
    %310 = arith.andi %307, %309 : vector<16x1xi1>
    %cst_87 = arith.constant 0.000000e+00 : f32
    %311 = vector.shape_cast %310 : vector<16x1xi1> to vector<16x1xi1>
    %312 = vector.broadcast %311 : vector<16x1xi1> to vector<16x8xi1>
    %313 = vector.broadcast %cst_87 : f32 to vector<16x8xf32>
    %314 = arith.select %312, %303, %313 : vector<16x8xi1>, vector<16x8xf32>
    %315 = arith.addf %301, %314 : vector<16x8xf32>
    %c0_88 = arith.constant 0 : index
    %c0_89 = arith.constant 0 : index
    %316 = vector.load %arg7[%c0_88, %c0_89] : memref<1x8xf32, #tpu.memory_space<vmem>>, vector<1x8xf32>
    %317 = vector.broadcast %316 : vector<1x8xf32> to vector<16x8xf32>
    %318 = arith.addf %315, %317 : vector<16x8xf32>
    %319 = arith.addf %318, %243 : vector<16x8xf32>
    %320 = math.tanh %319 : vector<16x8xf32>
    %321 = arith.mulf %320, %320 : vector<16x8xf32>
    %322 = tpu.concatenate %320, %321 in 1 : vector<16x8xf32>, vector<16x8xf32> -> vector<16x16xf32>
    %323 = arith.truncf %322 : vector<16x16xf32> to vector<16x16xbf16>
    %c0_90 = arith.constant 0 : index
    %c0_91 = arith.constant 0 : index
    %324 = vector.load %arg8[%c0_90, %c0_91] : memref<16x24xbf16, #tpu.memory_space<vmem>>, vector<16x24xbf16>
    %cst_92 = arith.constant dense<0.000000e+00> : vector<16x24xf32>
    %325 = tpu.matmul %323, %324, %cst_92 {dimension_numbers = #tpu.dot_dimension_numbers<[1], [0], [0], [1], [0, 0, 1, 1], [], []>} : vector<16x16xbf16>, vector<16x24xbf16>, vector<16x24xf32> -> vector<16x24xf32>
    %326 = vector.extract_strided_slice %325 {offsets = [0, 0], sizes = [16, 8], strides = [1, 1]} : vector<16x24xf32> to vector<16x8xf32>
    %c1_i32_93 = arith.constant 1 : i32
    %327 = tpu.dynamic_rotate %326 by %c1_i32_93 dim 0 : vector<16x8xf32>, i32 -> vector<16x8xf32>
    %c-1_i32_94 = arith.constant -1 : i32
    %328 = vector.broadcast %c-1_i32_94 : i32 to vector<16x1xi32>
    %329 = arith.addi %151, %328 : vector<16x1xi32>
    %c0_i32_95 = arith.constant 0 : i32
    %330 = vector.broadcast %c0_i32_95 : i32 to vector<16x1xi32>
    %331 = arith.cmpi sge, %329, %330 : vector<16x1xi32>
    %c16_i32_96 = arith.constant 16 : i32
    %332 = vector.broadcast %c16_i32_96 : i32 to vector<16x1xi32>
    %333 = arith.cmpi slt, %329, %332 : vector<16x1xi32>
    %334 = arith.andi %331, %333 : vector<16x1xi1>
    %cst_97 = arith.constant 0.000000e+00 : f32
    %335 = vector.shape_cast %334 : vector<16x1xi1> to vector<16x1xi1>
    %336 = vector.broadcast %335 : vector<16x1xi1> to vector<16x8xi1>
    %337 = vector.broadcast %cst_97 : f32 to vector<16x8xf32>
    %338 = arith.select %336, %327, %337 : vector<16x8xi1>, vector<16x8xf32>
    %339 = vector.extract_strided_slice %325 {offsets = [0, 8], sizes = [16, 8], strides = [1, 1]} : vector<16x24xf32> to vector<16x8xf32>
    %340 = arith.addf %338, %339 : vector<16x8xf32>
    %341 = vector.extract_strided_slice %325 {offsets = [0, 16], sizes = [16, 8], strides = [1, 1]} : vector<16x24xf32> to vector<16x8xf32>
    %c15_i32_98 = arith.constant 15 : i32
    %342 = tpu.dynamic_rotate %341 by %c15_i32_98 dim 0 : vector<16x8xf32>, i32 -> vector<16x8xf32>
    %c1_i32_99 = arith.constant 1 : i32
    %343 = vector.broadcast %c1_i32_99 : i32 to vector<16x1xi32>
    %344 = arith.addi %151, %343 : vector<16x1xi32>
    %c0_i32_100 = arith.constant 0 : i32
    %345 = vector.broadcast %c0_i32_100 : i32 to vector<16x1xi32>
    %346 = arith.cmpi sge, %344, %345 : vector<16x1xi32>
    %c16_i32_101 = arith.constant 16 : i32
    %347 = vector.broadcast %c16_i32_101 : i32 to vector<16x1xi32>
    %348 = arith.cmpi slt, %344, %347 : vector<16x1xi32>
    %349 = arith.andi %346, %348 : vector<16x1xi1>
    %cst_102 = arith.constant 0.000000e+00 : f32
    %350 = vector.shape_cast %349 : vector<16x1xi1> to vector<16x1xi1>
    %351 = vector.broadcast %350 : vector<16x1xi1> to vector<16x8xi1>
    %352 = vector.broadcast %cst_102 : f32 to vector<16x8xf32>
    %353 = arith.select %351, %342, %352 : vector<16x8xi1>, vector<16x8xf32>
    %354 = arith.addf %340, %353 : vector<16x8xf32>
    %c0_103 = arith.constant 0 : index
    %c0_104 = arith.constant 0 : index
    %355 = vector.load %arg9[%c0_103, %c0_104] : memref<1x8xf32, #tpu.memory_space<vmem>>, vector<1x8xf32>
    %356 = vector.broadcast %355 : vector<1x8xf32> to vector<16x8xf32>
    %357 = arith.addf %354, %356 : vector<16x8xf32>
    %358 = math.tanh %357 : vector<16x8xf32>
    %359 = arith.mulf %358, %358 : vector<16x8xf32>
    %360 = tpu.concatenate %358, %359 in 1 : vector<16x8xf32>, vector<16x8xf32> -> vector<16x16xf32>
    %361 = arith.truncf %360 : vector<16x16xf32> to vector<16x16xbf16>
    %c0_105 = arith.constant 0 : index
    %c0_106 = arith.constant 0 : index
    %362 = vector.load %arg10[%c0_105, %c0_106] : memref<16x24xbf16, #tpu.memory_space<vmem>>, vector<16x24xbf16>
    %cst_107 = arith.constant dense<0.000000e+00> : vector<16x24xf32>
    %363 = tpu.matmul %361, %362, %cst_107 {dimension_numbers = #tpu.dot_dimension_numbers<[1], [0], [0], [1], [0, 0, 1, 1], [], []>} : vector<16x16xbf16>, vector<16x24xbf16>, vector<16x24xf32> -> vector<16x24xf32>
    %364 = vector.extract_strided_slice %363 {offsets = [0, 0], sizes = [16, 8], strides = [1, 1]} : vector<16x24xf32> to vector<16x8xf32>
    %c1_i32_108 = arith.constant 1 : i32
    %365 = tpu.dynamic_rotate %364 by %c1_i32_108 dim 0 : vector<16x8xf32>, i32 -> vector<16x8xf32>
    %c-1_i32_109 = arith.constant -1 : i32
    %366 = vector.broadcast %c-1_i32_109 : i32 to vector<16x1xi32>
    %367 = arith.addi %151, %366 : vector<16x1xi32>
    %c0_i32_110 = arith.constant 0 : i32
    %368 = vector.broadcast %c0_i32_110 : i32 to vector<16x1xi32>
    %369 = arith.cmpi sge, %367, %368 : vector<16x1xi32>
    %c16_i32_111 = arith.constant 16 : i32
    %370 = vector.broadcast %c16_i32_111 : i32 to vector<16x1xi32>
    %371 = arith.cmpi slt, %367, %370 : vector<16x1xi32>
    %372 = arith.andi %369, %371 : vector<16x1xi1>
    %cst_112 = arith.constant 0.000000e+00 : f32
    %373 = vector.shape_cast %372 : vector<16x1xi1> to vector<16x1xi1>
    %374 = vector.broadcast %373 : vector<16x1xi1> to vector<16x8xi1>
    %375 = vector.broadcast %cst_112 : f32 to vector<16x8xf32>
    %376 = arith.select %374, %365, %375 : vector<16x8xi1>, vector<16x8xf32>
    %377 = vector.extract_strided_slice %363 {offsets = [0, 8], sizes = [16, 8], strides = [1, 1]} : vector<16x24xf32> to vector<16x8xf32>
    %378 = arith.addf %376, %377 : vector<16x8xf32>
    %379 = vector.extract_strided_slice %363 {offsets = [0, 16], sizes = [16, 8], strides = [1, 1]} : vector<16x24xf32> to vector<16x8xf32>
    %c15_i32_113 = arith.constant 15 : i32
    %380 = tpu.dynamic_rotate %379 by %c15_i32_113 dim 0 : vector<16x8xf32>, i32 -> vector<16x8xf32>
    %c1_i32_114 = arith.constant 1 : i32
    %381 = vector.broadcast %c1_i32_114 : i32 to vector<16x1xi32>
    %382 = arith.addi %151, %381 : vector<16x1xi32>
    %c0_i32_115 = arith.constant 0 : i32
    %383 = vector.broadcast %c0_i32_115 : i32 to vector<16x1xi32>
    %384 = arith.cmpi sge, %382, %383 : vector<16x1xi32>
    %c16_i32_116 = arith.constant 16 : i32
    %385 = vector.broadcast %c16_i32_116 : i32 to vector<16x1xi32>
    %386 = arith.cmpi slt, %382, %385 : vector<16x1xi32>
    %387 = arith.andi %384, %386 : vector<16x1xi1>
    %cst_117 = arith.constant 0.000000e+00 : f32
    %388 = vector.shape_cast %387 : vector<16x1xi1> to vector<16x1xi1>
    %389 = vector.broadcast %388 : vector<16x1xi1> to vector<16x8xi1>
    %390 = vector.broadcast %cst_117 : f32 to vector<16x8xf32>
    %391 = arith.select %389, %380, %390 : vector<16x8xi1>, vector<16x8xf32>
    %392 = arith.addf %378, %391 : vector<16x8xf32>
    %c0_118 = arith.constant 0 : index
    %c0_119 = arith.constant 0 : index
    %393 = vector.load %arg11[%c0_118, %c0_119] : memref<1x8xf32, #tpu.memory_space<vmem>>, vector<1x8xf32>
    %394 = vector.broadcast %393 : vector<1x8xf32> to vector<16x8xf32>
    %395 = arith.addf %392, %394 : vector<16x8xf32>
    %396 = arith.addf %395, %320 : vector<16x8xf32>
    %397 = math.tanh %396 : vector<16x8xf32>
    %398 = arith.mulf %397, %397 : vector<16x8xf32>
    %399 = tpu.concatenate %397, %398 in 1 : vector<16x8xf32>, vector<16x8xf32> -> vector<16x16xf32>
    %400 = arith.truncf %399 : vector<16x16xf32> to vector<16x16xbf16>
    %c0_120 = arith.constant 0 : index
    %c0_121 = arith.constant 0 : index
    %401 = vector.load %arg12[%c0_120, %c0_121] : memref<16x48xbf16, #tpu.memory_space<vmem>>, vector<16x48xbf16>
    %cst_122 = arith.constant dense<0.000000e+00> : vector<16x48xf32>
    %402 = tpu.matmul %400, %401, %cst_122 {dimension_numbers = #tpu.dot_dimension_numbers<[1], [0], [0], [1], [0, 0, 1, 1], [], []>} : vector<16x16xbf16>, vector<16x48xbf16>, vector<16x48xf32> -> vector<16x48xf32>
    %403 = vector.extract_strided_slice %402 {offsets = [0, 0], sizes = [16, 16], strides = [1, 1]} : vector<16x48xf32> to vector<16x16xf32>
    %404 = tpu.iota {dimensions = array<i32: 0>} : vector<16x16xi32>
    %405 = tpu.iota {dimensions = array<i32: 1>} : vector<16x16xi32>
    %c2_i32_123 = arith.constant 2 : i32
    %406 = vector.broadcast %c2_i32_123 : i32 to vector<16x16xi32>
    %407 = arith.muli %406, %404 : vector<16x16xi32>
    %c-1_i32_124 = arith.constant -1 : i32
    %408 = vector.broadcast %c-1_i32_124 : i32 to vector<16x16xi32>
    %409 = arith.addi %407, %408 : vector<16x16xi32>
    %410 = arith.cmpi eq, %405, %409 : vector<16x16xi32>
    %c8_i32 = arith.constant 8 : i32
    %411 = vector.broadcast %c8_i32 : i32 to vector<16x16xi32>
    %412 = arith.cmpi slt, %404, %411 : vector<16x16xi32>
    %413 = arith.andi %410, %412 : vector<16x16xi1>
    %c16_i32_125 = arith.constant 16 : i32
    %414 = vector.broadcast %c16_i32_125 : i32 to vector<16x16xi32>
    %415 = arith.cmpi slt, %405, %414 : vector<16x16xi32>
    %416 = arith.andi %413, %415 : vector<16x16xi1>
    %417 = arith.extui %416 : vector<16x16xi1> to vector<16x16xi32>
    %418 = arith.sitofp %417 : vector<16x16xi32> to vector<16x16xf32>
    %419 = arith.truncf %418 : vector<16x16xf32> to vector<16x16xbf16>
    %420 = arith.truncf %403 : vector<16x16xf32> to vector<16x16xbf16>
    %cst_126 = arith.constant dense<0.000000e+00> : vector<16x16xf32>
    %421 = tpu.matmul %419, %420, %cst_126 {dimension_numbers = #tpu.dot_dimension_numbers<[1], [0], [0], [1], [0, 0, 1, 1], [], []>} : vector<16x16xbf16>, vector<16x16xbf16>, vector<16x16xf32> -> vector<16x16xf32>
    %422 = vector.extract_strided_slice %402 {offsets = [0, 16], sizes = [16, 16], strides = [1, 1]} : vector<16x48xf32> to vector<16x16xf32>
    %423 = tpu.iota {dimensions = array<i32: 0>} : vector<16x16xi32>
    %424 = tpu.iota {dimensions = array<i32: 1>} : vector<16x16xi32>
    %c2_i32_127 = arith.constant 2 : i32
    %425 = vector.broadcast %c2_i32_127 : i32 to vector<16x16xi32>
    %426 = arith.muli %425, %423 : vector<16x16xi32>
    %c0_i32_128 = arith.constant 0 : i32
    %427 = vector.broadcast %c0_i32_128 : i32 to vector<16x16xi32>
    %428 = arith.addi %426, %427 : vector<16x16xi32>
    %429 = arith.cmpi eq, %424, %428 : vector<16x16xi32>
    %c8_i32_129 = arith.constant 8 : i32
    %430 = vector.broadcast %c8_i32_129 : i32 to vector<16x16xi32>
    %431 = arith.cmpi slt, %423, %430 : vector<16x16xi32>
    %432 = arith.andi %429, %431 : vector<16x16xi1>
    %c16_i32_130 = arith.constant 16 : i32
    %433 = vector.broadcast %c16_i32_130 : i32 to vector<16x16xi32>
    %434 = arith.cmpi slt, %424, %433 : vector<16x16xi32>
    %435 = arith.andi %432, %434 : vector<16x16xi1>
    %436 = arith.extui %435 : vector<16x16xi1> to vector<16x16xi32>
    %437 = arith.sitofp %436 : vector<16x16xi32> to vector<16x16xf32>
    %438 = arith.truncf %437 : vector<16x16xf32> to vector<16x16xbf16>
    %439 = arith.truncf %422 : vector<16x16xf32> to vector<16x16xbf16>
    %cst_131 = arith.constant dense<0.000000e+00> : vector<16x16xf32>
    %440 = tpu.matmul %438, %439, %cst_131 {dimension_numbers = #tpu.dot_dimension_numbers<[1], [0], [0], [1], [0, 0, 1, 1], [], []>} : vector<16x16xbf16>, vector<16x16xbf16>, vector<16x16xf32> -> vector<16x16xf32>
    %441 = arith.addf %421, %440 : vector<16x16xf32>
    %442 = vector.extract_strided_slice %402 {offsets = [0, 32], sizes = [16, 16], strides = [1, 1]} : vector<16x48xf32> to vector<16x16xf32>
    %443 = tpu.iota {dimensions = array<i32: 0>} : vector<16x16xi32>
    %444 = tpu.iota {dimensions = array<i32: 1>} : vector<16x16xi32>
    %c2_i32_132 = arith.constant 2 : i32
    %445 = vector.broadcast %c2_i32_132 : i32 to vector<16x16xi32>
    %446 = arith.muli %445, %443 : vector<16x16xi32>
    %c1_i32_133 = arith.constant 1 : i32
    %447 = vector.broadcast %c1_i32_133 : i32 to vector<16x16xi32>
    %448 = arith.addi %446, %447 : vector<16x16xi32>
    %449 = arith.cmpi eq, %444, %448 : vector<16x16xi32>
    %c8_i32_134 = arith.constant 8 : i32
    %450 = vector.broadcast %c8_i32_134 : i32 to vector<16x16xi32>
    %451 = arith.cmpi slt, %443, %450 : vector<16x16xi32>
    %452 = arith.andi %449, %451 : vector<16x16xi1>
    %c16_i32_135 = arith.constant 16 : i32
    %453 = vector.broadcast %c16_i32_135 : i32 to vector<16x16xi32>
    %454 = arith.cmpi slt, %444, %453 : vector<16x16xi32>
    %455 = arith.andi %452, %454 : vector<16x16xi1>
    %456 = arith.extui %455 : vector<16x16xi1> to vector<16x16xi32>
    %457 = arith.sitofp %456 : vector<16x16xi32> to vector<16x16xf32>
    %458 = arith.truncf %457 : vector<16x16xf32> to vector<16x16xbf16>
    %459 = arith.truncf %442 : vector<16x16xf32> to vector<16x16xbf16>
    %cst_136 = arith.constant dense<0.000000e+00> : vector<16x16xf32>
    %460 = tpu.matmul %458, %459, %cst_136 {dimension_numbers = #tpu.dot_dimension_numbers<[1], [0], [0], [1], [0, 0, 1, 1], [], []>} : vector<16x16xbf16>, vector<16x16xbf16>, vector<16x16xf32> -> vector<16x16xf32>
    %461 = arith.addf %441, %460 : vector<16x16xf32>
    %c0_137 = arith.constant 0 : index
    %c0_138 = arith.constant 0 : index
    %462 = vector.load %arg13[%c0_137, %c0_138] : memref<1x16xf32, #tpu.memory_space<vmem>>, vector<1x16xf32>
    %463 = vector.broadcast %462 : vector<1x16xf32> to vector<16x16xf32>
    %464 = arith.addf %461, %463 : vector<16x16xf32>
    %465 = math.tanh %464 : vector<16x16xf32>
    %466 = arith.mulf %465, %465 : vector<16x16xf32>
    %467 = tpu.concatenate %465, %466 in 1 : vector<16x16xf32>, vector<16x16xf32> -> vector<16x32xf32>
    %468 = arith.truncf %467 : vector<16x32xf32> to vector<16x32xbf16>
    %c0_139 = arith.constant 0 : index
    %c0_140 = arith.constant 0 : index
    %469 = vector.load %arg14[%c0_139, %c0_140] : memref<32x48xbf16, #tpu.memory_space<vmem>>, vector<32x48xbf16>
    %cst_141 = arith.constant dense<0.000000e+00> : vector<16x48xf32>
    %470 = tpu.matmul %468, %469, %cst_141 {dimension_numbers = #tpu.dot_dimension_numbers<[1], [0], [0], [1], [0, 0, 1, 1], [], []>} : vector<16x32xbf16>, vector<32x48xbf16>, vector<16x48xf32> -> vector<16x48xf32>
    %471 = vector.extract_strided_slice %470 {offsets = [0, 0], sizes = [16, 16], strides = [1, 1]} : vector<16x48xf32> to vector<16x16xf32>
    %c1_i32_142 = arith.constant 1 : i32
    %472 = tpu.dynamic_rotate %471 by %c1_i32_142 dim 0 : vector<16x16xf32>, i32 -> vector<16x16xf32>
    %c-1_i32_143 = arith.constant -1 : i32
    %473 = vector.broadcast %c-1_i32_143 : i32 to vector<16x1xi32>
    %474 = arith.addi %151, %473 : vector<16x1xi32>
    %c0_i32_144 = arith.constant 0 : i32
    %475 = vector.broadcast %c0_i32_144 : i32 to vector<16x1xi32>
    %476 = arith.cmpi sge, %474, %475 : vector<16x1xi32>
    %c8_i32_145 = arith.constant 8 : i32
    %477 = vector.broadcast %c8_i32_145 : i32 to vector<16x1xi32>
    %478 = arith.cmpi slt, %474, %477 : vector<16x1xi32>
    %479 = arith.andi %476, %478 : vector<16x1xi1>
    %cst_146 = arith.constant 0.000000e+00 : f32
    %480 = vector.shape_cast %479 : vector<16x1xi1> to vector<16x1xi1>
    %481 = vector.broadcast %480 : vector<16x1xi1> to vector<16x16xi1>
    %482 = vector.broadcast %cst_146 : f32 to vector<16x16xf32>
    %483 = arith.select %481, %472, %482 : vector<16x16xi1>, vector<16x16xf32>
    %484 = vector.extract_strided_slice %470 {offsets = [0, 16], sizes = [16, 16], strides = [1, 1]} : vector<16x48xf32> to vector<16x16xf32>
    %485 = arith.addf %483, %484 : vector<16x16xf32>
    %486 = vector.extract_strided_slice %470 {offsets = [0, 32], sizes = [16, 16], strides = [1, 1]} : vector<16x48xf32> to vector<16x16xf32>
    %c15_i32_147 = arith.constant 15 : i32
    %487 = tpu.dynamic_rotate %486 by %c15_i32_147 dim 0 : vector<16x16xf32>, i32 -> vector<16x16xf32>
    %c1_i32_148 = arith.constant 1 : i32
    %488 = vector.broadcast %c1_i32_148 : i32 to vector<16x1xi32>
    %489 = arith.addi %151, %488 : vector<16x1xi32>
    %c0_i32_149 = arith.constant 0 : i32
    %490 = vector.broadcast %c0_i32_149 : i32 to vector<16x1xi32>
    %491 = arith.cmpi sge, %489, %490 : vector<16x1xi32>
    %c8_i32_150 = arith.constant 8 : i32
    %492 = vector.broadcast %c8_i32_150 : i32 to vector<16x1xi32>
    %493 = arith.cmpi slt, %489, %492 : vector<16x1xi32>
    %494 = arith.andi %491, %493 : vector<16x1xi1>
    %cst_151 = arith.constant 0.000000e+00 : f32
    %495 = vector.shape_cast %494 : vector<16x1xi1> to vector<16x1xi1>
    %496 = vector.broadcast %495 : vector<16x1xi1> to vector<16x16xi1>
    %497 = vector.broadcast %cst_151 : f32 to vector<16x16xf32>
    %498 = arith.select %496, %487, %497 : vector<16x16xi1>, vector<16x16xf32>
    %499 = arith.addf %485, %498 : vector<16x16xf32>
    %c0_152 = arith.constant 0 : index
    %c0_153 = arith.constant 0 : index
    %500 = vector.load %arg15[%c0_152, %c0_153] : memref<1x16xf32, #tpu.memory_space<vmem>>, vector<1x16xf32>
    %501 = vector.broadcast %500 : vector<1x16xf32> to vector<16x16xf32>
    %502 = arith.addf %499, %501 : vector<16x16xf32>
    %503 = arith.truncf %397 : vector<16x8xf32> to vector<16x8xbf16>
    %c0_154 = arith.constant 0 : index
    %c0_155 = arith.constant 0 : index
    %504 = vector.load %arg16[%c0_154, %c0_155] : memref<8x16xbf16, #tpu.memory_space<vmem>>, vector<8x16xbf16>
    %cst_156 = arith.constant dense<0.000000e+00> : vector<16x16xf32>
    %505 = tpu.matmul %503, %504, %cst_156 {dimension_numbers = #tpu.dot_dimension_numbers<[1], [0], [0], [1], [0, 0, 1, 1], [], []>} : vector<16x8xbf16>, vector<8x16xbf16>, vector<16x16xf32> -> vector<16x16xf32>
    %506 = arith.truncf %505 : vector<16x16xf32> to vector<16x16xbf16>
    %cst_157 = arith.constant dense<0.000000e+00> : vector<16x16xf32>
    %507 = tpu.matmul %438, %506, %cst_157 {dimension_numbers = #tpu.dot_dimension_numbers<[1], [0], [0], [1], [0, 0, 1, 1], [], []>} : vector<16x16xbf16>, vector<16x16xbf16>, vector<16x16xf32> -> vector<16x16xf32>
    %508 = arith.addf %502, %507 : vector<16x16xf32>
    %509 = math.tanh %508 : vector<16x16xf32>
    %c8_i32_158 = arith.constant 8 : i32
    %510 = vector.broadcast %c8_i32_158 : i32 to vector<16x1xi32>
    %511 = arith.cmpi slt, %151, %510 : vector<16x1xi32>
    %cst_159 = arith.constant 0.000000e+00 : f32
    %512 = vector.shape_cast %511 : vector<16x1xi1> to vector<16x1xi1>
    %513 = vector.broadcast %512 : vector<16x1xi1> to vector<16x16xi1>
    %514 = vector.broadcast %cst_159 : f32 to vector<16x16xf32>
    %515 = arith.select %513, %509, %514 : vector<16x16xi1>, vector<16x16xf32>
    %516 = arith.mulf %515, %515 : vector<16x16xf32>
    %517 = tpu.concatenate %515, %516 in 1 : vector<16x16xf32>, vector<16x16xf32> -> vector<16x32xf32>
    %518 = arith.truncf %517 : vector<16x32xf32> to vector<16x32xbf16>
    %c0_160 = arith.constant 0 : index
    %c0_161 = arith.constant 0 : index
    %519 = vector.load %arg17[%c0_160, %c0_161] : memref<32x48xbf16, #tpu.memory_space<vmem>>, vector<32x48xbf16>
    %cst_162 = arith.constant dense<0.000000e+00> : vector<16x48xf32>
    %520 = tpu.matmul %518, %519, %cst_162 {dimension_numbers = #tpu.dot_dimension_numbers<[1], [0], [0], [1], [0, 0, 1, 1], [], []>} : vector<16x32xbf16>, vector<32x48xbf16>, vector<16x48xf32> -> vector<16x48xf32>
    %521 = vector.extract_strided_slice %520 {offsets = [0, 0], sizes = [16, 16], strides = [1, 1]} : vector<16x48xf32> to vector<16x16xf32>
    %c1_i32_163 = arith.constant 1 : i32
    %522 = tpu.dynamic_rotate %521 by %c1_i32_163 dim 0 : vector<16x16xf32>, i32 -> vector<16x16xf32>
    %c-1_i32_164 = arith.constant -1 : i32
    %523 = vector.broadcast %c-1_i32_164 : i32 to vector<16x1xi32>
    %524 = arith.addi %151, %523 : vector<16x1xi32>
    %c0_i32_165 = arith.constant 0 : i32
    %525 = vector.broadcast %c0_i32_165 : i32 to vector<16x1xi32>
    %526 = arith.cmpi sge, %524, %525 : vector<16x1xi32>
    %c8_i32_166 = arith.constant 8 : i32
    %527 = vector.broadcast %c8_i32_166 : i32 to vector<16x1xi32>
    %528 = arith.cmpi slt, %524, %527 : vector<16x1xi32>
    %529 = arith.andi %526, %528 : vector<16x1xi1>
    %cst_167 = arith.constant 0.000000e+00 : f32
    %530 = vector.shape_cast %529 : vector<16x1xi1> to vector<16x1xi1>
    %531 = vector.broadcast %530 : vector<16x1xi1> to vector<16x16xi1>
    %532 = vector.broadcast %cst_167 : f32 to vector<16x16xf32>
    %533 = arith.select %531, %522, %532 : vector<16x16xi1>, vector<16x16xf32>
    %534 = vector.extract_strided_slice %520 {offsets = [0, 16], sizes = [16, 16], strides = [1, 1]} : vector<16x48xf32> to vector<16x16xf32>
    %535 = arith.addf %533, %534 : vector<16x16xf32>
    %536 = vector.extract_strided_slice %520 {offsets = [0, 32], sizes = [16, 16], strides = [1, 1]} : vector<16x48xf32> to vector<16x16xf32>
    %c15_i32_168 = arith.constant 15 : i32
    %537 = tpu.dynamic_rotate %536 by %c15_i32_168 dim 0 : vector<16x16xf32>, i32 -> vector<16x16xf32>
    %c1_i32_169 = arith.constant 1 : i32
    %538 = vector.broadcast %c1_i32_169 : i32 to vector<16x1xi32>
    %539 = arith.addi %151, %538 : vector<16x1xi32>
    %c0_i32_170 = arith.constant 0 : i32
    %540 = vector.broadcast %c0_i32_170 : i32 to vector<16x1xi32>
    %541 = arith.cmpi sge, %539, %540 : vector<16x1xi32>
    %c8_i32_171 = arith.constant 8 : i32
    %542 = vector.broadcast %c8_i32_171 : i32 to vector<16x1xi32>
    %543 = arith.cmpi slt, %539, %542 : vector<16x1xi32>
    %544 = arith.andi %541, %543 : vector<16x1xi1>
    %cst_172 = arith.constant 0.000000e+00 : f32
    %545 = vector.shape_cast %544 : vector<16x1xi1> to vector<16x1xi1>
    %546 = vector.broadcast %545 : vector<16x1xi1> to vector<16x16xi1>
    %547 = vector.broadcast %cst_172 : f32 to vector<16x16xf32>
    %548 = arith.select %546, %537, %547 : vector<16x16xi1>, vector<16x16xf32>
    %549 = arith.addf %535, %548 : vector<16x16xf32>
    %c0_173 = arith.constant 0 : index
    %c0_174 = arith.constant 0 : index
    %550 = vector.load %arg18[%c0_173, %c0_174] : memref<1x16xf32, #tpu.memory_space<vmem>>, vector<1x16xf32>
    %551 = vector.broadcast %550 : vector<1x16xf32> to vector<16x16xf32>
    %552 = arith.addf %549, %551 : vector<16x16xf32>
    %553 = math.tanh %552 : vector<16x16xf32>
    %554 = arith.mulf %553, %553 : vector<16x16xf32>
    %555 = tpu.concatenate %553, %554 in 1 : vector<16x16xf32>, vector<16x16xf32> -> vector<16x32xf32>
    %556 = arith.truncf %555 : vector<16x32xf32> to vector<16x32xbf16>
    %c0_175 = arith.constant 0 : index
    %c0_176 = arith.constant 0 : index
    %557 = vector.load %arg19[%c0_175, %c0_176] : memref<32x48xbf16, #tpu.memory_space<vmem>>, vector<32x48xbf16>
    %cst_177 = arith.constant dense<0.000000e+00> : vector<16x48xf32>
    %558 = tpu.matmul %556, %557, %cst_177 {dimension_numbers = #tpu.dot_dimension_numbers<[1], [0], [0], [1], [0, 0, 1, 1], [], []>} : vector<16x32xbf16>, vector<32x48xbf16>, vector<16x48xf32> -> vector<16x48xf32>
    %559 = vector.extract_strided_slice %558 {offsets = [0, 0], sizes = [16, 16], strides = [1, 1]} : vector<16x48xf32> to vector<16x16xf32>
    %c1_i32_178 = arith.constant 1 : i32
    %560 = tpu.dynamic_rotate %559 by %c1_i32_178 dim 0 : vector<16x16xf32>, i32 -> vector<16x16xf32>
    %c-1_i32_179 = arith.constant -1 : i32
    %561 = vector.broadcast %c-1_i32_179 : i32 to vector<16x1xi32>
    %562 = arith.addi %151, %561 : vector<16x1xi32>
    %c0_i32_180 = arith.constant 0 : i32
    %563 = vector.broadcast %c0_i32_180 : i32 to vector<16x1xi32>
    %564 = arith.cmpi sge, %562, %563 : vector<16x1xi32>
    %c8_i32_181 = arith.constant 8 : i32
    %565 = vector.broadcast %c8_i32_181 : i32 to vector<16x1xi32>
    %566 = arith.cmpi slt, %562, %565 : vector<16x1xi32>
    %567 = arith.andi %564, %566 : vector<16x1xi1>
    %cst_182 = arith.constant 0.000000e+00 : f32
    %568 = vector.shape_cast %567 : vector<16x1xi1> to vector<16x1xi1>
    %569 = vector.broadcast %568 : vector<16x1xi1> to vector<16x16xi1>
    %570 = vector.broadcast %cst_182 : f32 to vector<16x16xf32>
    %571 = arith.select %569, %560, %570 : vector<16x16xi1>, vector<16x16xf32>
    %572 = vector.extract_strided_slice %558 {offsets = [0, 16], sizes = [16, 16], strides = [1, 1]} : vector<16x48xf32> to vector<16x16xf32>
    %573 = arith.addf %571, %572 : vector<16x16xf32>
    %574 = vector.extract_strided_slice %558 {offsets = [0, 32], sizes = [16, 16], strides = [1, 1]} : vector<16x48xf32> to vector<16x16xf32>
    %c15_i32_183 = arith.constant 15 : i32
    %575 = tpu.dynamic_rotate %574 by %c15_i32_183 dim 0 : vector<16x16xf32>, i32 -> vector<16x16xf32>
    %c1_i32_184 = arith.constant 1 : i32
    %576 = vector.broadcast %c1_i32_184 : i32 to vector<16x1xi32>
    %577 = arith.addi %151, %576 : vector<16x1xi32>
    %c0_i32_185 = arith.constant 0 : i32
    %578 = vector.broadcast %c0_i32_185 : i32 to vector<16x1xi32>
    %579 = arith.cmpi sge, %577, %578 : vector<16x1xi32>
    %c8_i32_186 = arith.constant 8 : i32
    %580 = vector.broadcast %c8_i32_186 : i32 to vector<16x1xi32>
    %581 = arith.cmpi slt, %577, %580 : vector<16x1xi32>
    %582 = arith.andi %579, %581 : vector<16x1xi1>
    %cst_187 = arith.constant 0.000000e+00 : f32
    %583 = vector.shape_cast %582 : vector<16x1xi1> to vector<16x1xi1>
    %584 = vector.broadcast %583 : vector<16x1xi1> to vector<16x16xi1>
    %585 = vector.broadcast %cst_187 : f32 to vector<16x16xf32>
    %586 = arith.select %584, %575, %585 : vector<16x16xi1>, vector<16x16xf32>
    %587 = arith.addf %573, %586 : vector<16x16xf32>
    %c0_188 = arith.constant 0 : index
    %c0_189 = arith.constant 0 : index
    %588 = vector.load %arg20[%c0_188, %c0_189] : memref<1x16xf32, #tpu.memory_space<vmem>>, vector<1x16xf32>
    %589 = vector.broadcast %588 : vector<1x16xf32> to vector<16x16xf32>
    %590 = arith.addf %587, %589 : vector<16x16xf32>
    %591 = arith.addf %590, %515 : vector<16x16xf32>
    %592 = math.tanh %591 : vector<16x16xf32>
    %c8_i32_190 = arith.constant 8 : i32
    %593 = vector.broadcast %c8_i32_190 : i32 to vector<16x1xi32>
    %594 = arith.cmpi slt, %151, %593 : vector<16x1xi32>
    %cst_191 = arith.constant 0.000000e+00 : f32
    %595 = vector.shape_cast %594 : vector<16x1xi1> to vector<16x1xi1>
    %596 = vector.broadcast %595 : vector<16x1xi1> to vector<16x16xi1>
    %597 = vector.broadcast %cst_191 : f32 to vector<16x16xf32>
    %598 = arith.select %596, %592, %597 : vector<16x16xi1>, vector<16x16xf32>
    %599 = arith.mulf %598, %598 : vector<16x16xf32>
    %600 = tpu.concatenate %598, %599 in 1 : vector<16x16xf32>, vector<16x16xf32> -> vector<16x32xf32>
    %601 = arith.truncf %600 : vector<16x32xf32> to vector<16x32xbf16>
    %c0_192 = arith.constant 0 : index
    %c0_193 = arith.constant 0 : index
    %602 = vector.load %arg21[%c0_192, %c0_193] : memref<32x96xbf16, #tpu.memory_space<vmem>>, vector<32x96xbf16>
    %cst_194 = arith.constant dense<0.000000e+00> : vector<16x96xf32>
    %603 = tpu.matmul %601, %602, %cst_194 {dimension_numbers = #tpu.dot_dimension_numbers<[1], [0], [0], [1], [0, 0, 1, 1], [], []>} : vector<16x32xbf16>, vector<32x96xbf16>, vector<16x96xf32> -> vector<16x96xf32>
    %604 = vector.extract_strided_slice %603 {offsets = [0, 0], sizes = [16, 32], strides = [1, 1]} : vector<16x96xf32> to vector<16x32xf32>
    %605 = tpu.iota {dimensions = array<i32: 0>} : vector<16x16xi32>
    %606 = tpu.iota {dimensions = array<i32: 1>} : vector<16x16xi32>
    %c2_i32_195 = arith.constant 2 : i32
    %607 = vector.broadcast %c2_i32_195 : i32 to vector<16x16xi32>
    %608 = arith.muli %607, %605 : vector<16x16xi32>
    %c-1_i32_196 = arith.constant -1 : i32
    %609 = vector.broadcast %c-1_i32_196 : i32 to vector<16x16xi32>
    %610 = arith.addi %608, %609 : vector<16x16xi32>
    %611 = arith.cmpi eq, %606, %610 : vector<16x16xi32>
    %c4_i32 = arith.constant 4 : i32
    %612 = vector.broadcast %c4_i32 : i32 to vector<16x16xi32>
    %613 = arith.cmpi slt, %605, %612 : vector<16x16xi32>
    %614 = arith.andi %611, %613 : vector<16x16xi1>
    %c8_i32_197 = arith.constant 8 : i32
    %615 = vector.broadcast %c8_i32_197 : i32 to vector<16x16xi32>
    %616 = arith.cmpi slt, %606, %615 : vector<16x16xi32>
    %617 = arith.andi %614, %616 : vector<16x16xi1>
    %618 = arith.extui %617 : vector<16x16xi1> to vector<16x16xi32>
    %619 = arith.sitofp %618 : vector<16x16xi32> to vector<16x16xf32>
    %620 = arith.truncf %619 : vector<16x16xf32> to vector<16x16xbf16>
    %621 = arith.truncf %604 : vector<16x32xf32> to vector<16x32xbf16>
    %cst_198 = arith.constant dense<0.000000e+00> : vector<16x32xf32>
    %622 = tpu.matmul %620, %621, %cst_198 {dimension_numbers = #tpu.dot_dimension_numbers<[1], [0], [0], [1], [0, 0, 1, 1], [], []>} : vector<16x16xbf16>, vector<16x32xbf16>, vector<16x32xf32> -> vector<16x32xf32>
    %623 = vector.extract_strided_slice %603 {offsets = [0, 32], sizes = [16, 32], strides = [1, 1]} : vector<16x96xf32> to vector<16x32xf32>
    %624 = tpu.iota {dimensions = array<i32: 0>} : vector<16x16xi32>
    %625 = tpu.iota {dimensions = array<i32: 1>} : vector<16x16xi32>
    %c2_i32_199 = arith.constant 2 : i32
    %626 = vector.broadcast %c2_i32_199 : i32 to vector<16x16xi32>
    %627 = arith.muli %626, %624 : vector<16x16xi32>
    %c0_i32_200 = arith.constant 0 : i32
    %628 = vector.broadcast %c0_i32_200 : i32 to vector<16x16xi32>
    %629 = arith.addi %627, %628 : vector<16x16xi32>
    %630 = arith.cmpi eq, %625, %629 : vector<16x16xi32>
    %c4_i32_201 = arith.constant 4 : i32
    %631 = vector.broadcast %c4_i32_201 : i32 to vector<16x16xi32>
    %632 = arith.cmpi slt, %624, %631 : vector<16x16xi32>
    %633 = arith.andi %630, %632 : vector<16x16xi1>
    %c8_i32_202 = arith.constant 8 : i32
    %634 = vector.broadcast %c8_i32_202 : i32 to vector<16x16xi32>
    %635 = arith.cmpi slt, %625, %634 : vector<16x16xi32>
    %636 = arith.andi %633, %635 : vector<16x16xi1>
    %637 = arith.extui %636 : vector<16x16xi1> to vector<16x16xi32>
    %638 = arith.sitofp %637 : vector<16x16xi32> to vector<16x16xf32>
    %639 = arith.truncf %638 : vector<16x16xf32> to vector<16x16xbf16>
    %640 = arith.truncf %623 : vector<16x32xf32> to vector<16x32xbf16>
    %cst_203 = arith.constant dense<0.000000e+00> : vector<16x32xf32>
    %641 = tpu.matmul %639, %640, %cst_203 {dimension_numbers = #tpu.dot_dimension_numbers<[1], [0], [0], [1], [0, 0, 1, 1], [], []>} : vector<16x16xbf16>, vector<16x32xbf16>, vector<16x32xf32> -> vector<16x32xf32>
    %642 = arith.addf %622, %641 : vector<16x32xf32>
    %643 = vector.extract_strided_slice %603 {offsets = [0, 64], sizes = [16, 32], strides = [1, 1]} : vector<16x96xf32> to vector<16x32xf32>
    %644 = tpu.iota {dimensions = array<i32: 0>} : vector<16x16xi32>
    %645 = tpu.iota {dimensions = array<i32: 1>} : vector<16x16xi32>
    %c2_i32_204 = arith.constant 2 : i32
    %646 = vector.broadcast %c2_i32_204 : i32 to vector<16x16xi32>
    %647 = arith.muli %646, %644 : vector<16x16xi32>
    %c1_i32_205 = arith.constant 1 : i32
    %648 = vector.broadcast %c1_i32_205 : i32 to vector<16x16xi32>
    %649 = arith.addi %647, %648 : vector<16x16xi32>
    %650 = arith.cmpi eq, %645, %649 : vector<16x16xi32>
    %c4_i32_206 = arith.constant 4 : i32
    %651 = vector.broadcast %c4_i32_206 : i32 to vector<16x16xi32>
    %652 = arith.cmpi slt, %644, %651 : vector<16x16xi32>
    %653 = arith.andi %650, %652 : vector<16x16xi1>
    %c8_i32_207 = arith.constant 8 : i32
    %654 = vector.broadcast %c8_i32_207 : i32 to vector<16x16xi32>
    %655 = arith.cmpi slt, %645, %654 : vector<16x16xi32>
    %656 = arith.andi %653, %655 : vector<16x16xi1>
    %657 = arith.extui %656 : vector<16x16xi1> to vector<16x16xi32>
    %658 = arith.sitofp %657 : vector<16x16xi32> to vector<16x16xf32>
    %659 = arith.truncf %658 : vector<16x16xf32> to vector<16x16xbf16>
    %660 = arith.truncf %643 : vector<16x32xf32> to vector<16x32xbf16>
    %cst_208 = arith.constant dense<0.000000e+00> : vector<16x32xf32>
    %661 = tpu.matmul %659, %660, %cst_208 {dimension_numbers = #tpu.dot_dimension_numbers<[1], [0], [0], [1], [0, 0, 1, 1], [], []>} : vector<16x16xbf16>, vector<16x32xbf16>, vector<16x32xf32> -> vector<16x32xf32>
    %662 = arith.addf %642, %661 : vector<16x32xf32>
    %c0_209 = arith.constant 0 : index
    %c0_210 = arith.constant 0 : index
    %663 = vector.load %arg22[%c0_209, %c0_210] : memref<1x32xf32, #tpu.memory_space<vmem>>, vector<1x32xf32>
    %664 = vector.broadcast %663 : vector<1x32xf32> to vector<16x32xf32>
    %665 = arith.addf %662, %664 : vector<16x32xf32>
    %666 = math.tanh %665 : vector<16x32xf32>
    %667 = arith.mulf %666, %666 : vector<16x32xf32>
    %668 = tpu.concatenate %666, %667 in 1 : vector<16x32xf32>, vector<16x32xf32> -> vector<16x64xf32>
    %669 = arith.truncf %668 : vector<16x64xf32> to vector<16x64xbf16>
    %c0_211 = arith.constant 0 : index
    %c0_212 = arith.constant 0 : index
    %670 = vector.load %arg23[%c0_211, %c0_212] : memref<64x96xbf16, #tpu.memory_space<vmem>>, vector<64x96xbf16>
    %cst_213 = arith.constant dense<0.000000e+00> : vector<16x96xf32>
    %671 = tpu.matmul %669, %670, %cst_213 {dimension_numbers = #tpu.dot_dimension_numbers<[1], [0], [0], [1], [0, 0, 1, 1], [], []>} : vector<16x64xbf16>, vector<64x96xbf16>, vector<16x96xf32> -> vector<16x96xf32>
    %672 = vector.extract_strided_slice %671 {offsets = [0, 0], sizes = [16, 32], strides = [1, 1]} : vector<16x96xf32> to vector<16x32xf32>
    %c1_i32_214 = arith.constant 1 : i32
    %673 = tpu.dynamic_rotate %672 by %c1_i32_214 dim 0 : vector<16x32xf32>, i32 -> vector<16x32xf32>
    %c-1_i32_215 = arith.constant -1 : i32
    %674 = vector.broadcast %c-1_i32_215 : i32 to vector<16x1xi32>
    %675 = arith.addi %151, %674 : vector<16x1xi32>
    %c0_i32_216 = arith.constant 0 : i32
    %676 = vector.broadcast %c0_i32_216 : i32 to vector<16x1xi32>
    %677 = arith.cmpi sge, %675, %676 : vector<16x1xi32>
    %c4_i32_217 = arith.constant 4 : i32
    %678 = vector.broadcast %c4_i32_217 : i32 to vector<16x1xi32>
    %679 = arith.cmpi slt, %675, %678 : vector<16x1xi32>
    %680 = arith.andi %677, %679 : vector<16x1xi1>
    %cst_218 = arith.constant 0.000000e+00 : f32
    %681 = vector.shape_cast %680 : vector<16x1xi1> to vector<16x1xi1>
    %682 = vector.broadcast %681 : vector<16x1xi1> to vector<16x32xi1>
    %683 = vector.broadcast %cst_218 : f32 to vector<16x32xf32>
    %684 = arith.select %682, %673, %683 : vector<16x32xi1>, vector<16x32xf32>
    %685 = vector.extract_strided_slice %671 {offsets = [0, 32], sizes = [16, 32], strides = [1, 1]} : vector<16x96xf32> to vector<16x32xf32>
    %686 = arith.addf %684, %685 : vector<16x32xf32>
    %687 = vector.extract_strided_slice %671 {offsets = [0, 64], sizes = [16, 32], strides = [1, 1]} : vector<16x96xf32> to vector<16x32xf32>
    %c15_i32_219 = arith.constant 15 : i32
    %688 = tpu.dynamic_rotate %687 by %c15_i32_219 dim 0 : vector<16x32xf32>, i32 -> vector<16x32xf32>
    %c1_i32_220 = arith.constant 1 : i32
    %689 = vector.broadcast %c1_i32_220 : i32 to vector<16x1xi32>
    %690 = arith.addi %151, %689 : vector<16x1xi32>
    %c0_i32_221 = arith.constant 0 : i32
    %691 = vector.broadcast %c0_i32_221 : i32 to vector<16x1xi32>
    %692 = arith.cmpi sge, %690, %691 : vector<16x1xi32>
    %c4_i32_222 = arith.constant 4 : i32
    %693 = vector.broadcast %c4_i32_222 : i32 to vector<16x1xi32>
    %694 = arith.cmpi slt, %690, %693 : vector<16x1xi32>
    %695 = arith.andi %692, %694 : vector<16x1xi1>
    %cst_223 = arith.constant 0.000000e+00 : f32
    %696 = vector.shape_cast %695 : vector<16x1xi1> to vector<16x1xi1>
    %697 = vector.broadcast %696 : vector<16x1xi1> to vector<16x32xi1>
    %698 = vector.broadcast %cst_223 : f32 to vector<16x32xf32>
    %699 = arith.select %697, %688, %698 : vector<16x32xi1>, vector<16x32xf32>
    %700 = arith.addf %686, %699 : vector<16x32xf32>
    %c0_224 = arith.constant 0 : index
    %c0_225 = arith.constant 0 : index
    %701 = vector.load %arg24[%c0_224, %c0_225] : memref<1x32xf32, #tpu.memory_space<vmem>>, vector<1x32xf32>
    %702 = vector.broadcast %701 : vector<1x32xf32> to vector<16x32xf32>
    %703 = arith.addf %700, %702 : vector<16x32xf32>
    %704 = arith.truncf %598 : vector<16x16xf32> to vector<16x16xbf16>
    %c0_226 = arith.constant 0 : index
    %c0_227 = arith.constant 0 : index
    %705 = vector.load %arg25[%c0_226, %c0_227] : memref<16x32xbf16, #tpu.memory_space<vmem>>, vector<16x32xbf16>
    %cst_228 = arith.constant dense<0.000000e+00> : vector<16x32xf32>
    %706 = tpu.matmul %704, %705, %cst_228 {dimension_numbers = #tpu.dot_dimension_numbers<[1], [0], [0], [1], [0, 0, 1, 1], [], []>} : vector<16x16xbf16>, vector<16x32xbf16>, vector<16x32xf32> -> vector<16x32xf32>
    %707 = arith.truncf %706 : vector<16x32xf32> to vector<16x32xbf16>
    %cst_229 = arith.constant dense<0.000000e+00> : vector<16x32xf32>
    %708 = tpu.matmul %639, %707, %cst_229 {dimension_numbers = #tpu.dot_dimension_numbers<[1], [0], [0], [1], [0, 0, 1, 1], [], []>} : vector<16x16xbf16>, vector<16x32xbf16>, vector<16x32xf32> -> vector<16x32xf32>
    %709 = arith.addf %703, %708 : vector<16x32xf32>
    %710 = math.tanh %709 : vector<16x32xf32>
    %c4_i32_230 = arith.constant 4 : i32
    %711 = vector.broadcast %c4_i32_230 : i32 to vector<16x1xi32>
    %712 = arith.cmpi slt, %151, %711 : vector<16x1xi32>
    %cst_231 = arith.constant 0.000000e+00 : f32
    %713 = vector.shape_cast %712 : vector<16x1xi1> to vector<16x1xi1>
    %714 = vector.broadcast %713 : vector<16x1xi1> to vector<16x32xi1>
    %715 = vector.broadcast %cst_231 : f32 to vector<16x32xf32>
    %716 = arith.select %714, %710, %715 : vector<16x32xi1>, vector<16x32xf32>
    %717 = arith.mulf %716, %716 : vector<16x32xf32>
    %718 = tpu.concatenate %716, %717 in 1 : vector<16x32xf32>, vector<16x32xf32> -> vector<16x64xf32>
    %719 = arith.truncf %718 : vector<16x64xf32> to vector<16x64xbf16>
    %c0_232 = arith.constant 0 : index
    %c0_233 = arith.constant 0 : index
    %720 = vector.load %arg26[%c0_232, %c0_233] : memref<64x96xbf16, #tpu.memory_space<vmem>>, vector<64x96xbf16>
    %cst_234 = arith.constant dense<0.000000e+00> : vector<16x96xf32>
    %721 = tpu.matmul %719, %720, %cst_234 {dimension_numbers = #tpu.dot_dimension_numbers<[1], [0], [0], [1], [0, 0, 1, 1], [], []>} : vector<16x64xbf16>, vector<64x96xbf16>, vector<16x96xf32> -> vector<16x96xf32>
    %722 = vector.extract_strided_slice %721 {offsets = [0, 0], sizes = [16, 32], strides = [1, 1]} : vector<16x96xf32> to vector<16x32xf32>
    %c1_i32_235 = arith.constant 1 : i32
    %723 = tpu.dynamic_rotate %722 by %c1_i32_235 dim 0 : vector<16x32xf32>, i32 -> vector<16x32xf32>
    %c-1_i32_236 = arith.constant -1 : i32
    %724 = vector.broadcast %c-1_i32_236 : i32 to vector<16x1xi32>
    %725 = arith.addi %151, %724 : vector<16x1xi32>
    %c0_i32_237 = arith.constant 0 : i32
    %726 = vector.broadcast %c0_i32_237 : i32 to vector<16x1xi32>
    %727 = arith.cmpi sge, %725, %726 : vector<16x1xi32>
    %c4_i32_238 = arith.constant 4 : i32
    %728 = vector.broadcast %c4_i32_238 : i32 to vector<16x1xi32>
    %729 = arith.cmpi slt, %725, %728 : vector<16x1xi32>
    %730 = arith.andi %727, %729 : vector<16x1xi1>
    %cst_239 = arith.constant 0.000000e+00 : f32
    %731 = vector.shape_cast %730 : vector<16x1xi1> to vector<16x1xi1>
    %732 = vector.broadcast %731 : vector<16x1xi1> to vector<16x32xi1>
    %733 = vector.broadcast %cst_239 : f32 to vector<16x32xf32>
    %734 = arith.select %732, %723, %733 : vector<16x32xi1>, vector<16x32xf32>
    %735 = vector.extract_strided_slice %721 {offsets = [0, 32], sizes = [16, 32], strides = [1, 1]} : vector<16x96xf32> to vector<16x32xf32>
    %736 = arith.addf %734, %735 : vector<16x32xf32>
    %737 = vector.extract_strided_slice %721 {offsets = [0, 64], sizes = [16, 32], strides = [1, 1]} : vector<16x96xf32> to vector<16x32xf32>
    %c15_i32_240 = arith.constant 15 : i32
    %738 = tpu.dynamic_rotate %737 by %c15_i32_240 dim 0 : vector<16x32xf32>, i32 -> vector<16x32xf32>
    %c1_i32_241 = arith.constant 1 : i32
    %739 = vector.broadcast %c1_i32_241 : i32 to vector<16x1xi32>
    %740 = arith.addi %151, %739 : vector<16x1xi32>
    %c0_i32_242 = arith.constant 0 : i32
    %741 = vector.broadcast %c0_i32_242 : i32 to vector<16x1xi32>
    %742 = arith.cmpi sge, %740, %741 : vector<16x1xi32>
    %c4_i32_243 = arith.constant 4 : i32
    %743 = vector.broadcast %c4_i32_243 : i32 to vector<16x1xi32>
    %744 = arith.cmpi slt, %740, %743 : vector<16x1xi32>
    %745 = arith.andi %742, %744 : vector<16x1xi1>
    %cst_244 = arith.constant 0.000000e+00 : f32
    %746 = vector.shape_cast %745 : vector<16x1xi1> to vector<16x1xi1>
    %747 = vector.broadcast %746 : vector<16x1xi1> to vector<16x32xi1>
    %748 = vector.broadcast %cst_244 : f32 to vector<16x32xf32>
    %749 = arith.select %747, %738, %748 : vector<16x32xi1>, vector<16x32xf32>
    %750 = arith.addf %736, %749 : vector<16x32xf32>
    %c0_245 = arith.constant 0 : index
    %c0_246 = arith.constant 0 : index
    %751 = vector.load %arg27[%c0_245, %c0_246] : memref<1x32xf32, #tpu.memory_space<vmem>>, vector<1x32xf32>
    %752 = vector.broadcast %751 : vector<1x32xf32> to vector<16x32xf32>
    %753 = arith.addf %750, %752 : vector<16x32xf32>
    %754 = math.tanh %753 : vector<16x32xf32>
    %755 = arith.mulf %754, %754 : vector<16x32xf32>
    %756 = tpu.concatenate %754, %755 in 1 : vector<16x32xf32>, vector<16x32xf32> -> vector<16x64xf32>
    %757 = arith.truncf %756 : vector<16x64xf32> to vector<16x64xbf16>
    %c0_247 = arith.constant 0 : index
    %c0_248 = arith.constant 0 : index
    %758 = vector.load %arg28[%c0_247, %c0_248] : memref<64x96xbf16, #tpu.memory_space<vmem>>, vector<64x96xbf16>
    %cst_249 = arith.constant dense<0.000000e+00> : vector<16x96xf32>
    %759 = tpu.matmul %757, %758, %cst_249 {dimension_numbers = #tpu.dot_dimension_numbers<[1], [0], [0], [1], [0, 0, 1, 1], [], []>} : vector<16x64xbf16>, vector<64x96xbf16>, vector<16x96xf32> -> vector<16x96xf32>
    %760 = vector.extract_strided_slice %759 {offsets = [0, 0], sizes = [16, 32], strides = [1, 1]} : vector<16x96xf32> to vector<16x32xf32>
    %c1_i32_250 = arith.constant 1 : i32
    %761 = tpu.dynamic_rotate %760 by %c1_i32_250 dim 0 : vector<16x32xf32>, i32 -> vector<16x32xf32>
    %c-1_i32_251 = arith.constant -1 : i32
    %762 = vector.broadcast %c-1_i32_251 : i32 to vector<16x1xi32>
    %763 = arith.addi %151, %762 : vector<16x1xi32>
    %c0_i32_252 = arith.constant 0 : i32
    %764 = vector.broadcast %c0_i32_252 : i32 to vector<16x1xi32>
    %765 = arith.cmpi sge, %763, %764 : vector<16x1xi32>
    %c4_i32_253 = arith.constant 4 : i32
    %766 = vector.broadcast %c4_i32_253 : i32 to vector<16x1xi32>
    %767 = arith.cmpi slt, %763, %766 : vector<16x1xi32>
    %768 = arith.andi %765, %767 : vector<16x1xi1>
    %cst_254 = arith.constant 0.000000e+00 : f32
    %769 = vector.shape_cast %768 : vector<16x1xi1> to vector<16x1xi1>
    %770 = vector.broadcast %769 : vector<16x1xi1> to vector<16x32xi1>
    %771 = vector.broadcast %cst_254 : f32 to vector<16x32xf32>
    %772 = arith.select %770, %761, %771 : vector<16x32xi1>, vector<16x32xf32>
    %773 = vector.extract_strided_slice %759 {offsets = [0, 32], sizes = [16, 32], strides = [1, 1]} : vector<16x96xf32> to vector<16x32xf32>
    %774 = arith.addf %772, %773 : vector<16x32xf32>
    %775 = vector.extract_strided_slice %759 {offsets = [0, 64], sizes = [16, 32], strides = [1, 1]} : vector<16x96xf32> to vector<16x32xf32>
    %c15_i32_255 = arith.constant 15 : i32
    %776 = tpu.dynamic_rotate %775 by %c15_i32_255 dim 0 : vector<16x32xf32>, i32 -> vector<16x32xf32>
    %c1_i32_256 = arith.constant 1 : i32
    %777 = vector.broadcast %c1_i32_256 : i32 to vector<16x1xi32>
    %778 = arith.addi %151, %777 : vector<16x1xi32>
    %c0_i32_257 = arith.constant 0 : i32
    %779 = vector.broadcast %c0_i32_257 : i32 to vector<16x1xi32>
    %780 = arith.cmpi sge, %778, %779 : vector<16x1xi32>
    %c4_i32_258 = arith.constant 4 : i32
    %781 = vector.broadcast %c4_i32_258 : i32 to vector<16x1xi32>
    %782 = arith.cmpi slt, %778, %781 : vector<16x1xi32>
    %783 = arith.andi %780, %782 : vector<16x1xi1>
    %cst_259 = arith.constant 0.000000e+00 : f32
    %784 = vector.shape_cast %783 : vector<16x1xi1> to vector<16x1xi1>
    %785 = vector.broadcast %784 : vector<16x1xi1> to vector<16x32xi1>
    %786 = vector.broadcast %cst_259 : f32 to vector<16x32xf32>
    %787 = arith.select %785, %776, %786 : vector<16x32xi1>, vector<16x32xf32>
    %788 = arith.addf %774, %787 : vector<16x32xf32>
    %c0_260 = arith.constant 0 : index
    %c0_261 = arith.constant 0 : index
    %789 = vector.load %arg29[%c0_260, %c0_261] : memref<1x32xf32, #tpu.memory_space<vmem>>, vector<1x32xf32>
    %790 = vector.broadcast %789 : vector<1x32xf32> to vector<16x32xf32>
    %791 = arith.addf %788, %790 : vector<16x32xf32>
    %792 = arith.addf %791, %716 : vector<16x32xf32>
    %793 = math.tanh %792 : vector<16x32xf32>
    %c4_i32_262 = arith.constant 4 : i32
    %794 = vector.broadcast %c4_i32_262 : i32 to vector<16x1xi32>
    %795 = arith.cmpi slt, %151, %794 : vector<16x1xi32>
    %cst_263 = arith.constant 0.000000e+00 : f32
    %796 = vector.shape_cast %795 : vector<16x1xi1> to vector<16x1xi1>
    %797 = vector.broadcast %796 : vector<16x1xi1> to vector<16x32xi1>
    %798 = vector.broadcast %cst_263 : f32 to vector<16x32xf32>
    %799 = arith.select %797, %793, %798 : vector<16x32xi1>, vector<16x32xf32>
    %800 = arith.mulf %799, %799 : vector<16x32xf32>
    %801 = tpu.concatenate %799, %800 in 1 : vector<16x32xf32>, vector<16x32xf32> -> vector<16x64xf32>
    %802 = arith.truncf %801 : vector<16x64xf32> to vector<16x64xbf16>
    %c0_264 = arith.constant 0 : index
    %c0_265 = arith.constant 0 : index
    %803 = vector.load %arg30[%c0_264, %c0_265] : memref<64x192xbf16, #tpu.memory_space<vmem>>, vector<64x192xbf16>
    %cst_266 = arith.constant dense<0.000000e+00> : vector<16x192xf32>
    %804 = tpu.matmul %802, %803, %cst_266 {dimension_numbers = #tpu.dot_dimension_numbers<[1], [0], [0], [1], [0, 0, 1, 1], [], []>} : vector<16x64xbf16>, vector<64x192xbf16>, vector<16x192xf32> -> vector<16x192xf32>
    %805 = vector.extract_strided_slice %804 {offsets = [0, 0], sizes = [16, 64], strides = [1, 1]} : vector<16x192xf32> to vector<16x64xf32>
    %806 = tpu.iota {dimensions = array<i32: 0>} : vector<16x16xi32>
    %807 = tpu.iota {dimensions = array<i32: 1>} : vector<16x16xi32>
    %c2_i32_267 = arith.constant 2 : i32
    %808 = vector.broadcast %c2_i32_267 : i32 to vector<16x16xi32>
    %809 = arith.muli %808, %806 : vector<16x16xi32>
    %c-1_i32_268 = arith.constant -1 : i32
    %810 = vector.broadcast %c-1_i32_268 : i32 to vector<16x16xi32>
    %811 = arith.addi %809, %810 : vector<16x16xi32>
    %812 = arith.cmpi eq, %807, %811 : vector<16x16xi32>
    %c2_i32_269 = arith.constant 2 : i32
    %813 = vector.broadcast %c2_i32_269 : i32 to vector<16x16xi32>
    %814 = arith.cmpi slt, %806, %813 : vector<16x16xi32>
    %815 = arith.andi %812, %814 : vector<16x16xi1>
    %c4_i32_270 = arith.constant 4 : i32
    %816 = vector.broadcast %c4_i32_270 : i32 to vector<16x16xi32>
    %817 = arith.cmpi slt, %807, %816 : vector<16x16xi32>
    %818 = arith.andi %815, %817 : vector<16x16xi1>
    %819 = arith.extui %818 : vector<16x16xi1> to vector<16x16xi32>
    %820 = arith.sitofp %819 : vector<16x16xi32> to vector<16x16xf32>
    %821 = arith.truncf %820 : vector<16x16xf32> to vector<16x16xbf16>
    %822 = arith.truncf %805 : vector<16x64xf32> to vector<16x64xbf16>
    %cst_271 = arith.constant dense<0.000000e+00> : vector<16x64xf32>
    %823 = tpu.matmul %821, %822, %cst_271 {dimension_numbers = #tpu.dot_dimension_numbers<[1], [0], [0], [1], [0, 0, 1, 1], [], []>} : vector<16x16xbf16>, vector<16x64xbf16>, vector<16x64xf32> -> vector<16x64xf32>
    %824 = vector.extract_strided_slice %804 {offsets = [0, 64], sizes = [16, 64], strides = [1, 1]} : vector<16x192xf32> to vector<16x64xf32>
    %825 = tpu.iota {dimensions = array<i32: 0>} : vector<16x16xi32>
    %826 = tpu.iota {dimensions = array<i32: 1>} : vector<16x16xi32>
    %c2_i32_272 = arith.constant 2 : i32
    %827 = vector.broadcast %c2_i32_272 : i32 to vector<16x16xi32>
    %828 = arith.muli %827, %825 : vector<16x16xi32>
    %c0_i32_273 = arith.constant 0 : i32
    %829 = vector.broadcast %c0_i32_273 : i32 to vector<16x16xi32>
    %830 = arith.addi %828, %829 : vector<16x16xi32>
    %831 = arith.cmpi eq, %826, %830 : vector<16x16xi32>
    %c2_i32_274 = arith.constant 2 : i32
    %832 = vector.broadcast %c2_i32_274 : i32 to vector<16x16xi32>
    %833 = arith.cmpi slt, %825, %832 : vector<16x16xi32>
    %834 = arith.andi %831, %833 : vector<16x16xi1>
    %c4_i32_275 = arith.constant 4 : i32
    %835 = vector.broadcast %c4_i32_275 : i32 to vector<16x16xi32>
    %836 = arith.cmpi slt, %826, %835 : vector<16x16xi32>
    %837 = arith.andi %834, %836 : vector<16x16xi1>
    %838 = arith.extui %837 : vector<16x16xi1> to vector<16x16xi32>
    %839 = arith.sitofp %838 : vector<16x16xi32> to vector<16x16xf32>
    %840 = arith.truncf %839 : vector<16x16xf32> to vector<16x16xbf16>
    %841 = arith.truncf %824 : vector<16x64xf32> to vector<16x64xbf16>
    %cst_276 = arith.constant dense<0.000000e+00> : vector<16x64xf32>
    %842 = tpu.matmul %840, %841, %cst_276 {dimension_numbers = #tpu.dot_dimension_numbers<[1], [0], [0], [1], [0, 0, 1, 1], [], []>} : vector<16x16xbf16>, vector<16x64xbf16>, vector<16x64xf32> -> vector<16x64xf32>
    %843 = arith.addf %823, %842 : vector<16x64xf32>
    %844 = vector.extract_strided_slice %804 {offsets = [0, 128], sizes = [16, 64], strides = [1, 1]} : vector<16x192xf32> to vector<16x64xf32>
    %845 = tpu.iota {dimensions = array<i32: 0>} : vector<16x16xi32>
    %846 = tpu.iota {dimensions = array<i32: 1>} : vector<16x16xi32>
    %c2_i32_277 = arith.constant 2 : i32
    %847 = vector.broadcast %c2_i32_277 : i32 to vector<16x16xi32>
    %848 = arith.muli %847, %845 : vector<16x16xi32>
    %c1_i32_278 = arith.constant 1 : i32
    %849 = vector.broadcast %c1_i32_278 : i32 to vector<16x16xi32>
    %850 = arith.addi %848, %849 : vector<16x16xi32>
    %851 = arith.cmpi eq, %846, %850 : vector<16x16xi32>
    %c2_i32_279 = arith.constant 2 : i32
    %852 = vector.broadcast %c2_i32_279 : i32 to vector<16x16xi32>
    %853 = arith.cmpi slt, %845, %852 : vector<16x16xi32>
    %854 = arith.andi %851, %853 : vector<16x16xi1>
    %c4_i32_280 = arith.constant 4 : i32
    %855 = vector.broadcast %c4_i32_280 : i32 to vector<16x16xi32>
    %856 = arith.cmpi slt, %846, %855 : vector<16x16xi32>
    %857 = arith.andi %854, %856 : vector<16x16xi1>
    %858 = arith.extui %857 : vector<16x16xi1> to vector<16x16xi32>
    %859 = arith.sitofp %858 : vector<16x16xi32> to vector<16x16xf32>
    %860 = arith.truncf %859 : vector<16x16xf32> to vector<16x16xbf16>
    %861 = arith.truncf %844 : vector<16x64xf32> to vector<16x64xbf16>
    %cst_281 = arith.constant dense<0.000000e+00> : vector<16x64xf32>
    %862 = tpu.matmul %860, %861, %cst_281 {dimension_numbers = #tpu.dot_dimension_numbers<[1], [0], [0], [1], [0, 0, 1, 1], [], []>} : vector<16x16xbf16>, vector<16x64xbf16>, vector<16x64xf32> -> vector<16x64xf32>
    %863 = arith.addf %843, %862 : vector<16x64xf32>
    %c0_282 = arith.constant 0 : index
    %c0_283 = arith.constant 0 : index
    %864 = vector.load %arg31[%c0_282, %c0_283] : memref<1x64xf32, #tpu.memory_space<vmem>>, vector<1x64xf32>
    %865 = vector.broadcast %864 : vector<1x64xf32> to vector<16x64xf32>
    %866 = arith.addf %863, %865 : vector<16x64xf32>
    %867 = math.tanh %866 : vector<16x64xf32>
    %868 = arith.mulf %867, %867 : vector<16x64xf32>
    %869 = tpu.concatenate %867, %868 in 1 : vector<16x64xf32>, vector<16x64xf32> -> vector<16x128xf32>
    %870 = arith.truncf %869 : vector<16x128xf32> to vector<16x128xbf16>
    %c0_284 = arith.constant 0 : index
    %c0_285 = arith.constant 0 : index
    %871 = vector.load %arg32[%c0_284, %c0_285] : memref<128x192xbf16, #tpu.memory_space<vmem>>, vector<128x192xbf16>
    %cst_286 = arith.constant dense<0.000000e+00> : vector<16x192xf32>
    %872 = tpu.matmul %870, %871, %cst_286 {dimension_numbers = #tpu.dot_dimension_numbers<[1], [0], [0], [1], [0, 0, 1, 1], [], []>} : vector<16x128xbf16>, vector<128x192xbf16>, vector<16x192xf32> -> vector<16x192xf32>
    %873 = vector.extract_strided_slice %872 {offsets = [0, 0], sizes = [16, 64], strides = [1, 1]} : vector<16x192xf32> to vector<16x64xf32>
    %c1_i32_287 = arith.constant 1 : i32
    %874 = tpu.dynamic_rotate %873 by %c1_i32_287 dim 0 : vector<16x64xf32>, i32 -> vector<16x64xf32>
    %c-1_i32_288 = arith.constant -1 : i32
    %875 = vector.broadcast %c-1_i32_288 : i32 to vector<16x1xi32>
    %876 = arith.addi %151, %875 : vector<16x1xi32>
    %c0_i32_289 = arith.constant 0 : i32
    %877 = vector.broadcast %c0_i32_289 : i32 to vector<16x1xi32>
    %878 = arith.cmpi sge, %876, %877 : vector<16x1xi32>
    %c2_i32_290 = arith.constant 2 : i32
    %879 = vector.broadcast %c2_i32_290 : i32 to vector<16x1xi32>
    %880 = arith.cmpi slt, %876, %879 : vector<16x1xi32>
    %881 = arith.andi %878, %880 : vector<16x1xi1>
    %cst_291 = arith.constant 0.000000e+00 : f32
    %882 = vector.shape_cast %881 : vector<16x1xi1> to vector<16x1xi1>
    %883 = vector.broadcast %882 : vector<16x1xi1> to vector<16x64xi1>
    %884 = vector.broadcast %cst_291 : f32 to vector<16x64xf32>
    %885 = arith.select %883, %874, %884 : vector<16x64xi1>, vector<16x64xf32>
    %886 = vector.extract_strided_slice %872 {offsets = [0, 64], sizes = [16, 64], strides = [1, 1]} : vector<16x192xf32> to vector<16x64xf32>
    %887 = arith.addf %885, %886 : vector<16x64xf32>
    %888 = vector.extract_strided_slice %872 {offsets = [0, 128], sizes = [16, 64], strides = [1, 1]} : vector<16x192xf32> to vector<16x64xf32>
    %c15_i32_292 = arith.constant 15 : i32
    %889 = tpu.dynamic_rotate %888 by %c15_i32_292 dim 0 : vector<16x64xf32>, i32 -> vector<16x64xf32>
    %c1_i32_293 = arith.constant 1 : i32
    %890 = vector.broadcast %c1_i32_293 : i32 to vector<16x1xi32>
    %891 = arith.addi %151, %890 : vector<16x1xi32>
    %c0_i32_294 = arith.constant 0 : i32
    %892 = vector.broadcast %c0_i32_294 : i32 to vector<16x1xi32>
    %893 = arith.cmpi sge, %891, %892 : vector<16x1xi32>
    %c2_i32_295 = arith.constant 2 : i32
    %894 = vector.broadcast %c2_i32_295 : i32 to vector<16x1xi32>
    %895 = arith.cmpi slt, %891, %894 : vector<16x1xi32>
    %896 = arith.andi %893, %895 : vector<16x1xi1>
    %cst_296 = arith.constant 0.000000e+00 : f32
    %897 = vector.shape_cast %896 : vector<16x1xi1> to vector<16x1xi1>
    %898 = vector.broadcast %897 : vector<16x1xi1> to vector<16x64xi1>
    %899 = vector.broadcast %cst_296 : f32 to vector<16x64xf32>
    %900 = arith.select %898, %889, %899 : vector<16x64xi1>, vector<16x64xf32>
    %901 = arith.addf %887, %900 : vector<16x64xf32>
    %c0_297 = arith.constant 0 : index
    %c0_298 = arith.constant 0 : index
    %902 = vector.load %arg33[%c0_297, %c0_298] : memref<1x64xf32, #tpu.memory_space<vmem>>, vector<1x64xf32>
    %903 = vector.broadcast %902 : vector<1x64xf32> to vector<16x64xf32>
    %904 = arith.addf %901, %903 : vector<16x64xf32>
    %905 = arith.truncf %799 : vector<16x32xf32> to vector<16x32xbf16>
    %c0_299 = arith.constant 0 : index
    %c0_300 = arith.constant 0 : index
    %906 = vector.load %arg34[%c0_299, %c0_300] : memref<32x64xbf16, #tpu.memory_space<vmem>>, vector<32x64xbf16>
    %cst_301 = arith.constant dense<0.000000e+00> : vector<16x64xf32>
    %907 = tpu.matmul %905, %906, %cst_301 {dimension_numbers = #tpu.dot_dimension_numbers<[1], [0], [0], [1], [0, 0, 1, 1], [], []>} : vector<16x32xbf16>, vector<32x64xbf16>, vector<16x64xf32> -> vector<16x64xf32>
    %908 = arith.truncf %907 : vector<16x64xf32> to vector<16x64xbf16>
    %cst_302 = arith.constant dense<0.000000e+00> : vector<16x64xf32>
    %909 = tpu.matmul %840, %908, %cst_302 {dimension_numbers = #tpu.dot_dimension_numbers<[1], [0], [0], [1], [0, 0, 1, 1], [], []>} : vector<16x16xbf16>, vector<16x64xbf16>, vector<16x64xf32> -> vector<16x64xf32>
    %910 = arith.addf %904, %909 : vector<16x64xf32>
    %911 = math.tanh %910 : vector<16x64xf32>
    %c2_i32_303 = arith.constant 2 : i32
    %912 = vector.broadcast %c2_i32_303 : i32 to vector<16x1xi32>
    %913 = arith.cmpi slt, %151, %912 : vector<16x1xi32>
    %cst_304 = arith.constant 0.000000e+00 : f32
    %914 = vector.shape_cast %913 : vector<16x1xi1> to vector<16x1xi1>
    %915 = vector.broadcast %914 : vector<16x1xi1> to vector<16x64xi1>
    %916 = vector.broadcast %cst_304 : f32 to vector<16x64xf32>
    %917 = arith.select %915, %911, %916 : vector<16x64xi1>, vector<16x64xf32>
    %918 = arith.mulf %917, %917 : vector<16x64xf32>
    %919 = tpu.concatenate %917, %918 in 1 : vector<16x64xf32>, vector<16x64xf32> -> vector<16x128xf32>
    %920 = arith.truncf %919 : vector<16x128xf32> to vector<16x128xbf16>
    %c0_305 = arith.constant 0 : index
    %c0_306 = arith.constant 0 : index
    %921 = vector.load %arg35[%c0_305, %c0_306] : memref<128x192xbf16, #tpu.memory_space<vmem>>, vector<128x192xbf16>
    %cst_307 = arith.constant dense<0.000000e+00> : vector<16x192xf32>
    %922 = tpu.matmul %920, %921, %cst_307 {dimension_numbers = #tpu.dot_dimension_numbers<[1], [0], [0], [1], [0, 0, 1, 1], [], []>} : vector<16x128xbf16>, vector<128x192xbf16>, vector<16x192xf32> -> vector<16x192xf32>
    %923 = vector.extract_strided_slice %922 {offsets = [0, 0], sizes = [16, 64], strides = [1, 1]} : vector<16x192xf32> to vector<16x64xf32>
    %c1_i32_308 = arith.constant 1 : i32
    %924 = tpu.dynamic_rotate %923 by %c1_i32_308 dim 0 : vector<16x64xf32>, i32 -> vector<16x64xf32>
    %c-1_i32_309 = arith.constant -1 : i32
    %925 = vector.broadcast %c-1_i32_309 : i32 to vector<16x1xi32>
    %926 = arith.addi %151, %925 : vector<16x1xi32>
    %c0_i32_310 = arith.constant 0 : i32
    %927 = vector.broadcast %c0_i32_310 : i32 to vector<16x1xi32>
    %928 = arith.cmpi sge, %926, %927 : vector<16x1xi32>
    %c2_i32_311 = arith.constant 2 : i32
    %929 = vector.broadcast %c2_i32_311 : i32 to vector<16x1xi32>
    %930 = arith.cmpi slt, %926, %929 : vector<16x1xi32>
    %931 = arith.andi %928, %930 : vector<16x1xi1>
    %cst_312 = arith.constant 0.000000e+00 : f32
    %932 = vector.shape_cast %931 : vector<16x1xi1> to vector<16x1xi1>
    %933 = vector.broadcast %932 : vector<16x1xi1> to vector<16x64xi1>
    %934 = vector.broadcast %cst_312 : f32 to vector<16x64xf32>
    %935 = arith.select %933, %924, %934 : vector<16x64xi1>, vector<16x64xf32>
    %936 = vector.extract_strided_slice %922 {offsets = [0, 64], sizes = [16, 64], strides = [1, 1]} : vector<16x192xf32> to vector<16x64xf32>
    %937 = arith.addf %935, %936 : vector<16x64xf32>
    %938 = vector.extract_strided_slice %922 {offsets = [0, 128], sizes = [16, 64], strides = [1, 1]} : vector<16x192xf32> to vector<16x64xf32>
    %c15_i32_313 = arith.constant 15 : i32
    %939 = tpu.dynamic_rotate %938 by %c15_i32_313 dim 0 : vector<16x64xf32>, i32 -> vector<16x64xf32>
    %c1_i32_314 = arith.constant 1 : i32
    %940 = vector.broadcast %c1_i32_314 : i32 to vector<16x1xi32>
    %941 = arith.addi %151, %940 : vector<16x1xi32>
    %c0_i32_315 = arith.constant 0 : i32
    %942 = vector.broadcast %c0_i32_315 : i32 to vector<16x1xi32>
    %943 = arith.cmpi sge, %941, %942 : vector<16x1xi32>
    %c2_i32_316 = arith.constant 2 : i32
    %944 = vector.broadcast %c2_i32_316 : i32 to vector<16x1xi32>
    %945 = arith.cmpi slt, %941, %944 : vector<16x1xi32>
    %946 = arith.andi %943, %945 : vector<16x1xi1>
    %cst_317 = arith.constant 0.000000e+00 : f32
    %947 = vector.shape_cast %946 : vector<16x1xi1> to vector<16x1xi1>
    %948 = vector.broadcast %947 : vector<16x1xi1> to vector<16x64xi1>
    %949 = vector.broadcast %cst_317 : f32 to vector<16x64xf32>
    %950 = arith.select %948, %939, %949 : vector<16x64xi1>, vector<16x64xf32>
    %951 = arith.addf %937, %950 : vector<16x64xf32>
    %c0_318 = arith.constant 0 : index
    %c0_319 = arith.constant 0 : index
    %952 = vector.load %arg36[%c0_318, %c0_319] : memref<1x64xf32, #tpu.memory_space<vmem>>, vector<1x64xf32>
    %953 = vector.broadcast %952 : vector<1x64xf32> to vector<16x64xf32>
    %954 = arith.addf %951, %953 : vector<16x64xf32>
    %955 = math.tanh %954 : vector<16x64xf32>
    %956 = arith.mulf %955, %955 : vector<16x64xf32>
    %957 = tpu.concatenate %955, %956 in 1 : vector<16x64xf32>, vector<16x64xf32> -> vector<16x128xf32>
    %958 = arith.truncf %957 : vector<16x128xf32> to vector<16x128xbf16>
    %c0_320 = arith.constant 0 : index
    %c0_321 = arith.constant 0 : index
    %959 = vector.load %arg37[%c0_320, %c0_321] : memref<128x192xbf16, #tpu.memory_space<vmem>>, vector<128x192xbf16>
    %cst_322 = arith.constant dense<0.000000e+00> : vector<16x192xf32>
    %960 = tpu.matmul %958, %959, %cst_322 {dimension_numbers = #tpu.dot_dimension_numbers<[1], [0], [0], [1], [0, 0, 1, 1], [], []>} : vector<16x128xbf16>, vector<128x192xbf16>, vector<16x192xf32> -> vector<16x192xf32>
    %961 = vector.extract_strided_slice %960 {offsets = [0, 0], sizes = [16, 64], strides = [1, 1]} : vector<16x192xf32> to vector<16x64xf32>
    %c1_i32_323 = arith.constant 1 : i32
    %962 = tpu.dynamic_rotate %961 by %c1_i32_323 dim 0 : vector<16x64xf32>, i32 -> vector<16x64xf32>
    %c-1_i32_324 = arith.constant -1 : i32
    %963 = vector.broadcast %c-1_i32_324 : i32 to vector<16x1xi32>
    %964 = arith.addi %151, %963 : vector<16x1xi32>
    %c0_i32_325 = arith.constant 0 : i32
    %965 = vector.broadcast %c0_i32_325 : i32 to vector<16x1xi32>
    %966 = arith.cmpi sge, %964, %965 : vector<16x1xi32>
    %c2_i32_326 = arith.constant 2 : i32
    %967 = vector.broadcast %c2_i32_326 : i32 to vector<16x1xi32>
    %968 = arith.cmpi slt, %964, %967 : vector<16x1xi32>
    %969 = arith.andi %966, %968 : vector<16x1xi1>
    %cst_327 = arith.constant 0.000000e+00 : f32
    %970 = vector.shape_cast %969 : vector<16x1xi1> to vector<16x1xi1>
    %971 = vector.broadcast %970 : vector<16x1xi1> to vector<16x64xi1>
    %972 = vector.broadcast %cst_327 : f32 to vector<16x64xf32>
    %973 = arith.select %971, %962, %972 : vector<16x64xi1>, vector<16x64xf32>
    %974 = vector.extract_strided_slice %960 {offsets = [0, 64], sizes = [16, 64], strides = [1, 1]} : vector<16x192xf32> to vector<16x64xf32>
    %975 = arith.addf %973, %974 : vector<16x64xf32>
    %976 = vector.extract_strided_slice %960 {offsets = [0, 128], sizes = [16, 64], strides = [1, 1]} : vector<16x192xf32> to vector<16x64xf32>
    %c15_i32_328 = arith.constant 15 : i32
    %977 = tpu.dynamic_rotate %976 by %c15_i32_328 dim 0 : vector<16x64xf32>, i32 -> vector<16x64xf32>
    %c1_i32_329 = arith.constant 1 : i32
    %978 = vector.broadcast %c1_i32_329 : i32 to vector<16x1xi32>
    %979 = arith.addi %151, %978 : vector<16x1xi32>
    %c0_i32_330 = arith.constant 0 : i32
    %980 = vector.broadcast %c0_i32_330 : i32 to vector<16x1xi32>
    %981 = arith.cmpi sge, %979, %980 : vector<16x1xi32>
    %c2_i32_331 = arith.constant 2 : i32
    %982 = vector.broadcast %c2_i32_331 : i32 to vector<16x1xi32>
    %983 = arith.cmpi slt, %979, %982 : vector<16x1xi32>
    %984 = arith.andi %981, %983 : vector<16x1xi1>
    %cst_332 = arith.constant 0.000000e+00 : f32
    %985 = vector.shape_cast %984 : vector<16x1xi1> to vector<16x1xi1>
    %986 = vector.broadcast %985 : vector<16x1xi1> to vector<16x64xi1>
    %987 = vector.broadcast %cst_332 : f32 to vector<16x64xf32>
    %988 = arith.select %986, %977, %987 : vector<16x64xi1>, vector<16x64xf32>
    %989 = arith.addf %975, %988 : vector<16x64xf32>
    %c0_333 = arith.constant 0 : index
    %c0_334 = arith.constant 0 : index
    %990 = vector.load %arg38[%c0_333, %c0_334] : memref<1x64xf32, #tpu.memory_space<vmem>>, vector<1x64xf32>
    %991 = vector.broadcast %990 : vector<1x64xf32> to vector<16x64xf32>
    %992 = arith.addf %989, %991 : vector<16x64xf32>
    %993 = arith.addf %992, %917 : vector<16x64xf32>
    %994 = math.tanh %993 : vector<16x64xf32>
    %c2_i32_335 = arith.constant 2 : i32
    %995 = vector.broadcast %c2_i32_335 : i32 to vector<16x1xi32>
    %996 = arith.cmpi slt, %151, %995 : vector<16x1xi32>
    %cst_336 = arith.constant 0.000000e+00 : f32
    %997 = vector.shape_cast %996 : vector<16x1xi1> to vector<16x1xi1>
    %998 = vector.broadcast %997 : vector<16x1xi1> to vector<16x64xi1>
    %999 = vector.broadcast %cst_336 : f32 to vector<16x64xf32>
    %1000 = arith.select %998, %994, %999 : vector<16x64xi1>, vector<16x64xf32>
    %cst_337 = arith.constant dense<0.000000e+00> : vector<64xf32>
    %1001 = vector.multi_reduction <add>, %1000, %cst_337 [0] : vector<16x64xf32> to vector<64xf32>
    %1002 = vector.shape_cast %1001 : vector<64xf32> to vector<1x64xf32>
    %cst_338 = arith.constant 5.000000e-01 : f32
    %1003 = vector.broadcast %cst_338 : f32 to vector<1x64xf32>
    %1004 = arith.mulf %1002, %1003 : vector<1x64xf32>
    %1005 = arith.truncf %1004 : vector<1x64xf32> to vector<1x64xbf16>
    %c0_339 = arith.constant 0 : index
    %c0_340 = arith.constant 0 : index
    %1006 = vector.load %arg39[%c0_339, %c0_340] : memref<64x128xbf16, #tpu.memory_space<vmem>>, vector<64x128xbf16>
    %cst_341 = arith.constant dense<0.000000e+00> : vector<1x128xf32>
    %1007 = tpu.matmul %1005, %1006, %cst_341 {dimension_numbers = #tpu.dot_dimension_numbers<[1], [0], [0], [1], [0, 0, 1, 1], [], []>} : vector<1x64xbf16>, vector<64x128xbf16>, vector<1x128xf32> -> vector<1x128xf32>
    %c0_342 = arith.constant 0 : index
    %c0_343 = arith.constant 0 : index
    %1008 = vector.load %arg40[%c0_342, %c0_343] : memref<1x128xf32, #tpu.memory_space<vmem>>, vector<1x128xf32>
    %1009 = arith.addf %1007, %1008 : vector<1x128xf32>
    %cst_344 = arith.constant dense<0xFF800000> : vector<1xf32>
    %1010 = vector.multi_reduction <maximumf>, %1009, %cst_344 [1] : vector<1x128xf32> to vector<1xf32>
    %1011 = vector.shape_cast %1010 : vector<1xf32> to vector<1x1xf32>
    %1012 = vector.broadcast %1011 : vector<1x1xf32> to vector<1x128xf32>
    %1013 = arith.subf %1009, %1012 : vector<1x128xf32>
    %1014 = math.exp %1013 : vector<1x128xf32>
    %cst_345 = arith.constant dense<0.000000e+00> : vector<1xf32>
    %1015 = vector.multi_reduction <add>, %1014, %cst_345 [1] : vector<1x128xf32> to vector<1xf32>
    %1016 = vector.shape_cast %1015 : vector<1xf32> to vector<1x1xf32>
    %1017 = math.log %1016 : vector<1x1xf32>
    %1018 = vector.broadcast %1017 : vector<1x1xf32> to vector<1x128xf32>
    %1019 = arith.subf %1013, %1018 : vector<1x128xf32>
    %1020 = vector.shape_cast %1019 : vector<1x128xf32> to vector<1x128xf32>
    %1021 = vector.broadcast %1020 : vector<1x128xf32> to vector<8x128xf32>
    %c0_346 = arith.constant 0 : index
    %c0_347 = arith.constant 0 : index
    %c0_348 = arith.constant 0 : index
    %1022 = vector.load %arg41[%c0_346, %c0_347, %c0_348] : memref<1x8x128xf32, #tpu.memory_space<vmem>>, vector<1x8x128xf32>
    %1023 = vector.shape_cast %1022 : vector<1x8x128xf32> to vector<8x128xf32>
    %1024 = vector.shape_cast %1021 : vector<8x128xf32> to vector<1x8x128xf32>
    tpu.vector_store %arg41[%c0_346, %c0_347, %c0_348], %1024 {strides = array<i32>} : memref<1x8x128xf32, #tpu.memory_space<vmem>>, vector<1x8x128xf32>,
    return
  }
  func.func @transform_0(%arg0: i32) -> (i32, i32, i32) {
    %c0_i32 = arith.constant 0 : i32
    %c0_i32_0 = arith.constant 0 : i32
    %c0_i32_1 = arith.constant 0 : i32
    return %arg0, %c0_i32, %c0_i32_0 : i32, i32, i32
  }
  func.func @transform_1(%arg0: i32) -> (i32, i32) {
    %c0_i32 = arith.constant 0 : i32
    %c0_i32_0 = arith.constant 0 : i32
    %c0_i32_1 = arith.constant 0 : i32
    return %c0_i32, %c0_i32_0 : i32, i32
  }
  func.func @transform_2(%arg0: i32) -> (i32, i32) {
    %c0_i32 = arith.constant 0 : i32
    %c0_i32_0 = arith.constant 0 : i32
    %c0_i32_1 = arith.constant 0 : i32
    return %c0_i32, %c0_i32_0 : i32, i32
  }
  func.func @transform_3(%arg0: i32) -> (i32, i32) {
    %c0_i32 = arith.constant 0 : i32
    %c0_i32_0 = arith.constant 0 : i32
    %c0_i32_1 = arith.constant 0 : i32
    return %c0_i32, %c0_i32_0 : i32, i32
  }
  func.func @transform_4(%arg0: i32) -> (i32, i32) {
    %c0_i32 = arith.constant 0 : i32
    %c0_i32_0 = arith.constant 0 : i32
    %c0_i32_1 = arith.constant 0 : i32
    return %c0_i32, %c0_i32_0 : i32, i32
  }
  func.func @transform_5(%arg0: i32) -> (i32, i32) {
    %c0_i32 = arith.constant 0 : i32
    %c0_i32_0 = arith.constant 0 : i32
    %c0_i32_1 = arith.constant 0 : i32
    return %c0_i32, %c0_i32_0 : i32, i32
  }
  func.func @transform_6(%arg0: i32) -> (i32, i32) {
    %c0_i32 = arith.constant 0 : i32
    %c0_i32_0 = arith.constant 0 : i32
    %c0_i32_1 = arith.constant 0 : i32
    return %c0_i32, %c0_i32_0 : i32, i32
  }
  func.func @transform_7(%arg0: i32) -> (i32, i32) {
    %c0_i32 = arith.constant 0 : i32
    %c0_i32_0 = arith.constant 0 : i32
    %c0_i32_1 = arith.constant 0 : i32
    return %c0_i32, %c0_i32_0 : i32, i32
  }
  func.func @transform_8(%arg0: i32) -> (i32, i32) {
    %c0_i32 = arith.constant 0 : i32
    %c0_i32_0 = arith.constant 0 : i32
    %c0_i32_1 = arith.constant 0 : i32
    return %c0_i32, %c0_i32_0 : i32, i32
  }
  func.func @transform_9(%arg0: i32) -> (i32, i32) {
    %c0_i32 = arith.constant 0 : i32
    %c0_i32_0 = arith.constant 0 : i32
    %c0_i32_1 = arith.constant 0 : i32
    return %c0_i32, %c0_i32_0 : i32, i32
  }
  func.func @transform_10(%arg0: i32) -> (i32, i32) {
    %c0_i32 = arith.constant 0 : i32
    %c0_i32_0 = arith.constant 0 : i32
    %c0_i32_1 = arith.constant 0 : i32
    return %c0_i32, %c0_i32_0 : i32, i32
  }
  func.func @transform_11(%arg0: i32) -> (i32, i32) {
    %c0_i32 = arith.constant 0 : i32
    %c0_i32_0 = arith.constant 0 : i32
    %c0_i32_1 = arith.constant 0 : i32
    return %c0_i32, %c0_i32_0 : i32, i32
  }
  func.func @transform_12(%arg0: i32) -> (i32, i32) {
    %c0_i32 = arith.constant 0 : i32
    %c0_i32_0 = arith.constant 0 : i32
    %c0_i32_1 = arith.constant 0 : i32
    return %c0_i32, %c0_i32_0 : i32, i32
  }
  func.func @transform_13(%arg0: i32) -> (i32, i32) {
    %c0_i32 = arith.constant 0 : i32
    %c0_i32_0 = arith.constant 0 : i32
    %c0_i32_1 = arith.constant 0 : i32
    return %c0_i32, %c0_i32_0 : i32, i32
  }
  func.func @transform_14(%arg0: i32) -> (i32, i32) {
    %c0_i32 = arith.constant 0 : i32
    %c0_i32_0 = arith.constant 0 : i32
    %c0_i32_1 = arith.constant 0 : i32
    return %c0_i32, %c0_i32_0 : i32, i32
  }
  func.func @transform_15(%arg0: i32) -> (i32, i32) {
    %c0_i32 = arith.constant 0 : i32
    %c0_i32_0 = arith.constant 0 : i32
    %c0_i32_1 = arith.constant 0 : i32
    return %c0_i32, %c0_i32_0 : i32, i32
  }
  func.func @transform_16(%arg0: i32) -> (i32, i32) {
    %c0_i32 = arith.constant 0 : i32
    %c0_i32_0 = arith.constant 0 : i32
    %c0_i32_1 = arith.constant 0 : i32
    return %c0_i32, %c0_i32_0 : i32, i32
  }
  func.func @transform_17(%arg0: i32) -> (i32, i32) {
    %c0_i32 = arith.constant 0 : i32
    %c0_i32_0 = arith.constant 0 : i32
    %c0_i32_1 = arith.constant 0 : i32
    return %c0_i32, %c0_i32_0 : i32, i32
  }
  func.func @transform_18(%arg0: i32) -> (i32, i32) {
    %c0_i32 = arith.constant 0 : i32
    %c0_i32_0 = arith.constant 0 : i32
    %c0_i32_1 = arith.constant 0 : i32
    return %c0_i32, %c0_i32_0 : i32, i32
  }
  func.func @transform_19(%arg0: i32) -> (i32, i32) {
    %c0_i32 = arith.constant 0 : i32
    %c0_i32_0 = arith.constant 0 : i32
    %c0_i32_1 = arith.constant 0 : i32
    return %c0_i32, %c0_i32_0 : i32, i32
  }
  func.func @transform_20(%arg0: i32) -> (i32, i32) {
    %c0_i32 = arith.constant 0 : i32
    %c0_i32_0 = arith.constant 0 : i32
    %c0_i32_1 = arith.constant 0 : i32
    return %c0_i32, %c0_i32_0 : i32, i32
  }
  func.func @transform_21(%arg0: i32) -> (i32, i32) {
    %c0_i32 = arith.constant 0 : i32
    %c0_i32_0 = arith.constant 0 : i32
    %c0_i32_1 = arith.constant 0 : i32
    return %c0_i32, %c0_i32_0 : i32, i32
  }
  func.func @transform_22(%arg0: i32) -> (i32, i32) {
    %c0_i32 = arith.constant 0 : i32
    %c0_i32_0 = arith.constant 0 : i32
    %c0_i32_1 = arith.constant 0 : i32
    return %c0_i32, %c0_i32_0 : i32, i32
  }
  func.func @transform_23(%arg0: i32) -> (i32, i32) {
    %c0_i32 = arith.constant 0 : i32
    %c0_i32_0 = arith.constant 0 : i32
    %c0_i32_1 = arith.constant 0 : i32
    return %c0_i32, %c0_i32_0 : i32, i32
  }
  func.func @transform_24(%arg0: i32) -> (i32, i32) {
    %c0_i32 = arith.constant 0 : i32
    %c0_i32_0 = arith.constant 0 : i32
    %c0_i32_1 = arith.constant 0 : i32
    return %c0_i32, %c0_i32_0 : i32, i32
  }
  func.func @transform_25(%arg0: i32) -> (i32, i32) {
    %c0_i32 = arith.constant 0 : i32
    %c0_i32_0 = arith.constant 0 : i32
    %c0_i32_1 = arith.constant 0 : i32
    return %c0_i32, %c0_i32_0 : i32, i32
  }
  func.func @transform_26(%arg0: i32) -> (i32, i32) {
    %c0_i32 = arith.constant 0 : i32
    %c0_i32_0 = arith.constant 0 : i32
    %c0_i32_1 = arith.constant 0 : i32
    return %c0_i32, %c0_i32_0 : i32, i32
  }
  func.func @transform_27(%arg0: i32) -> (i32, i32) {
    %c0_i32 = arith.constant 0 : i32
    %c0_i32_0 = arith.constant 0 : i32
    %c0_i32_1 = arith.constant 0 : i32
    return %c0_i32, %c0_i32_0 : i32, i32
  }
  func.func @transform_28(%arg0: i32) -> (i32, i32) {
    %c0_i32 = arith.constant 0 : i32
    %c0_i32_0 = arith.constant 0 : i32
    %c0_i32_1 = arith.constant 0 : i32
    return %c0_i32, %c0_i32_0 : i32, i32
  }
  func.func @transform_29(%arg0: i32) -> (i32, i32) {
    %c0_i32 = arith.constant 0 : i32
    %c0_i32_0 = arith.constant 0 : i32
    %c0_i32_1 = arith.constant 0 : i32
    return %c0_i32, %c0_i32_0 : i32, i32
  }
  func.func @transform_30(%arg0: i32) -> (i32, i32) {
    %c0_i32 = arith.constant 0 : i32
    %c0_i32_0 = arith.constant 0 : i32
    %c0_i32_1 = arith.constant 0 : i32
    return %c0_i32, %c0_i32_0 : i32, i32
  }
  func.func @transform_31(%arg0: i32) -> (i32, i32) {
    %c0_i32 = arith.constant 0 : i32
    %c0_i32_0 = arith.constant 0 : i32
    %c0_i32_1 = arith.constant 0 : i32
    return %c0_i32, %c0_i32_0 : i32, i32
  }
  func.func @transform_32(%arg0: i32) -> (i32, i32) {
    %c0_i32 = arith.constant 0 : i32
    %c0_i32_0 = arith.constant 0 : i32
    %c0_i32_1 = arith.constant 0 : i32
    return %c0_i32, %c0_i32_0 : i32, i32
  }
  func.func @transform_33(%arg0: i32) -> (i32, i32) {
    %c0_i32 = arith.constant 0 : i32
    %c0_i32_0 = arith.constant 0 : i32
    %c0_i32_1 = arith.constant 0 : i32
    return %c0_i32, %c0_i32_0 : i32, i32
  }
  func.func @transform_34(%arg0: i32) -> (i32, i32) {
    %c0_i32 = arith.constant 0 : i32
    %c0_i32_0 = arith.constant 0 : i32
    %c0_i32_1 = arith.constant 0 : i32
    return %c0_i32, %c0_i32_0 : i32, i32
  }
  func.func @transform_35(%arg0: i32) -> (i32, i32) {
    %c0_i32 = arith.constant 0 : i32
    %c0_i32_0 = arith.constant 0 : i32
    %c0_i32_1 = arith.constant 0 : i32
    return %c0_i32, %c0_i32_0 : i32, i32
  }
  func.func @transform_36(%arg0: i32) -> (i32, i32) {
    %c0_i32 = arith.constant 0 : i32
    %c0_i32_0 = arith.constant 0 : i32
    %c0_i32_1 = arith.constant 0 : i32
    return %c0_i32, %c0_i32_0 : i32, i32
  }
  func.func @transform_37(%arg0: i32) -> (i32, i32) {
    %c0_i32 = arith.constant 0 : i32
    %c0_i32_0 = arith.constant 0 : i32
    %c0_i32_1 = arith.constant 0 : i32
    return %c0_i32, %c0_i32_0 : i32, i32
  }
  func.func @transform_38(%arg0: i32) -> (i32, i32) {
    %c0_i32 = arith.constant 0 : i32
    %c0_i32_0 = arith.constant 0 : i32
    %c0_i32_1 = arith.constant 0 : i32
    return %c0_i32, %c0_i32_0 : i32, i32
  }
  func.func @transform_39(%arg0: i32) -> (i32, i32) {
    %c0_i32 = arith.constant 0 : i32
    %c0_i32_0 = arith.constant 0 : i32
    %c0_i32_1 = arith.constant 0 : i32
    return %c0_i32, %c0_i32_0 : i32, i32
  }
  func.func @transform_40(%arg0: i32) -> (i32, i32, i32) {
    %c0_i32 = arith.constant 0 : i32
    %c0_i32_0 = arith.constant 0 : i32
    %c0_i32_1 = arith.constant 0 : i32
    return %arg0, %c0_i32, %c0_i32_0 : i32, i32, i32
  }
}

</mosaic_0001>

<llo_original>
// kernel: selfresnet_forward.1
$region0: #{selfresnet_forward.1}
  #allocation0 [shape = 'u32[]', space=smem, size = 0x4, offset = 0x4, fixed_abs, tag = 'smem constant byte address 0x4 - core index']
  #allocation1 [shape = 'u32[144,128]{1,0:T(1,128)}', space=vmem, size = 0x12000, scoped, tag = 'internal scratch']
  %s0 = inlined_call_operand.smem [shape: u32[41], index: -1, kind: input, shape index: {}]
  %s1 = sld [smem:[%s0]]
  %s2 = scalar_lea.smem %s0, 1
  %s3 = sld [smem:[%s2]]
  %s4 = scalar_lea.smem %s0, 2
  %s5 = sld [smem:[%s4]]
  %s6 = scalar_lea.smem %s0, 3
  %s7 = sld [smem:[%s6]]
  %s8 = scalar_lea.smem %s0, 4
  %s9 = sld [smem:[%s8]]
  %s10 = scalar_lea.smem %s0, 5
  %s11 = sld [smem:[%s10]]
  %s12 = scalar_lea.smem %s0, 6
  %s13 = sld [smem:[%s12]]
  %s14 = scalar_lea.smem %s0, 7
  %s15 = sld [smem:[%s14]]
  %s16 = scalar_lea.smem %s0, 8
  %s17 = sld [smem:[%s16]]
  %s18 = scalar_lea.smem %s0, 9
  %s19 = sld [smem:[%s18]]
  %s20 = scalar_lea.smem %s0, 10
  %s21 = sld [smem:[%s20]]
  %s22 = scalar_lea.smem %s0, 11
  %s23 = sld [smem:[%s22]]
  %s24 = scalar_lea.smem %s0, 12
  %s25 = sld [smem:[%s24]]
  %s26 = scalar_lea.smem %s0, 13
  %s27 = sld [smem:[%s26]]
  %s28 = scalar_lea.smem %s0, 14
  %s29 = sld [smem:[%s28]]
  %s30 = scalar_lea.smem %s0, 15
  %s31 = sld [smem:[%s30]]
  %s32 = scalar_lea.smem %s0, 16
  %s33 = sld [smem:[%s32]]
  %s34 = scalar_lea.smem %s0, 17
  %s35 = sld [smem:[%s34]]
  %s36 = scalar_lea.smem %s0, 18
  %s37 = sld [smem:[%s36]]
  %s38 = scalar_lea.smem %s0, 19
  %s39 = sld [smem:[%s38]]
  %s40 = scalar_lea.smem %s0, 20
  %s41 = sld [smem:[%s40]]
  %s42 = scalar_lea.smem %s0, 21
  %s43 = sld [smem:[%s42]]
  %s44 = scalar_lea.smem %s0, 22
  %s45 = sld [smem:[%s44]]
  %s46 = scalar_lea.smem %s0, 23
  %s47 = sld [smem:[%s46]]
  %s48 = scalar_lea.smem %s0, 24
  %s49 = sld [smem:[%s48]]
  %s50 = scalar_lea.smem %s0, 25
  %s51 = sld [smem:[%s50]]
  %s52 = scalar_lea.smem %s0, 26
  %s53 = sld [smem:[%s52]]
  %s54 = scalar_lea.smem %s0, 27
  %s55 = sld [smem:[%s54]]
  %s56 = scalar_lea.smem %s0, 28
  %s57 = sld [smem:[%s56]]
  %s58 = scalar_lea.smem %s0, 29
  %s59 = sld [smem:[%s58]]
  %s60 = scalar_lea.smem %s0, 30
  %s61 = sld [smem:[%s60]]
  %s62 = scalar_lea.smem %s0, 31
  %s63 = sld [smem:[%s62]]
  %s64 = scalar_lea.smem %s0, 32
  %s65 = sld [smem:[%s64]]
  %s66 = scalar_lea.smem %s0, 33
  %s67 = sld [smem:[%s66]]
  %s68 = scalar_lea.smem %s0, 34
  %s69 = sld [smem:[%s68]]
  %s70 = scalar_lea.smem %s0, 35
  %s71 = sld [smem:[%s70]]
  %s72 = scalar_lea.smem %s0, 36
  %s73 = sld [smem:[%s72]]
  %s74 = scalar_lea.smem %s0, 37
  %s75 = sld [smem:[%s74]]
  %s76 = scalar_lea.smem %s0, 38
  %s77 = sld [smem:[%s76]]
  %s78 = scalar_lea.smem %s0, 39
  %s79 = sld [smem:[%s78]]
  %s80 = scalar_lea.smem %s0, 40
  %s81 = sld [smem:[%s80]]
  %s82 = sld [smem:[#allocation0]]
  $region193: #{selfresnet_forward.1} parent=0
    _
  %s84 = ssub.s32 1, %s82
  %s85 = scalar_select 0, %s84, %s82
  loop: start=0, step=1, limit=4
  $region2: #{selfresnet_forward.1} parent=0 // loop_pre_header
    _
  $region3: #{selfresnet_forward.1} parent=0 // loop_header
    %s87 = sphi 0, %s91
    %p88 = scmp.ge.s32.totalorder %s87, 4
    %s97 = sphi 0, %s99
    %s100 = sphi 0, %s97
    %s101 = sphi 0, %s100
    %s117 = sphi 0, %s101
    %s121 = sphi 0, %s121
    %s123 = sphi 0, %s121
    %s124 = sphi 0, %s123
    %s138 = sphi 0, %s124
    %s142 = sphi 0, %s142
    %s144 = sphi 0, %s142
    %s145 = sphi 0, %s144
    %s159 = sphi 0, %s145
    %s163 = sphi 0, %s163
    %s165 = sphi 0, %s163
    %s166 = sphi 0, %s165
    %s180 = sphi 0, %s166
    %s184 = sphi 0, %s184
    %s186 = sphi 0, %s184
    %s187 = sphi 0, %s186
    %s201 = sphi 0, %s187
    %s205 = sphi 0, %s205
    %s207 = sphi 0, %s205
    %s208 = sphi 0, %s207
    %s222 = sphi 0, %s208
    %s226 = sphi 0, %s226
    %s228 = sphi 0, %s226
    %s229 = sphi 0, %s228
    %s243 = sphi 0, %s229
    %s247 = sphi 0, %s247
    %s249 = sphi 0, %s247
    %s250 = sphi 0, %s249
    %s264 = sphi 0, %s250
    %s268 = sphi 0, %s268
    %s270 = sphi 0, %s268
    %s271 = sphi 0, %s270
    %s285 = sphi 0, %s271
    %s289 = sphi 0, %s289
    %s291 = sphi 0, %s289
    %s292 = sphi 0, %s291
    %s306 = sphi 0, %s292
    %s310 = sphi 0, %s310
    %s312 = sphi 0, %s310
    %s313 = sphi 0, %s312
    %s327 = sphi 0, %s313
    %s331 = sphi 0, %s331
    %s333 = sphi 0, %s331
    %s334 = sphi 0, %s333
    %s348 = sphi 0, %s334
    %s352 = sphi 0, %s352
    %s354 = sphi 0, %s352
    %s355 = sphi 0, %s354
    %s369 = sphi 0, %s355
    %s373 = sphi 0, %s373
    %s375 = sphi 0, %s373
    %s376 = sphi 0, %s375
    %s390 = sphi 0, %s376
    %s394 = sphi 0, %s394
    %s396 = sphi 0, %s394
    %s397 = sphi 0, %s396
    %s411 = sphi 0, %s397
    %s415 = sphi 0, %s415
    %s417 = sphi 0, %s415
    %s418 = sphi 0, %s417
    %s432 = sphi 0, %s418
    %s436 = sphi 0, %s436
    %s438 = sphi 0, %s436
    %s439 = sphi 0, %s438
    %s453 = sphi 0, %s439
    %s457 = sphi 0, %s457
    %s459 = sphi 0, %s457
    %s460 = sphi 0, %s459
    %s474 = sphi 0, %s460
    %s478 = sphi 0, %s478
    %s480 = sphi 0, %s478
    %s481 = sphi 0, %s480
    %s495 = sphi 0, %s481
    %s499 = sphi 0, %s499
    %s501 = sphi 0, %s499
    %s502 = sphi 0, %s501
    %s516 = sphi 0, %s502
    %s520 = sphi 0, %s520
    %s522 = sphi 0, %s520
    %s523 = sphi 0, %s522
    %s537 = sphi 0, %s523
    %s541 = sphi 0, %s541
    %s543 = sphi 0, %s541
    %s544 = sphi 0, %s543
    %s558 = sphi 0, %s544
    %s562 = sphi 0, %s562
    %s564 = sphi 0, %s562
    %s565 = sphi 0, %s564
    %s579 = sphi 0, %s565
    %s583 = sphi 0, %s583
    %s585 = sphi 0, %s583
    %s586 = sphi 0, %s585
    %s600 = sphi 0, %s586
    %s604 = sphi 0, %s604
    %s606 = sphi 0, %s604
    %s607 = sphi 0, %s606
    %s621 = sphi 0, %s607
    %s625 = sphi 0, %s625
    %s627 = sphi 0, %s625
    %s628 = sphi 0, %s627
    %s642 = sphi 0, %s628
    %s646 = sphi 0, %s646
    %s648 = sphi 0, %s646
    %s649 = sphi 0, %s648
    %s663 = sphi 0, %s649
    %s667 = sphi 0, %s667
    %s669 = sphi 0, %s667
    %s670 = sphi 0, %s669
    %s684 = sphi 0, %s670
    %s688 = sphi 0, %s688
    %s690 = sphi 0, %s688
    %s691 = sphi 0, %s690
    %s705 = sphi 0, %s691
    %s709 = sphi 0, %s709
    %s711 = sphi 0, %s709
    %s712 = sphi 0, %s711
    %s726 = sphi 0, %s712
    %s730 = sphi 0, %s730
    %s732 = sphi 0, %s730
    %s733 = sphi 0, %s732
    %s747 = sphi 0, %s733
    %s751 = sphi 0, %s751
    %s753 = sphi 0, %s751
    %s754 = sphi 0, %s753
    %s768 = sphi 0, %s754
    %s772 = sphi 0, %s772
    %s774 = sphi 0, %s772
    %s775 = sphi 0, %s774
    %s789 = sphi 0, %s775
    %s793 = sphi 0, %s793
    %s795 = sphi 0, %s793
    %s796 = sphi 0, %s795
    %s810 = sphi 0, %s796
    %s814 = sphi 0, %s814
    %s816 = sphi 0, %s814
    %s817 = sphi 0, %s816
    %s831 = sphi 0, %s817
    %s835 = sphi 0, %s835
    %s837 = sphi 0, %s835
    %s838 = sphi 0, %s837
    %s852 = sphi 0, %s838
    %s856 = sphi 0, %s856
    %s858 = sphi 0, %s856
    %s859 = sphi 0, %s858
    %s873 = sphi 0, %s859
    %s877 = sphi 0, %s877
    %s879 = sphi 0, %s877
    %s880 = sphi 0, %s879
    %s894 = sphi 0, %s880
    %s898 = sphi 0, %s898
    %s900 = sphi 0, %s898
    %s901 = sphi 0, %s900
    %s915 = sphi 0, %s901
    %s919 = sphi 0, %s919
    %s921 = sphi 0, %s919
    %s922 = sphi 0, %s921
    %s936 = sphi 0, %s922
    %s942 = sphi 0, %s944
    %s945 = sphi 0, %s942
    %s946 = sphi 0, %s945
    %s962 = sphi 0, %s946
  $region4: #{selfresnet_forward.1} parent=0 // loop_header_branch
    %90 = sbr.rel (%p88) target = $region8
  $region5: #{selfresnet_forward.1} parent=0 // loop_body
    %s92 = ssub.s32 %s87, 1
    %s93 = ssub.s32 %s87, 2
    %s94 = sadd.s32 %s87, 1
    %s95 = ssub.s32 %s87, %s94
    %p96 = scmp.eq.s32.totalorder %s95, 0
    %s98 = sadd.s32 %s97, 1
    %s99 = scalar_select %p96, %s97, %s98
    %p102 = pneg %p96
    %p103 = scmp.eq.s32.totalorder %s87, 1
    %p104 = por %p102, %p103
    %p105 = scmp.ne.s32.totalorder %s97, %s100
    %p106 = scmp.eq.s32.totalorder %s87, 0
    %p107 = por %p105, %p106
    %p108 = scmp.ne.s32.totalorder %s97, %s100
    %p109 = scmp.eq.s32.totalorder %s92, 1
    %p110 = por %p108, %p109
    %p111 = scmp.ne.s32.totalorder %s100, %s101
    %p112 = scmp.eq.s32.totalorder %s92, 0
    %p113 = por %p111, %p112
    %p114 = scmp.ne.s32.totalorder %s100, %s101
    %p115 = scmp.eq.s32.totalorder %s93, 1
    %p116 = por %p114, %p115
    %p118 = scmp.ne.s32.totalorder %s101, %s117
    %p119 = scmp.eq.s32.totalorder %s93, 0
    %p120 = por %p118, %p119
    %s122 = sadd.s32 %s121, 1
    %p125 = scmp.eq.s32.totalorder %s87, 1
    %p126 = scmp.ne.s32.totalorder %s121, %s123
    %p127 = scmp.eq.s32.totalorder %s87, 0
    %p128 = por %p126, %p127
    %p129 = scmp.ne.s32.totalorder %s121, %s123
    %p130 = scmp.eq.s32.totalorder %s92, 1
    %p131 = por %p129, %p130
    %p132 = scmp.ne.s32.totalorder %s123, %s124
    %p133 = scmp.eq.s32.totalorder %s92, 0
    %p134 = por %p132, %p133
    %p135 = scmp.ne.s32.totalorder %s123, %s124
    %p136 = scmp.eq.s32.totalorder %s93, 1
    %p137 = por %p135, %p136
    %p139 = scmp.ne.s32.totalorder %s124, %s138
    %p140 = scmp.eq.s32.totalorder %s93, 0
    %p141 = por %p139, %p140
    %s143 = sadd.s32 %s142, 1
    %p146 = scmp.eq.s32.totalorder %s87, 1
    %p147 = scmp.ne.s32.totalorder %s142, %s144
    %p148 = scmp.eq.s32.totalorder %s87, 0
    %p149 = por %p147, %p148
    %p150 = scmp.ne.s32.totalorder %s142, %s144
    %p151 = scmp.eq.s32.totalorder %s92, 1
    %p152 = por %p150, %p151
    %p153 = scmp.ne.s32.totalorder %s144, %s145
    %p154 = scmp.eq.s32.totalorder %s92, 0
    %p155 = por %p153, %p154
    %p156 = scmp.ne.s32.totalorder %s144, %s145
    %p157 = scmp.eq.s32.totalorder %s93, 1
    %p158 = por %p156, %p157
    %p160 = scmp.ne.s32.totalorder %s145, %s159
    %p161 = scmp.eq.s32.totalorder %s93, 0
    %p162 = por %p160, %p161
    %s164 = sadd.s32 %s163, 1
    %p167 = scmp.eq.s32.totalorder %s87, 1
    %p168 = scmp.ne.s32.totalorder %s163, %s165
    %p169 = scmp.eq.s32.totalorder %s87, 0
    %p170 = por %p168, %p169
    %p171 = scmp.ne.s32.totalorder %s163, %s165
    %p172 = scmp.eq.s32.totalorder %s92, 1
    %p173 = por %p171, %p172
    %p174 = scmp.ne.s32.totalorder %s165, %s166
    %p175 = scmp.eq.s32.totalorder %s92, 0
    %p176 = por %p174, %p175
    %p177 = scmp.ne.s32.totalorder %s165, %s166
    %p178 = scmp.eq.s32.totalorder %s93, 1
    %p179 = por %p177, %p178
    %p181 = scmp.ne.s32.totalorder %s166, %s180
    %p182 = scmp.eq.s32.totalorder %s93, 0
    %p183 = por %p181, %p182
    %s185 = sadd.s32 %s184, 1
    %p188 = scmp.eq.s32.totalorder %s87, 1
    %p189 = scmp.ne.s32.totalorder %s184, %s186
    %p190 = scmp.eq.s32.totalorder %s87, 0
    %p191 = por %p189, %p190
    %p192 = scmp.ne.s32.totalorder %s184, %s186
    %p193 = scmp.eq.s32.totalorder %s92, 1
    %p194 = por %p192, %p193
    %p195 = scmp.ne.s32.totalorder %s186, %s187
    %p196 = scmp.eq.s32.totalorder %s92, 0
    %p197 = por %p195, %p196
    %p198 = scmp.ne.s32.totalorder %s186, %s187
    %p199 = scmp.eq.s32.totalorder %s93, 1
    %p200 = por %p198, %p199
    %p202 = scmp.ne.s32.totalorder %s187, %s201
    %p203 = scmp.eq.s32.totalorder %s93, 0
    %p204 = por %p202, %p203
    %s206 = sadd.s32 %s205, 1
    %p209 = scmp.eq.s32.totalorder %s87, 1
    %p210 = scmp.ne.s32.totalorder %s205, %s207
    %p211 = scmp.eq.s32.totalorder %s87, 0
    %p212 = por %p210, %p211
    %p213 = scmp.ne.s32.totalorder %s205, %s207
    %p214 = scmp.eq.s32.totalorder %s92, 1
    %p215 = por %p213, %p214
    %p216 = scmp.ne.s32.totalorder %s207, %s208
    %p217 = scmp.eq.s32.totalorder %s92, 0
    %p218 = por %p216, %p217
    %p219 = scmp.ne.s32.totalorder %s207, %s208
    %p220 = scmp.eq.s32.totalorder %s93, 1
    %p221 = por %p219, %p220
    %p223 = scmp.ne.s32.totalorder %s208, %s222
    %p224 = scmp.eq.s32.totalorder %s93, 0
    %p225 = por %p223, %p224
    %s227 = sadd.s32 %s226, 1
    %p230 = scmp.eq.s32.totalorder %s87, 1
    %p231 = scmp.ne.s32.totalorder %s226, %s228
    %p232 = scmp.eq.s32.totalorder %s87, 0
    %p233 = por %p231, %p232
    %p234 = scmp.ne.s32.totalorder %s226, %s228
    %p235 = scmp.eq.s32.totalorder %s92, 1
    %p236 = por %p234, %p235
    %p237 = scmp.ne.s32.totalorder %s228, %s229
    %p238 = scmp.eq.s32.totalorder %s92, 0
    %p239 = por %p237, %p238
    %p240 = scmp.ne.s32.totalorder %s228, %s229
    %p241 = scmp.eq.s32.totalorder %s93, 1
    %p242 = por %p240, %p241
    %p244 = scmp.ne.s32.totalorder %s229, %s243
    %p245 = scmp.eq.s32.totalorder %s93, 0
    %p246 = por %p244, %p245
    %s248 = sadd.s32 %s247, 1
    %p251 = scmp.eq.s32.totalorder %s87, 1
    %p252 = scmp.ne.s32.totalorder %s247, %s249
    %p253 = scmp.eq.s32.totalorder %s87, 0
    %p254 = por %p252, %p253
    %p255 = scmp.ne.s32.totalorder %s247, %s249
    %p256 = scmp.eq.s32.totalorder %s92, 1
    %p257 = por %p255, %p256
    %p258 = scmp.ne.s32.totalorder %s249, %s250
    %p259 = scmp.eq.s32.totalorder %s92, 0
    %p260 = por %p258, %p259
    %p261 = scmp.ne.s32.totalorder %s249, %s250
    %p262 = scmp.eq.s32.totalorder %s93, 1
    %p263 = por %p261, %p262
    %p265 = scmp.ne.s32.totalorder %s250, %s264
    %p266 = scmp.eq.s32.totalorder %s93, 0
    %p267 = por %p265, %p266
    %s269 = sadd.s32 %s268, 1
    %p272 = scmp.eq.s32.totalorder %s87, 1
    %p273 = scmp.ne.s32.totalorder %s268, %s270
    %p274 = scmp.eq.s32.totalorder %s87, 0
    %p275 = por %p273, %p274
    %p276 = scmp.ne.s32.totalorder %s268, %s270
    %p277 = scmp.eq.s32.totalorder %s92, 1
    %p278 = por %p276, %p277
    %p279 = scmp.ne.s32.totalorder %s270, %s271
    %p280 = scmp.eq.s32.totalorder %s92, 0
    %p281 = por %p279, %p280
    %p282 = scmp.ne.s32.totalorder %s270, %s271
    %p283 = scmp.eq.s32.totalorder %s93, 1
    %p284 = por %p282, %p283
    %p286 = scmp.ne.s32.totalorder %s271, %s285
    %p287 = scmp.eq.s32.totalorder %s93, 0
    %p288 = por %p286, %p287
    %s290 = sadd.s32 %s289, 1
    %p293 = scmp.eq.s32.totalorder %s87, 1
    %p294 = scmp.ne.s32.totalorder %s289, %s291
    %p295 = scmp.eq.s32.totalorder %s87, 0
    %p296 = por %p294, %p295
    %p297 = scmp.ne.s32.totalorder %s289, %s291
    %p298 = scmp.eq.s32.totalorder %s92, 1
    %p299 = por %p297, %p298
    %p300 = scmp.ne.s32.totalorder %s291, %s292
    %p301 = scmp.eq.s32.totalorder %s92, 0
    %p302 = por %p300, %p301
    %p303 = scmp.ne.s32.totalorder %s291, %s292
    %p304 = scmp.eq.s32.totalorder %s93, 1
    %p305 = por %p303, %p304
    %p307 = scmp.ne.s32.totalorder %s292, %s306
    %p308 = scmp.eq.s32.totalorder %s93, 0
    %p309 = por %p307, %p308
    %s311 = sadd.s32 %s310, 1
    %p314 = scmp.eq.s32.totalorder %s87, 1
    %p315 = scmp.ne.s32.totalorder %s310, %s312
    %p316 = scmp.eq.s32.totalorder %s87, 0
    %p317 = por %p315, %p316
    %p318 = scmp.ne.s32.totalorder %s310, %s312
    %p319 = scmp.eq.s32.totalorder %s92, 1
    %p320 = por %p318, %p319
    %p321 = scmp.ne.s32.totalorder %s312, %s313
    %p322 = scmp.eq.s32.totalorder %s92, 0
    %p323 = por %p321, %p322
    %p324 = scmp.ne.s32.totalorder %s312, %s313
    %p325 = scmp.eq.s32.totalorder %s93, 1
    %p326 = por %p324, %p325
    %p328 = scmp.ne.s32.totalorder %s313, %s327
    %p329 = scmp.eq.s32.totalorder %s93, 0
    %p330 = por %p328, %p329
    %s332 = sadd.s32 %s331, 1
    %p335 = scmp.eq.s32.totalorder %s87, 1
    %p336 = scmp.ne.s32.totalorder %s331, %s333
    %p337 = scmp.eq.s32.totalorder %s87, 0
    %p338 = por %p336, %p337
    %p339 = scmp.ne.s32.totalorder %s331, %s333
    %p340 = scmp.eq.s32.totalorder %s92, 1
    %p341 = por %p339, %p340
    %p342 = scmp.ne.s32.totalorder %s333, %s334
    %p343 = scmp.eq.s32.totalorder %s92, 0
    %p344 = por %p342, %p343
    %p345 = scmp.ne.s32.totalorder %s333, %s334
    %p346 = scmp.eq.s32.totalorder %s93, 1
    %p347 = por %p345, %p346
    %p349 = scmp.ne.s32.totalorder %s334, %s348
    %p350 = scmp.eq.s32.totalorder %s93, 0
    %p351 = por %p349, %p350
    %s353 = sadd.s32 %s352, 1
    %p356 = scmp.eq.s32.totalorder %s87, 1
    %p357 = scmp.ne.s32.totalorder %s352, %s354
    %p358 = scmp.eq.s32.totalorder %s87, 0
    %p359 = por %p357, %p358
    %p360 = scmp.ne.s32.totalorder %s352, %s354
    %p361 = scmp.eq.s32.totalorder %s92, 1
    %p362 = por %p360, %p361
    %p363 = scmp.ne.s32.totalorder %s354, %s355
    %p364 = scmp.eq.s32.totalorder %s92, 0
    %p365 = por %p363, %p364
    %p366 = scmp.ne.s32.totalorder %s354, %s355
    %p367 = scmp.eq.s32.totalorder %s93, 1
    %p368 = por %p366, %p367
    %p370 = scmp.ne.s32.totalorder %s355, %s369
    %p371 = scmp.eq.s32.totalorder %s93, 0
    %p372 = por %p370, %p371
    %s374 = sadd.s32 %s373, 1
    %p377 = scmp.eq.s32.totalorder %s87, 1
    %p378 = scmp.ne.s32.totalorder %s373, %s375
    %p379 = scmp.eq.s32.totalorder %s87, 0
    %p380 = por %p378, %p379
    %p381 = scmp.ne.s32.totalorder %s373, %s375
    %p382 = scmp.eq.s32.totalorder %s92, 1
    %p383 = por %p381, %p382
    %p384 = scmp.ne.s32.totalorder %s375, %s376
    %p385 = scmp.eq.s32.totalorder %s92, 0
    %p386 = por %p384, %p385
    %p387 = scmp.ne.s32.totalorder %s375, %s376
    %p388 = scmp.eq.s32.totalorder %s93, 1
    %p389 = por %p387, %p388
    %p391 = scmp.ne.s32.totalorder %s376, %s390
    %p392 = scmp.eq.s32.totalorder %s93, 0
    %p393 = por %p391, %p392
    %s395 = sadd.s32 %s394, 1
    %p398 = scmp.eq.s32.totalorder %s87, 1
    %p399 = scmp.ne.s32.totalorder %s394, %s396
    %p400 = scmp.eq.s32.totalorder %s87, 0
    %p401 = por %p399, %p400
    %p402 = scmp.ne.s32.totalorder %s394, %s396
    %p403 = scmp.eq.s32.totalorder %s92, 1
    %p404 = por %p402, %p403
    %p405 = scmp.ne.s32.totalorder %s396, %s397
    %p406 = scmp.eq.s32.totalorder %s92, 0
    %p407 = por %p405, %p406
    %p408 = scmp.ne.s32.totalorder %s396, %s397
    %p409 = scmp.eq.s32.totalorder %s93, 1
    %p410 = por %p408, %p409
    %p412 = scmp.ne.s32.totalorder %s397, %s411
    %p413 = scmp.eq.s32.totalorder %s93, 0
    %p414 = por %p412, %p413
    %s416 = sadd.s32 %s415, 1
    %p419 = scmp.eq.s32.totalorder %s87, 1
    %p420 = scmp.ne.s32.totalorder %s415, %s417
    %p421 = scmp.eq.s32.totalorder %s87, 0
    %p422 = por %p420, %p421
    %p423 = scmp.ne.s32.totalorder %s415, %s417
    %p424 = scmp.eq.s32.totalorder %s92, 1
    %p425 = por %p423, %p424
    %p426 = scmp.ne.s32.totalorder %s417, %s418
    %p427 = scmp.eq.s32.totalorder %s92, 0
    %p428 = por %p426, %p427
    %p429 = scmp.ne.s32.totalorder %s417, %s418
    %p430 = scmp.eq.s32.totalorder %s93, 1
    %p431 = por %p429, %p430
    %p433 = scmp.ne.s32.totalorder %s418, %s432
    %p434 = scmp.eq.s32.totalorder %s93, 0
    %p435 = por %p433, %p434
    %s437 = sadd.s32 %s436, 1
    %p440 = scmp.eq.s32.totalorder %s87, 1
    %p441 = scmp.ne.s32.totalorder %s436, %s438
    %p442 = scmp.eq.s32.totalorder %s87, 0
    %p443 = por %p441, %p442
    %p444 = scmp.ne.s32.totalorder %s436, %s438
    %p445 = scmp.eq.s32.totalorder %s92, 1
    %p446 = por %p444, %p445
    %p447 = scmp.ne.s32.totalorder %s438, %s439
    %p448 = scmp.eq.s32.totalorder %s92, 0
    %p449 = por %p447, %p448
    %p450 = scmp.ne.s32.totalorder %s438, %s439
    %p451 = scmp.eq.s32.totalorder %s93, 1
    %p452 = por %p450, %p451
    %p454 = scmp.ne.s32.totalorder %s439, %s453
    %p455 = scmp.eq.s32.totalorder %s93, 0
    %p456 = por %p454, %p455
    %s458 = sadd.s32 %s457, 1
    %p461 = scmp.eq.s32.totalorder %s87, 1
    %p462 = scmp.ne.s32.totalorder %s457, %s459
    %p463 = scmp.eq.s32.totalorder %s87, 0
    %p464 = por %p462, %p463
    %p465 = scmp.ne.s32.totalorder %s457, %s459
    %p466 = scmp.eq.s32.totalorder %s92, 1
    %p467 = por %p465, %p466
    %p468 = scmp.ne.s32.totalorder %s459, %s460
    %p469 = scmp.eq.s32.totalorder %s92, 0
    %p470 = por %p468, %p469
    %p471 = scmp.ne.s32.totalorder %s459, %s460
    %p472 = scmp.eq.s32.totalorder %s93, 1
    %p473 = por %p471, %p472
    %p475 = scmp.ne.s32.totalorder %s460, %s474
    %p476 = scmp.eq.s32.totalorder %s93, 0
    %p477 = por %p475, %p476
    %s479 = sadd.s32 %s478, 1
    %p482 = scmp.eq.s32.totalorder %s87, 1
    %p483 = scmp.ne.s32.totalorder %s478, %s480
    %p484 = scmp.eq.s32.totalorder %s87, 0
    %p485 = por %p483, %p484
    %p486 = scmp.ne.s32.totalorder %s478, %s480
    %p487 = scmp.eq.s32.totalorder %s92, 1
    %p488 = por %p486, %p487
    %p489 = scmp.ne.s32.totalorder %s480, %s481
    %p490 = scmp.eq.s32.totalorder %s92, 0
    %p491 = por %p489, %p490
    %p492 = scmp.ne.s32.totalorder %s480, %s481
    %p493 = scmp.eq.s32.totalorder %s93, 1
    %p494 = por %p492, %p493
    %p496 = scmp.ne.s32.totalorder %s481, %s495
    %p497 = scmp.eq.s32.totalorder %s93, 0
    %p498 = por %p496, %p497
    %s500 = sadd.s32 %s499, 1
    %p503 = scmp.eq.s32.totalorder %s87, 1
    %p504 = scmp.ne.s32.totalorder %s499, %s501
    %p505 = scmp.eq.s32.totalorder %s87, 0
    %p506 = por %p504, %p505
    %p507 = scmp.ne.s32.totalorder %s499, %s501
    %p508 = scmp.eq.s32.totalorder %s92, 1
    %p509 = por %p507, %p508
    %p510 = scmp.ne.s32.totalorder %s501, %s502
    %p511 = scmp.eq.s32.totalorder %s92, 0
    %p512 = por %p510, %p511
    %p513 = scmp.ne.s32.totalorder %s501, %s502
    %p514 = scmp.eq.s32.totalorder %s93, 1
    %p515 = por %p513, %p514
    %p517 = scmp.ne.s32.totalorder %s502, %s516
    %p518 = scmp.eq.s32.totalorder %s93, 0
    %p519 = por %p517, %p518
    %s521 = sadd.s32 %s520, 1
    %p524 = scmp.eq.s32.totalorder %s87, 1
    %p525 = scmp.ne.s32.totalorder %s520, %s522
    %p526 = scmp.eq.s32.totalorder %s87, 0
    %p527 = por %p525, %p526
    %p528 = scmp.ne.s32.totalorder %s520, %s522
    %p529 = scmp.eq.s32.totalorder %s92, 1
    %p530 = por %p528, %p529
    %p531 = scmp.ne.s32.totalorder %s522, %s523
    %p532 = scmp.eq.s32.totalorder %s92, 0
    %p533 = por %p531, %p532
    %p534 = scmp.ne.s32.totalorder %s522, %s523
    %p535 = scmp.eq.s32.totalorder %s93, 1
    %p536 = por %p534, %p535
    %p538 = scmp.ne.s32.totalorder %s523, %s537
    %p539 = scmp.eq.s32.totalorder %s93, 0
    %p540 = por %p538, %p539
    %s542 = sadd.s32 %s541, 1
    %p545 = scmp.eq.s32.totalorder %s87, 1
    %p546 = scmp.ne.s32.totalorder %s541, %s543
    %p547 = scmp.eq.s32.totalorder %s87, 0
    %p548 = por %p546, %p547
    %p549 = scmp.ne.s32.totalorder %s541, %s543
    %p550 = scmp.eq.s32.totalorder %s92, 1
    %p551 = por %p549, %p550
    %p552 = scmp.ne.s32.totalorder %s543, %s544
    %p553 = scmp.eq.s32.totalorder %s92, 0
    %p554 = por %p552, %p553
    %p555 = scmp.ne.s32.totalorder %s543, %s544
    %p556 = scmp.eq.s32.totalorder %s93, 1
    %p557 = por %p555, %p556
    %p559 = scmp.ne.s32.totalorder %s544, %s558
    %p560 = scmp.eq.s32.totalorder %s93, 0
    %p561 = por %p559, %p560
    %s563 = sadd.s32 %s562, 1
    %p566 = scmp.eq.s32.totalorder %s87, 1
    %p567 = scmp.ne.s32.totalorder %s562, %s564
    %p568 = scmp.eq.s32.totalorder %s87, 0
    %p569 = por %p567, %p568
    %p570 = scmp.ne.s32.totalorder %s562, %s564
    %p571 = scmp.eq.s32.totalorder %s92, 1
    %p572 = por %p570, %p571
    %p573 = scmp.ne.s32.totalorder %s564, %s565
    %p574 = scmp.eq.s32.totalorder %s92, 0
    %p575 = por %p573, %p574
    %p576 = scmp.ne.s32.totalorder %s564, %s565
    %p577 = scmp.eq.s32.totalorder %s93, 1
    %p578 = por %p576, %p577
    %p580 = scmp.ne.s32.totalorder %s565, %s579
    %p581 = scmp.eq.s32.totalorder %s93, 0
    %p582 = por %p580, %p581
    %s584 = sadd.s32 %s583, 1
    %p587 = scmp.eq.s32.totalorder %s87, 1
    %p588 = scmp.ne.s32.totalorder %s583, %s585
    %p589 = scmp.eq.s32.totalorder %s87, 0
    %p590 = por %p588, %p589
    %p591 = scmp.ne.s32.totalorder %s583, %s585
    %p592 = scmp.eq.s32.totalorder %s92, 1
    %p593 = por %p591, %p592
    %p594 = scmp.ne.s32.totalorder %s585, %s586
    %p595 = scmp.eq.s32.totalorder %s92, 0
    %p596 = por %p594, %p595
    %p597 = scmp.ne.s32.totalorder %s585, %s586
    %p598 = scmp.eq.s32.totalorder %s93, 1
    %p599 = por %p597, %p598
    %p601 = scmp.ne.s32.totalorder %s586, %s600
    %p602 = scmp.eq.s32.totalorder %s93, 0
    %p603 = por %p601, %p602
    %s605 = sadd.s32 %s604, 1
    %p608 = scmp.eq.s32.totalorder %s87, 1
    %p609 = scmp.ne.s32.totalorder %s604, %s606
    %p610 = scmp.eq.s32.totalorder %s87, 0
    %p611 = por %p609, %p610
    %p612 = scmp.ne.s32.totalorder %s604, %s606
    %p613 = scmp.eq.s32.totalorder %s92, 1
    %p614 = por %p612, %p613
    %p615 = scmp.ne.s32.totalorder %s606, %s607
    %p616 = scmp.eq.s32.totalorder %s92, 0
    %p617 = por %p615, %p616
    %p618 = scmp.ne.s32.totalorder %s606, %s607
    %p619 = scmp.eq.s32.totalorder %s93, 1
    %p620 = por %p618, %p619
    %p622 = scmp.ne.s32.totalorder %s607, %s621
    %p623 = scmp.eq.s32.totalorder %s93, 0
    %p624 = por %p622, %p623
    %s626 = sadd.s32 %s625, 1
    %p629 = scmp.eq.s32.totalorder %s87, 1
    %p630 = scmp.ne.s32.totalorder %s625, %s627
    %p631 = scmp.eq.s32.totalorder %s87, 0
    %p632 = por %p630, %p631
    %p633 = scmp.ne.s32.totalorder %s625, %s627
    %p634 = scmp.eq.s32.totalorder %s92, 1
    %p635 = por %p633, %p634
    %p636 = scmp.ne.s32.totalorder %s627, %s628
    %p637 = scmp.eq.s32.totalorder %s92, 0
    %p638 = por %p636, %p637
    %p639 = scmp.ne.s32.totalorder %s627, %s628
    %p640 = scmp.eq.s32.totalorder %s93, 1
    %p641 = por %p639, %p640
    %p643 = scmp.ne.s32.totalorder %s628, %s642
    %p644 = scmp.eq.s32.totalorder %s93, 0
    %p645 = por %p643, %p644
    %s647 = sadd.s32 %s646, 1
    %p650 = scmp.eq.s32.totalorder %s87, 1
    %p651 = scmp.ne.s32.totalorder %s646, %s648
    %p652 = scmp.eq.s32.totalorder %s87, 0
    %p653 = por %p651, %p652
    %p654 = scmp.ne.s32.totalorder %s646, %s648
    %p655 = scmp.eq.s32.totalorder %s92, 1
    %p656 = por %p654, %p655
    %p657 = scmp.ne.s32.totalorder %s648, %s649
    %p658 = scmp.eq.s32.totalorder %s92, 0
    %p659 = por %p657, %p658
    %p660 = scmp.ne.s32.totalorder %s648, %s649
    %p661 = scmp.eq.s32.totalorder %s93, 1
    %p662 = por %p660, %p661
    %p664 = scmp.ne.s32.totalorder %s649, %s663
    %p665 = scmp.eq.s32.totalorder %s93, 0
    %p666 = por %p664, %p665
    %s668 = sadd.s32 %s667, 1
    %p671 = scmp.eq.s32.totalorder %s87, 1
    %p672 = scmp.ne.s32.totalorder %s667, %s669
    %p673 = scmp.eq.s32.totalorder %s87, 0
    %p674 = por %p672, %p673
    %p675 = scmp.ne.s32.totalorder %s667, %s669
    %p676 = scmp.eq.s32.totalorder %s92, 1
    %p677 = por %p675, %p676
    %p678 = scmp.ne.s32.totalorder %s669, %s670
    %p679 = scmp.eq.s32.totalorder %s92, 0
    %p680 = por %p678, %p679
    %p681 = scmp.ne.s32.totalorder %s669, %s670
    %p682 = scmp.eq.s32.totalorder %s93, 1
    %p683 = por %p681, %p682
    %p685 = scmp.ne.s32.totalorder %s670, %s684
    %p686 = scmp.eq.s32.totalorder %s93, 0
    %p687 = por %p685, %p686
    %s689 = sadd.s32 %s688, 1
    %p692 = scmp.eq.s32.totalorder %s87, 1
    %p693 = scmp.ne.s32.totalorder %s688, %s690
    %p694 = scmp.eq.s32.totalorder %s87, 0
    %p695 = por %p693, %p694
    %p696 = scmp.ne.s32.totalorder %s688, %s690
    %p697 = scmp.eq.s32.totalorder %s92, 1
    %p698 = por %p696, %p697
    %p699 = scmp.ne.s32.totalorder %s690, %s691
    %p700 = scmp.eq.s32.totalorder %s92, 0
    %p701 = por %p699, %p700
    %p702 = scmp.ne.s32.totalorder %s690, %s691
    %p703 = scmp.eq.s32.totalorder %s93, 1
    %p704 = por %p702, %p703
    %p706 = scmp.ne.s32.totalorder %s691, %s705
    %p707 = scmp.eq.s32.totalorder %s93, 0
    %p708 = por %p706, %p707
    %s710 = sadd.s32 %s709, 1
    %p713 = scmp.eq.s32.totalorder %s87, 1
    %p714 = scmp.ne.s32.totalorder %s709, %s711
    %p715 = scmp.eq.s32.totalorder %s87, 0
    %p716 = por %p714, %p715
    %p717 = scmp.ne.s32.totalorder %s709, %s711
    %p718 = scmp.eq.s32.totalorder %s92, 1
    %p719 = por %p717, %p718
    %p720 = scmp.ne.s32.totalorder %s711, %s712
    %p721 = scmp.eq.s32.totalorder %s92, 0
    %p722 = por %p720, %p721
    %p723 = scmp.ne.s32.totalorder %s711, %s712
    %p724 = scmp.eq.s32.totalorder %s93, 1
    %p725 = por %p723, %p724
    %p727 = scmp.ne.s32.totalorder %s712, %s726
    %p728 = scmp.eq.s32.totalorder %s93, 0
    %p729 = por %p727, %p728
    %s731 = sadd.s32 %s730, 1
    %p734 = scmp.eq.s32.totalorder %s87, 1
    %p735 = scmp.ne.s32.totalorder %s730, %s732
    %p736 = scmp.eq.s32.totalorder %s87, 0
    %p737 = por %p735, %p736
    %p738 = scmp.ne.s32.totalorder %s730, %s732
    %p739 = scmp.eq.s32.totalorder %s92, 1
    %p740 = por %p738, %p739
    %p741 = scmp.ne.s32.totalorder %s732, %s733
    %p742 = scmp.eq.s32.totalorder %s92, 0
    %p743 = por %p741, %p742
    %p744 = scmp.ne.s32.totalorder %s732, %s733
    %p745 = scmp.eq.s32.totalorder %s93, 1
    %p746 = por %p744, %p745
    %p748 = scmp.ne.s32.totalorder %s733, %s747
    %p749 = scmp.eq.s32.totalorder %s93, 0
    %p750 = por %p748, %p749
    %s752 = sadd.s32 %s751, 1
    %p755 = scmp.eq.s32.totalorder %s87, 1
    %p756 = scmp.ne.s32.totalorder %s751, %s753
    %p757 = scmp.eq.s32.totalorder %s87, 0
    %p758 = por %p756, %p757
    %p759 = scmp.ne.s32.totalorder %s751, %s753
    %p760 = scmp.eq.s32.totalorder %s92, 1
    %p761 = por %p759, %p760
    %p762 = scmp.ne.s32.totalorder %s753, %s754
    %p763 = scmp.eq.s32.totalorder %s92, 0
    %p764 = por %p762, %p763
    %p765 = scmp.ne.s32.totalorder %s753, %s754
    %p766 = scmp.eq.s32.totalorder %s93, 1
    %p767 = por %p765, %p766
    %p769 = scmp.ne.s32.totalorder %s754, %s768
    %p770 = scmp.eq.s32.totalorder %s93, 0
    %p771 = por %p769, %p770
    %s773 = sadd.s32 %s772, 1
    %p776 = scmp.eq.s32.totalorder %s87, 1
    %p777 = scmp.ne.s32.totalorder %s772, %s774
    %p778 = scmp.eq.s32.totalorder %s87, 0
    %p779 = por %p777, %p778
    %p780 = scmp.ne.s32.totalorder %s772, %s774
    %p781 = scmp.eq.s32.totalorder %s92, 1
    %p782 = por %p780, %p781
    %p783 = scmp.ne.s32.totalorder %s774, %s775
    %p784 = scmp.eq.s32.totalorder %s92, 0
    %p785 = por %p783, %p784
    %p786 = scmp.ne.s32.totalorder %s774, %s775
    %p787 = scmp.eq.s32.totalorder %s93, 1
    %p788 = por %p786, %p787
    %p790 = scmp.ne.s32.totalorder %s775, %s789
    %p791 = scmp.eq.s32.totalorder %s93, 0
    %p792 = por %p790, %p791
    %s794 = sadd.s32 %s793, 1
    %p797 = scmp.eq.s32.totalorder %s87, 1
    %p798 = scmp.ne.s32.totalorder %s793, %s795
    %p799 = scmp.eq.s32.totalorder %s87, 0
    %p800 = por %p798, %p799
    %p801 = scmp.ne.s32.totalorder %s793, %s795
    %p802 = scmp.eq.s32.totalorder %s92, 1
    %p803 = por %p801, %p802
    %p804 = scmp.ne.s32.totalorder %s795, %s796
    %p805 = scmp.eq.s32.totalorder %s92, 0
    %p806 = por %p804, %p805
    %p807 = scmp.ne.s32.totalorder %s795, %s796
    %p808 = scmp.eq.s32.totalorder %s93, 1
    %p809 = por %p807, %p808
    %p811 = scmp.ne.s32.totalorder %s796, %s810
    %p812 = scmp.eq.s32.totalorder %s93, 0
    %p813 = por %p811, %p812
    %s815 = sadd.s32 %s814, 1
    %p818 = scmp.eq.s32.totalorder %s87, 1
    %p819 = scmp.ne.s32.totalorder %s814, %s816
    %p820 = scmp.eq.s32.totalorder %s87, 0
    %p821 = por %p819, %p820
    %p822 = scmp.ne.s32.totalorder %s814, %s816
    %p823 = scmp.eq.s32.totalorder %s92, 1
    %p824 = por %p822, %p823
    %p825 = scmp.ne.s32.totalorder %s816, %s817
    %p826 = scmp.eq.s32.totalorder %s92, 0
    %p827 = por %p825, %p826
    %p828 = scmp.ne.s32.totalorder %s816, %s817
    %p829 = scmp.eq.s32.totalorder %s93, 1
    %p830 = por %p828, %p829
    %p832 = scmp.ne.s32.totalorder %s817, %s831
    %p833 = scmp.eq.s32.totalorder %s93, 0
    %p834 = por %p832, %p833
    %s836 = sadd.s32 %s835, 1
    %p839 = scmp.eq.s32.totalorder %s87, 1
    %p840 = scmp.ne.s32.totalorder %s835, %s837
    %p841 = scmp.eq.s32.totalorder %s87, 0
    %p842 = por %p840, %p841
    %p843 = scmp.ne.s32.totalorder %s835, %s837
    %p844 = scmp.eq.s32.totalorder %s92, 1
    %p845 = por %p843, %p844
    %p846 = scmp.ne.s32.totalorder %s837, %s838
    %p847 = scmp.eq.s32.totalorder %s92, 0
    %p848 = por %p846, %p847
    %p849 = scmp.ne.s32.totalorder %s837, %s838
    %p850 = scmp.eq.s32.totalorder %s93, 1
    %p851 = por %p849, %p850
    %p853 = scmp.ne.s32.totalorder %s838, %s852
    %p854 = scmp.eq.s32.totalorder %s93, 0
    %p855 = por %p853, %p854
    %s857 = sadd.s32 %s856, 1
    %p860 = scmp.eq.s32.totalorder %s87, 1
    %p861 = scmp.ne.s32.totalorder %s856, %s858
    %p862 = scmp.eq.s32.totalorder %s87, 0
    %p863 = por %p861, %p862
    %p864 = scmp.ne.s32.totalorder %s856, %s858
    %p865 = scmp.eq.s32.totalorder %s92, 1
    %p866 = por %p864, %p865
    %p867 = scmp.ne.s32.totalorder %s858, %s859
    %p868 = scmp.eq.s32.totalorder %s92, 0
    %p869 = por %p867, %p868
    %p870 = scmp.ne.s32.totalorder %s858, %s859
    %p871 = scmp.eq.s32.totalorder %s93, 1
    %p872 = por %p870, %p871
    %p874 = scmp.ne.s32.totalorder %s859, %s873
    %p875 = scmp.eq.s32.totalorder %s93, 0
    %p876 = por %p874, %p875
    %s878 = sadd.s32 %s877, 1
    %p881 = scmp.eq.s32.totalorder %s87, 1
    %p882 = scmp.ne.s32.totalorder %s877, %s879
    %p883 = scmp.eq.s32.totalorder %s87, 0
    %p884 = por %p882, %p883
    %p885 = scmp.ne.s32.totalorder %s877, %s879
    %p886 = scmp.eq.s32.totalorder %s92, 1
    %p887 = por %p885, %p886
    %p888 = scmp.ne.s32.totalorder %s879, %s880
    %p889 = scmp.eq.s32.totalorder %s92, 0
    %p890 = por %p888, %p889
    %p891 = scmp.ne.s32.totalorder %s879, %s880
    %p892 = scmp.eq.s32.totalorder %s93, 1
    %p893 = por %p891, %p892
    %p895 = scmp.ne.s32.totalorder %s880, %s894
    %p896 = scmp.eq.s32.totalorder %s93, 0
    %p897 = por %p895, %p896
    %s899 = sadd.s32 %s898, 1
    %p902 = scmp.eq.s32.totalorder %s87, 1
    %p903 = scmp.ne.s32.totalorder %s898, %s900
    %p904 = scmp.eq.s32.totalorder %s87, 0
    %p905 = por %p903, %p904
    %p906 = scmp.ne.s32.totalorder %s898, %s900
    %p907 = scmp.eq.s32.totalorder %s92, 1
    %p908 = por %p906, %p907
    %p909 = scmp.ne.s32.totalorder %s900, %s901
    %p910 = scmp.eq.s32.totalorder %s92, 0
    %p911 = por %p909, %p910
    %p912 = scmp.ne.s32.totalorder %s900, %s901
    %p913 = scmp.eq.s32.totalorder %s93, 1
    %p914 = por %p912, %p913
    %p916 = scmp.ne.s32.totalorder %s901, %s915
    %p917 = scmp.eq.s32.totalorder %s93, 0
    %p918 = por %p916, %p917
    %s920 = sadd.s32 %s919, 1
    %p923 = scmp.eq.s32.totalorder %s87, 1
    %p924 = scmp.ne.s32.totalorder %s919, %s921
    %p925 = scmp.eq.s32.totalorder %s87, 0
    %p926 = por %p924, %p925
    %p927 = scmp.ne.s32.totalorder %s919, %s921
    %p928 = scmp.eq.s32.totalorder %s92, 1
    %p929 = por %p927, %p928
    %p930 = scmp.ne.s32.totalorder %s921, %s922
    %p931 = scmp.eq.s32.totalorder %s92, 0
    %p932 = por %p930, %p931
    %p933 = scmp.ne.s32.totalorder %s921, %s922
    %p934 = scmp.eq.s32.totalorder %s93, 1
    %p935 = por %p933, %p934
    %p937 = scmp.ne.s32.totalorder %s922, %s936
    %p938 = scmp.eq.s32.totalorder %s93, 0
    %p939 = por %p937, %p938
    %s940 = ssub.s32 %s87, %s94
    %p941 = scmp.eq.s32.totalorder %s940, 0
    %s943 = sadd.s32 %s942, 1
    %s944 = scalar_select %p941, %s942, %s943
    %p947 = pneg %p941
    %p948 = scmp.eq.s32.totalorder %s87, 1
    %p949 = por %p947, %p948
    %p950 = scmp.ne.s32.totalorder %s942, %s945
    %p951 = scmp.eq.s32.totalorder %s87, 0
    %p952 = por %p950, %p951
    %p953 = scmp.ne.s32.totalorder %s942, %s945
    %p954 = scmp.eq.s32.totalorder %s92, 1
    %p955 = por %p953, %p954
    %p956 = scmp.ne.s32.totalorder %s945, %s946
    %p957 = scmp.eq.s32.totalorder %s92, 0
    %p958 = por %p956, %p957
    %p959 = scmp.ne.s32.totalorder %s945, %s946
    %p960 = scmp.eq.s32.totalorder %s93, 1
    %p961 = por %p959, %p960
    %p963 = scmp.ne.s32.totalorder %s946, %s962
    %p964 = scmp.eq.s32.totalorder %s93, 0
    %p965 = por %p963, %p964
    %p966 = scmp.le.s32.totalorder 1, %s87
    %p967 = scmp.lt.s32.totalorder %s87, 3
    %p968 = pnand %p966, %p967
    %p969 = pneg %p968
    // Predicated region
    $region9: #{selfresnet_forward.1} parent=5 // pred_check
      _
    $region10: #{selfresnet_forward.1} parent=5 // pred_check_branch
      %971 = sbr.rel (%p968) target = $region12
    $region11: #{selfresnet_forward.1} parent=5 // pred_region
      %s972 = ssub.s32 %s87, 1
      // Predicated region
      $region13: #{selfresnet_forward.1} parent=11 // pred_check
        %p973 = pneg %p134
      $region14: #{selfresnet_forward.1} parent=11 // pred_check_branch
        %975 = sbr.rel (%p973) target = $region16
      $region15: #{selfresnet_forward.1} parent=11 // pred_region
        _
      $region16: #{selfresnet_forward.1} parent=11 // pred_fallthru
        _
      // Predicated region
      $region17: #{selfresnet_forward.1} parent=11 // pred_check
        %p976 = pneg %p155
      $region18: #{selfresnet_forward.1} parent=11 // pred_check_branch
        %978 = sbr.rel (%p976) target = $region20
      $region19: #{selfresnet_forward.1} parent=11 // pred_region
        _
      $region20: #{selfresnet_forward.1} parent=11 // pred_fallthru
        _
      // Predicated region
      $region21: #{selfresnet_forward.1} parent=11 // pred_check
        %p979 = pneg %p176
      $region22: #{selfresnet_forward.1} parent=11 // pred_check_branch
        %981 = sbr.rel (%p979) target = $region24
      $region23: #{selfresnet_forward.1} parent=11 // pred_region
        _
      $region24: #{selfresnet_forward.1} parent=11 // pred_fallthru
        _
      // Predicated region
      $region25: #{selfresnet_forward.1} parent=11 // pred_check
        %p982 = pneg %p197
      $region26: #{selfresnet_forward.1} parent=11 // pred_check_branch
        %984 = sbr.rel (%p982) target = $region28
      $region27: #{selfresnet_forward.1} parent=11 // pred_region
        _
      $region28: #{selfresnet_forward.1} parent=11 // pred_fallthru
        _
      // Predicated region
      $region29: #{selfresnet_forward.1} parent=11 // pred_check
        %p985 = pneg %p218
      $region30: #{selfresnet_forward.1} parent=11 // pred_check_branch
        %987 = sbr.rel (%p985) target = $region32
      $region31: #{selfresnet_forward.1} parent=11 // pred_region
        _
      $region32: #{selfresnet_forward.1} parent=11 // pred_fallthru
        _
      // Predicated region
      $region33: #{selfresnet_forward.1} parent=11 // pred_check
        %p988 = pneg %p239
      $region34: #{selfresnet_forward.1} parent=11 // pred_check_branch
        %990 = sbr.rel (%p988) target = $region36
      $region35: #{selfresnet_forward.1} parent=11 // pred_region
        _
      $region36: #{selfresnet_forward.1} parent=11 // pred_fallthru
        _
      // Predicated region
      $region37: #{selfresnet_forward.1} parent=11 // pred_check
        %p991 = pneg %p260
      $region38: #{selfresnet_forward.1} parent=11 // pred_check_branch
        %993 = sbr.rel (%p991) target = $region40
      $region39: #{selfresnet_forward.1} parent=11 // pred_region
        _
      $region40: #{selfresnet_forward.1} parent=11 // pred_fallthru
        _
      // Predicated region
      $region41: #{selfresnet_forward.1} parent=11 // pred_check
        %p994 = pneg %p281
      $region42: #{selfresnet_forward.1} parent=11 // pred_check_branch
        %996 = sbr.rel (%p994) target = $region44
      $region43: #{selfresnet_forward.1} parent=11 // pred_region
        _
      $region44: #{selfresnet_forward.1} parent=11 // pred_fallthru
        _
      // Predicated region
      $region45: #{selfresnet_forward.1} parent=11 // pred_check
        %p997 = pneg %p302
      $region46: #{selfresnet_forward.1} parent=11 // pred_check_branch
        %999 = sbr.rel (%p997) target = $region48
      $region47: #{selfresnet_forward.1} parent=11 // pred_region
        _
      $region48: #{selfresnet_forward.1} parent=11 // pred_fallthru
        _
      // Predicated region
      $region49: #{selfresnet_forward.1} parent=11 // pred_check
        %p1000 = pneg %p323
      $region50: #{selfresnet_forward.1} parent=11 // pred_check_branch
        %1002 = sbr.rel (%p1000) target = $region52
      $region51: #{selfresnet_forward.1} parent=11 // pred_region
        _
      $region52: #{selfresnet_forward.1} parent=11 // pred_fallthru
        _
      // Predicated region
      $region53: #{selfresnet_forward.1} parent=11 // pred_check
        %p1003 = pneg %p344
      $region54: #{selfresnet_forward.1} parent=11 // pred_check_branch
        %1005 = sbr.rel (%p1003) target = $region56
      $region55: #{selfresnet_forward.1} parent=11 // pred_region
        _
      $region56: #{selfresnet_forward.1} parent=11 // pred_fallthru
        _
      // Predicated region
      $region57: #{selfresnet_forward.1} parent=11 // pred_check
        %p1006 = pneg %p365
      $region58: #{selfresnet_forward.1} parent=11 // pred_check_branch
        %1008 = sbr.rel (%p1006) target = $region60
      $region59: #{selfresnet_forward.1} parent=11 // pred_region
        _
      $region60: #{selfresnet_forward.1} parent=11 // pred_fallthru
        _
      // Predicated region
      $region61: #{selfresnet_forward.1} parent=11 // pred_check
        %p1009 = pneg %p386
      $region62: #{selfresnet_forward.1} parent=11 // pred_check_branch
        %1011 = sbr.rel (%p1009) target = $region64
      $region63: #{selfresnet_forward.1} parent=11 // pred_region
        _
      $region64: #{selfresnet_forward.1} parent=11 // pred_fallthru
        _
      // Predicated region
      $region65: #{selfresnet_forward.1} parent=11 // pred_check
        %p1012 = pneg %p407
      $region66: #{selfresnet_forward.1} parent=11 // pred_check_branch
        %1014 = sbr.rel (%p1012) target = $region68
      $region67: #{selfresnet_forward.1} parent=11 // pred_region
        _
      $region68: #{selfresnet_forward.1} parent=11 // pred_fallthru
        _
      // Predicated region
      $region69: #{selfresnet_forward.1} parent=11 // pred_check
        %p1015 = pneg %p428
      $region70: #{selfresnet_forward.1} parent=11 // pred_check_branch
        %1017 = sbr.rel (%p1015) target = $region72
      $region71: #{selfresnet_forward.1} parent=11 // pred_region
        _
      $region72: #{selfresnet_forward.1} parent=11 // pred_fallthru
        _
      // Predicated region
      $region73: #{selfresnet_forward.1} parent=11 // pred_check
        %p1018 = pneg %p449
      $region74: #{selfresnet_forward.1} parent=11 // pred_check_branch
        %1020 = sbr.rel (%p1018) target = $region76
      $region75: #{selfresnet_forward.1} parent=11 // pred_region
        _
      $region76: #{selfresnet_forward.1} parent=11 // pred_fallthru
        _
      // Predicated region
      $region77: #{selfresnet_forward.1} parent=11 // pred_check
        %p1021 = pneg %p470
      $region78: #{selfresnet_forward.1} parent=11 // pred_check_branch
        %1023 = sbr.rel (%p1021) target = $region80
      $region79: #{selfresnet_forward.1} parent=11 // pred_region
        _
      $region80: #{selfresnet_forward.1} parent=11 // pred_fallthru
        _
      // Predicated region
      $region81: #{selfresnet_forward.1} parent=11 // pred_check
        %p1024 = pneg %p491
      $region82: #{selfresnet_forward.1} parent=11 // pred_check_branch
        %1026 = sbr.rel (%p1024) target = $region84
      $region83: #{selfresnet_forward.1} parent=11 // pred_region
        _
      $region84: #{selfresnet_forward.1} parent=11 // pred_fallthru
        _
      // Predicated region
      $region85: #{selfresnet_forward.1} parent=11 // pred_check
        %p1027 = pneg %p512
      $region86: #{selfresnet_forward.1} parent=11 // pred_check_branch
        %1029 = sbr.rel (%p1027) target = $region88
      $region87: #{selfresnet_forward.1} parent=11 // pred_region
        _
      $region88: #{selfresnet_forward.1} parent=11 // pred_fallthru
        _
      // Predicated region
      $region89: #{selfresnet_forward.1} parent=11 // pred_check
        %p1030 = pneg %p533
      $region90: #{selfresnet_forward.1} parent=11 // pred_check_branch
        %1032 = sbr.rel (%p1030) target = $region92
      $region91: #{selfresnet_forward.1} parent=11 // pred_region
        _
      $region92: #{selfresnet_forward.1} parent=11 // pred_fallthru
        _
      // Predicated region
      $region93: #{selfresnet_forward.1} parent=11 // pred_check
        %p1033 = pneg %p554
      $region94: #{selfresnet_forward.1} parent=11 // pred_check_branch
        %1035 = sbr.rel (%p1033) target = $region96
      $region95: #{selfresnet_forward.1} parent=11 // pred_region
        _
      $region96: #{selfresnet_forward.1} parent=11 // pred_fallthru
        _
      // Predicated region
      $region97: #{selfresnet_forward.1} parent=11 // pred_check
        %p1036 = pneg %p575
      $region98: #{selfresnet_forward.1} parent=11 // pred_check_branch
        %1038 = sbr.rel (%p1036) target = $region100
      $region99: #{selfresnet_forward.1} parent=11 // pred_region
        _
      $region100: #{selfresnet_forward.1} parent=11 // pred_fallthru
        _
      // Predicated region
      $region101: #{selfresnet_forward.1} parent=11 // pred_check
        %p1039 = pneg %p596
      $region102: #{selfresnet_forward.1} parent=11 // pred_check_branch
        %1041 = sbr.rel (%p1039) target = $region104
      $region103: #{selfresnet_forward.1} parent=11 // pred_region
        _
      $region104: #{selfresnet_forward.1} parent=11 // pred_fallthru
        _
      // Predicated region
      $region105: #{selfresnet_forward.1} parent=11 // pred_check
        %p1042 = pneg %p617
      $region106: #{selfresnet_forward.1} parent=11 // pred_check_branch
        %1044 = sbr.rel (%p1042) target = $region108
      $region107: #{selfresnet_forward.1} parent=11 // pred_region
        _
      $region108: #{selfresnet_forward.1} parent=11 // pred_fallthru
        _
      // Predicated region
      $region109: #{selfresnet_forward.1} parent=11 // pred_check
        %p1045 = pneg %p638
      $region110: #{selfresnet_forward.1} parent=11 // pred_check_branch
        %1047 = sbr.rel (%p1045) target = $region112
      $region111: #{selfresnet_forward.1} parent=11 // pred_region
        _
      $region112: #{selfresnet_forward.1} parent=11 // pred_fallthru
        _
      // Predicated region
      $region113: #{selfresnet_forward.1} parent=11 // pred_check
        %p1048 = pneg %p659
      $region114: #{selfresnet_forward.1} parent=11 // pred_check_branch
        %1050 = sbr.rel (%p1048) target = $region116
      $region115: #{selfresnet_forward.1} parent=11 // pred_region
        _
      $region116: #{selfresnet_forward.1} parent=11 // pred_fallthru
        _
      // Predicated region
      $region117: #{selfresnet_forward.1} parent=11 // pred_check
        %p1051 = pneg %p680
      $region118: #{selfresnet_forward.1} parent=11 // pred_check_branch
        %1053 = sbr.rel (%p1051) target = $region120
      $region119: #{selfresnet_forward.1} parent=11 // pred_region
        _
      $region120: #{selfresnet_forward.1} parent=11 // pred_fallthru
        _
      // Predicated region
      $region121: #{selfresnet_forward.1} parent=11 // pred_check
        %p1054 = pneg %p701
      $region122: #{selfresnet_forward.1} parent=11 // pred_check_branch
        %1056 = sbr.rel (%p1054) target = $region124
      $region123: #{selfresnet_forward.1} parent=11 // pred_region
        _
      $region124: #{selfresnet_forward.1} parent=11 // pred_fallthru
        _
      // Predicated region
      $region125: #{selfresnet_forward.1} parent=11 // pred_check
        %p1057 = pneg %p722
      $region126: #{selfresnet_forward.1} parent=11 // pred_check_branch
        %1059 = sbr.rel (%p1057) target = $region128
      $region127: #{selfresnet_forward.1} parent=11 // pred_region
        _
      $region128: #{selfresnet_forward.1} parent=11 // pred_fallthru
        _
      // Predicated region
      $region129: #{selfresnet_forward.1} parent=11 // pred_check
        %p1060 = pneg %p743
      $region130: #{selfresnet_forward.1} parent=11 // pred_check_branch
        %1062 = sbr.rel (%p1060) target = $region132
      $region131: #{selfresnet_forward.1} parent=11 // pred_region
        _
      $region132: #{selfresnet_forward.1} parent=11 // pred_fallthru
        _
      // Predicated region
      $region133: #{selfresnet_forward.1} parent=11 // pred_check
        %p1063 = pneg %p764
      $region134: #{selfresnet_forward.1} parent=11 // pred_check_branch
        %1065 = sbr.rel (%p1063) target = $region136
      $region135: #{selfresnet_forward.1} parent=11 // pred_region
        _
      $region136: #{selfresnet_forward.1} parent=11 // pred_fallthru
        _
      // Predicated region
      $region137: #{selfresnet_forward.1} parent=11 // pred_check
        %p1066 = pneg %p785
      $region138: #{selfresnet_forward.1} parent=11 // pred_check_branch
        %1068 = sbr.rel (%p1066) target = $region140
      $region139: #{selfresnet_forward.1} parent=11 // pred_region
        _
      $region140: #{selfresnet_forward.1} parent=11 // pred_fallthru
        _
      // Predicated region
      $region141: #{selfresnet_forward.1} parent=11 // pred_check
        %p1069 = pneg %p806
      $region142: #{selfresnet_forward.1} parent=11 // pred_check_branch
        %1071 = sbr.rel (%p1069) target = $region144
      $region143: #{selfresnet_forward.1} parent=11 // pred_region
        _
      $region144: #{selfresnet_forward.1} parent=11 // pred_fallthru
        _
      // Predicated region
      $region145: #{selfresnet_forward.1} parent=11 // pred_check
        %p1072 = pneg %p827
      $region146: #{selfresnet_forward.1} parent=11 // pred_check_branch
        %1074 = sbr.rel (%p1072) target = $region148
      $region147: #{selfresnet_forward.1} parent=11 // pred_region
        _
      $region148: #{selfresnet_forward.1} parent=11 // pred_fallthru
        _
      // Predicated region
      $region149: #{selfresnet_forward.1} parent=11 // pred_check
        %p1075 = pneg %p848
      $region150: #{selfresnet_forward.1} parent=11 // pred_check_branch
        %1077 = sbr.rel (%p1075) target = $region152
      $region151: #{selfresnet_forward.1} parent=11 // pred_region
        _
      $region152: #{selfresnet_forward.1} parent=11 // pred_fallthru
        _
      // Predicated region
      $region153: #{selfresnet_forward.1} parent=11 // pred_check
        %p1078 = pneg %p869
      $region154: #{selfresnet_forward.1} parent=11 // pred_check_branch
        %1080 = sbr.rel (%p1078) target = $region156
      $region155: #{selfresnet_forward.1} parent=11 // pred_region
        _
      $region156: #{selfresnet_forward.1} parent=11 // pred_fallthru
        _
      // Predicated region
      $region157: #{selfresnet_forward.1} parent=11 // pred_check
        %p1081 = pneg %p890
      $region158: #{selfresnet_forward.1} parent=11 // pred_check_branch
        %1083 = sbr.rel (%p1081) target = $region160
      $region159: #{selfresnet_forward.1} parent=11 // pred_region
        _
      $region160: #{selfresnet_forward.1} parent=11 // pred_fallthru
        _
      // Predicated region
      $region161: #{selfresnet_forward.1} parent=11 // pred_check
        %p1084 = pneg %p911
      $region162: #{selfresnet_forward.1} parent=11 // pred_check_branch
        %1086 = sbr.rel (%p1084) target = $region164
      $region163: #{selfresnet_forward.1} parent=11 // pred_region
        _
      $region164: #{selfresnet_forward.1} parent=11 // pred_fallthru
        _
      // Predicated region
      $region165: #{selfresnet_forward.1} parent=11 // pred_check
        %p1087 = pneg %p932
      $region166: #{selfresnet_forward.1} parent=11 // pred_check_branch
        %1089 = sbr.rel (%p1087) target = $region168
      $region167: #{selfresnet_forward.1} parent=11 // pred_region
        _
      $region168: #{selfresnet_forward.1} parent=11 // pred_fallthru
        _
    $region12: #{selfresnet_forward.1} parent=5 // pred_fallthru
      _
    %p1090 = scmp.lt.s32.totalorder %s87, 2
    // Predicated region
    $region169: #{selfresnet_forward.1} parent=5 // pred_check
      %p1091 = pneg %p1090
    $region170: #{selfresnet_forward.1} parent=5 // pred_check_branch
      %1093 = sbr.rel (%p1091) target = $region172
    $region171: #{selfresnet_forward.1} parent=5 // pred_region
      // Predicated region
      $region173: #{selfresnet_forward.1} parent=171 // pred_check
        %p1094 = pneg %p107
      $region174: #{selfresnet_forward.1} parent=171 // pred_check_branch
        %1096 = sbr.rel (%p1094) target = $region176
      $region175: #{selfresnet_forward.1} parent=171 // pred_region
        %p1097 = scmp.lt.s32.totalorder %s87, 1
        %s1098 = scalar_select %p1097, %s87, 1
        %s1099 = smul.addr %s1098, 8
        %s1100 = smul.addr %s1099, 8
        %s1101 = scalar_lea.vmem %s1, %s1100
      $region176: #{selfresnet_forward.1} parent=171 // pred_fallthru
        _
    $region172: #{selfresnet_forward.1} parent=5 // pred_fallthru
      _
    %p1102 = scmp.le.s32.totalorder 1, %s87
    %p1103 = scmp.lt.s32.totalorder %s87, 3
    %p1104 = pnand %p1102, %p1103
    %p1105 = pneg %p1104
    // Predicated region
    $region177: #{selfresnet_forward.1} parent=5 // pred_check
      _
    $region178: #{selfresnet_forward.1} parent=5 // pred_check_branch
      %1107 = sbr.rel (%p1104) target = $region180
    $region179: #{selfresnet_forward.1} parent=5 // pred_region
      %s1108 = ssub.s32 %s87, 1
      %p1109 = scmp.lt.s32.totalorder %s92, 1
      %s1110 = scalar_select %p1109, %s92, 1
      %s1111 = smul.addr %s1110, 8
      %s1112 = smul.addr %s1111, 8
      %s1113 = scalar_lea.vmem %s1, %s1112
      %p1114 = pneg %p113
      %p1115 = pneg %p110
      %p1116 = pneg %p134
      %p1117 = pneg %p131
      %p1118 = pneg %p155
      %p1119 = pneg %p152
      %p1120 = pneg %p176
      %p1121 = pneg %p173
      %p1122 = pneg %p197
      %p1123 = pneg %p194
      %p1124 = pneg %p218
      %p1125 = pneg %p215
      %p1126 = pneg %p239
      %p1127 = pneg %p236
      %p1128 = pneg %p260
      %p1129 = pneg %p257
      %p1130 = pneg %p281
      %p1131 = pneg %p278
      %p1132 = pneg %p302
      %p1133 = pneg %p299
      %p1134 = pneg %p323
      %p1135 = pneg %p320
      %p1136 = pneg %p344
      %p1137 = pneg %p341
      %p1138 = pneg %p365
      %p1139 = pneg %p362
      %p1140 = pneg %p386
      %p1141 = pneg %p383
      %p1142 = pneg %p407
      %p1143 = pneg %p404
      %p1144 = pneg %p428
      %p1145 = pneg %p425
      %p1146 = pneg %p449
      %p1147 = pneg %p446
      %p1148 = pneg %p470
      %p1149 = pneg %p467
      %p1150 = pneg %p491
      %p1151 = pneg %p488
      %p1152 = pneg %p512
      %p1153 = pneg %p509
      %p1154 = pneg %p533
      %p1155 = pneg %p530
      %p1156 = pneg %p554
      %p1157 = pneg %p551
      %p1158 = pneg %p575
      %p1159 = pneg %p572
      %p1160 = pneg %p596
      %p1161 = pneg %p593
      %p1162 = pneg %p617
      %p1163 = pneg %p614
      %p1164 = pneg %p638
      %p1165 = pneg %p635
      %p1166 = pneg %p659
      %p1167 = pneg %p656
      %p1168 = pneg %p680
      %p1169 = pneg %p677
      %p1170 = pneg %p701
      %p1171 = pneg %p698
      %p1172 = pneg %p722
      %p1173 = pneg %p719
      %p1174 = pneg %p743
      %p1175 = pneg %p740
      %p1176 = pneg %p764
      %p1177 = pneg %p761
      %p1178 = pneg %p785
      %p1179 = pneg %p782
      %p1180 = pneg %p806
      %p1181 = pneg %p803
      %p1182 = pneg %p827
      %p1183 = pneg %p824
      %p1184 = pneg %p848
      %p1185 = pneg %p845
      %p1186 = pneg %p869
      %p1187 = pneg %p866
      %p1188 = pneg %p890
      %p1189 = pneg %p887
      %p1190 = pneg %p911
      %p1191 = pneg %p908
      %p1192 = pneg %p932
      %p1193 = pneg %p929
      %p1194 = pneg %p958
      %p1195 = pneg %p955
      %p1196 = scmp.lt.s32.totalorder %s92, 1
      %s1197 = scalar_select %p1196, %s92, 1
      %s1198 = smul.addr %s1197, 8
      %s1199 = scalar_lea.vmem %s81, %s1198
      %p1200 = scmp.lt.s32.totalorder %s92, 1
      %s1201 = scalar_select %p1200, %s92, 1
      %s1202 = smul.addr %s1201, 8
      %s1203 = smul.addr %s1202, 8
      %s1204 = scalar_lea.vmem %s1, %s1203
      %p1205 = scmp.lt.s32.totalorder %s92, 1
      %s1206 = scalar_select %p1205, %s92, 1
      %s1207 = smul.addr %s1206, 8
      %s1208 = scalar_lea.vmem %s81, %s1207
      %v1210 = vld [vmem:[%s1204] sm:$0xff]
      %v1211 = vld [vmem:[%s1204 + $0x8] sm:$0xff]
      %v1212 = vld [vmem:[%s1204 + $0x10] sm:$0xff]
      %v1213 = vld [vmem:[%s1204 + $0x18] sm:$0xff]
      %v1214 = vld [vmem:[%s1204 + $0x20] sm:$0xff]
      %v1215 = vld [vmem:[%s1204 + $0x28] sm:$0xff]
      %v1216 = vld [vmem:[%s1204 + $0x30] sm:$0xff]
      %v1217 = vld [vmem:[%s1204 + $0x38] sm:$0xff]
      %v1218 = vmul.f32 %v1210, %v1210
      %v1219 = vmul.f32 %v1211, %v1211
      %v1220 = vmul.f32 %v1212, %v1212
      %v1221 = vmul.f32 %v1213, %v1213
      %v1222 = vmul.f32 %v1214, %v1214
      %v1223 = vmul.f32 %v1215, %v1215
      %v1224 = vmul.f32 %v1216, %v1216
      %v1225 = vmul.f32 %v1217, %v1217
      %1234 = vrot.lane.b32.xlu0 %v1218, 4
      %v1235 = vpop.permute.xlu0 %1234
      %1236 = vrot.lane.b32.xlu0 %v1219, 4
      %v1237 = vpop.permute.xlu0 %1236
      %1238 = vrot.lane.b32.xlu0 %v1220, 4
      %v1239 = vpop.permute.xlu0 %1238
      %1240 = vrot.lane.b32.xlu0 %v1221, 4
      %v1241 = vpop.permute.xlu0 %1240
      %1242 = vrot.lane.b32.xlu0 %v1222, 4
      %v1243 = vpop.permute.xlu0 %1242
      %1244 = vrot.lane.b32.xlu0 %v1223, 4
      %v1245 = vpop.permute.xlu0 %1244
      %1246 = vrot.lane.b32.xlu0 %v1224, 4
      %v1247 = vpop.permute.xlu0 %1246
      %1248 = vrot.lane.b32.xlu0 %v1225, 4
      %v1249 = vpop.permute.xlu0 %1248
      %vm1258 = vcmask 31744
      %v1259 = vsel %vm1258, %v1210, %v1235
      %v1260 = vsel %vm1258, %v1211, %v1237
      %v1261 = vsel %vm1258, %v1212, %v1239
      %v1262 = vsel %vm1258, %v1213, %v1241
      %v1263 = vsel %vm1258, %v1214, %v1243
      %v1264 = vsel %vm1258, %v1215, %v1245
      %v1265 = vsel %vm1258, %v1216, %v1247
      %v1266 = vsel %vm1258, %v1217, %v1249
      %v1267 = vpack.c.bf16 %v1260, %v1259
      %v1268 = vpack.c.bf16 %v1262, %v1261
      %v1269 = vpack.c.bf16 %v1264, %v1263
      %v1270 = vpack.c.bf16 %v1266, %v1265
      %v1271 = vld [vmem:[%s3] sm:$0xf]
      %vm1272 = vcmask 64512
      %v1274 = vsel %vm1272, %v1267, 0
      %v1277 = vsel %vm1272, %v1268, 0
      %v1280 = vsel %vm1272, %v1269, 0
      %v1283 = vsel %vm1272, %v1270, 0
      %vm1285 = vcmask 1043456
      %v1287 = vsel %vm1285, %v1271, 0
      %1289 = vmatprep.subr.bf16.mxu0 0
      %1290 = vmatpush1.bf16.msra.mxu0 %v1287
      %1291 = vmatprep.subr.bf16.mxu0 0
      %1292 = vmatpush1.bf16.msra.mxu0 0
      %1293 = vmatprep.subr.bf16.mxu0 0
      %1294 = vmatpush1.bf16.msra.mxu0 0
      %1295 = vmatprep.subr.bf16.mxu0 0
      %1296 = vmatpush1.bf16.msra.mxu0 0
      %1297 = vmatprep.subr.bf16.mxu0 0
      %1298 = vmatpush1.bf16.msra.mxu0 0
      %1299 = vmatprep.subr.bf16.mxu0 0
      %1300 = vmatpush1.bf16.msra.mxu0 0
      %1301 = vmatprep.subr.bf16.mxu0 0
      %1302 = vmatpush1.bf16.msra.mxu0 0
      %1303 = vmatprep.subr.bf16.mxu0 0
      %1304 = vmatpush1.bf16.msra.mxu0 0
      %1305 = vmatprep.subr.bf16.mxu0 0
      %1306 = vmatpush1.bf16.msra.mxu0 0
      %1307 = vmatprep.subr.bf16.mxu0 0
      %1308 = vmatpush1.bf16.msra.mxu0 0
      %1309 = vmatprep.subr.bf16.mxu0 0
      %1310 = vmatpush1.bf16.msra.mxu0 0
      %1311 = vmatprep.subr.bf16.mxu0 0
      %1312 = vmatpush1.bf16.msra.mxu0 0
      %1313 = vmatprep.subr.bf16.mxu0 0
      %1314 = vmatpush1.bf16.msra.mxu0 0
      %1315 = vmatprep.subr.bf16.mxu0 0
      %1316 = vmatpush1.bf16.msra.mxu0 0
      %1317 = vmatprep.subr.bf16.mxu0 0
      %1318 = vmatpush1.bf16.msra.mxu0 0
      %1319 = vmatprep.subr.bf16.mxu0 0
      %1320 = vmatpush1.bf16.msra.mxu0 0
      %1321 = vmatprep.mubr.bf16.mxu0 0
      %1322 = vmatmul.mubr.bf16.gmra.mrb[0].mxu0 %v1274
      %v1323 = vpop.f32.mrb[0].mxu0
      %v1324 = vadd.f32 0.0, %v1323
      %v1325 = vpop.f32.mrb[0].mxu0
      %v1326 = vpop.f32.mrb[0].mxu0
      %v1327 = vadd.f32 0.0, %v1326
      %v1328 = vpop.f32.mrb[0].mxu0
      %1329 = vmatprep.mubr.bf16.mxu0 0
      %1330 = vmatmul.mubr.bf16.gmra.mrb[0].mxu0 %v1277
      %v1331 = vpop.f32.mrb[0].mxu0
      %v1332 = vadd.f32 0.0, %v1331
      %v1333 = vpop.f32.mrb[0].mxu0
      %v1334 = vpop.f32.mrb[0].mxu0
      %v1335 = vadd.f32 0.0, %v1334
      %v1336 = vpop.f32.mrb[0].mxu0
      %1337 = vmatprep.mubr.bf16.mxu0 0
      %1338 = vmatmul.mubr.bf16.gmra.mrb[0].mxu0 %v1280
      %v1339 = vpop.f32.mrb[0].mxu0
      %v1340 = vadd.f32 0.0, %v1339
      %v1341 = vpop.f32.mrb[0].mxu0
      %v1342 = vpop.f32.mrb[0].mxu0
      %v1343 = vadd.f32 0.0, %v1342
      %v1344 = vpop.f32.mrb[0].mxu0
      %1345 = vmatprep.mubr.bf16.mxu0 0
      %1346 = vmatmul.mubr.bf16.gmra.mrb[0].mxu0 %v1283
      %v1347 = vpop.f32.mrb[0].mxu0
      %v1348 = vadd.f32 0.0, %v1347
      %v1349 = vpop.f32.mrb[0].mxu0
      %v1350 = vpop.f32.mrb[0].mxu0
      %v1351 = vadd.f32 0.0, %v1350
      %v1352 = vpop.f32.mrb[0].mxu0
      %1353 = vdwg.mxu0
      %v1354 = vlaneseq
      %v1355 = vshrl.u32 %v1354, 7
      %v1356 = vadd.s32 %v1355, 8
      %v1357 = vadd.s32 %v1355, 16
      %v1358 = vadd.s32 %v1355, 24
      %v1359 = vlaneseq
      %v1360 = vand.u32 %v1359, 127
      %v1361 = vmul.u32 %v1355, 2
      %v1362 = vmul.u32 %v1356, 2
      %v1363 = vmul.u32 %v1357, 2
      %v1364 = vmul.u32 %v1358, 2
      %v1365 = vadd.s32 %v1361, 4294967293
      %v1366 = vadd.s32 %v1362, 4294967293
      %v1367 = vadd.s32 %v1363, 4294967293
      %v1368 = vadd.s32 %v1364, 4294967293
      %vm1369 = vcmp.eq.s32.totalorder %v1360, %v1365
      %vm1370 = vcmp.eq.s32.totalorder %v1360, %v1366
      %vm1371 = vcmp.eq.s32.totalorder %v1360, %v1367
      %vm1372 = vcmp.eq.s32.totalorder %v1360, %v1368
      %vm1373 = vcmp.lt.s32.totalorder %v1355, 32
      %vm1374 = vcmp.lt.s32.totalorder %v1356, 32
      %vm1375 = vcmp.lt.s32.totalorder %v1357, 32
      %vm1376 = vcmp.lt.s32.totalorder %v1358, 32
      %vm1377 = vmand %vm1369, %vm1373
      %vm1378 = vmand %vm1370, %vm1374
      %vm1379 = vmand %vm1371, %vm1375
      %vm1380 = vmand %vm1372, %vm1376
      %vm1381 = vcmp.lt.s32.totalorder %v1360, 64
      %vm1382 = vmand %vm1377, %vm1381
      %vm1383 = vmand %vm1378, %vm1381
      %vm1384 = vmand %vm1379, %vm1381
      %vm1385 = vmand %vm1380, %vm1381
      %v1386 = vsel %vm1382, 1, 0
      %v1387 = vsel %vm1383, 1, 0
      %v1388 = vsel %vm1384, 1, 0
      %v1389 = vsel %vm1385, 1, 0
      %v1390 = vcvt.s32.f32 %v1386
      %v1391 = vcvt.s32.f32 %v1387
      %v1392 = vcvt.s32.f32 %v1388
      %v1393 = vcvt.s32.f32 %v1389
      %v1394 = vpack.c.bf16 %v1391, %v1390
      %v1395 = vpack.c.bf16 %v1393, %v1392
      %v1396 = vpack.c.bf16 %v1327, %v1324
      %v1397 = vpack.c.bf16 %v1335, %v1332
      %v1398 = vpack.c.bf16 %v1343, %v1340
      %v1399 = vpack.c.bf16 %v1351, %v1348
      %v1400 = vadd.s32 %v1361, 4294967294
      %v1401 = vadd.s32 %v1362, 4294967294
      %v1402 = vadd.s32 %v1363, 4294967294
      %v1403 = vadd.s32 %v1364, 4294967294
      %vm1404 = vcmp.eq.s32.totalorder %v1360, %v1400
      %vm1405 = vcmp.eq.s32.totalorder %v1360, %v1401
      %vm1406 = vcmp.eq.s32.totalorder %v1360, %v1402
      %vm1407 = vcmp.eq.s32.totalorder %v1360, %v1403
      %vm1408 = vmand %vm1404, %vm1373
      %vm1409 = vmand %vm1405, %vm1374
      %vm1410 = vmand %vm1406, %vm1375
      %vm1411 = vmand %vm1407, %vm1376
      %vm1412 = vmand %vm1408, %vm1381
      %vm1413 = vmand %vm1409, %vm1381
      %vm1414 = vmand %vm1410, %vm1381
      %vm1415 = vmand %vm1411, %vm1381
      %v1416 = vsel %vm1412, 1, 0
      %v1417 = vsel %vm1413, 1, 0
      %v1418 = vsel %vm1414, 1, 0
      %v1419 = vsel %vm1415, 1, 0
      %v1420 = vcvt.s32.f32 %v1416
      %v1421 = vcvt.s32.f32 %v1417
      %v1422 = vcvt.s32.f32 %v1418
      %v1423 = vcvt.s32.f32 %v1419
      %v1424 = vpack.c.bf16 %v1421, %v1420
      %v1425 = vpack.c.bf16 %v1423, %v1422
      %1430 = vrot.lane.b32.xlu0 %v1396, 120
      %v1431 = vpop.permute.xlu0 %1430
      %1432 = vrot.lane.b32.xlu0 %v1397, 120
      %v1433 = vpop.permute.xlu0 %1432
      %1434 = vrot.lane.b32.xlu0 %v1398, 120
      %v1435 = vpop.permute.xlu0 %1434
      %1436 = vrot.lane.b32.xlu0 %v1399, 120
      %v1437 = vpop.permute.xlu0 %1436
      %vm1442 = vcmask 523264
      %v1444 = vsel %vm1442, %v1424, 0
      %v1447 = vsel %vm1442, %v1425, 0
      %1449 = vmatprep.subr.bf16.mxu0 0
      %1450 = vmatpush1.bf16.msra.mxu0 %v1431
      %1451 = vmatprep.subr.bf16.mxu0 0
      %1452 = vmatpush1.bf16.msra.mxu0 %v1433
      %1453 = vmatprep.subr.bf16.mxu0 0
      %1454 = vmatpush1.bf16.msra.mxu0 %v1435
      %1455 = vmatprep.subr.bf16.mxu0 0
      %1456 = vmatpush1.bf16.msra.mxu0 %v1437
      %1457 = vmatprep.subr.bf16.mxu0 0
      %1458 = vmatpush1.bf16.msra.mxu0 0
      %1459 = vmatprep.subr.bf16.mxu0 0
      %1460 = vmatpush1.bf16.msra.mxu0 0
      %1461 = vmatprep.subr.bf16.mxu0 0
      %1462 = vmatpush1.bf16.msra.mxu0 0
      %1463 = vmatprep.subr.bf16.mxu0 0
      %1464 = vmatpush1.bf16.msra.mxu0 0
      %1465 = vmatprep.subr.bf16.mxu0 0
      %1466 = vmatpush1.bf16.msra.mxu0 0
      %1467 = vmatprep.subr.bf16.mxu0 0
      %1468 = vmatpush1.bf16.msra.mxu0 0
      %1469 = vmatprep.subr.bf16.mxu0 0
      %1470 = vmatpush1.bf16.msra.mxu0 0
      %1471 = vmatprep.subr.bf16.mxu0 0
      %1472 = vmatpush1.bf16.msra.mxu0 0
      %1473 = vmatprep.subr.bf16.mxu0 0
      %1474 = vmatpush1.bf16.msra.mxu0 0
      %1475 = vmatprep.subr.bf16.mxu0 0
      %1476 = vmatpush1.bf16.msra.mxu0 0
      %1477 = vmatprep.subr.bf16.mxu0 0
      %1478 = vmatpush1.bf16.msra.mxu0 0
      %1479 = vmatprep.subr.bf16.mxu0 0
      %1480 = vmatpush1.bf16.msra.mxu0 0
      %1481 = vmatprep.mubr.bf16.mxu0 0
      %1482 = vmatmul.mubr.bf16.gmra.mrb[0].mxu0 %v1444
      %v1483 = vpop.f32.mrb[0].mxu0
      %v1484 = vadd.f32 0.0, %v1483
      %v1485 = vpop.f32.mrb[0].mxu0
      %v1486 = vpop.f32.mrb[0].mxu0
      %v1487 = vadd.f32 0.0, %v1486
      %v1488 = vpop.f32.mrb[0].mxu0
      %1489 = vmatprep.mubr.bf16.mxu0 0
      %1490 = vmatmul.mubr.bf16.gmra.mrb[0].mxu0 %v1447
      %v1491 = vpop.f32.mrb[0].mxu0
      %v1492 = vadd.f32 0.0, %v1491
      %v1493 = vpop.f32.mrb[0].mxu0
      %v1494 = vpop.f32.mrb[0].mxu0
      %v1495 = vadd.f32 0.0, %v1494
      %v1496 = vpop.f32.mrb[0].mxu0
      %1497 = vdwg.mxu0
      %v1499 = vsel %vm1442, %v1394, 0
      %v1502 = vsel %vm1442, %v1395, 0
      %1504 = vmatprep.subr.bf16.mxu0 0
      %1505 = vmatpush1.bf16.msra.mxu0 %v1396
      %1506 = vmatprep.subr.bf16.mxu0 0
      %1507 = vmatpush1.bf16.msra.mxu0 %v1397
      %1508 = vmatprep.subr.bf16.mxu0 0
      %1509 = vmatpush1.bf16.msra.mxu0 %v1398
      %1510 = vmatprep.subr.bf16.mxu0 0
      %1511 = vmatpush1.bf16.msra.mxu0 %v1399
      %1512 = vmatprep.subr.bf16.mxu0 0
      %1513 = vmatpush1.bf16.msra.mxu0 0
      %1514 = vmatprep.subr.bf16.mxu0 0
      %1515 = vmatpush1.bf16.msra.mxu0 0
      %1516 = vmatprep.subr.bf16.mxu0 0
      %1517 = vmatpush1.bf16.msra.mxu0 0
      %1518 = vmatprep.subr.bf16.mxu0 0
      %1519 = vmatpush1.bf16.msra.mxu0 0
      %1520 = vmatprep.subr.bf16.mxu0 0
      %1521 = vmatpush1.bf16.msra.mxu0 0
      %1522 = vmatprep.subr.bf16.mxu0 0
      %1523 = vmatpush1.bf16.msra.mxu0 0
      %1524 = vmatprep.subr.bf16.mxu0 0
      %1525 = vmatpush1.bf16.msra.mxu0 0
      %1526 = vmatprep.subr.bf16.mxu0 0
      %1527 = vmatpush1.bf16.msra.mxu0 0
      %1528 = vmatprep.subr.bf16.mxu0 0
      %1529 = vmatpush1.bf16.msra.mxu0 0
      %1530 = vmatprep.subr.bf16.mxu0 0
      %1531 = vmatpush1.bf16.msra.mxu0 0
      %1532 = vmatprep.subr.bf16.mxu0 0
      %1533 = vmatpush1.bf16.msra.mxu0 0
      %1534 = vmatprep.subr.bf16.mxu0 0
      %1535 = vmatpush1.bf16.msra.mxu0 0
      %1536 = vmatprep.mubr.bf16.mxu0 0
      %1537 = vmatmul.mubr.bf16.gmra.mrb[0].mxu0 %v1499
      %v1538 = vpop.f32.mrb[0].mxu0
      %v1539 = vadd.f32 %v1484, %v1538
      %v1540 = vpop.f32.mrb[0].mxu0
      %v1541 = vpop.f32.mrb[0].mxu0
      %v1542 = vadd.f32 %v1487, %v1541
      %v1543 = vpop.f32.mrb[0].mxu0
      %1544 = vmatprep.mubr.bf16.mxu0 0
      %1545 = vmatmul.mubr.bf16.gmra.mrb[0].mxu0 %v1502
      %v1546 = vpop.f32.mrb[0].mxu0
      %v1547 = vadd.f32 %v1492, %v1546
      %v1548 = vpop.f32.mrb[0].mxu0
      %v1549 = vpop.f32.mrb[0].mxu0
      %v1550 = vadd.f32 %v1495, %v1549
      %v1551 = vpop.f32.mrb[0].mxu0
      %1552 = vdwg.mxu0
      %v1553 = vadd.s32 %v1361, 4294967295
      %v1554 = vadd.s32 %v1362, 4294967295
      %v1555 = vadd.s32 %v1363, 4294967295
      %v1556 = vadd.s32 %v1364, 4294967295
      %vm1557 = vcmp.eq.s32.totalorder %v1360, %v1553
      %vm1558 = vcmp.eq.s32.totalorder %v1360, %v1554
      %vm1559 = vcmp.eq.s32.totalorder %v1360, %v1555
      %vm1560 = vcmp.eq.s32.totalorder %v1360, %v1556
      %vm1561 = vmand %vm1557, %vm1373
      %vm1562 = vmand %vm1558, %vm1374
      %vm1563 = vmand %vm1559, %vm1375
      %vm1564 = vmand %vm1560, %vm1376
      %vm1565 = vmand %vm1561, %vm1381
      %vm1566 = vmand %vm1562, %vm1381
      %vm1567 = vmand %vm1563, %vm1381
      %vm1568 = vmand %vm1564, %vm1381
      %v1569 = vsel %vm1565, 1, 0
      %v1570 = vsel %vm1566, 1, 0
      %v1571 = vsel %vm1567, 1, 0
      %v1572 = vsel %vm1568, 1, 0
      %v1573 = vcvt.s32.f32 %v1569
      %v1574 = vcvt.s32.f32 %v1570
      %v1575 = vcvt.s32.f32 %v1571
      %v1576 = vcvt.s32.f32 %v1572
      %v1577 = vpack.c.bf16 %v1574, %v1573
      %v1578 = vpack.c.bf16 %v1576, %v1575
      %1579 = vrot.lane.b32.xlu0 %v1396, 112
      %v1580 = vpop.permute.xlu0 %1579
      %1581 = vrot.lane.b32.xlu0 %v1397, 112
      %v1582 = vpop.permute.xlu0 %1581
      %1583 = vrot.lane.b32.xlu0 %v1398, 112
      %v1584 = vpop.permute.xlu0 %1583
      %1585 = vrot.lane.b32.xlu0 %v1399, 112
      %v1586 = vpop.permute.xlu0 %1585
      %v1592 = vsel %vm1442, %v1577, 0
      %v1595 = vsel %vm1442, %v1578, 0
      %1597 = vmatprep.subr.bf16.mxu0 0
      %1598 = vmatpush1.bf16.msra.mxu0 %v1580
      %1599 = vmatprep.subr.bf16.mxu0 0
      %1600 = vmatpush1.bf16.msra.mxu0 %v1582
      %1601 = vmatprep.subr.bf16.mxu0 0
      %1602 = vmatpush1.bf16.msra.mxu0 %v1584
      %1603 = vmatprep.subr.bf16.mxu0 0
      %1604 = vmatpush1.bf16.msra.mxu0 %v1586
      %1605 = vmatprep.subr.bf16.mxu0 0
      %1606 = vmatpush1.bf16.msra.mxu0 0
      %1607 = vmatprep.subr.bf16.mxu0 0
      %1608 = vmatpush1.bf16.msra.mxu0 0
      %1609 = vmatprep.subr.bf16.mxu0 0
      %1610 = vmatpush1.bf16.msra.mxu0 0
      %1611 = vmatprep.subr.bf16.mxu0 0
      %1612 = vmatpush1.bf16.msra.mxu0 0
      %1613 = vmatprep.subr.bf16.mxu0 0
      %1614 = vmatpush1.bf16.msra.mxu0 0
      %1615 = vmatprep.subr.bf16.mxu0 0
      %1616 = vmatpush1.bf16.msra.mxu0 0
      %1617 = vmatprep.subr.bf16.mxu0 0
      %1618 = vmatpush1.bf16.msra.mxu0 0
      %1619 = vmatprep.subr.bf16.mxu0 0
      %1620 = vmatpush1.bf16.msra.mxu0 0
      %1621 = vmatprep.subr.bf16.mxu0 0
      %1622 = vmatpush1.bf16.msra.mxu0 0
      %1623 = vmatprep.subr.bf16.mxu0 0
      %1624 = vmatpush1.bf16.msra.mxu0 0
      %1625 = vmatprep.subr.bf16.mxu0 0
      %1626 = vmatpush1.bf16.msra.mxu0 0
      %1627 = vmatprep.subr.bf16.mxu0 0
      %1628 = vmatpush1.bf16.msra.mxu0 0
      %1629 = vmatprep.mubr.bf16.mxu0 0
      %1630 = vmatmul.mubr.bf16.gmra.mrb[0].mxu0 %v1592
      %v1631 = vpop.f32.mrb[0].mxu0
      %v1632 = vadd.f32 0.0, %v1631
      %v1633 = vpop.f32.mrb[0].mxu0
      %v1634 = vpop.f32.mrb[0].mxu0
      %v1635 = vadd.f32 0.0, %v1634
      %v1636 = vpop.f32.mrb[0].mxu0
      %1637 = vmatprep.mubr.bf16.mxu0 0
      %1638 = vmatmul.mubr.bf16.gmra.mrb[0].mxu0 %v1595
      %v1639 = vpop.f32.mrb[0].mxu0
      %v1640 = vadd.f32 0.0, %v1639
      %v1641 = vpop.f32.mrb[0].mxu0
      %v1642 = vpop.f32.mrb[0].mxu0
      %v1643 = vadd.f32 0.0, %v1642
      %v1644 = vpop.f32.mrb[0].mxu0
      %1645 = vdwg.mxu0
      %v1646 = vadd.f32 %v1539, %v1632
      %v1647 = vadd.f32 %v1542, %v1635
      %v1648 = vadd.f32 %v1547, %v1640
      %v1649 = vadd.f32 %v1550, %v1643
      %vm1650 = vcmp.eq.s32.totalorder %v1360, %v1361
      %vm1651 = vcmp.eq.s32.totalorder %v1360, %v1362
      %vm1652 = vcmp.eq.s32.totalorder %v1360, %v1363
      %vm1653 = vcmp.eq.s32.totalorder %v1360, %v1364
      %vm1654 = vmand %vm1650, %vm1373
      %vm1655 = vmand %vm1651, %vm1374
      %vm1656 = vmand %vm1652, %vm1375
      %vm1657 = vmand %vm1653, %vm1376
      %vm1658 = vmand %vm1654, %vm1381
      %vm1659 = vmand %vm1655, %vm1381
      %vm1660 = vmand %vm1656, %vm1381
      %vm1661 = vmand %vm1657, %vm1381
      %v1662 = vsel %vm1658, 1, 0
      %v1663 = vsel %vm1659, 1, 0
      %v1664 = vsel %vm1660, 1, 0
      %v1665 = vsel %vm1661, 1, 0
      %v1666 = vcvt.s32.f32 %v1662
      %v1667 = vcvt.s32.f32 %v1663
      %v1668 = vcvt.s32.f32 %v1664
      %v1669 = vcvt.s32.f32 %v1665
      %v1670 = vpack.c.bf16 %v1667, %v1666
      %v1671 = vpack.c.bf16 %v1669, %v1668
      %1672 = vrot.lane.b32.xlu0 %v1396, 104
      %v1673 = vpop.permute.xlu0 %1672
      %1674 = vrot.lane.b32.xlu0 %v1397, 104
      %v1675 = vpop.permute.xlu0 %1674
      %1676 = vrot.lane.b32.xlu0 %v1398, 104
      %v1677 = vpop.permute.xlu0 %1676
      %1678 = vrot.lane.b32.xlu0 %v1399, 104
      %v1679 = vpop.permute.xlu0 %1678
      %v1685 = vsel %vm1442, %v1670, 0
      %v1688 = vsel %vm1442, %v1671, 0
      %1690 = vmatprep.subr.bf16.mxu0 0
      %1691 = vmatpush1.bf16.msra.mxu0 %v1673
      %1692 = vmatprep.subr.bf16.mxu0 0
      %1693 = vmatpush1.bf16.msra.mxu0 %v1675
      %1694 = vmatprep.subr.bf16.mxu0 0
      %1695 = vmatpush1.bf16.msra.mxu0 %v1677
      %1696 = vmatprep.subr.bf16.mxu0 0
      %1697 = vmatpush1.bf16.msra.mxu0 %v1679
      %1698 = vmatprep.subr.bf16.mxu0 0
      %1699 = vmatpush1.bf16.msra.mxu0 0
      %1700 = vmatprep.subr.bf16.mxu0 0
      %1701 = vmatpush1.bf16.msra.mxu0 0
      %1702 = vmatprep.subr.bf16.mxu0 0
      %1703 = vmatpush1.bf16.msra.mxu0 0
      %1704 = vmatprep.subr.bf16.mxu0 0
      %1705 = vmatpush1.bf16.msra.mxu0 0
      %1706 = vmatprep.subr.bf16.mxu0 0
      %1707 = vmatpush1.bf16.msra.mxu0 0
      %1708 = vmatprep.subr.bf16.mxu0 0
      %1709 = vmatpush1.bf16.msra.mxu0 0
      %1710 = vmatprep.subr.bf16.mxu0 0
      %1711 = vmatpush1.bf16.msra.mxu0 0
      %1712 = vmatprep.subr.bf16.mxu0 0
      %1713 = vmatpush1.bf16.msra.mxu0 0
      %1714 = vmatprep.subr.bf16.mxu0 0
      %1715 = vmatpush1.bf16.msra.mxu0 0
      %1716 = vmatprep.subr.bf16.mxu0 0
      %1717 = vmatpush1.bf16.msra.mxu0 0
      %1718 = vmatprep.subr.bf16.mxu0 0
      %1719 = vmatpush1.bf16.msra.mxu0 0
      %1720 = vmatprep.subr.bf16.mxu0 0
      %1721 = vmatpush1.bf16.msra.mxu0 0
      %1722 = vmatprep.mubr.bf16.mxu0 0
      %1723 = vmatmul.mubr.bf16.gmra.mrb[0].mxu0 %v1685
      %v1724 = vpop.f32.mrb[0].mxu0
      %v1725 = vadd.f32 0.0, %v1724
      %v1726 = vpop.f32.mrb[0].mxu0
      %v1727 = vpop.f32.mrb[0].mxu0
      %v1728 = vadd.f32 0.0, %v1727
      %v1729 = vpop.f32.mrb[0].mxu0
      %1730 = vmatprep.mubr.bf16.mxu0 0
      %1731 = vmatmul.mubr.bf16.gmra.mrb[0].mxu0 %v1688
      %v1732 = vpop.f32.mrb[0].mxu0
      %v1733 = vadd.f32 0.0, %v1732
      %v1734 = vpop.f32.mrb[0].mxu0
      %v1735 = vpop.f32.mrb[0].mxu0
      %v1736 = vadd.f32 0.0, %v1735
      %v1737 = vpop.f32.mrb[0].mxu0
      %1738 = vdwg.mxu0
      %v1739 = vadd.f32 %v1646, %v1725
      %v1740 = vadd.f32 %v1647, %v1728
      %v1741 = vadd.f32 %v1648, %v1733
      %v1742 = vadd.f32 %v1649, %v1736
      %v1743 = vadd.s32 %v1361, 1
      %v1744 = vadd.s32 %v1362, 1
      %v1745 = vadd.s32 %v1363, 1
      %v1746 = vadd.s32 %v1364, 1
      %vm1747 = vcmp.eq.s32.totalorder %v1360, %v1743
      %vm1748 = vcmp.eq.s32.totalorder %v1360, %v1744
      %vm1749 = vcmp.eq.s32.totalorder %v1360, %v1745
      %vm1750 = vcmp.eq.s32.totalorder %v1360, %v1746
      %vm1751 = vmand %vm1747, %vm1373
      %vm1752 = vmand %vm1748, %vm1374
      %vm1753 = vmand %vm1749, %vm1375
      %vm1754 = vmand %vm1750, %vm1376
      %vm1755 = vmand %vm1751, %vm1381
      %vm1756 = vmand %vm1752, %vm1381
      %vm1757 = vmand %vm1753, %vm1381
      %vm1758 = vmand %vm1754, %vm1381
      %v1759 = vsel %vm1755, 1, 0
      %v1760 = vsel %vm1756, 1, 0
      %v1761 = vsel %vm1757, 1, 0
      %v1762 = vsel %vm1758, 1, 0
      %v1763 = vcvt.s32.f32 %v1759
      %v1764 = vcvt.s32.f32 %v1760
      %v1765 = vcvt.s32.f32 %v1761
      %v1766 = vcvt.s32.f32 %v1762
      %v1767 = vpack.c.bf16 %v1764, %v1763
      %v1768 = vpack.c.bf16 %v1766, %v1765
      %1769 = vrot.lane.b32.xlu0 %v1396, 96
      %v1770 = vpop.permute.xlu0 %1769
      %1771 = vrot.lane.b32.xlu0 %v1397, 96
      %v1772 = vpop.permute.xlu0 %1771
      %1773 = vrot.lane.b32.xlu0 %v1398, 96
      %v1774 = vpop.permute.xlu0 %1773
      %1775 = vrot.lane.b32.xlu0 %v1399, 96
      %v1776 = vpop.permute.xlu0 %1775
      %v1782 = vsel %vm1442, %v1767, 0
      %v1785 = vsel %vm1442, %v1768, 0
      %1787 = vmatprep.subr.bf16.mxu0 0
      %1788 = vmatpush1.bf16.msra.mxu0 %v1770
      %1789 = vmatprep.subr.bf16.mxu0 0
      %1790 = vmatpush1.bf16.msra.mxu0 %v1772
      %1791 = vmatprep.subr.bf16.mxu0 0
      %1792 = vmatpush1.bf16.msra.mxu0 %v1774
      %1793 = vmatprep.subr.bf16.mxu0 0
      %1794 = vmatpush1.bf16.msra.mxu0 %v1776
      %1795 = vmatprep.subr.bf16.mxu0 0
      %1796 = vmatpush1.bf16.msra.mxu0 0
      %1797 = vmatprep.subr.bf16.mxu0 0
      %1798 = vmatpush1.bf16.msra.mxu0 0
      %1799 = vmatprep.subr.bf16.mxu0 0
      %1800 = vmatpush1.bf16.msra.mxu0 0
      %1801 = vmatprep.subr.bf16.mxu0 0
      %1802 = vmatpush1.bf16.msra.mxu0 0
      %1803 = vmatprep.subr.bf16.mxu0 0
      %1804 = vmatpush1.bf16.msra.mxu0 0
      %1805 = vmatprep.subr.bf16.mxu0 0
      %1806 = vmatpush1.bf16.msra.mxu0 0
      %1807 = vmatprep.subr.bf16.mxu0 0
      %1808 = vmatpush1.bf16.msra.mxu0 0
      %1809 = vmatprep.subr.bf16.mxu0 0
      %1810 = vmatpush1.bf16.msra.mxu0 0
      %1811 = vmatprep.subr.bf16.mxu0 0
      %1812 = vmatpush1.bf16.msra.mxu0 0
      %1813 = vmatprep.subr.bf16.mxu0 0
      %1814 = vmatpush1.bf16.msra.mxu0 0
      %1815 = vmatprep.subr.bf16.mxu0 0
      %1816 = vmatpush1.bf16.msra.mxu0 0
      %1817 = vmatprep.subr.bf16.mxu0 0
      %1818 = vmatpush1.bf16.msra.mxu0 0
      %1819 = vmatprep.mubr.bf16.mxu0 0
      %1820 = vmatmul.mubr.bf16.gmra.mrb[0].mxu0 %v1782
      %v1821 = vpop.f32.mrb[0].mxu0
      %v1822 = vadd.f32 0.0, %v1821
      %v1823 = vpop.f32.mrb[0].mxu0
      %v1824 = vpop.f32.mrb[0].mxu0
      %v1825 = vadd.f32 0.0, %v1824
      %v1826 = vpop.f32.mrb[0].mxu0
      %1827 = vmatprep.mubr.bf16.mxu0 0
      %1828 = vmatmul.mubr.bf16.gmra.mrb[0].mxu0 %v1785
      %v1829 = vpop.f32.mrb[0].mxu0
      %v1830 = vadd.f32 0.0, %v1829
      %v1831 = vpop.f32.mrb[0].mxu0
      %v1832 = vpop.f32.mrb[0].mxu0
      %v1833 = vadd.f32 0.0, %v1832
      %v1834 = vpop.f32.mrb[0].mxu0
      %1835 = vdwg.mxu0
      %v1836 = vadd.f32 %v1739, %v1822
      %v1837 = vadd.f32 %v1740, %v1825
      %v1838 = vadd.f32 %v1741, %v1830
      %v1839 = vadd.f32 %v1742, %v1833
      %v1840 = vadd.s32 %v1361, 2
      %v1841 = vadd.s32 %v1362, 2
      %v1842 = vadd.s32 %v1363, 2
      %v1843 = vadd.s32 %v1364, 2
      %vm1844 = vcmp.eq.s32.totalorder %v1360, %v1840
      %vm1845 = vcmp.eq.s32.totalorder %v1360, %v1841
      %vm1846 = vcmp.eq.s32.totalorder %v1360, %v1842
      %vm1847 = vcmp.eq.s32.totalorder %v1360, %v1843
      %vm1848 = vmand %vm1844, %vm1373
      %vm1849 = vmand %vm1845, %vm1374
      %vm1850 = vmand %vm1846, %vm1375
      %vm1851 = vmand %vm1847, %vm1376
      %vm1852 = vmand %vm1848, %vm1381
      %vm1853 = vmand %vm1849, %vm1381
      %vm1854 = vmand %vm1850, %vm1381
      %vm1855 = vmand %vm1851, %vm1381
      %v1856 = vsel %vm1852, 1, 0
      %v1857 = vsel %vm1853, 1, 0
      %v1858 = vsel %vm1854, 1, 0
      %v1859 = vsel %vm1855, 1, 0
      %v1860 = vcvt.s32.f32 %v1856
      %v1861 = vcvt.s32.f32 %v1857
      %v1862 = vcvt.s32.f32 %v1858
      %v1863 = vcvt.s32.f32 %v1859
      %v1864 = vpack.c.bf16 %v1861, %v1860
      %v1865 = vpack.c.bf16 %v1863, %v1862
      %1866 = vrot.lane.b32.xlu0 %v1396, 88
      %v1867 = vpop.permute.xlu0 %1866
      %1868 = vrot.lane.b32.xlu0 %v1397, 88
      %v1869 = vpop.permute.xlu0 %1868
      %1870 = vrot.lane.b32.xlu0 %v1398, 88
      %v1871 = vpop.permute.xlu0 %1870
      %1872 = vrot.lane.b32.xlu0 %v1399, 88
      %v1873 = vpop.permute.xlu0 %1872
      %v1879 = vsel %vm1442, %v1864, 0
      %v1882 = vsel %vm1442, %v1865, 0
      %1884 = vmatprep.subr.bf16.mxu0 0
      %1885 = vmatpush1.bf16.msra.mxu0 %v1867
      %1886 = vmatprep.subr.bf16.mxu0 0
      %1887 = vmatpush1.bf16.msra.mxu0 %v1869
      %1888 = vmatprep.subr.bf16.mxu0 0
      %1889 = vmatpush1.bf16.msra.mxu0 %v1871
      %1890 = vmatprep.subr.bf16.mxu0 0
      %1891 = vmatpush1.bf16.msra.mxu0 %v1873
      %1892 = vmatprep.subr.bf16.mxu0 0
      %1893 = vmatpush1.bf16.msra.mxu0 0
      %1894 = vmatprep.subr.bf16.mxu0 0
      %1895 = vmatpush1.bf16.msra.mxu0 0
      %1896 = vmatprep.subr.bf16.mxu0 0
      %1897 = vmatpush1.bf16.msra.mxu0 0
      %1898 = vmatprep.subr.bf16.mxu0 0
      %1899 = vmatpush1.bf16.msra.mxu0 0
      %1900 = vmatprep.subr.bf16.mxu0 0
      %1901 = vmatpush1.bf16.msra.mxu0 0
      %1902 = vmatprep.subr.bf16.mxu0 0
      %1903 = vmatpush1.bf16.msra.mxu0 0
      %1904 = vmatprep.subr.bf16.mxu0 0
      %1905 = vmatpush1.bf16.msra.mxu0 0
      %1906 = vmatprep.subr.bf16.mxu0 0
      %1907 = vmatpush1.bf16.msra.mxu0 0
      %1908 = vmatprep.subr.bf16.mxu0 0
      %1909 = vmatpush1.bf16.msra.mxu0 0
      %1910 = vmatprep.subr.bf16.mxu0 0
      %1911 = vmatpush1.bf16.msra.mxu0 0
      %1912 = vmatprep.subr.bf16.mxu0 0
      %1913 = vmatpush1.bf16.msra.mxu0 0
      %1914 = vmatprep.subr.bf16.mxu0 0
      %1915 = vmatpush1.bf16.msra.mxu0 0
      %1916 = vmatprep.mubr.bf16.mxu0 0
      %1917 = vmatmul.mubr.bf16.gmra.mrb[0].mxu0 %v1879
      %v1918 = vpop.f32.mrb[0].mxu0
      %v1919 = vadd.f32 0.0, %v1918
      %v1920 = vpop.f32.mrb[0].mxu0
      %v1921 = vpop.f32.mrb[0].mxu0
      %v1922 = vadd.f32 0.0, %v1921
      %v1923 = vpop.f32.mrb[0].mxu0
      %1924 = vmatprep.mubr.bf16.mxu0 0
      %1925 = vmatmul.mubr.bf16.gmra.mrb[0].mxu0 %v1882
      %v1926 = vpop.f32.mrb[0].mxu0
      %v1927 = vadd.f32 0.0, %v1926
      %v1928 = vpop.f32.mrb[0].mxu0
      %v1929 = vpop.f32.mrb[0].mxu0
      %v1930 = vadd.f32 0.0, %v1929
      %v1931 = vpop.f32.mrb[0].mxu0
      %1932 = vdwg.mxu0
      %v1933 = vadd.f32 %v1836, %v1919
      %v1934 = vadd.f32 %v1837, %v1922
      %v1935 = vadd.f32 %v1838, %v1927
      %v1936 = vadd.f32 %v1839, %v1930
      %v1937 = vadd.s32 %v1361, 3
      %v1938 = vadd.s32 %v1362, 3
      %v1939 = vadd.s32 %v1363, 3
      %v1940 = vadd.s32 %v1364, 3
      %vm1941 = vcmp.eq.s32.totalorder %v1360, %v1937
      %vm1942 = vcmp.eq.s32.totalorder %v1360, %v1938
      %vm1943 = vcmp.eq.s32.totalorder %v1360, %v1939
      %vm1944 = vcmp.eq.s32.totalorder %v1360, %v1940
      %vm1945 = vmand %vm1941, %vm1373
      %vm1946 = vmand %vm1942, %vm1374
      %vm1947 = vmand %vm1943, %vm1375
      %vm1948 = vmand %vm1944, %vm1376
      %vm1949 = vmand %vm1945, %vm1381
      %vm1950 = vmand %vm1946, %vm1381
      %vm1951 = vmand %vm1947, %vm1381
      %vm1952 = vmand %vm1948, %vm1381
      %v1953 = vsel %vm1949, 1, 0
      %v1954 = vsel %vm1950, 1, 0
      %v1955 = vsel %vm1951, 1, 0
      %v1956 = vsel %vm1952, 1, 0
      %v1957 = vcvt.s32.f32 %v1953
      %v1958 = vcvt.s32.f32 %v1954
      %v1959 = vcvt.s32.f32 %v1955
      %v1960 = vcvt.s32.f32 %v1956
      %v1961 = vpack.c.bf16 %v1958, %v1957
      %v1962 = vpack.c.bf16 %v1960, %v1959
      %1963 = vrot.lane.b32.xlu0 %v1396, 80
      %v1964 = vpop.permute.xlu0 %1963
      %1965 = vrot.lane.b32.xlu0 %v1397, 80
      %v1966 = vpop.permute.xlu0 %1965
      %1967 = vrot.lane.b32.xlu0 %v1398, 80
      %v1968 = vpop.permute.xlu0 %1967
      %1969 = vrot.lane.b32.xlu0 %v1399, 80
      %v1970 = vpop.permute.xlu0 %1969
      %v1976 = vsel %vm1442, %v1961, 0
      %v1979 = vsel %vm1442, %v1962, 0
      %1981 = vmatprep.subr.bf16.mxu0 0
      %1982 = vmatpush1.bf16.msra.mxu0 %v1964
      %1983 = vmatprep.subr.bf16.mxu0 0
      %1984 = vmatpush1.bf16.msra.mxu0 %v1966
      %1985 = vmatprep.subr.bf16.mxu0 0
      %1986 = vmatpush1.bf16.msra.mxu0 %v1968
      %1987 = vmatprep.subr.bf16.mxu0 0
      %1988 = vmatpush1.bf16.msra.mxu0 %v1970
      %1989 = vmatprep.subr.bf16.mxu0 0
      %1990 = vmatpush1.bf16.msra.mxu0 0
      %1991 = vmatprep.subr.bf16.mxu0 0
      %1992 = vmatpush1.bf16.msra.mxu0 0
      %1993 = vmatprep.subr.bf16.mxu0 0
      %1994 = vmatpush1.bf16.msra.mxu0 0
      %1995 = vmatprep.subr.bf16.mxu0 0
      %1996 = vmatpush1.bf16.msra.mxu0 0
      %1997 = vmatprep.subr.bf16.mxu0 0
      %1998 = vmatpush1.bf16.msra.mxu0 0
      %1999 = vmatprep.subr.bf16.mxu0 0
      %2000 = vmatpush1.bf16.msra.mxu0 0
      %2001 = vmatprep.subr.bf16.mxu0 0
      %2002 = vmatpush1.bf16.msra.mxu0 0
      %2003 = vmatprep.subr.bf16.mxu0 0
      %2004 = vmatpush1.bf16.msra.mxu0 0
      %2005 = vmatprep.subr.bf16.mxu0 0
      %2006 = vmatpush1.bf16.msra.mxu0 0
      %2007 = vmatprep.subr.bf16.mxu0 0
      %2008 = vmatpush1.bf16.msra.mxu0 0
      %2009 = vmatprep.subr.bf16.mxu0 0
      %2010 = vmatpush1.bf16.msra.mxu0 0
      %2011 = vmatprep.subr.bf16.mxu0 0
      %2012 = vmatpush1.bf16.msra.mxu0 0
      %2013 = vmatprep.mubr.bf16.mxu0 0
      %2014 = vmatmul.mubr.bf16.gmra.mrb[0].mxu0 %v1976
      %v2015 = vpop.f32.mrb[0].mxu0
      %v2016 = vadd.f32 0.0, %v2015
      %v2017 = vpop.f32.mrb[0].mxu0
      %v2018 = vpop.f32.mrb[0].mxu0
      %v2019 = vadd.f32 0.0, %v2018
      %v2020 = vpop.f32.mrb[0].mxu0
      %2021 = vmatprep.mubr.bf16.mxu0 0
      %2022 = vmatmul.mubr.bf16.gmra.mrb[0].mxu0 %v1979
      %v2023 = vpop.f32.mrb[0].mxu0
      %v2024 = vadd.f32 0.0, %v2023
      %v2025 = vpop.f32.mrb[0].mxu0
      %v2026 = vpop.f32.mrb[0].mxu0
      %v2027 = vadd.f32 0.0, %v2026
      %v2028 = vpop.f32.mrb[0].mxu0
      %2029 = vdwg.mxu0
      %v2030 = vadd.f32 %v1933, %v2016
      %v2031 = vadd.f32 %v1934, %v2019
      %v2032 = vadd.f32 %v1935, %v2024
      %v2033 = vadd.f32 %v1936, %v2027
      %v2034 = vld [vmem:[%s5] sm:$0x1]
      %v2036 = vlaneseq
      %v2037 = vshrl.u32 %v2036, 7
      %v2038 = vsub.s32 0, %v2037
      %v2039 = vrot.slane %v2034, %v2038
      %v2041 = vadd.f32 %v2030, %v2039
      %v2042 = vadd.f32 %v2031, %v2039
      %v2043 = vadd.f32 %v2032, %v2039
      %v2044 = vadd.f32 %v2033, %v2039
      %v2045 = vtanh.pop %v2041
      %v2046 = vtanh.pop %v2042
      %v2047 = vtanh.pop %v2043
      %v2048 = vtanh.pop %v2044
      %v2049 = vpack.c.bf16 %v2046, %v2045
      %v2050 = vpack.c.bf16 %v2048, %v2047
      %vm2051 = vcmp.lt.s32.totalorder %v1355, 16
      %vm2052 = vcmp.lt.s32.totalorder %v1356, 16
      %vm2053 = vmand %vm1557, %vm2051
      %vm2054 = vmand %vm1558, %vm2052
      %vm2055 = vcmp.lt.s32.totalorder %v1360, 32
      %vm2056 = vmand %vm2053, %vm2055
      %vm2057 = vmand %vm2054, %vm2055
      %v2058 = vsel %vm2056, 1, 0
      %v2059 = vsel %vm2057, 1, 0
      %v2060 = vcvt.s32.f32 %v2058
      %v2061 = vcvt.s32.f32 %v2059
      %v2062 = vpack.c.bf16 %v2061, %v2060
      %vm2063 = vcmask 261120
      %v2065 = vsel %vm2063, %v2062, 0
      %2067 = vmatprep.subr.bf16.mxu0 0
      %2068 = vmatpush1.bf16.msra.mxu0 %v2049
      %2069 = vmatprep.subr.bf16.mxu0 0
      %2070 = vmatpush1.bf16.msra.mxu0 %v2050
      %2071 = vmatprep.subr.bf16.mxu0 0
      %2072 = vmatpush1.bf16.msra.mxu0 0
      %2073 = vmatprep.subr.bf16.mxu0 0
      %2074 = vmatpush1.bf16.msra.mxu0 0
      %2075 = vmatprep.subr.bf16.mxu0 0
      %2076 = vmatpush1.bf16.msra.mxu0 0
      %2077 = vmatprep.subr.bf16.mxu0 0
      %2078 = vmatpush1.bf16.msra.mxu0 0
      %2079 = vmatprep.subr.bf16.mxu0 0
      %2080 = vmatpush1.bf16.msra.mxu0 0
      %2081 = vmatprep.subr.bf16.mxu0 0
      %2082 = vmatpush1.bf16.msra.mxu0 0
      %2083 = vmatprep.subr.bf16.mxu0 0
      %2084 = vmatpush1.bf16.msra.mxu0 0
      %2085 = vmatprep.subr.bf16.mxu0 0
      %2086 = vmatpush1.bf16.msra.mxu0 0
      %2087 = vmatprep.subr.bf16.mxu0 0
      %2088 = vmatpush1.bf16.msra.mxu0 0
      %2089 = vmatprep.subr.bf16.mxu0 0
      %2090 = vmatpush1.bf16.msra.mxu0 0
      %2091 = vmatprep.subr.bf16.mxu0 0
      %2092 = vmatpush1.bf16.msra.mxu0 0
      %2093 = vmatprep.subr.bf16.mxu0 0
      %2094 = vmatpush1.bf16.msra.mxu0 0
      %2095 = vmatprep.subr.bf16.mxu0 0
      %2096 = vmatpush1.bf16.msra.mxu0 0
      %2097 = vmatprep.subr.bf16.mxu0 0
      %2098 = vmatpush1.bf16.msra.mxu0 0
      %2099 = vmatprep.mubr.bf16.mxu0 0
      %2100 = vmatmul.mubr.bf16.gmra.mrb[0].mxu0 %v2065
      %v2101 = vpop.f32.mrb[0].mxu0
      %v2102 = vadd.f32 0.0, %v2101
      %v2103 = vpop.f32.mrb[0].mxu0
      %v2104 = vpop.f32.mrb[0].mxu0
      %v2105 = vadd.f32 0.0, %v2104
      %v2106 = vpop.f32.mrb[0].mxu0
      %2107 = vdwg.mxu0
      %vm2108 = vcmp.lt.s32.totalorder %v1553, 0
      %vm2109 = vcmp.lt.s32.totalorder %v1554, 0
      %vm2110 = vcmp.ge.s32.totalorder %v1553, 32
      %vm2111 = vcmp.ge.s32.totalorder %v1554, 32
      %vm2112 = vmor %vm2108, %vm2110
      %vm2113 = vmor %vm2109, %vm2111
      %v2114 = vsel %vm2112, 1, 0
      %v2115 = vsel %vm2113, 1, 0
      %vm2116 = vcmp.eq.s32.totalorder %v2114, 1
      %vm2117 = vcmp.eq.s32.totalorder %v2115, 1
      %v2118 = vsel %vm2116, -1.0, %v2102
      %v2119 = vsel %vm2117, -1.0, %v2105
      %vm2120 = vmand %vm1650, %vm2051
      %vm2121 = vmand %vm1651, %vm2052
      %vm2122 = vmand %vm2120, %vm2055
      %vm2123 = vmand %vm2121, %vm2055
      %v2124 = vsel %vm2122, 1, 0
      %v2125 = vsel %vm2123, 1, 0
      %v2126 = vcvt.s32.f32 %v2124
      %v2127 = vcvt.s32.f32 %v2125
      %v2128 = vpack.c.bf16 %v2127, %v2126
      %v2130 = vsel %vm2063, %v2128, 0
      %2132 = vmatprep.subr.bf16.mxu0 0
      %2133 = vmatpush1.bf16.msra.mxu0 %v2049
      %2134 = vmatprep.subr.bf16.mxu0 0
      %2135 = vmatpush1.bf16.msra.mxu0 %v2050
      %2136 = vmatprep.subr.bf16.mxu0 0
      %2137 = vmatpush1.bf16.msra.mxu0 0
      %2138 = vmatprep.subr.bf16.mxu0 0
      %2139 = vmatpush1.bf16.msra.mxu0 0
      %2140 = vmatprep.subr.bf16.mxu0 0
      %2141 = vmatpush1.bf16.msra.mxu0 0
      %2142 = vmatprep.subr.bf16.mxu0 0
      %2143 = vmatpush1.bf16.msra.mxu0 0
      %2144 = vmatprep.subr.bf16.mxu0 0
      %2145 = vmatpush1.bf16.msra.mxu0 0
      %2146 = vmatprep.subr.bf16.mxu0 0
      %2147 = vmatpush1.bf16.msra.mxu0 0
      %2148 = vmatprep.subr.bf16.mxu0 0
      %2149 = vmatpush1.bf16.msra.mxu0 0
      %2150 = vmatprep.subr.bf16.mxu0 0
      %2151 = vmatpush1.bf16.msra.mxu0 0
      %2152 = vmatprep.subr.bf16.mxu0 0
      %2153 = vmatpush1.bf16.msra.mxu0 0
      %2154 = vmatprep.subr.bf16.mxu0 0
      %2155 = vmatpush1.bf16.msra.mxu0 0
      %2156 = vmatprep.subr.bf16.mxu0 0
      %2157 = vmatpush1.bf16.msra.mxu0 0
      %2158 = vmatprep.subr.bf16.mxu0 0
      %2159 = vmatpush1.bf16.msra.mxu0 0
      %2160 = vmatprep.subr.bf16.mxu0 0
      %2161 = vmatpush1.bf16.msra.mxu0 0
      %2162 = vmatprep.subr.bf16.mxu0 0
      %2163 = vmatpush1.bf16.msra.mxu0 0
      %2164 = vmatprep.mubr.bf16.mxu0 0
      %2165 = vmatmul.mubr.bf16.gmra.mrb[0].mxu0 %v2130
      %v2166 = vpop.f32.mrb[0].mxu0
      %v2167 = vadd.f32 0.0, %v2166
      %v2168 = vpop.f32.mrb[0].mxu0
      %v2169 = vpop.f32.mrb[0].mxu0
      %v2170 = vadd.f32 0.0, %v2169
      %v2171 = vpop.f32.mrb[0].mxu0
      %2172 = vdwg.mxu0
      %vm2173 = vcmp.lt.s32.totalorder %v1361, 0
      %vm2174 = vcmp.lt.s32.totalorder %v1362, 0
      %vm2175 = vcmp.ge.s32.totalorder %v1361, 32
      %vm2176 = vcmp.ge.s32.totalorder %v1362, 32
      %vm2177 = vmor %vm2173, %vm2175
      %vm2178 = vmor %vm2174, %vm2176
      %v2179 = vsel %vm2177, 1, 0
      %v2180 = vsel %vm2178, 1, 0
      %vm2181 = vcmp.eq.s32.totalorder %v2179, 1
      %vm2182 = vcmp.eq.s32.totalorder %v2180, 1
      %v2183 = vsel %vm2181, -1.0, %v2167
      %v2184 = vsel %vm2182, -1.0, %v2170
      %v2185 = vmax.f32 %v2118, %v2183
      %v2186 = vmax.f32 %v2119, %v2184
      %vm2187 = vmand %vm1747, %vm2051
      %vm2188 = vmand %vm1748, %vm2052
      %vm2189 = vmand %vm2187, %vm2055
      %vm2190 = vmand %vm2188, %vm2055
      %v2191 = vsel %vm2189, 1, 0
      %v2192 = vsel %vm2190, 1, 0
      %v2193 = vcvt.s32.f32 %v2191
      %v2194 = vcvt.s32.f32 %v2192
      %v2195 = vpack.c.bf16 %v2194, %v2193
      %v2197 = vsel %vm2063, %v2195, 0
      %2199 = vmatprep.subr.bf16.mxu0 0
      %2200 = vmatpush1.bf16.msra.mxu0 %v2049
      %2201 = vmatprep.subr.bf16.mxu0 0
      %2202 = vmatpush1.bf16.msra.mxu0 %v2050
      %2203 = vmatprep.subr.bf16.mxu0 0
      %2204 = vmatpush1.bf16.msra.mxu0 0
      %2205 = vmatprep.subr.bf16.mxu0 0
      %2206 = vmatpush1.bf16.msra.mxu0 0
      %2207 = vmatprep.subr.bf16.mxu0 0
      %2208 = vmatpush1.bf16.msra.mxu0 0
      %2209 = vmatprep.subr.bf16.mxu0 0
      %2210 = vmatpush1.bf16.msra.mxu0 0
      %2211 = vmatprep.subr.bf16.mxu0 0
      %2212 = vmatpush1.bf16.msra.mxu0 0
      %2213 = vmatprep.subr.bf16.mxu0 0
      %2214 = vmatpush1.bf16.msra.mxu0 0
      %2215 = vmatprep.subr.bf16.mxu0 0
      %2216 = vmatpush1.bf16.msra.mxu0 0
      %2217 = vmatprep.subr.bf16.mxu0 0
      %2218 = vmatpush1.bf16.msra.mxu0 0
      %2219 = vmatprep.subr.bf16.mxu0 0
      %2220 = vmatpush1.bf16.msra.mxu0 0
      %2221 = vmatprep.subr.bf16.mxu0 0
      %2222 = vmatpush1.bf16.msra.mxu0 0
      %2223 = vmatprep.subr.bf16.mxu0 0
      %2224 = vmatpush1.bf16.msra.mxu0 0
      %2225 = vmatprep.subr.bf16.mxu0 0
      %2226 = vmatpush1.bf16.msra.mxu0 0
      %2227 = vmatprep.subr.bf16.mxu0 0
      %2228 = vmatpush1.bf16.msra.mxu0 0
      %2229 = vmatprep.subr.bf16.mxu0 0
      %2230 = vmatpush1.bf16.msra.mxu0 0
      %2231 = vmatprep.mubr.bf16.mxu0 0
      %2232 = vmatmul.mubr.bf16.gmra.mrb[0].mxu0 %v2197
      %v2233 = vpop.f32.mrb[0].mxu0
      %v2234 = vadd.f32 0.0, %v2233
      %v2235 = vpop.f32.mrb[0].mxu0
      %v2236 = vpop.f32.mrb[0].mxu0
      %v2237 = vadd.f32 0.0, %v2236
      %v2238 = vpop.f32.mrb[0].mxu0
      %2239 = vdwg.mxu0
      %vm2240 = vcmp.lt.s32.totalorder %v1743, 0
      %vm2241 = vcmp.lt.s32.totalorder %v1744, 0
      %vm2242 = vcmp.ge.s32.totalorder %v1743, 32
      %vm2243 = vcmp.ge.s32.totalorder %v1744, 32
      %vm2244 = vmor %vm2240, %vm2242
      %vm2245 = vmor %vm2241, %vm2243
      %v2246 = vsel %vm2244, 1, 0
      %v2247 = vsel %vm2245, 1, 0
      %vm2248 = vcmp.eq.s32.totalorder %v2246, 1
      %vm2249 = vcmp.eq.s32.totalorder %v2247, 1
      %v2250 = vsel %vm2248, -1.0, %v2234
      %v2251 = vsel %vm2249, -1.0, %v2237
      %v2252 = vmax.f32 %v2185, %v2250
      %v2253 = vmax.f32 %v2186, %v2251
      %v2254 = vmul.f32 %v2252, %v2252
      %v2255 = vmul.f32 %v2253, %v2253
      %2258 = vrot.lane.b32.xlu0 %v2254, 8
      %v2259 = vpop.permute.xlu0 %2258
      %2260 = vrot.lane.b32.xlu0 %v2255, 8
      %v2261 = vpop.permute.xlu0 %2260
      %v2264 = vsel %vm1272, %v2252, %v2259
      %v2265 = vsel %vm1272, %v2253, %v2261
      %v2266 = vpack.c.bf16 %v2265, %v2264
      %v2267 = vld [vmem:[%s7] sm:$0xf]
      %v2268 = vld [vmem:[%s7 + $0x4] sm:$0xf]
      %v2271 = vunpack.c.l.b16 %v2267
      %v2272 = vunpack.c.l.b16 %v2268
      %v2273 = vpack.c.b16 %v2272, %v2271
      %vm2275 = vcmask 130048
      %v2277 = vsel %vm2275, %v2266, 0
      %2279 = vmatprep.subr.bf16.mxu0 0
      %2280 = vmatpush1.bf16.msra.mxu0 %v2273
      %2281 = vmatprep.subr.bf16.mxu0 0
      %2282 = vmatpush1.bf16.msra.mxu0 0
      %2283 = vmatprep.subr.bf16.mxu0 0
      %2284 = vmatpush1.bf16.msra.mxu0 0
      %2285 = vmatprep.subr.bf16.mxu0 0
      %2286 = vmatpush1.bf16.msra.mxu0 0
      %2287 = vmatprep.subr.bf16.mxu0 0
      %2288 = vmatpush1.bf16.msra.mxu0 0
      %2289 = vmatprep.subr.bf16.mxu0 0
      %2290 = vmatpush1.bf16.msra.mxu0 0
      %2291 = vmatprep.subr.bf16.mxu0 0
      %2292 = vmatpush1.bf16.msra.mxu0 0
      %2293 = vmatprep.subr.bf16.mxu0 0
      %2294 = vmatpush1.bf16.msra.mxu0 0
      %2295 = vmatprep.subr.bf16.mxu0 0
      %2296 = vmatpush1.bf16.msra.mxu0 0
      %2297 = vmatprep.subr.bf16.mxu0 0
      %2298 = vmatpush1.bf16.msra.mxu0 0
      %2299 = vmatprep.subr.bf16.mxu0 0
      %2300 = vmatpush1.bf16.msra.mxu0 0
      %2301 = vmatprep.subr.bf16.mxu0 0
      %2302 = vmatpush1.bf16.msra.mxu0 0
      %2303 = vmatprep.subr.bf16.mxu0 0
      %2304 = vmatpush1.bf16.msra.mxu0 0
      %2305 = vmatprep.subr.bf16.mxu0 0
      %2306 = vmatpush1.bf16.msra.mxu0 0
      %2307 = vmatprep.subr.bf16.mxu0 0
      %2308 = vmatpush1.bf16.msra.mxu0 0
      %2309 = vmatprep.subr.bf16.mxu0 0
      %2310 = vmatpush1.bf16.msra.mxu0 0
      %2311 = vmatprep.mubr.bf16.mxu0 0
      %2312 = vmatmul.mubr.bf16.gmra.mrb[0].mxu0 %v2277
      %v2313 = vpop.f32.mrb[0].mxu0
      %v2314 = vadd.f32 0.0, %v2313
      %v2315 = vpop.f32.mrb[0].mxu0
      %v2316 = vpop.f32.mrb[0].mxu0
      %v2317 = vadd.f32 0.0, %v2316
      %v2318 = vpop.f32.mrb[0].mxu0
      %2319 = vdwg.mxu0
      %v2320 = vrot.slane %v2314, 7
      %v2321 = vrot.slane %v2317, 7
      %vm2322 = vcmp.lt.s32.totalorder %v1355, 1
      %v2323 = vsel %vm2322, %v2320, %v2321
      %v2324 = vsel %vm2322, %v2321, %v2320
      %v2325 = vadd.s32 %v1355, 4294967295
      %v2326 = vadd.s32 %v1356, 4294967295
      %vm2327 = vcmp.ge.s32.totalorder %v2325, 0
      %vm2328 = vcmp.ge.s32.totalorder %v2326, 0
      %vm2329 = vcmp.lt.s32.totalorder %v2325, 16
      %vm2330 = vcmp.lt.s32.totalorder %v2326, 16
      %vm2331 = vmand %vm2327, %vm2329
      %vm2332 = vmand %vm2328, %vm2330
      %v2333 = vsel %vm2331, 1, 0
      %v2334 = vsel %vm2332, 1, 0
      %vm2335 = vcmp.eq.s32.totalorder %v2333, 1
      %vm2336 = vcmp.eq.s32.totalorder %v2334, 1
      %v2337 = vsel %vm2335, %v2324, 0.0
      %v2338 = vsel %vm2336, %v2323, 0.0
      %2341 = vrot.lane.b32.xlu0 %v2314, 120
      %v2342 = vpop.permute.xlu0 %2341
      %2343 = vrot.lane.b32.xlu0 %v2317, 120
      %v2344 = vpop.permute.xlu0 %2343
      %v2347 = vadd.f32 %v2337, %v2342
      %v2348 = vadd.f32 %v2338, %v2344
      %2349 = vrot.lane.b32.xlu0 %v2314, 112
      %v2350 = vpop.permute.xlu0 %2349
      %2351 = vrot.lane.b32.xlu0 %v2317, 112
      %v2352 = vpop.permute.xlu0 %2351
      %v2355 = vrot.slane %v2350, 1
      %v2356 = vrot.slane %v2352, 1
      %vm2357 = vcmp.lt.s32.totalorder %v1355, 7
      %v2358 = vsel %vm2357, %v2355, %v2356
      %v2359 = vsel %vm2357, %v2356, %v2355
      %v2360 = vadd.s32 %v1355, 1
      %v2361 = vadd.s32 %v1356, 1
      %vm2362 = vcmp.ge.s32.totalorder %v2360, 0
      %vm2363 = vcmp.ge.s32.totalorder %v2361, 0
      %vm2364 = vcmp.lt.s32.totalorder %v2360, 16
      %vm2365 = vcmp.lt.s32.totalorder %v2361, 16
      %vm2366 = vmand %vm2362, %vm2364
      %vm2367 = vmand %vm2363, %vm2365
      %v2368 = vsel %vm2366, 1, 0
      %v2369 = vsel %vm2367, 1, 0
      %vm2370 = vcmp.eq.s32.totalorder %v2368, 1
      %vm2371 = vcmp.eq.s32.totalorder %v2369, 1
      %v2372 = vsel %vm2370, %v2358, 0.0
      %v2373 = vsel %vm2371, %v2359, 0.0
      %v2374 = vadd.f32 %v2347, %v2372
      %v2375 = vadd.f32 %v2348, %v2373
      %v2376 = vld [vmem:[%s9] sm:$0x1]
      %v2378 = vlaneseq
      %v2379 = vshrl.u32 %v2378, 7
      %v2380 = vsub.s32 0, %v2379
      %v2381 = vrot.slane %v2376, %v2380
      %v2383 = vadd.f32 %v2374, %v2381
      %v2384 = vadd.f32 %v2375, %v2381
      %v2385 = vtanh.pop %v2383
      %v2386 = vtanh.pop %v2384
      %v2387 = vmul.f32 %v2385, %v2385
      %v2388 = vmul.f32 %v2386, %v2386
      %2391 = vrot.lane.b32.xlu0 %v2387, 8
      %v2392 = vpop.permute.xlu0 %2391
      %2393 = vrot.lane.b32.xlu0 %v2388, 8
      %v2394 = vpop.permute.xlu0 %2393
      %v2397 = vsel %vm1272, %v2385, %v2392
      %v2398 = vsel %vm1272, %v2386, %v2394
      %v2399 = vpack.c.bf16 %v2398, %v2397
      %v2400 = vld [vmem:[%s11] sm:$0xf]
      %v2401 = vld [vmem:[%s11 + $0x4] sm:$0xf]
      %v2404 = vunpack.c.l.b16 %v2400
      %v2405 = vunpack.c.l.b16 %v2401
      %v2406 = vpack.c.b16 %v2405, %v2404
      %v2409 = vsel %vm2275, %v2399, 0
      %2411 = vmatprep.subr.bf16.mxu0 0
      %2412 = vmatpush1.bf16.msra.mxu0 %v2406
      %2413 = vmatprep.subr.bf16.mxu0 0
      %2414 = vmatpush1.bf16.msra.mxu0 0
      %2415 = vmatprep.subr.bf16.mxu0 0
      %2416 = vmatpush1.bf16.msra.mxu0 0
      %2417 = vmatprep.subr.bf16.mxu0 0
      %2418 = vmatpush1.bf16.msra.mxu0 0
      %2419 = vmatprep.subr.bf16.mxu0 0
      %2420 = vmatpush1.bf16.msra.mxu0 0
      %2421 = vmatprep.subr.bf16.mxu0 0
      %2422 = vmatpush1.bf16.msra.mxu0 0
      %2423 = vmatprep.subr.bf16.mxu0 0
      %2424 = vmatpush1.bf16.msra.mxu0 0
      %2425 = vmatprep.subr.bf16.mxu0 0
      %2426 = vmatpush1.bf16.msra.mxu0 0
      %2427 = vmatprep.subr.bf16.mxu0 0
      %2428 = vmatpush1.bf16.msra.mxu0 0
      %2429 = vmatprep.subr.bf16.mxu0 0
      %2430 = vmatpush1.bf16.msra.mxu0 0
      %2431 = vmatprep.subr.bf16.mxu0 0
      %2432 = vmatpush1.bf16.msra.mxu0 0
      %2433 = vmatprep.subr.bf16.mxu0 0
      %2434 = vmatpush1.bf16.msra.mxu0 0
      %2435 = vmatprep.subr.bf16.mxu0 0
      %2436 = vmatpush1.bf16.msra.mxu0 0
      %2437 = vmatprep.subr.bf16.mxu0 0
      %2438 = vmatpush1.bf16.msra.mxu0 0
      %2439 = vmatprep.subr.bf16.mxu0 0
      %2440 = vmatpush1.bf16.msra.mxu0 0
      %2441 = vmatprep.subr.bf16.mxu0 0
      %2442 = vmatpush1.bf16.msra.mxu0 0
      %2443 = vmatprep.mubr.bf16.mxu0 0
      %2444 = vmatmul.mubr.bf16.gmra.mrb[0].mxu0 %v2409
      %v2445 = vpop.f32.mrb[0].mxu0
      %v2446 = vadd.f32 0.0, %v2445
      %v2447 = vpop.f32.mrb[0].mxu0
      %v2448 = vpop.f32.mrb[0].mxu0
      %v2449 = vadd.f32 0.0, %v2448
      %v2450 = vpop.f32.mrb[0].mxu0
      %2451 = vdwg.mxu0
      %v2452 = vrot.slane %v2446, 7
      %v2453 = vrot.slane %v2449, 7
      %v2454 = vsel %vm2322, %v2452, %v2453
      %v2455 = vsel %vm2322, %v2453, %v2452
      %v2456 = vsel %vm2335, %v2455, 0.0
      %v2457 = vsel %vm2336, %v2454, 0.0
      %2460 = vrot.lane.b32.xlu0 %v2446, 120
      %v2461 = vpop.permute.xlu0 %2460
      %2462 = vrot.lane.b32.xlu0 %v2449, 120
      %v2463 = vpop.permute.xlu0 %2462
      %v2466 = vadd.f32 %v2456, %v2461
      %v2467 = vadd.f32 %v2457, %v2463
      %2468 = vrot.lane.b32.xlu0 %v2446, 112
      %v2469 = vpop.permute.xlu0 %2468
      %2470 = vrot.lane.b32.xlu0 %v2449, 112
      %v2471 = vpop.permute.xlu0 %2470
      %v2474 = vrot.slane %v2469, 1
      %v2475 = vrot.slane %v2471, 1
      %v2476 = vsel %vm2357, %v2474, %v2475
      %v2477 = vsel %vm2357, %v2475, %v2474
      %v2478 = vsel %vm2370, %v2476, 0.0
      %v2479 = vsel %vm2371, %v2477, 0.0
      %v2480 = vadd.f32 %v2466, %v2478
      %v2481 = vadd.f32 %v2467, %v2479
      %v2482 = vld [vmem:[%s13] sm:$0x1]
      %v2484 = vlaneseq
      %v2485 = vshrl.u32 %v2484, 7
      %v2486 = vsub.s32 0, %v2485
      %v2487 = vrot.slane %v2482, %v2486
      %v2489 = vadd.f32 %v2480, %v2487
      %v2490 = vadd.f32 %v2481, %v2487
      %v2491 = vadd.f32 %v2489, %v2252
      %v2492 = vadd.f32 %v2490, %v2253
      %v2493 = vtanh.pop %v2491
      %v2494 = vtanh.pop %v2492
      %v2495 = vmul.f32 %v2493, %v2493
      %v2496 = vmul.f32 %v2494, %v2494
      %2499 = vrot.lane.b32.xlu0 %v2495, 8
      %v2500 = vpop.permute.xlu0 %2499
      %2501 = vrot.lane.b32.xlu0 %v2496, 8
      %v2502 = vpop.permute.xlu0 %2501
      %v2505 = vsel %vm1272, %v2493, %v2500
      %v2506 = vsel %vm1272, %v2494, %v2502
      %v2507 = vpack.c.bf16 %v2506, %v2505
      %v2508 = vld [vmem:[%s15] sm:$0xf]
      %v2509 = vld [vmem:[%s15 + $0x4] sm:$0xf]
      %v2512 = vunpack.c.l.b16 %v2508
      %v2513 = vunpack.c.l.b16 %v2509
      %v2514 = vpack.c.b16 %v2513, %v2512
      %v2517 = vsel %vm2275, %v2507, 0
      %2519 = vmatprep.subr.bf16.mxu0 0
      %2520 = vmatpush1.bf16.msra.mxu0 %v2514
      %2521 = vmatprep.subr.bf16.mxu0 0
      %2522 = vmatpush1.bf16.msra.mxu0 0
      %2523 = vmatprep.subr.bf16.mxu0 0
      %2524 = vmatpush1.bf16.msra.mxu0 0
      %2525 = vmatprep.subr.bf16.mxu0 0
      %2526 = vmatpush1.bf16.msra.mxu0 0
      %2527 = vmatprep.subr.bf16.mxu0 0
      %2528 = vmatpush1.bf16.msra.mxu0 0
      %2529 = vmatprep.subr.bf16.mxu0 0
      %2530 = vmatpush1.bf16.msra.mxu0 0
      %2531 = vmatprep.subr.bf16.mxu0 0
      %2532 = vmatpush1.bf16.msra.mxu0 0
      %2533 = vmatprep.subr.bf16.mxu0 0
      %2534 = vmatpush1.bf16.msra.mxu0 0
      %2535 = vmatprep.subr.bf16.mxu0 0
      %2536 = vmatpush1.bf16.msra.mxu0 0
      %2537 = vmatprep.subr.bf16.mxu0 0
      %2538 = vmatpush1.bf16.msra.mxu0 0
      %2539 = vmatprep.subr.bf16.mxu0 0
      %2540 = vmatpush1.bf16.msra.mxu0 0
      %2541 = vmatprep.subr.bf16.mxu0 0
      %2542 = vmatpush1.bf16.msra.mxu0 0
      %2543 = vmatprep.subr.bf16.mxu0 0
      %2544 = vmatpush1.bf16.msra.mxu0 0
      %2545 = vmatprep.subr.bf16.mxu0 0
      %2546 = vmatpush1.bf16.msra.mxu0 0
      %2547 = vmatprep.subr.bf16.mxu0 0
      %2548 = vmatpush1.bf16.msra.mxu0 0
      %2549 = vmatprep.subr.bf16.mxu0 0
      %2550 = vmatpush1.bf16.msra.mxu0 0
      %2551 = vmatprep.mubr.bf16.mxu0 0
      %2552 = vmatmul.mubr.bf16.gmra.mrb[0].mxu0 %v2517
      %v2553 = vpop.f32.mrb[0].mxu0
      %v2554 = vadd.f32 0.0, %v2553
      %v2555 = vpop.f32.mrb[0].mxu0
      %v2556 = vpop.f32.mrb[0].mxu0
      %v2557 = vadd.f32 0.0, %v2556
      %v2558 = vpop.f32.mrb[0].mxu0
      %2559 = vdwg.mxu0
      %v2560 = vrot.slane %v2554, 7
      %v2561 = vrot.slane %v2557, 7
      %v2562 = vsel %vm2322, %v2560, %v2561
      %v2563 = vsel %vm2322, %v2561, %v2560
      %v2564 = vsel %vm2335, %v2563, 0.0
      %v2565 = vsel %vm2336, %v2562, 0.0
      %2568 = vrot.lane.b32.xlu0 %v2554, 120
      %v2569 = vpop.permute.xlu0 %2568
      %2570 = vrot.lane.b32.xlu0 %v2557, 120
      %v2571 = vpop.permute.xlu0 %2570
      %v2574 = vadd.f32 %v2564, %v2569
      %v2575 = vadd.f32 %v2565, %v2571
      %2576 = vrot.lane.b32.xlu0 %v2554, 112
      %v2577 = vpop.permute.xlu0 %2576
      %2578 = vrot.lane.b32.xlu0 %v2557, 112
      %v2579 = vpop.permute.xlu0 %2578
      %v2582 = vrot.slane %v2577, 1
      %v2583 = vrot.slane %v2579, 1
      %v2584 = vsel %vm2357, %v2582, %v2583
      %v2585 = vsel %vm2357, %v2583, %v2582
      %v2586 = vsel %vm2370, %v2584, 0.0
      %v2587 = vsel %vm2371, %v2585, 0.0
      %v2588 = vadd.f32 %v2574, %v2586
      %v2589 = vadd.f32 %v2575, %v2587
      %v2590 = vld [vmem:[%s17] sm:$0x1]
      %v2592 = vlaneseq
      %v2593 = vshrl.u32 %v2592, 7
      %v2594 = vsub.s32 0, %v2593
      %v2595 = vrot.slane %v2590, %v2594
      %v2597 = vadd.f32 %v2588, %v2595
      %v2598 = vadd.f32 %v2589, %v2595
      %v2599 = vtanh.pop %v2597
      %v2600 = vtanh.pop %v2598
      %v2601 = vmul.f32 %v2599, %v2599
      %v2602 = vmul.f32 %v2600, %v2600
      %2605 = vrot.lane.b32.xlu0 %v2601, 8
      %v2606 = vpop.permute.xlu0 %2605
      %2607 = vrot.lane.b32.xlu0 %v2602, 8
      %v2608 = vpop.permute.xlu0 %2607
      %v2611 = vsel %vm1272, %v2599, %v2606
      %v2612 = vsel %vm1272, %v2600, %v2608
      %v2613 = vpack.c.bf16 %v2612, %v2611
      %v2614 = vld [vmem:[%s19] sm:$0xf]
      %v2615 = vld [vmem:[%s19 + $0x4] sm:$0xf]
      %v2618 = vunpack.c.l.b16 %v2614
      %v2619 = vunpack.c.l.b16 %v2615
      %v2620 = vpack.c.b16 %v2619, %v2618
      %v2623 = vsel %vm2275, %v2613, 0
      %2625 = vmatprep.subr.bf16.mxu0 0
      %2626 = vmatpush1.bf16.msra.mxu0 %v2620
      %2627 = vmatprep.subr.bf16.mxu0 0
      %2628 = vmatpush1.bf16.msra.mxu0 0
      %2629 = vmatprep.subr.bf16.mxu0 0
      %2630 = vmatpush1.bf16.msra.mxu0 0
      %2631 = vmatprep.subr.bf16.mxu0 0
      %2632 = vmatpush1.bf16.msra.mxu0 0
      %2633 = vmatprep.subr.bf16.mxu0 0
      %2634 = vmatpush1.bf16.msra.mxu0 0
      %2635 = vmatprep.subr.bf16.mxu0 0
      %2636 = vmatpush1.bf16.msra.mxu0 0
      %2637 = vmatprep.subr.bf16.mxu0 0
      %2638 = vmatpush1.bf16.msra.mxu0 0
      %2639 = vmatprep.subr.bf16.mxu0 0
      %2640 = vmatpush1.bf16.msra.mxu0 0
      %2641 = vmatprep.subr.bf16.mxu0 0
      %2642 = vmatpush1.bf16.msra.mxu0 0
      %2643 = vmatprep.subr.bf16.mxu0 0
      %2644 = vmatpush1.bf16.msra.mxu0 0
      %2645 = vmatprep.subr.bf16.mxu0 0
      %2646 = vmatpush1.bf16.msra.mxu0 0
      %2647 = vmatprep.subr.bf16.mxu0 0
      %2648 = vmatpush1.bf16.msra.mxu0 0
      %2649 = vmatprep.subr.bf16.mxu0 0
      %2650 = vmatpush1.bf16.msra.mxu0 0
      %2651 = vmatprep.subr.bf16.mxu0 0
      %2652 = vmatpush1.bf16.msra.mxu0 0
      %2653 = vmatprep.subr.bf16.mxu0 0
      %2654 = vmatpush1.bf16.msra.mxu0 0
      %2655 = vmatprep.subr.bf16.mxu0 0
      %2656 = vmatpush1.bf16.msra.mxu0 0
      %2657 = vmatprep.mubr.bf16.mxu0 0
      %2658 = vmatmul.mubr.bf16.gmra.mrb[0].mxu0 %v2623
      %v2659 = vpop.f32.mrb[0].mxu0
      %v2660 = vadd.f32 0.0, %v2659
      %v2661 = vpop.f32.mrb[0].mxu0
      %v2662 = vpop.f32.mrb[0].mxu0
      %v2663 = vadd.f32 0.0, %v2662
      %v2664 = vpop.f32.mrb[0].mxu0
      %2665 = vdwg.mxu0
      %v2666 = vrot.slane %v2660, 7
      %v2667 = vrot.slane %v2663, 7
      %v2668 = vsel %vm2322, %v2666, %v2667
      %v2669 = vsel %vm2322, %v2667, %v2666
      %v2670 = vsel %vm2335, %v2669, 0.0
      %v2671 = vsel %vm2336, %v2668, 0.0
      %2674 = vrot.lane.b32.xlu0 %v2660, 120
      %v2675 = vpop.permute.xlu0 %2674
      %2676 = vrot.lane.b32.xlu0 %v2663, 120
      %v2677 = vpop.permute.xlu0 %2676
      %v2680 = vadd.f32 %v2670, %v2675
      %v2681 = vadd.f32 %v2671, %v2677
      %2682 = vrot.lane.b32.xlu0 %v2660, 112
      %v2683 = vpop.permute.xlu0 %2682
      %2684 = vrot.lane.b32.xlu0 %v2663, 112
      %v2685 = vpop.permute.xlu0 %2684
      %v2688 = vrot.slane %v2683, 1
      %v2689 = vrot.slane %v2685, 1
      %v2690 = vsel %vm2357, %v2688, %v2689
      %v2691 = vsel %vm2357, %v2689, %v2688
      %v2692 = vsel %vm2370, %v2690, 0.0
      %v2693 = vsel %vm2371, %v2691, 0.0
      %v2694 = vadd.f32 %v2680, %v2692
      %v2695 = vadd.f32 %v2681, %v2693
      %v2696 = vld [vmem:[%s21] sm:$0x1]
      %v2698 = vlaneseq
      %v2699 = vshrl.u32 %v2698, 7
      %v2700 = vsub.s32 0, %v2699
      %v2701 = vrot.slane %v2696, %v2700
      %v2703 = vadd.f32 %v2694, %v2701
      %v2704 = vadd.f32 %v2695, %v2701
      %v2705 = vadd.f32 %v2703, %v2493
      %v2706 = vadd.f32 %v2704, %v2494
      %v2707 = vtanh.pop %v2705
      %v2708 = vtanh.pop %v2706
      %v2709 = vmul.f32 %v2707, %v2707
      %v2710 = vmul.f32 %v2708, %v2708
      %2713 = vrot.lane.b32.xlu0 %v2709, 8
      %v2714 = vpop.permute.xlu0 %2713
      %2715 = vrot.lane.b32.xlu0 %v2710, 8
      %v2716 = vpop.permute.xlu0 %2715
      %v2719 = vsel %vm1272, %v2707, %v2714
      %v2720 = vsel %vm1272, %v2708, %v2716
      %v2721 = vpack.c.bf16 %v2720, %v2719
      %v2722 = vld [vmem:[%s23] sm:$0xf]
      %v2723 = vld [vmem:[%s23 + $0x4] sm:$0xf]
      %v2726 = vunpack.c.l.b16 %v2722
      %v2727 = vunpack.c.l.b16 %v2723
      %v2728 = vpack.c.b16 %v2727, %v2726
      %v2731 = vsel %vm2275, %v2721, 0
      %2733 = vmatprep.subr.bf16.mxu0 0
      %2734 = vmatpush1.bf16.msra.mxu0 %v2728
      %2735 = vmatprep.subr.bf16.mxu0 0
      %2736 = vmatpush1.bf16.msra.mxu0 0
      %2737 = vmatprep.subr.bf16.mxu0 0
      %2738 = vmatpush1.bf16.msra.mxu0 0
      %2739 = vmatprep.subr.bf16.mxu0 0
      %2740 = vmatpush1.bf16.msra.mxu0 0
      %2741 = vmatprep.subr.bf16.mxu0 0
      %2742 = vmatpush1.bf16.msra.mxu0 0
      %2743 = vmatprep.subr.bf16.mxu0 0
      %2744 = vmatpush1.bf16.msra.mxu0 0
      %2745 = vmatprep.subr.bf16.mxu0 0
      %2746 = vmatpush1.bf16.msra.mxu0 0
      %2747 = vmatprep.subr.bf16.mxu0 0
      %2748 = vmatpush1.bf16.msra.mxu0 0
      %2749 = vmatprep.subr.bf16.mxu0 0
      %2750 = vmatpush1.bf16.msra.mxu0 0
      %2751 = vmatprep.subr.bf16.mxu0 0
      %2752 = vmatpush1.bf16.msra.mxu0 0
      %2753 = vmatprep.subr.bf16.mxu0 0
      %2754 = vmatpush1.bf16.msra.mxu0 0
      %2755 = vmatprep.subr.bf16.mxu0 0
      %2756 = vmatpush1.bf16.msra.mxu0 0
      %2757 = vmatprep.subr.bf16.mxu0 0
      %2758 = vmatpush1.bf16.msra.mxu0 0
      %2759 = vmatprep.subr.bf16.mxu0 0
      %2760 = vmatpush1.bf16.msra.mxu0 0
      %2761 = vmatprep.subr.bf16.mxu0 0
      %2762 = vmatpush1.bf16.msra.mxu0 0
      %2763 = vmatprep.subr.bf16.mxu0 0
      %2764 = vmatpush1.bf16.msra.mxu0 0
      %2765 = vmatprep.mubr.bf16.mxu0 0
      %2766 = vmatmul.mubr.bf16.gmra.mrb[0].mxu0 %v2731
      %v2767 = vpop.f32.mrb[0].mxu0
      %v2768 = vadd.f32 0.0, %v2767
      %v2769 = vpop.f32.mrb[0].mxu0
      %v2770 = vpop.f32.mrb[0].mxu0
      %v2771 = vadd.f32 0.0, %v2770
      %v2772 = vpop.f32.mrb[0].mxu0
      %2773 = vdwg.mxu0
      %vm2774 = vcmp.lt.s32.totalorder %v1355, 8
      %vm2775 = vcmp.lt.s32.totalorder %v1356, 8
      %vm2776 = vmand %vm1557, %vm2774
      %vm2777 = vmand %vm1558, %vm2775
      %vm2778 = vcmp.lt.s32.totalorder %v1360, 16
      %vm2779 = vmand %vm2776, %vm2778
      %vm2780 = vmand %vm2777, %vm2778
      %v2781 = vsel %vm2779, 1, 0
      %v2782 = vsel %vm2780, 1, 0
      %v2783 = vcvt.s32.f32 %v2781
      %v2784 = vcvt.s32.f32 %v2782
      %v2785 = vpack.c.bf16 %v2784, %v2783
      %v2786 = vpack.c.bf16 %v2771, %v2768
      %vm2787 = vmand %vm1650, %vm2774
      %vm2788 = vmand %vm1651, %vm2775
      %vm2789 = vmand %vm2787, %vm2778
      %vm2790 = vmand %vm2788, %vm2778
      %v2791 = vsel %vm2789, 1, 0
      %v2792 = vsel %vm2790, 1, 0
      %v2793 = vcvt.s32.f32 %v2791
      %v2794 = vcvt.s32.f32 %v2792
      %v2795 = vpack.c.bf16 %v2794, %v2793
      %2797 = vrot.lane.b32.xlu0 %v2786, 112
      %v2798 = vpop.permute.xlu0 %2797
      %v2801 = vsel %vm2275, %v2795, 0
      %2803 = vmatprep.subr.bf16.mxu0 0
      %2804 = vmatpush1.bf16.msra.mxu0 %v2798
      %2805 = vmatprep.subr.bf16.mxu0 0
      %2806 = vmatpush1.bf16.msra.mxu0 0
      %2807 = vmatprep.subr.bf16.mxu0 0
      %2808 = vmatpush1.bf16.msra.mxu0 0
      %2809 = vmatprep.subr.bf16.mxu0 0
      %2810 = vmatpush1.bf16.msra.mxu0 0
      %2811 = vmatprep.subr.bf16.mxu0 0
      %2812 = vmatpush1.bf16.msra.mxu0 0
      %2813 = vmatprep.subr.bf16.mxu0 0
      %2814 = vmatpush1.bf16.msra.mxu0 0
      %2815 = vmatprep.subr.bf16.mxu0 0
      %2816 = vmatpush1.bf16.msra.mxu0 0
      %2817 = vmatprep.subr.bf16.mxu0 0
      %2818 = vmatpush1.bf16.msra.mxu0 0
      %2819 = vmatprep.subr.bf16.mxu0 0
      %2820 = vmatpush1.bf16.msra.mxu0 0
      %2821 = vmatprep.subr.bf16.mxu0 0
      %2822 = vmatpush1.bf16.msra.mxu0 0
      %2823 = vmatprep.subr.bf16.mxu0 0
      %2824 = vmatpush1.bf16.msra.mxu0 0
      %2825 = vmatprep.subr.bf16.mxu0 0
      %2826 = vmatpush1.bf16.msra.mxu0 0
      %2827 = vmatprep.subr.bf16.mxu0 0
      %2828 = vmatpush1.bf16.msra.mxu0 0
      %2829 = vmatprep.subr.bf16.mxu0 0
      %2830 = vmatpush1.bf16.msra.mxu0 0
      %2831 = vmatprep.subr.bf16.mxu0 0
      %2832 = vmatpush1.bf16.msra.mxu0 0
      %2833 = vmatprep.subr.bf16.mxu0 0
      %2834 = vmatpush1.bf16.msra.mxu0 0
      %2835 = vmatprep.mubr.bf16.mxu0 0
      %2836 = vmatmul.mubr.bf16.gmra.mrb[0].mxu0 %v2801
      %v2837 = vpop.f32.mrb[0].mxu0
      %v2838 = vadd.f32 0.0, %v2837
      %v2839 = vpop.f32.mrb[0].mxu0
      %v2840 = vpop.f32.mrb[0].mxu0
      %v2841 = vadd.f32 0.0, %v2840
      %v2842 = vpop.f32.mrb[0].mxu0
      %2843 = vdwg.mxu0
      %v2845 = vsel %vm2275, %v2785, 0
      %2847 = vmatprep.subr.bf16.mxu0 0
      %2848 = vmatpush1.bf16.msra.mxu0 %v2786
      %2849 = vmatprep.subr.bf16.mxu0 0
      %2850 = vmatpush1.bf16.msra.mxu0 0
      %2851 = vmatprep.subr.bf16.mxu0 0
      %2852 = vmatpush1.bf16.msra.mxu0 0
      %2853 = vmatprep.subr.bf16.mxu0 0
      %2854 = vmatpush1.bf16.msra.mxu0 0
      %2855 = vmatprep.subr.bf16.mxu0 0
      %2856 = vmatpush1.bf16.msra.mxu0 0
      %2857 = vmatprep.subr.bf16.mxu0 0
      %2858 = vmatpush1.bf16.msra.mxu0 0
      %2859 = vmatprep.subr.bf16.mxu0 0
      %2860 = vmatpush1.bf16.msra.mxu0 0
      %2861 = vmatprep.subr.bf16.mxu0 0
      %2862 = vmatpush1.bf16.msra.mxu0 0
      %2863 = vmatprep.subr.bf16.mxu0 0
      %2864 = vmatpush1.bf16.msra.mxu0 0
      %2865 = vmatprep.subr.bf16.mxu0 0
      %2866 = vmatpush1.bf16.msra.mxu0 0
      %2867 = vmatprep.subr.bf16.mxu0 0
      %2868 = vmatpush1.bf16.msra.mxu0 0
      %2869 = vmatprep.subr.bf16.mxu0 0
      %2870 = vmatpush1.bf16.msra.mxu0 0
      %2871 = vmatprep.subr.bf16.mxu0 0
      %2872 = vmatpush1.bf16.msra.mxu0 0
      %2873 = vmatprep.subr.bf16.mxu0 0
      %2874 = vmatpush1.bf16.msra.mxu0 0
      %2875 = vmatprep.subr.bf16.mxu0 0
      %2876 = vmatpush1.bf16.msra.mxu0 0
      %2877 = vmatprep.subr.bf16.mxu0 0
      %2878 = vmatpush1.bf16.msra.mxu0 0
      %2879 = vmatprep.mubr.bf16.mxu0 0
      %2880 = vmatmul.mubr.bf16.gmra.mrb[0].mxu0 %v2845
      %v2881 = vpop.f32.mrb[0].mxu0
      %v2882 = vadd.f32 %v2838, %v2881
      %v2883 = vpop.f32.mrb[0].mxu0
      %v2884 = vpop.f32.mrb[0].mxu0
      %v2885 = vadd.f32 %v2841, %v2884
      %v2886 = vpop.f32.mrb[0].mxu0
      %2887 = vdwg.mxu0
      %vm2888 = vmand %vm1747, %vm2774
      %vm2889 = vmand %vm1748, %vm2775
      %vm2890 = vmand %vm2888, %vm2778
      %vm2891 = vmand %vm2889, %vm2778
      %v2892 = vsel %vm2890, 1, 0
      %v2893 = vsel %vm2891, 1, 0
      %v2894 = vcvt.s32.f32 %v2892
      %v2895 = vcvt.s32.f32 %v2893
      %v2896 = vpack.c.bf16 %v2895, %v2894
      %2897 = vrot.lane.b32.xlu0 %v2786, 96
      %v2898 = vpop.permute.xlu0 %2897
      %v2901 = vsel %vm2275, %v2896, 0
      %2903 = vmatprep.subr.bf16.mxu0 0
      %2904 = vmatpush1.bf16.msra.mxu0 %v2898
      %2905 = vmatprep.subr.bf16.mxu0 0
      %2906 = vmatpush1.bf16.msra.mxu0 0
      %2907 = vmatprep.subr.bf16.mxu0 0
      %2908 = vmatpush1.bf16.msra.mxu0 0
      %2909 = vmatprep.subr.bf16.mxu0 0
      %2910 = vmatpush1.bf16.msra.mxu0 0
      %2911 = vmatprep.subr.bf16.mxu0 0
      %2912 = vmatpush1.bf16.msra.mxu0 0
      %2913 = vmatprep.subr.bf16.mxu0 0
      %2914 = vmatpush1.bf16.msra.mxu0 0
      %2915 = vmatprep.subr.bf16.mxu0 0
      %2916 = vmatpush1.bf16.msra.mxu0 0
      %2917 = vmatprep.subr.bf16.mxu0 0
      %2918 = vmatpush1.bf16.msra.mxu0 0
      %2919 = vmatprep.subr.bf16.mxu0 0
      %2920 = vmatpush1.bf16.msra.mxu0 0
      %2921 = vmatprep.subr.bf16.mxu0 0
      %2922 = vmatpush1.bf16.msra.mxu0 0
      %2923 = vmatprep.subr.bf16.mxu0 0
      %2924 = vmatpush1.bf16.msra.mxu0 0
      %2925 = vmatprep.subr.bf16.mxu0 0
      %2926 = vmatpush1.bf16.msra.mxu0 0
      %2927 = vmatprep.subr.bf16.mxu0 0
      %2928 = vmatpush1.bf16.msra.mxu0 0
      %2929 = vmatprep.subr.bf16.mxu0 0
      %2930 = vmatpush1.bf16.msra.mxu0 0
      %2931 = vmatprep.subr.bf16.mxu0 0
      %2932 = vmatpush1.bf16.msra.mxu0 0
      %2933 = vmatprep.subr.bf16.mxu0 0
      %2934 = vmatpush1.bf16.msra.mxu0 0
      %2935 = vmatprep.mubr.bf16.mxu0 0
      %2936 = vmatmul.mubr.bf16.gmra.mrb[0].mxu0 %v2901
      %v2937 = vpop.f32.mrb[0].mxu0
      %v2938 = vadd.f32 0.0, %v2937
      %v2939 = vpop.f32.mrb[0].mxu0
      %v2940 = vpop.f32.mrb[0].mxu0
      %v2941 = vadd.f32 0.0, %v2940
      %v2942 = vpop.f32.mrb[0].mxu0
      %2943 = vdwg.mxu0
      %v2944 = vadd.f32 %v2882, %v2938
      %v2945 = vadd.f32 %v2885, %v2941
      %v2946 = vld [vmem:[%s25] sm:$0x1]
      %v2948 = vlaneseq
      %v2949 = vshrl.u32 %v2948, 7
      %v2950 = vsub.s32 0, %v2949
      %v2951 = vrot.slane %v2946, %v2950
      %v2953 = vadd.f32 %v2944, %v2951
      %v2954 = vadd.f32 %v2945, %v2951
      %v2955 = vtanh.pop %v2953
      %v2956 = vtanh.pop %v2954
      %v2957 = vmul.f32 %v2955, %v2955
      %v2958 = vmul.f32 %v2956, %v2956
      %2961 = vrot.lane.b32.xlu0 %v2957, 16
      %v2962 = vpop.permute.xlu0 %2961
      %2963 = vrot.lane.b32.xlu0 %v2958, 16
      %v2964 = vpop.permute.xlu0 %2963
      %v2967 = vsel %vm2275, %v2955, %v2962
      %v2968 = vsel %vm2275, %v2956, %v2964
      %v2969 = vpack.c.bf16 %v2968, %v2967
      %v2970 = vld [vmem:[%s27] sm:$0xf]
      %v2971 = vld [vmem:[%s27 + $0x4] sm:$0xf]
      %v2972 = vld [vmem:[%s27 + $0x8] sm:$0xf]
      %v2973 = vld [vmem:[%s27 + $0xc] sm:$0xf]
      %v2978 = vunpack.c.l.b16 %v2970
      %v2979 = vunpack.c.l.b16 %v2971
      %v2980 = vunpack.c.l.b16 %v2972
      %v2981 = vunpack.c.l.b16 %v2973
      %v2982 = vpack.c.b16 %v2979, %v2978
      %v2983 = vpack.c.b16 %v2981, %v2980
      %v2987 = vsel %vm2063, %v2969, 0
      %2989 = vmatprep.subr.bf16.mxu0 0
      %2990 = vmatpush1.bf16.msra.mxu0 %v2982
      %2991 = vmatprep.subr.bf16.mxu0 0
      %2992 = vmatpush1.bf16.msra.mxu0 %v2983
      %2993 = vmatprep.subr.bf16.mxu0 0
      %2994 = vmatpush1.bf16.msra.mxu0 0
      %2995 = vmatprep.subr.bf16.mxu0 0
      %2996 = vmatpush1.bf16.msra.mxu0 0
      %2997 = vmatprep.subr.bf16.mxu0 0
      %2998 = vmatpush1.bf16.msra.mxu0 0
      %2999 = vmatprep.subr.bf16.mxu0 0
      %3000 = vmatpush1.bf16.msra.mxu0 0
      %3001 = vmatprep.subr.bf16.mxu0 0
      %3002 = vmatpush1.bf16.msra.mxu0 0
      %3003 = vmatprep.subr.bf16.mxu0 0
      %3004 = vmatpush1.bf16.msra.mxu0 0
      %3005 = vmatprep.subr.bf16.mxu0 0
      %3006 = vmatpush1.bf16.msra.mxu0 0
      %3007 = vmatprep.subr.bf16.mxu0 0
      %3008 = vmatpush1.bf16.msra.mxu0 0
      %3009 = vmatprep.subr.bf16.mxu0 0
      %3010 = vmatpush1.bf16.msra.mxu0 0
      %3011 = vmatprep.subr.bf16.mxu0 0
      %3012 = vmatpush1.bf16.msra.mxu0 0
      %3013 = vmatprep.subr.bf16.mxu0 0
      %3014 = vmatpush1.bf16.msra.mxu0 0
      %3015 = vmatprep.subr.bf16.mxu0 0
      %3016 = vmatpush1.bf16.msra.mxu0 0
      %3017 = vmatprep.subr.bf16.mxu0 0
      %3018 = vmatpush1.bf16.msra.mxu0 0
      %3019 = vmatprep.subr.bf16.mxu0 0
      %3020 = vmatpush1.bf16.msra.mxu0 0
      %3021 = vmatprep.mubr.bf16.mxu0 0
      %3022 = vmatmul.mubr.bf16.gmra.mrb[0].mxu0 %v2987
      %v3023 = vpop.f32.mrb[0].mxu0
      %v3024 = vadd.f32 0.0, %v3023
      %v3025 = vpop.f32.mrb[0].mxu0
      %v3026 = vpop.f32.mrb[0].mxu0
      %v3027 = vadd.f32 0.0, %v3026
      %v3028 = vpop.f32.mrb[0].mxu0
      %3029 = vdwg.mxu0
      %v3030 = vrot.slane %v3024, 7
      %v3031 = vrot.slane %v3027, 7
      %v3032 = vsel %vm2322, %v3030, %v3031
      %v3033 = vsel %vm2322, %v3031, %v3030
      %vm3034 = vcmp.lt.s32.totalorder %v2325, 8
      %vm3035 = vcmp.lt.s32.totalorder %v2326, 8
      %vm3036 = vmand %vm2327, %vm3034
      %vm3037 = vmand %vm2328, %vm3035
      %v3038 = vsel %vm3036, 1, 0
      %v3039 = vsel %vm3037, 1, 0
      %vm3040 = vcmp.eq.s32.totalorder %v3038, 1
      %vm3041 = vcmp.eq.s32.totalorder %v3039, 1
      %v3042 = vsel %vm3040, %v3033, 0.0
      %v3043 = vsel %vm3041, %v3032, 0.0
      %3046 = vrot.lane.b32.xlu0 %v3024, 112
      %v3047 = vpop.permute.xlu0 %3046
      %3048 = vrot.lane.b32.xlu0 %v3027, 112
      %v3049 = vpop.permute.xlu0 %3048
      %v3052 = vadd.f32 %v3042, %v3047
      %v3053 = vadd.f32 %v3043, %v3049
      %3054 = vrot.lane.b32.xlu0 %v3024, 96
      %v3055 = vpop.permute.xlu0 %3054
      %3056 = vrot.lane.b32.xlu0 %v3027, 96
      %v3057 = vpop.permute.xlu0 %3056
      %v3060 = vrot.slane %v3055, 1
      %v3061 = vrot.slane %v3057, 1
      %v3062 = vsel %vm2357, %v3060, %v3061
      %v3063 = vsel %vm2357, %v3061, %v3060
      %vm3064 = vcmp.lt.s32.totalorder %v2360, 8
      %vm3065 = vcmp.lt.s32.totalorder %v2361, 8
      %vm3066 = vmand %vm2362, %vm3064
      %vm3067 = vmand %vm2363, %vm3065
      %v3068 = vsel %vm3066, 1, 0
      %v3069 = vsel %vm3067, 1, 0
      %vm3070 = vcmp.eq.s32.totalorder %v3068, 1
      %vm3071 = vcmp.eq.s32.totalorder %v3069, 1
      %v3072 = vsel %vm3070, %v3062, 0.0
      %v3073 = vsel %vm3071, %v3063, 0.0
      %v3074 = vadd.f32 %v3052, %v3072
      %v3075 = vadd.f32 %v3053, %v3073
      %v3076 = vld [vmem:[%s29] sm:$0x1]
      %v3078 = vlaneseq
      %v3079 = vshrl.u32 %v3078, 7
      %v3080 = vsub.s32 0, %v3079
      %v3081 = vrot.slane %v3076, %v3080
      %v3083 = vadd.f32 %v3074, %v3081
      %v3084 = vadd.f32 %v3075, %v3081
      %v3085 = vpack.c.bf16 %v2708, %v2707
      %v3086 = vld [vmem:[%s31] sm:$0xf]
      %v3088 = vsel %vm1272, %v3085, 0
      %v3091 = vsel %vm1285, %v3086, 0
      %3093 = vmatprep.subr.bf16.mxu0 0
      %3094 = vmatpush1.bf16.msra.mxu0 %v3091
      %3095 = vmatprep.subr.bf16.mxu0 0
      %3096 = vmatpush1.bf16.msra.mxu0 0
      %3097 = vmatprep.subr.bf16.mxu0 0
      %3098 = vmatpush1.bf16.msra.mxu0 0
      %3099 = vmatprep.subr.bf16.mxu0 0
      %3100 = vmatpush1.bf16.msra.mxu0 0
      %3101 = vmatprep.subr.bf16.mxu0 0
      %3102 = vmatpush1.bf16.msra.mxu0 0
      %3103 = vmatprep.subr.bf16.mxu0 0
      %3104 = vmatpush1.bf16.msra.mxu0 0
      %3105 = vmatprep.subr.bf16.mxu0 0
      %3106 = vmatpush1.bf16.msra.mxu0 0
      %3107 = vmatprep.subr.bf16.mxu0 0
      %3108 = vmatpush1.bf16.msra.mxu0 0
      %3109 = vmatprep.subr.bf16.mxu0 0
      %3110 = vmatpush1.bf16.msra.mxu0 0
      %3111 = vmatprep.subr.bf16.mxu0 0
      %3112 = vmatpush1.bf16.msra.mxu0 0
      %3113 = vmatprep.subr.bf16.mxu0 0
      %3114 = vmatpush1.bf16.msra.mxu0 0
      %3115 = vmatprep.subr.bf16.mxu0 0
      %3116 = vmatpush1.bf16.msra.mxu0 0
      %3117 = vmatprep.subr.bf16.mxu0 0
      %3118 = vmatpush1.bf16.msra.mxu0 0
      %3119 = vmatprep.subr.bf16.mxu0 0
      %3120 = vmatpush1.bf16.msra.mxu0 0
      %3121 = vmatprep.subr.bf16.mxu0 0
      %3122 = vmatpush1.bf16.msra.mxu0 0
      %3123 = vmatprep.subr.bf16.mxu0 0
      %3124 = vmatpush1.bf16.msra.mxu0 0
      %3125 = vmatprep.mubr.bf16.mxu0 0
      %3126 = vmatmul.mubr.bf16.gmra.mrb[0].mxu0 %v3088
      %v3127 = vpop.f32.mrb[0].mxu0
      %v3128 = vadd.f32 0.0, %v3127
      %v3129 = vpop.f32.mrb[0].mxu0
      %v3130 = vpop.f32.mrb[0].mxu0
      %v3131 = vadd.f32 0.0, %v3130
      %v3132 = vpop.f32.mrb[0].mxu0
      %3133 = vdwg.mxu0
      %v3134 = vpack.c.bf16 %v3131, %v3128
      %3135 = vmatprep.subr.bf16.mxu0 0
      %3136 = vmatpush1.bf16.msra.mxu0 %v3134
      %3137 = vmatprep.subr.bf16.mxu0 0
      %3138 = vmatpush1.bf16.msra.mxu0 0
      %3139 = vmatprep.subr.bf16.mxu0 0
      %3140 = vmatpush1.bf16.msra.mxu0 0
      %3141 = vmatprep.subr.bf16.mxu0 0
      %3142 = vmatpush1.bf16.msra.mxu0 0
      %3143 = vmatprep.subr.bf16.mxu0 0
      %3144 = vmatpush1.bf16.msra.mxu0 0
      %3145 = vmatprep.subr.bf16.mxu0 0
      %3146 = vmatpush1.bf16.msra.mxu0 0
      %3147 = vmatprep.subr.bf16.mxu0 0
      %3148 = vmatpush1.bf16.msra.mxu0 0
      %3149 = vmatprep.subr.bf16.mxu0 0
      %3150 = vmatpush1.bf16.msra.mxu0 0
      %3151 = vmatprep.subr.bf16.mxu0 0
      %3152 = vmatpush1.bf16.msra.mxu0 0
      %3153 = vmatprep.subr.bf16.mxu0 0
      %3154 = vmatpush1.bf16.msra.mxu0 0
      %3155 = vmatprep.subr.bf16.mxu0 0
      %3156 = vmatpush1.bf16.msra.mxu0 0
      %3157 = vmatprep.subr.bf16.mxu0 0
      %3158 = vmatpush1.bf16.msra.mxu0 0
      %3159 = vmatprep.subr.bf16.mxu0 0
      %3160 = vmatpush1.bf16.msra.mxu0 0
      %3161 = vmatprep.subr.bf16.mxu0 0
      %3162 = vmatpush1.bf16.msra.mxu0 0
      %3163 = vmatprep.subr.bf16.mxu0 0
      %3164 = vmatpush1.bf16.msra.mxu0 0
      %3165 = vmatprep.subr.bf16.mxu0 0
      %3166 = vmatpush1.bf16.msra.mxu0 0
      %3167 = vmatprep.mubr.bf16.mxu0 0
      %3168 = vmatmul.mubr.bf16.gmra.mrb[0].mxu0 %v2801
      %v3169 = vpop.f32.mrb[0].mxu0
      %v3170 = vadd.f32 0.0, %v3169
      %v3171 = vpop.f32.mrb[0].mxu0
      %v3172 = vpop.f32.mrb[0].mxu0
      %v3173 = vadd.f32 0.0, %v3172
      %v3174 = vpop.f32.mrb[0].mxu0
      %3175 = vdwg.mxu0
      %v3176 = vadd.f32 %v3083, %v3170
      %v3177 = vadd.f32 %v3084, %v3173
      %v3178 = vtanh.pop %v3176
      %v3179 = vtanh.pop %v3177
      %v3180 = vsel %vm2774, 1, 0
      %v3181 = vsel %vm2775, 1, 0
      %vm3182 = vcmp.eq.s32.totalorder %v3180, 1
      %vm3183 = vcmp.eq.s32.totalorder %v3181, 1
      %v3184 = vsel %vm3182, %v3178, 0.0
      %v3185 = vsel %vm3183, %v3179, 0.0
      %v3186 = vmul.f32 %v3184, %v3184
      %v3187 = vmul.f32 %v3185, %v3185
      %3190 = vrot.lane.b32.xlu0 %v3186, 16
      %v3191 = vpop.permute.xlu0 %3190
      %3192 = vrot.lane.b32.xlu0 %v3187, 16
      %v3193 = vpop.permute.xlu0 %3192
      %v3196 = vsel %vm2275, %v3184, %v3191
      %v3197 = vsel %vm2275, %v3185, %v3193
      %v3198 = vpack.c.bf16 %v3197, %v3196
      %v3199 = vld [vmem:[%s33] sm:$0xf]
      %v3200 = vld [vmem:[%s33 + $0x4] sm:$0xf]
      %v3201 = vld [vmem:[%s33 + $0x8] sm:$0xf]
      %v3202 = vld [vmem:[%s33 + $0xc] sm:$0xf]
      %v3207 = vunpack.c.l.b16 %v3199
      %v3208 = vunpack.c.l.b16 %v3200
      %v3209 = vunpack.c.l.b16 %v3201
      %v3210 = vunpack.c.l.b16 %v3202
      %v3211 = vpack.c.b16 %v3208, %v3207
      %v3212 = vpack.c.b16 %v3210, %v3209
      %v3216 = vsel %vm2063, %v3198, 0
      %3218 = vmatprep.subr.bf16.mxu0 0
      %3219 = vmatpush1.bf16.msra.mxu0 %v3211
      %3220 = vmatprep.subr.bf16.mxu0 0
      %3221 = vmatpush1.bf16.msra.mxu0 %v3212
      %3222 = vmatprep.subr.bf16.mxu0 0
      %3223 = vmatpush1.bf16.msra.mxu0 0
      %3224 = vmatprep.subr.bf16.mxu0 0
      %3225 = vmatpush1.bf16.msra.mxu0 0
      %3226 = vmatprep.subr.bf16.mxu0 0
      %3227 = vmatpush1.bf16.msra.mxu0 0
      %3228 = vmatprep.subr.bf16.mxu0 0
      %3229 = vmatpush1.bf16.msra.mxu0 0
      %3230 = vmatprep.subr.bf16.mxu0 0
      %3231 = vmatpush1.bf16.msra.mxu0 0
      %3232 = vmatprep.subr.bf16.mxu0 0
      %3233 = vmatpush1.bf16.msra.mxu0 0
      %3234 = vmatprep.subr.bf16.mxu0 0
      %3235 = vmatpush1.bf16.msra.mxu0 0
      %3236 = vmatprep.subr.bf16.mxu0 0
      %3237 = vmatpush1.bf16.msra.mxu0 0
      %3238 = vmatprep.subr.bf16.mxu0 0
      %3239 = vmatpush1.bf16.msra.mxu0 0
      %3240 = vmatprep.subr.bf16.mxu0 0
      %3241 = vmatpush1.bf16.msra.mxu0 0
      %3242 = vmatprep.subr.bf16.mxu0 0
      %3243 = vmatpush1.bf16.msra.mxu0 0
      %3244 = vmatprep.subr.bf16.mxu0 0
      %3245 = vmatpush1.bf16.msra.mxu0 0
      %3246 = vmatprep.subr.bf16.mxu0 0
      %3247 = vmatpush1.bf16.msra.mxu0 0
      %3248 = vmatprep.subr.bf16.mxu0 0
      %3249 = vmatpush1.bf16.msra.mxu0 0
      %3250 = vmatprep.mubr.bf16.mxu0 0
      %3251 = vmatmul.mubr.bf16.gmra.mrb[0].mxu0 %v3216
      %v3252 = vpop.f32.mrb[0].mxu0
      %v3253 = vadd.f32 0.0, %v3252
      %v3254 = vpop.f32.mrb[0].mxu0
      %v3255 = vpop.f32.mrb[0].mxu0
      %v3256 = vadd.f32 0.0, %v3255
      %v3257 = vpop.f32.mrb[0].mxu0
      %3258 = vdwg.mxu0
      %v3259 = vrot.slane %v3253, 7
      %v3260 = vrot.slane %v3256, 7
      %v3261 = vsel %vm2322, %v3259, %v3260
      %v3262 = vsel %vm2322, %v3260, %v3259
      %v3263 = vsel %vm3040, %v3262, 0.0
      %v3264 = vsel %vm3041, %v3261, 0.0
      %3267 = vrot.lane.b32.xlu0 %v3253, 112
      %v3268 = vpop.permute.xlu0 %3267
      %3269 = vrot.lane.b32.xlu0 %v3256, 112
      %v3270 = vpop.permute.xlu0 %3269
      %v3273 = vadd.f32 %v3263, %v3268
      %v3274 = vadd.f32 %v3264, %v3270
      %3275 = vrot.lane.b32.xlu0 %v3253, 96
      %v3276 = vpop.permute.xlu0 %3275
      %3277 = vrot.lane.b32.xlu0 %v3256, 96
      %v3278 = vpop.permute.xlu0 %3277
      %v3281 = vrot.slane %v3276, 1
      %v3282 = vrot.slane %v3278, 1
      %v3283 = vsel %vm2357, %v3281, %v3282
      %v3284 = vsel %vm2357, %v3282, %v3281
      %v3285 = vsel %vm3070, %v3283, 0.0
      %v3286 = vsel %vm3071, %v3284, 0.0
      %v3287 = vadd.f32 %v3273, %v3285
      %v3288 = vadd.f32 %v3274, %v3286
      %v3289 = vld [vmem:[%s35] sm:$0x1]
      %v3291 = vlaneseq
      %v3292 = vshrl.u32 %v3291, 7
      %v3293 = vsub.s32 0, %v3292
      %v3294 = vrot.slane %v3289, %v3293
      %v3296 = vadd.f32 %v3287, %v3294
      %v3297 = vadd.f32 %v3288, %v3294
      %v3298 = vtanh.pop %v3296
      %v3299 = vtanh.pop %v3297
      %v3300 = vmul.f32 %v3298, %v3298
      %v3301 = vmul.f32 %v3299, %v3299
      %3304 = vrot.lane.b32.xlu0 %v3300, 16
      %v3305 = vpop.permute.xlu0 %3304
      %3306 = vrot.lane.b32.xlu0 %v3301, 16
      %v3307 = vpop.permute.xlu0 %3306
      %v3310 = vsel %vm2275, %v3298, %v3305
      %v3311 = vsel %vm2275, %v3299, %v3307
      %v3312 = vpack.c.bf16 %v3311, %v3310
      %v3313 = vld [vmem:[%s37] sm:$0xf]
      %v3314 = vld [vmem:[%s37 + $0x4] sm:$0xf]
      %v3315 = vld [vmem:[%s37 + $0x8] sm:$0xf]
      %v3316 = vld [vmem:[%s37 + $0xc] sm:$0xf]
      %v3321 = vunpack.c.l.b16 %v3313
      %v3322 = vunpack.c.l.b16 %v3314
      %v3323 = vunpack.c.l.b16 %v3315
      %v3324 = vunpack.c.l.b16 %v3316
      %v3325 = vpack.c.b16 %v3322, %v3321
      %v3326 = vpack.c.b16 %v3324, %v3323
      %v3330 = vsel %vm2063, %v3312, 0
      %3332 = vmatprep.subr.bf16.mxu0 0
      %3333 = vmatpush1.bf16.msra.mxu0 %v3325
      %3334 = vmatprep.subr.bf16.mxu0 0
      %3335 = vmatpush1.bf16.msra.mxu0 %v3326
      %3336 = vmatprep.subr.bf16.mxu0 0
      %3337 = vmatpush1.bf16.msra.mxu0 0
      %3338 = vmatprep.subr.bf16.mxu0 0
      %3339 = vmatpush1.bf16.msra.mxu0 0
      %3340 = vmatprep.subr.bf16.mxu0 0
      %3341 = vmatpush1.bf16.msra.mxu0 0
      %3342 = vmatprep.subr.bf16.mxu0 0
      %3343 = vmatpush1.bf16.msra.mxu0 0
      %3344 = vmatprep.subr.bf16.mxu0 0
      %3345 = vmatpush1.bf16.msra.mxu0 0
      %3346 = vmatprep.subr.bf16.mxu0 0
      %3347 = vmatpush1.bf16.msra.mxu0 0
      %3348 = vmatprep.subr.bf16.mxu0 0
      %3349 = vmatpush1.bf16.msra.mxu0 0
      %3350 = vmatprep.subr.bf16.mxu0 0
      %3351 = vmatpush1.bf16.msra.mxu0 0
      %3352 = vmatprep.subr.bf16.mxu0 0
      %3353 = vmatpush1.bf16.msra.mxu0 0
      %3354 = vmatprep.subr.bf16.mxu0 0
      %3355 = vmatpush1.bf16.msra.mxu0 0
      %3356 = vmatprep.subr.bf16.mxu0 0
      %3357 = vmatpush1.bf16.msra.mxu0 0
      %3358 = vmatprep.subr.bf16.mxu0 0
      %3359 = vmatpush1.bf16.msra.mxu0 0
      %3360 = vmatprep.subr.bf16.mxu0 0
      %3361 = vmatpush1.bf16.msra.mxu0 0
      %3362 = vmatprep.subr.bf16.mxu0 0
      %3363 = vmatpush1.bf16.msra.mxu0 0
      %3364 = vmatprep.mubr.bf16.mxu0 0
      %3365 = vmatmul.mubr.bf16.gmra.mrb[0].mxu0 %v3330
      %v3366 = vpop.f32.mrb[0].mxu0
      %v3367 = vadd.f32 0.0, %v3366
      %v3368 = vpop.f32.mrb[0].mxu0
      %v3369 = vpop.f32.mrb[0].mxu0
      %v3370 = vadd.f32 0.0, %v3369
      %v3371 = vpop.f32.mrb[0].mxu0
      %3372 = vdwg.mxu0
      %v3373 = vrot.slane %v3367, 7
      %v3374 = vrot.slane %v3370, 7
      %v3375 = vsel %vm2322, %v3373, %v3374
      %v3376 = vsel %vm2322, %v3374, %v3373
      %v3377 = vsel %vm3040, %v3376, 0.0
      %v3378 = vsel %vm3041, %v3375, 0.0
      %3381 = vrot.lane.b32.xlu0 %v3367, 112
      %v3382 = vpop.permute.xlu0 %3381
      %3383 = vrot.lane.b32.xlu0 %v3370, 112
      %v3384 = vpop.permute.xlu0 %3383
      %v3387 = vadd.f32 %v3377, %v3382
      %v3388 = vadd.f32 %v3378, %v3384
      %3389 = vrot.lane.b32.xlu0 %v3367, 96
      %v3390 = vpop.permute.xlu0 %3389
      %3391 = vrot.lane.b32.xlu0 %v3370, 96
      %v3392 = vpop.permute.xlu0 %3391
      %v3395 = vrot.slane %v3390, 1
      %v3396 = vrot.slane %v3392, 1
      %v3397 = vsel %vm2357, %v3395, %v3396
      %v3398 = vsel %vm2357, %v3396, %v3395
      %v3399 = vsel %vm3070, %v3397, 0.0
      %v3400 = vsel %vm3071, %v3398, 0.0
      %v3401 = vadd.f32 %v3387, %v3399
      %v3402 = vadd.f32 %v3388, %v3400
      %v3403 = vld [vmem:[%s39] sm:$0x1]
      %v3405 = vlaneseq
      %v3406 = vshrl.u32 %v3405, 7
      %v3407 = vsub.s32 0, %v3406
      %v3408 = vrot.slane %v3403, %v3407
      %v3410 = vadd.f32 %v3401, %v3408
      %v3411 = vadd.f32 %v3402, %v3408
      %v3412 = vadd.f32 %v3410, %v3184
      %v3413 = vadd.f32 %v3411, %v3185
      %v3414 = vtanh.pop %v3412
      %v3415 = vtanh.pop %v3413
      %v3416 = vsel %vm3182, %v3414, 0.0
      %v3417 = vsel %vm3183, %v3415, 0.0
      %v3418 = vmul.f32 %v3416, %v3416
      %v3419 = vmul.f32 %v3417, %v3417
      %3422 = vrot.lane.b32.xlu0 %v3418, 16
      %v3423 = vpop.permute.xlu0 %3422
      %3424 = vrot.lane.b32.xlu0 %v3419, 16
      %v3425 = vpop.permute.xlu0 %3424
      %v3428 = vsel %vm2275, %v3416, %v3423
      %v3429 = vsel %vm2275, %v3417, %v3425
      %v3430 = vpack.c.bf16 %v3429, %v3428
      %v3431 = vld [vmem:[%s41] sm:$0xf]
      %v3432 = vld [vmem:[%s41 + $0x4] sm:$0xf]
      %v3433 = vld [vmem:[%s41 + $0x8] sm:$0xf]
      %v3434 = vld [vmem:[%s41 + $0xc] sm:$0xf]
      %v3439 = vunpack.c.l.b16 %v3431
      %v3440 = vunpack.c.l.b16 %v3432
      %v3441 = vunpack.c.l.b16 %v3433
      %v3442 = vunpack.c.l.b16 %v3434
      %v3443 = vpack.c.b16 %v3440, %v3439
      %v3444 = vpack.c.b16 %v3442, %v3441
      %v3448 = vsel %vm2063, %v3430, 0
      %3450 = vmatprep.subr.bf16.mxu0 0
      %3451 = vmatpush1.bf16.msra.mxu0 %v3443
      %3452 = vmatprep.subr.bf16.mxu0 0
      %3453 = vmatpush1.bf16.msra.mxu0 %v3444
      %3454 = vmatprep.subr.bf16.mxu0 0
      %3455 = vmatpush1.bf16.msra.mxu0 0
      %3456 = vmatprep.subr.bf16.mxu0 0
      %3457 = vmatpush1.bf16.msra.mxu0 0
      %3458 = vmatprep.subr.bf16.mxu0 0
      %3459 = vmatpush1.bf16.msra.mxu0 0
      %3460 = vmatprep.subr.bf16.mxu0 0
      %3461 = vmatpush1.bf16.msra.mxu0 0
      %3462 = vmatprep.subr.bf16.mxu0 0
      %3463 = vmatpush1.bf16.msra.mxu0 0
      %3464 = vmatprep.subr.bf16.mxu0 0
      %3465 = vmatpush1.bf16.msra.mxu0 0
      %3466 = vmatprep.subr.bf16.mxu0 0
      %3467 = vmatpush1.bf16.msra.mxu0 0
      %3468 = vmatprep.subr.bf16.mxu0 0
      %3469 = vmatpush1.bf16.msra.mxu0 0
      %3470 = vmatprep.subr.bf16.mxu0 0
      %3471 = vmatpush1.bf16.msra.mxu0 0
      %3472 = vmatprep.subr.bf16.mxu0 0
      %3473 = vmatpush1.bf16.msra.mxu0 0
      %3474 = vmatprep.subr.bf16.mxu0 0
      %3475 = vmatpush1.bf16.msra.mxu0 0
      %3476 = vmatprep.subr.bf16.mxu0 0
      %3477 = vmatpush1.bf16.msra.mxu0 0
      %3478 = vmatprep.subr.bf16.mxu0 0
      %3479 = vmatpush1.bf16.msra.mxu0 0
      %3480 = vmatprep.subr.bf16.mxu0 0
      %3481 = vmatpush1.bf16.msra.mxu0 0
      %3482 = vmatprep.mubr.bf16.mxu0 0
      %3483 = vmatmul.mubr.bf16.gmra.mrb[0].mxu0 %v3448
      %v3484 = vpop.f32.mrb[0].mxu0
      %v3485 = vadd.f32 0.0, %v3484
      %v3486 = vpop.f32.mrb[0].mxu0
      %v3487 = vpop.f32.mrb[0].mxu0
      %v3488 = vadd.f32 0.0, %v3487
      %v3489 = vpop.f32.mrb[0].mxu0
      %3490 = vdwg.mxu0
      %vm3491 = vcmp.lt.s32.totalorder %v1355, 4
      %vm3492 = vcmp.lt.s32.totalorder %v1356, 4
      %vm3493 = vmand %vm1557, %vm3491
      %vm3494 = vmand %vm1558, %vm3492
      %vm3495 = vcmp.lt.s32.totalorder %v1360, 8
      %vm3496 = vmand %vm3493, %vm3495
      %vm3497 = vmand %vm3494, %vm3495
      %v3498 = vsel %vm3496, 1, 0
      %v3499 = vsel %vm3497, 1, 0
      %v3500 = vcvt.s32.f32 %v3498
      %v3501 = vcvt.s32.f32 %v3499
      %v3502 = vpack.c.bf16 %v3501, %v3500
      %v3503 = vpack.c.bf16 %v3488, %v3485
      %vm3504 = vmand %vm1650, %vm3491
      %vm3505 = vmand %vm1651, %vm3492
      %vm3506 = vmand %vm3504, %vm3495
      %vm3507 = vmand %vm3505, %vm3495
      %v3508 = vsel %vm3506, 1, 0
      %v3509 = vsel %vm3507, 1, 0
      %v3510 = vcvt.s32.f32 %v3508
      %v3511 = vcvt.s32.f32 %v3509
      %v3512 = vpack.c.bf16 %v3511, %v3510
      %3514 = vrot.lane.b32.xlu0 %v3503, 96
      %v3515 = vpop.permute.xlu0 %3514
      %v3518 = vsel %vm2275, %v3512, 0
      %3520 = vmatprep.subr.bf16.mxu0 0
      %3521 = vmatpush1.bf16.msra.mxu0 %v3515
      %3522 = vmatprep.subr.bf16.mxu0 0
      %3523 = vmatpush1.bf16.msra.mxu0 0
      %3524 = vmatprep.subr.bf16.mxu0 0
      %3525 = vmatpush1.bf16.msra.mxu0 0
      %3526 = vmatprep.subr.bf16.mxu0 0
      %3527 = vmatpush1.bf16.msra.mxu0 0
      %3528 = vmatprep.subr.bf16.mxu0 0
      %3529 = vmatpush1.bf16.msra.mxu0 0
      %3530 = vmatprep.subr.bf16.mxu0 0
      %3531 = vmatpush1.bf16.msra.mxu0 0
      %3532 = vmatprep.subr.bf16.mxu0 0
      %3533 = vmatpush1.bf16.msra.mxu0 0
      %3534 = vmatprep.subr.bf16.mxu0 0
      %3535 = vmatpush1.bf16.msra.mxu0 0
      %3536 = vmatprep.subr.bf16.mxu0 0
      %3537 = vmatpush1.bf16.msra.mxu0 0
      %3538 = vmatprep.subr.bf16.mxu0 0
      %3539 = vmatpush1.bf16.msra.mxu0 0
      %3540 = vmatprep.subr.bf16.mxu0 0
      %3541 = vmatpush1.bf16.msra.mxu0 0
      %3542 = vmatprep.subr.bf16.mxu0 0
      %3543 = vmatpush1.bf16.msra.mxu0 0
      %3544 = vmatprep.subr.bf16.mxu0 0
      %3545 = vmatpush1.bf16.msra.mxu0 0
      %3546 = vmatprep.subr.bf16.mxu0 0
      %3547 = vmatpush1.bf16.msra.mxu0 0
      %3548 = vmatprep.subr.bf16.mxu0 0
      %3549 = vmatpush1.bf16.msra.mxu0 0
      %3550 = vmatprep.subr.bf16.mxu0 0
      %3551 = vmatpush1.bf16.msra.mxu0 0
      %3552 = vmatprep.mubr.bf16.mxu0 0
      %3553 = vmatmul.mubr.bf16.gmra.mrb[0].mxu0 %v3518
      %v3554 = vpop.f32.mrb[0].mxu0
      %v3555 = vadd.f32 0.0, %v3554
      %v3556 = vpop.f32.mrb[0].mxu0
      %v3557 = vpop.f32.mrb[0].mxu0
      %v3558 = vadd.f32 0.0, %v3557
      %v3559 = vpop.f32.mrb[0].mxu0
      %3560 = vdwg.mxu0
      %v3562 = vsel %vm2275, %v3502, 0
      %3564 = vmatprep.subr.bf16.mxu0 0
      %3565 = vmatpush1.bf16.msra.mxu0 %v3503
      %3566 = vmatprep.subr.bf16.mxu0 0
      %3567 = vmatpush1.bf16.msra.mxu0 0
      %3568 = vmatprep.subr.bf16.mxu0 0
      %3569 = vmatpush1.bf16.msra.mxu0 0
      %3570 = vmatprep.subr.bf16.mxu0 0
      %3571 = vmatpush1.bf16.msra.mxu0 0
      %3572 = vmatprep.subr.bf16.mxu0 0
      %3573 = vmatpush1.bf16.msra.mxu0 0
      %3574 = vmatprep.subr.bf16.mxu0 0
      %3575 = vmatpush1.bf16.msra.mxu0 0
      %3576 = vmatprep.subr.bf16.mxu0 0
      %3577 = vmatpush1.bf16.msra.mxu0 0
      %3578 = vmatprep.subr.bf16.mxu0 0
      %3579 = vmatpush1.bf16.msra.mxu0 0
      %3580 = vmatprep.subr.bf16.mxu0 0
      %3581 = vmatpush1.bf16.msra.mxu0 0
      %3582 = vmatprep.subr.bf16.mxu0 0
      %3583 = vmatpush1.bf16.msra.mxu0 0
      %3584 = vmatprep.subr.bf16.mxu0 0
      %3585 = vmatpush1.bf16.msra.mxu0 0
      %3586 = vmatprep.subr.bf16.mxu0 0
      %3587 = vmatpush1.bf16.msra.mxu0 0
      %3588 = vmatprep.subr.bf16.mxu0 0
      %3589 = vmatpush1.bf16.msra.mxu0 0
      %3590 = vmatprep.subr.bf16.mxu0 0
      %3591 = vmatpush1.bf16.msra.mxu0 0
      %3592 = vmatprep.subr.bf16.mxu0 0
      %3593 = vmatpush1.bf16.msra.mxu0 0
      %3594 = vmatprep.subr.bf16.mxu0 0
      %3595 = vmatpush1.bf16.msra.mxu0 0
      %3596 = vmatprep.mubr.bf16.mxu0 0
      %3597 = vmatmul.mubr.bf16.gmra.mrb[0].mxu0 %v3562
      %v3598 = vpop.f32.mrb[0].mxu0
      %v3599 = vadd.f32 %v3555, %v3598
      %v3600 = vpop.f32.mrb[0].mxu0
      %v3601 = vpop.f32.mrb[0].mxu0
      %v3602 = vadd.f32 %v3558, %v3601
      %v3603 = vpop.f32.mrb[0].mxu0
      %3604 = vdwg.mxu0
      %vm3605 = vmand %vm1747, %vm3491
      %vm3606 = vmand %vm1748, %vm3492
      %vm3607 = vmand %vm3605, %vm3495
      %vm3608 = vmand %vm3606, %vm3495
      %v3609 = vsel %vm3607, 1, 0
      %v3610 = vsel %vm3608, 1, 0
      %v3611 = vcvt.s32.f32 %v3609
      %v3612 = vcvt.s32.f32 %v3610
      %v3613 = vpack.c.bf16 %v3612, %v3611
      %3614 = vrot.lane.b32.xlu0 %v3503, 64
      %v3615 = vpop.permute.xlu0 %3614
      %v3618 = vsel %vm2275, %v3613, 0
      %3620 = vmatprep.subr.bf16.mxu0 0
      %3621 = vmatpush1.bf16.msra.mxu0 %v3615
      %3622 = vmatprep.subr.bf16.mxu0 0
      %3623 = vmatpush1.bf16.msra.mxu0 0
      %3624 = vmatprep.subr.bf16.mxu0 0
      %3625 = vmatpush1.bf16.msra.mxu0 0
      %3626 = vmatprep.subr.bf16.mxu0 0
      %3627 = vmatpush1.bf16.msra.mxu0 0
      %3628 = vmatprep.subr.bf16.mxu0 0
      %3629 = vmatpush1.bf16.msra.mxu0 0
      %3630 = vmatprep.subr.bf16.mxu0 0
      %3631 = vmatpush1.bf16.msra.mxu0 0
      %3632 = vmatprep.subr.bf16.mxu0 0
      %3633 = vmatpush1.bf16.msra.mxu0 0
      %3634 = vmatprep.subr.bf16.mxu0 0
      %3635 = vmatpush1.bf16.msra.mxu0 0
      %3636 = vmatprep.subr.bf16.mxu0 0
      %3637 = vmatpush1.bf16.msra.mxu0 0
      %3638 = vmatprep.subr.bf16.mxu0 0
      %3639 = vmatpush1.bf16.msra.mxu0 0
      %3640 = vmatprep.subr.bf16.mxu0 0
      %3641 = vmatpush1.bf16.msra.mxu0 0
      %3642 = vmatprep.subr.bf16.mxu0 0
      %3643 = vmatpush1.bf16.msra.mxu0 0
      %3644 = vmatprep.subr.bf16.mxu0 0
      %3645 = vmatpush1.bf16.msra.mxu0 0
      %3646 = vmatprep.subr.bf16.mxu0 0
      %3647 = vmatpush1.bf16.msra.mxu0 0
      %3648 = vmatprep.subr.bf16.mxu0 0
      %3649 = vmatpush1.bf16.msra.mxu0 0
      %3650 = vmatprep.subr.bf16.mxu0 0
      %3651 = vmatpush1.bf16.msra.mxu0 0
      %3652 = vmatprep.mubr.bf16.mxu0 0
      %3653 = vmatmul.mubr.bf16.gmra.mrb[0].mxu0 %v3618
      %v3654 = vpop.f32.mrb[0].mxu0
      %v3655 = vadd.f32 0.0, %v3654
      %v3656 = vpop.f32.mrb[0].mxu0
      %v3657 = vpop.f32.mrb[0].mxu0
      %v3658 = vadd.f32 0.0, %v3657
      %v3659 = vpop.f32.mrb[0].mxu0
      %3660 = vdwg.mxu0
      %v3661 = vadd.f32 %v3599, %v3655
      %v3662 = vadd.f32 %v3602, %v3658
      %v3663 = vld [vmem:[%s43] sm:$0x1]
      %v3665 = vlaneseq
      %v3666 = vshrl.u32 %v3665, 7
      %v3667 = vsub.s32 0, %v3666
      %v3668 = vrot.slane %v3663, %v3667
      %v3670 = vadd.f32 %v3661, %v3668
      %v3671 = vadd.f32 %v3662, %v3668
      %v3672 = vtanh.pop %v3670
      %v3673 = vtanh.pop %v3671
      %v3674 = vmul.f32 %v3672, %v3672
      %v3675 = vmul.f32 %v3673, %v3673
      %3678 = vrot.lane.b32.xlu0 %v3674, 32
      %v3679 = vpop.permute.xlu0 %3678
      %3680 = vrot.lane.b32.xlu0 %v3675, 32
      %v3681 = vpop.permute.xlu0 %3680
      %v3684 = vsel %vm2063, %v3672, %v3679
      %v3685 = vsel %vm2063, %v3673, %v3681
      %v3686 = vpack.c.bf16 %v3685, %v3684
      %v3687 = vld [vmem:[%s45] sm:$0xf]
      %v3688 = vld [vmem:[%s45 + $0x4] sm:$0xf]
      %v3689 = vld [vmem:[%s45 + $0x8] sm:$0xf]
      %v3690 = vld [vmem:[%s45 + $0xc] sm:$0xf]
      %v3691 = vld [vmem:[%s45 + $0x10] sm:$0xf]
      %v3692 = vld [vmem:[%s45 + $0x14] sm:$0xf]
      %v3693 = vld [vmem:[%s45 + $0x18] sm:$0xf]
      %v3694 = vld [vmem:[%s45 + $0x1c] sm:$0xf]
      %v3703 = vunpack.c.l.b16 %v3687
      %v3704 = vunpack.c.l.b16 %v3688
      %v3705 = vunpack.c.l.b16 %v3689
      %v3706 = vunpack.c.l.b16 %v3690
      %v3707 = vunpack.c.l.b16 %v3691
      %v3708 = vunpack.c.l.b16 %v3692
      %v3709 = vunpack.c.l.b16 %v3693
      %v3710 = vunpack.c.l.b16 %v3694
      %v3711 = vpack.c.b16 %v3704, %v3703
      %v3712 = vpack.c.b16 %v3706, %v3705
      %v3713 = vpack.c.b16 %v3708, %v3707
      %v3714 = vpack.c.b16 %v3710, %v3709
      %v3720 = vsel %vm1442, %v3686, 0
      %3722 = vmatprep.subr.bf16.mxu0 0
      %3723 = vmatpush1.bf16.msra.mxu0 %v3711
      %3724 = vmatprep.subr.bf16.mxu0 0
      %3725 = vmatpush1.bf16.msra.mxu0 %v3712
      %3726 = vmatprep.subr.bf16.mxu0 0
      %3727 = vmatpush1.bf16.msra.mxu0 %v3713
      %3728 = vmatprep.subr.bf16.mxu0 0
      %3729 = vmatpush1.bf16.msra.mxu0 %v3714
      %3730 = vmatprep.subr.bf16.mxu0 0
      %3731 = vmatpush1.bf16.msra.mxu0 0
      %3732 = vmatprep.subr.bf16.mxu0 0
      %3733 = vmatpush1.bf16.msra.mxu0 0
      %3734 = vmatprep.subr.bf16.mxu0 0
      %3735 = vmatpush1.bf16.msra.mxu0 0
      %3736 = vmatprep.subr.bf16.mxu0 0
      %3737 = vmatpush1.bf16.msra.mxu0 0
      %3738 = vmatprep.subr.bf16.mxu0 0
      %3739 = vmatpush1.bf16.msra.mxu0 0
      %3740 = vmatprep.subr.bf16.mxu0 0
      %3741 = vmatpush1.bf16.msra.mxu0 0
      %3742 = vmatprep.subr.bf16.mxu0 0
      %3743 = vmatpush1.bf16.msra.mxu0 0
      %3744 = vmatprep.subr.bf16.mxu0 0
      %3745 = vmatpush1.bf16.msra.mxu0 0
      %3746 = vmatprep.subr.bf16.mxu0 0
      %3747 = vmatpush1.bf16.msra.mxu0 0
      %3748 = vmatprep.subr.bf16.mxu0 0
      %3749 = vmatpush1.bf16.msra.mxu0 0
      %3750 = vmatprep.subr.bf16.mxu0 0
      %3751 = vmatpush1.bf16.msra.mxu0 0
      %3752 = vmatprep.subr.bf16.mxu0 0
      %3753 = vmatpush1.bf16.msra.mxu0 0
      %3754 = vmatprep.mubr.bf16.mxu0 0
      %3755 = vmatmul.mubr.bf16.gmra.mrb[0].mxu0 %v3720
      %v3756 = vpop.f32.mrb[0].mxu0
      %v3757 = vadd.f32 0.0, %v3756
      %v3758 = vpop.f32.mrb[0].mxu0
      %v3759 = vpop.f32.mrb[0].mxu0
      %v3760 = vadd.f32 0.0, %v3759
      %v3761 = vpop.f32.mrb[0].mxu0
      %3762 = vdwg.mxu0
      %v3763 = vrot.slane %v3757, 7
      %v3764 = vrot.slane %v3760, 7
      %v3765 = vsel %vm2322, %v3763, %v3764
      %v3766 = vsel %vm2322, %v3764, %v3763
      %vm3767 = vcmp.lt.s32.totalorder %v2325, 4
      %vm3768 = vcmp.lt.s32.totalorder %v2326, 4
      %vm3769 = vmand %vm2327, %vm3767
      %vm3770 = vmand %vm2328, %vm3768
      %v3771 = vsel %vm3769, 1, 0
      %v3772 = vsel %vm3770, 1, 0
      %vm3773 = vcmp.eq.s32.totalorder %v3771, 1
      %vm3774 = vcmp.eq.s32.totalorder %v3772, 1
      %v3775 = vsel %vm3773, %v3766, 0.0
      %v3776 = vsel %vm3774, %v3765, 0.0
      %3779 = vrot.lane.b32.xlu0 %v3757, 96
      %v3780 = vpop.permute.xlu0 %3779
      %3781 = vrot.lane.b32.xlu0 %v3760, 96
      %v3782 = vpop.permute.xlu0 %3781
      %v3785 = vadd.f32 %v3775, %v3780
      %v3786 = vadd.f32 %v3776, %v3782
      %3787 = vrot.lane.b32.xlu0 %v3757, 64
      %v3788 = vpop.permute.xlu0 %3787
      %3789 = vrot.lane.b32.xlu0 %v3760, 64
      %v3790 = vpop.permute.xlu0 %3789
      %v3793 = vrot.slane %v3788, 1
      %v3794 = vrot.slane %v3790, 1
      %v3795 = vsel %vm2357, %v3793, %v3794
      %v3796 = vsel %vm2357, %v3794, %v3793
      %vm3797 = vcmp.lt.s32.totalorder %v2360, 4
      %vm3798 = vcmp.lt.s32.totalorder %v2361, 4
      %vm3799 = vmand %vm2362, %vm3797
      %vm3800 = vmand %vm2363, %vm3798
      %v3801 = vsel %vm3799, 1, 0
      %v3802 = vsel %vm3800, 1, 0
      %vm3803 = vcmp.eq.s32.totalorder %v3801, 1
      %vm3804 = vcmp.eq.s32.totalorder %v3802, 1
      %v3805 = vsel %vm3803, %v3795, 0.0
      %v3806 = vsel %vm3804, %v3796, 0.0
      %v3807 = vadd.f32 %v3785, %v3805
      %v3808 = vadd.f32 %v3786, %v3806
      %v3809 = vld [vmem:[%s47] sm:$0x1]
      %v3811 = vlaneseq
      %v3812 = vshrl.u32 %v3811, 7
      %v3813 = vsub.s32 0, %v3812
      %v3814 = vrot.slane %v3809, %v3813
      %v3816 = vadd.f32 %v3807, %v3814
      %v3817 = vadd.f32 %v3808, %v3814
      %v3818 = vpack.c.bf16 %v3417, %v3416
      %v3819 = vld [vmem:[%s49] sm:$0xf]
      %v3820 = vld [vmem:[%s49 + $0x4] sm:$0xf]
      %v3823 = vunpack.c.l.b16 %v3819
      %v3824 = vunpack.c.l.b16 %v3820
      %v3825 = vpack.c.b16 %v3824, %v3823
      %v3828 = vsel %vm2275, %v3818, 0
      %3830 = vmatprep.subr.bf16.mxu0 0
      %3831 = vmatpush1.bf16.msra.mxu0 %v3825
      %3832 = vmatprep.subr.bf16.mxu0 0
      %3833 = vmatpush1.bf16.msra.mxu0 0
      %3834 = vmatprep.subr.bf16.mxu0 0
      %3835 = vmatpush1.bf16.msra.mxu0 0
      %3836 = vmatprep.subr.bf16.mxu0 0
      %3837 = vmatpush1.bf16.msra.mxu0 0
      %3838 = vmatprep.subr.bf16.mxu0 0
      %3839 = vmatpush1.bf16.msra.mxu0 0
      %3840 = vmatprep.subr.bf16.mxu0 0
      %3841 = vmatpush1.bf16.msra.mxu0 0
      %3842 = vmatprep.subr.bf16.mxu0 0
      %3843 = vmatpush1.bf16.msra.mxu0 0
      %3844 = vmatprep.subr.bf16.mxu0 0
      %3845 = vmatpush1.bf16.msra.mxu0 0
      %3846 = vmatprep.subr.bf16.mxu0 0
      %3847 = vmatpush1.bf16.msra.mxu0 0
      %3848 = vmatprep.subr.bf16.mxu0 0
      %3849 = vmatpush1.bf16.msra.mxu0 0
      %3850 = vmatprep.subr.bf16.mxu0 0
      %3851 = vmatpush1.bf16.msra.mxu0 0
      %3852 = vmatprep.subr.bf16.mxu0 0
      %3853 = vmatpush1.bf16.msra.mxu0 0
      %3854 = vmatprep.subr.bf16.mxu0 0
      %3855 = vmatpush1.bf16.msra.mxu0 0
      %3856 = vmatprep.subr.bf16.mxu0 0
      %3857 = vmatpush1.bf16.msra.mxu0 0
      %3858 = vmatprep.subr.bf16.mxu0 0
      %3859 = vmatpush1.bf16.msra.mxu0 0
      %3860 = vmatprep.subr.bf16.mxu0 0
      %3861 = vmatpush1.bf16.msra.mxu0 0
      %3862 = vmatprep.mubr.bf16.mxu0 0
      %3863 = vmatmul.mubr.bf16.gmra.mrb[0].mxu0 %v3828
      %v3864 = vpop.f32.mrb[0].mxu0
      %v3865 = vadd.f32 0.0, %v3864
      %v3866 = vpop.f32.mrb[0].mxu0
      %v3867 = vpop.f32.mrb[0].mxu0
      %v3868 = vadd.f32 0.0, %v3867
      %v3869 = vpop.f32.mrb[0].mxu0
      %3870 = vdwg.mxu0
      %v3871 = vpack.c.bf16 %v3868, %v3865
      %3872 = vmatprep.subr.bf16.mxu0 0
      %3873 = vmatpush1.bf16.msra.mxu0 %v3871
      %3874 = vmatprep.subr.bf16.mxu0 0
      %3875 = vmatpush1.bf16.msra.mxu0 0
      %3876 = vmatprep.subr.bf16.mxu0 0
      %3877 = vmatpush1.bf16.msra.mxu0 0
      %3878 = vmatprep.subr.bf16.mxu0 0
      %3879 = vmatpush1.bf16.msra.mxu0 0
      %3880 = vmatprep.subr.bf16.mxu0 0
      %3881 = vmatpush1.bf16.msra.mxu0 0
      %3882 = vmatprep.subr.bf16.mxu0 0
      %3883 = vmatpush1.bf16.msra.mxu0 0
      %3884 = vmatprep.subr.bf16.mxu0 0
      %3885 = vmatpush1.bf16.msra.mxu0 0
      %3886 = vmatprep.subr.bf16.mxu0 0
      %3887 = vmatpush1.bf16.msra.mxu0 0
      %3888 = vmatprep.subr.bf16.mxu0 0
      %3889 = vmatpush1.bf16.msra.mxu0 0
      %3890 = vmatprep.subr.bf16.mxu0 0
      %3891 = vmatpush1.bf16.msra.mxu0 0
      %3892 = vmatprep.subr.bf16.mxu0 0
      %3893 = vmatpush1.bf16.msra.mxu0 0
      %3894 = vmatprep.subr.bf16.mxu0 0
      %3895 = vmatpush1.bf16.msra.mxu0 0
      %3896 = vmatprep.subr.bf16.mxu0 0
      %3897 = vmatpush1.bf16.msra.mxu0 0
      %3898 = vmatprep.subr.bf16.mxu0 0
      %3899 = vmatpush1.bf16.msra.mxu0 0
      %3900 = vmatprep.subr.bf16.mxu0 0
      %3901 = vmatpush1.bf16.msra.mxu0 0
      %3902 = vmatprep.subr.bf16.mxu0 0
      %3903 = vmatpush1.bf16.msra.mxu0 0
      %3904 = vmatprep.mubr.bf16.mxu0 0
      %3905 = vmatmul.mubr.bf16.gmra.mrb[0].mxu0 %v3518
      %v3906 = vpop.f32.mrb[0].mxu0
      %v3907 = vadd.f32 0.0, %v3906
      %v3908 = vpop.f32.mrb[0].mxu0
      %v3909 = vpop.f32.mrb[0].mxu0
      %v3910 = vadd.f32 0.0, %v3909
      %v3911 = vpop.f32.mrb[0].mxu0
      %3912 = vdwg.mxu0
      %v3913 = vadd.f32 %v3816, %v3907
      %v3914 = vadd.f32 %v3817, %v3910
      %v3915 = vtanh.pop %v3913
      %v3916 = vtanh.pop %v3914
      %v3917 = vsel %vm3491, 1, 0
      %v3918 = vsel %vm3492, 1, 0
      %vm3919 = vcmp.eq.s32.totalorder %v3917, 1
      %vm3920 = vcmp.eq.s32.totalorder %v3918, 1
      %v3921 = vsel %vm3919, %v3915, 0.0
      %v3922 = vsel %vm3920, %v3916, 0.0
      %v3923 = vmul.f32 %v3921, %v3921
      %v3924 = vmul.f32 %v3922, %v3922
      %3927 = vrot.lane.b32.xlu0 %v3923, 32
      %v3928 = vpop.permute.xlu0 %3927
      %3929 = vrot.lane.b32.xlu0 %v3924, 32
      %v3930 = vpop.permute.xlu0 %3929
      %v3933 = vsel %vm2063, %v3921, %v3928
      %v3934 = vsel %vm2063, %v3922, %v3930
      %v3935 = vpack.c.bf16 %v3934, %v3933
      %v3936 = vld [vmem:[%s51] sm:$0xf]
      %v3937 = vld [vmem:[%s51 + $0x4] sm:$0xf]
      %v3938 = vld [vmem:[%s51 + $0x8] sm:$0xf]
      %v3939 = vld [vmem:[%s51 + $0xc] sm:$0xf]
      %v3940 = vld [vmem:[%s51 + $0x10] sm:$0xf]
      %v3941 = vld [vmem:[%s51 + $0x14] sm:$0xf]
      %v3942 = vld [vmem:[%s51 + $0x18] sm:$0xf]
      %v3943 = vld [vmem:[%s51 + $0x1c] sm:$0xf]
      %v3952 = vunpack.c.l.b16 %v3936
      %v3953 = vunpack.c.l.b16 %v3937
      %v3954 = vunpack.c.l.b16 %v3938
      %v3955 = vunpack.c.l.b16 %v3939
      %v3956 = vunpack.c.l.b16 %v3940
      %v3957 = vunpack.c.l.b16 %v3941
      %v3958 = vunpack.c.l.b16 %v3942
      %v3959 = vunpack.c.l.b16 %v3943
      %v3960 = vpack.c.b16 %v3953, %v3952
      %v3961 = vpack.c.b16 %v3955, %v3954
      %v3962 = vpack.c.b16 %v3957, %v3956
      %v3963 = vpack.c.b16 %v3959, %v3958
      %v3969 = vsel %vm1442, %v3935, 0
      %3971 = vmatprep.subr.bf16.mxu0 0
      %3972 = vmatpush1.bf16.msra.mxu0 %v3960
      %3973 = vmatprep.subr.bf16.mxu0 0
      %3974 = vmatpush1.bf16.msra.mxu0 %v3961
      %3975 = vmatprep.subr.bf16.mxu0 0
      %3976 = vmatpush1.bf16.msra.mxu0 %v3962
      %3977 = vmatprep.subr.bf16.mxu0 0
      %3978 = vmatpush1.bf16.msra.mxu0 %v3963
      %3979 = vmatprep.subr.bf16.mxu0 0
      %3980 = vmatpush1.bf16.msra.mxu0 0
      %3981 = vmatprep.subr.bf16.mxu0 0
      %3982 = vmatpush1.bf16.msra.mxu0 0
      %3983 = vmatprep.subr.bf16.mxu0 0
      %3984 = vmatpush1.bf16.msra.mxu0 0
      %3985 = vmatprep.subr.bf16.mxu0 0
      %3986 = vmatpush1.bf16.msra.mxu0 0
      %3987 = vmatprep.subr.bf16.mxu0 0
      %3988 = vmatpush1.bf16.msra.mxu0 0
      %3989 = vmatprep.subr.bf16.mxu0 0
      %3990 = vmatpush1.bf16.msra.mxu0 0
      %3991 = vmatprep.subr.bf16.mxu0 0
      %3992 = vmatpush1.bf16.msra.mxu0 0
      %3993 = vmatprep.subr.bf16.mxu0 0
      %3994 = vmatpush1.bf16.msra.mxu0 0
      %3995 = vmatprep.subr.bf16.mxu0 0
      %3996 = vmatpush1.bf16.msra.mxu0 0
      %3997 = vmatprep.subr.bf16.mxu0 0
      %3998 = vmatpush1.bf16.msra.mxu0 0
      %3999 = vmatprep.subr.bf16.mxu0 0
      %4000 = vmatpush1.bf16.msra.mxu0 0
      %4001 = vmatprep.subr.bf16.mxu0 0
      %4002 = vmatpush1.bf16.msra.mxu0 0
      %4003 = vmatprep.mubr.bf16.mxu0 0
      %4004 = vmatmul.mubr.bf16.gmra.mrb[0].mxu0 %v3969
      %v4005 = vpop.f32.mrb[0].mxu0
      %v4006 = vadd.f32 0.0, %v4005
      %v4007 = vpop.f32.mrb[0].mxu0
      %v4008 = vpop.f32.mrb[0].mxu0
      %v4009 = vadd.f32 0.0, %v4008
      %v4010 = vpop.f32.mrb[0].mxu0
      %4011 = vdwg.mxu0
      %v4012 = vrot.slane %v4006, 7
      %v4013 = vrot.slane %v4009, 7
      %v4014 = vsel %vm2322, %v4012, %v4013
      %v4015 = vsel %vm2322, %v4013, %v4012
      %v4016 = vsel %vm3773, %v4015, 0.0
      %v4017 = vsel %vm3774, %v4014, 0.0
      %4020 = vrot.lane.b32.xlu0 %v4006, 96
      %v4021 = vpop.permute.xlu0 %4020
      %4022 = vrot.lane.b32.xlu0 %v4009, 96
      %v4023 = vpop.permute.xlu0 %4022
      %v4026 = vadd.f32 %v4016, %v4021
      %v4027 = vadd.f32 %v4017, %v4023
      %4028 = vrot.lane.b32.xlu0 %v4006, 64
      %v4029 = vpop.permute.xlu0 %4028
      %4030 = vrot.lane.b32.xlu0 %v4009, 64
      %v4031 = vpop.permute.xlu0 %4030
      %v4034 = vrot.slane %v4029, 1
      %v4035 = vrot.slane %v4031, 1
      %v4036 = vsel %vm2357, %v4034, %v4035
      %v4037 = vsel %vm2357, %v4035, %v4034
      %v4038 = vsel %vm3803, %v4036, 0.0
      %v4039 = vsel %vm3804, %v4037, 0.0
      %v4040 = vadd.f32 %v4026, %v4038
      %v4041 = vadd.f32 %v4027, %v4039
      %v4042 = vld [vmem:[%s53] sm:$0x1]
      %v4044 = vlaneseq
      %v4045 = vshrl.u32 %v4044, 7
      %v4046 = vsub.s32 0, %v4045
      %v4047 = vrot.slane %v4042, %v4046
      %v4049 = vadd.f32 %v4040, %v4047
      %v4050 = vadd.f32 %v4041, %v4047
      %v4051 = vtanh.pop %v4049
      %v4052 = vtanh.pop %v4050
      %v4053 = vmul.f32 %v4051, %v4051
      %v4054 = vmul.f32 %v4052, %v4052
      %4057 = vrot.lane.b32.xlu0 %v4053, 32
      %v4058 = vpop.permute.xlu0 %4057
      %4059 = vrot.lane.b32.xlu0 %v4054, 32
      %v4060 = vpop.permute.xlu0 %4059
      %v4063 = vsel %vm2063, %v4051, %v4058
      %v4064 = vsel %vm2063, %v4052, %v4060
      %v4065 = vpack.c.bf16 %v4064, %v4063
      %v4066 = vld [vmem:[%s55] sm:$0xf]
      %v4067 = vld [vmem:[%s55 + $0x4] sm:$0xf]
      %v4068 = vld [vmem:[%s55 + $0x8] sm:$0xf]
      %v4069 = vld [vmem:[%s55 + $0xc] sm:$0xf]
      %v4070 = vld [vmem:[%s55 + $0x10] sm:$0xf]
      %v4071 = vld [vmem:[%s55 + $0x14] sm:$0xf]
      %v4072 = vld [vmem:[%s55 + $0x18] sm:$0xf]
      %v4073 = vld [vmem:[%s55 + $0x1c] sm:$0xf]
      %v4082 = vunpack.c.l.b16 %v4066
      %v4083 = vunpack.c.l.b16 %v4067
      %v4084 = vunpack.c.l.b16 %v4068
      %v4085 = vunpack.c.l.b16 %v4069
      %v4086 = vunpack.c.l.b16 %v4070
      %v4087 = vunpack.c.l.b16 %v4071
      %v4088 = vunpack.c.l.b16 %v4072
      %v4089 = vunpack.c.l.b16 %v4073
      %v4090 = vpack.c.b16 %v4083, %v4082
      %v4091 = vpack.c.b16 %v4085, %v4084
      %v4092 = vpack.c.b16 %v4087, %v4086
      %v4093 = vpack.c.b16 %v4089, %v4088
      %v4099 = vsel %vm1442, %v4065, 0
      %4101 = vmatprep.subr.bf16.mxu0 0
      %4102 = vmatpush1.bf16.msra.mxu0 %v4090
      %4103 = vmatprep.subr.bf16.mxu0 0
      %4104 = vmatpush1.bf16.msra.mxu0 %v4091
      %4105 = vmatprep.subr.bf16.mxu0 0
      %4106 = vmatpush1.bf16.msra.mxu0 %v4092
      %4107 = vmatprep.subr.bf16.mxu0 0
      %4108 = vmatpush1.bf16.msra.mxu0 %v4093
      %4109 = vmatprep.subr.bf16.mxu0 0
      %4110 = vmatpush1.bf16.msra.mxu0 0
      %4111 = vmatprep.subr.bf16.mxu0 0
      %4112 = vmatpush1.bf16.msra.mxu0 0
      %4113 = vmatprep.subr.bf16.mxu0 0
      %4114 = vmatpush1.bf16.msra.mxu0 0
      %4115 = vmatprep.subr.bf16.mxu0 0
      %4116 = vmatpush1.bf16.msra.mxu0 0
      %4117 = vmatprep.subr.bf16.mxu0 0
      %4118 = vmatpush1.bf16.msra.mxu0 0
      %4119 = vmatprep.subr.bf16.mxu0 0
      %4120 = vmatpush1.bf16.msra.mxu0 0
      %4121 = vmatprep.subr.bf16.mxu0 0
      %4122 = vmatpush1.bf16.msra.mxu0 0
      %4123 = vmatprep.subr.bf16.mxu0 0
      %4124 = vmatpush1.bf16.msra.mxu0 0
      %4125 = vmatprep.subr.bf16.mxu0 0
      %4126 = vmatpush1.bf16.msra.mxu0 0
      %4127 = vmatprep.subr.bf16.mxu0 0
      %4128 = vmatpush1.bf16.msra.mxu0 0
      %4129 = vmatprep.subr.bf16.mxu0 0
      %4130 = vmatpush1.bf16.msra.mxu0 0
      %4131 = vmatprep.subr.bf16.mxu0 0
      %4132 = vmatpush1.bf16.msra.mxu0 0
      %4133 = vmatprep.mubr.bf16.mxu0 0
      %4134 = vmatmul.mubr.bf16.gmra.mrb[0].mxu0 %v4099
      %v4135 = vpop.f32.mrb[0].mxu0
      %v4136 = vadd.f32 0.0, %v4135
      %v4137 = vpop.f32.mrb[0].mxu0
      %v4138 = vpop.f32.mrb[0].mxu0
      %v4139 = vadd.f32 0.0, %v4138
      %v4140 = vpop.f32.mrb[0].mxu0
      %4141 = vdwg.mxu0
      %v4142 = vrot.slane %v4136, 7
      %v4143 = vrot.slane %v4139, 7
      %v4144 = vsel %vm2322, %v4142, %v4143
      %v4145 = vsel %vm2322, %v4143, %v4142
      %v4146 = vsel %vm3773, %v4145, 0.0
      %v4147 = vsel %vm3774, %v4144, 0.0
      %4150 = vrot.lane.b32.xlu0 %v4136, 96
      %v4151 = vpop.permute.xlu0 %4150
      %4152 = vrot.lane.b32.xlu0 %v4139, 96
      %v4153 = vpop.permute.xlu0 %4152
      %v4156 = vadd.f32 %v4146, %v4151
      %v4157 = vadd.f32 %v4147, %v4153
      %4158 = vrot.lane.b32.xlu0 %v4136, 64
      %v4159 = vpop.permute.xlu0 %4158
      %4160 = vrot.lane.b32.xlu0 %v4139, 64
      %v4161 = vpop.permute.xlu0 %4160
      %v4164 = vrot.slane %v4159, 1
      %v4165 = vrot.slane %v4161, 1
      %v4166 = vsel %vm2357, %v4164, %v4165
      %v4167 = vsel %vm2357, %v4165, %v4164
      %v4168 = vsel %vm3803, %v4166, 0.0
      %v4169 = vsel %vm3804, %v4167, 0.0
      %v4170 = vadd.f32 %v4156, %v4168
      %v4171 = vadd.f32 %v4157, %v4169
      %v4172 = vld [vmem:[%s57] sm:$0x1]
      %v4174 = vlaneseq
      %v4175 = vshrl.u32 %v4174, 7
      %v4176 = vsub.s32 0, %v4175
      %v4177 = vrot.slane %v4172, %v4176
      %v4179 = vadd.f32 %v4170, %v4177
      %v4180 = vadd.f32 %v4171, %v4177
      %v4181 = vadd.f32 %v4179, %v3921
      %v4182 = vadd.f32 %v4180, %v3922
      %v4183 = vtanh.pop %v4181
      %v4184 = vtanh.pop %v4182
      %v4185 = vsel %vm3919, %v4183, 0.0
      %v4186 = vsel %vm3920, %v4184, 0.0
      %v4187 = vmul.f32 %v4185, %v4185
      %v4188 = vmul.f32 %v4186, %v4186
      %4191 = vrot.lane.b32.xlu0 %v4187, 32
      %v4192 = vpop.permute.xlu0 %4191
      %4193 = vrot.lane.b32.xlu0 %v4188, 32
      %v4194 = vpop.permute.xlu0 %4193
      %v4197 = vsel %vm2063, %v4185, %v4192
      %v4198 = vsel %vm2063, %v4186, %v4194
      %v4199 = vpack.c.bf16 %v4198, %v4197
      %v4200 = vld [vmem:[%s59] sm:$0xff]
      %v4201 = vld [vmem:[%s59 + $0x8] sm:$0xff]
      %v4202 = vld [vmem:[%s59 + $0x10] sm:$0xff]
      %v4203 = vld [vmem:[%s59 + $0x18] sm:$0xff]
      %v4204 = vld [vmem:[%s59 + $0x20] sm:$0xff]
      %v4205 = vld [vmem:[%s59 + $0x28] sm:$0xff]
      %v4206 = vld [vmem:[%s59 + $0x30] sm:$0xff]
      %v4207 = vld [vmem:[%s59 + $0x38] sm:$0xff]
      %v4216 = vunpack.c.l.b16 %v4200
      %v4217 = vunpack.c.h.b16 %v4200
      %v4218 = vunpack.c.l.b16 %v4201
      %v4219 = vunpack.c.h.b16 %v4201
      %v4220 = vunpack.c.l.b16 %v4202
      %v4221 = vunpack.c.h.b16 %v4202
      %v4222 = vunpack.c.l.b16 %v4203
      %v4223 = vunpack.c.h.b16 %v4203
      %v4224 = vunpack.c.l.b16 %v4204
      %v4225 = vunpack.c.h.b16 %v4204
      %v4226 = vunpack.c.l.b16 %v4205
      %v4227 = vunpack.c.h.b16 %v4205
      %v4228 = vunpack.c.l.b16 %v4206
      %v4229 = vunpack.c.h.b16 %v4206
      %v4230 = vunpack.c.l.b16 %v4207
      %v4231 = vunpack.c.h.b16 %v4207
      %v4232 = vpack.c.b16 %v4218, %v4216
      %v4233 = vpack.c.b16 %v4219, %v4217
      %v4234 = vpack.c.b16 %v4222, %v4220
      %v4235 = vpack.c.b16 %v4223, %v4221
      %v4236 = vpack.c.b16 %v4226, %v4224
      %v4237 = vpack.c.b16 %v4227, %v4225
      %v4238 = vpack.c.b16 %v4230, %v4228
      %v4239 = vpack.c.b16 %v4231, %v4229
      %v4249 = vsel %vm1442, %v4199, 0
      %4251 = vmatprep.subr.bf16.mxu0 %v4233
      %4252 = vmatpush1.bf16.msra.mxu0 %v4232
      %4253 = vmatprep.subr.bf16.mxu0 %v4235
      %4254 = vmatpush1.bf16.msra.mxu0 %v4234
      %4255 = vmatprep.subr.bf16.mxu0 %v4237
      %4256 = vmatpush1.bf16.msra.mxu0 %v4236
      %4257 = vmatprep.subr.bf16.mxu0 %v4239
      %4258 = vmatpush1.bf16.msra.mxu0 %v4238
      %4259 = vmatprep.subr.bf16.mxu0 0
      %4260 = vmatpush1.bf16.msra.mxu0 0
      %4261 = vmatprep.subr.bf16.mxu0 0
      %4262 = vmatpush1.bf16.msra.mxu0 0
      %4263 = vmatprep.subr.bf16.mxu0 0
      %4264 = vmatpush1.bf16.msra.mxu0 0
      %4265 = vmatprep.subr.bf16.mxu0 0
      %4266 = vmatpush1.bf16.msra.mxu0 0
      %4267 = vmatprep.subr.bf16.mxu0 0
      %4268 = vmatpush1.bf16.msra.mxu0 0
      %4269 = vmatprep.subr.bf16.mxu0 0
      %4270 = vmatpush1.bf16.msra.mxu0 0
      %4271 = vmatprep.subr.bf16.mxu0 0
      %4272 = vmatpush1.bf16.msra.mxu0 0
      %4273 = vmatprep.subr.bf16.mxu0 0
      %4274 = vmatpush1.bf16.msra.mxu0 0
      %4275 = vmatprep.subr.bf16.mxu0 0
      %4276 = vmatpush1.bf16.msra.mxu0 0
      %4277 = vmatprep.subr.bf16.mxu0 0
      %4278 = vmatpush1.bf16.msra.mxu0 0
      %4279 = vmatprep.subr.bf16.mxu0 0
      %4280 = vmatpush1.bf16.msra.mxu0 0
      %4281 = vmatprep.subr.bf16.mxu0 0
      %4282 = vmatpush1.bf16.msra.mxu0 0
      %4283 = vmatprep.mubr.bf16.mxu0 0
      %4284 = vmatmul.mubr.bf16.gmra.mrb[0].mxu0 %v4249
      %v4285 = vpop.f32.mrb[0].mxu0
      %v4286 = vadd.f32 0.0, %v4285
      %v4287 = vpop.f32.mrb[0].mxu0
      %v4288 = vadd.f32 0.0, %v4287
      %v4289 = vpop.f32.mrb[0].mxu0
      %v4290 = vadd.f32 0.0, %v4289
      %v4291 = vpop.f32.mrb[0].mxu0
      %v4292 = vadd.f32 0.0, %v4291
      %4293 = vdwg.mxu0
      %vm4294 = vcmp.lt.s32.totalorder %v1355, 2
      %vm4295 = vcmp.lt.s32.totalorder %v1356, 2
      %vm4296 = vmand %vm1557, %vm4294
      %vm4297 = vmand %vm1558, %vm4295
      %vm4298 = vcmp.lt.s32.totalorder %v1360, 4
      %vm4299 = vmand %vm4296, %vm4298
      %vm4300 = vmand %vm4297, %vm4298
      %v4301 = vsel %vm4299, 1, 0
      %v4302 = vsel %vm4300, 1, 0
      %v4303 = vcvt.s32.f32 %v4301
      %v4304 = vcvt.s32.f32 %v4302
      %v4305 = vpack.c.bf16 %v4304, %v4303
      %v4306 = vpack.c.bf16 %v4290, %v4286
      %vm4307 = vmand %vm1650, %vm4294
      %vm4308 = vmand %vm1651, %vm4295
      %vm4309 = vmand %vm4307, %vm4298
      %vm4310 = vmand %vm4308, %vm4298
      %v4311 = vsel %vm4309, 1, 0
      %v4312 = vsel %vm4310, 1, 0
      %v4313 = vcvt.s32.f32 %v4311
      %v4314 = vcvt.s32.f32 %v4312
      %v4315 = vpack.c.bf16 %v4314, %v4313
      %4317 = vrot.lane.b32.xlu0 %v4306, 64
      %v4318 = vpop.permute.xlu0 %4317
      %v4321 = vsel %vm2275, %v4315, 0
      %4323 = vmatprep.subr.bf16.mxu0 0
      %4324 = vmatpush1.bf16.msra.mxu0 %v4318
      %4325 = vmatprep.subr.bf16.mxu0 0
      %4326 = vmatpush1.bf16.msra.mxu0 0
      %4327 = vmatprep.subr.bf16.mxu0 0
      %4328 = vmatpush1.bf16.msra.mxu0 0
      %4329 = vmatprep.subr.bf16.mxu0 0
      %4330 = vmatpush1.bf16.msra.mxu0 0
      %4331 = vmatprep.subr.bf16.mxu0 0
      %4332 = vmatpush1.bf16.msra.mxu0 0
      %4333 = vmatprep.subr.bf16.mxu0 0
      %4334 = vmatpush1.bf16.msra.mxu0 0
      %4335 = vmatprep.subr.bf16.mxu0 0
      %4336 = vmatpush1.bf16.msra.mxu0 0
      %4337 = vmatprep.subr.bf16.mxu0 0
      %4338 = vmatpush1.bf16.msra.mxu0 0
      %4339 = vmatprep.subr.bf16.mxu0 0
      %4340 = vmatpush1.bf16.msra.mxu0 0
      %4341 = vmatprep.subr.bf16.mxu0 0
      %4342 = vmatpush1.bf16.msra.mxu0 0
      %4343 = vmatprep.subr.bf16.mxu0 0
      %4344 = vmatpush1.bf16.msra.mxu0 0
      %4345 = vmatprep.subr.bf16.mxu0 0
      %4346 = vmatpush1.bf16.msra.mxu0 0
      %4347 = vmatprep.subr.bf16.mxu0 0
      %4348 = vmatpush1.bf16.msra.mxu0 0
      %4349 = vmatprep.subr.bf16.mxu0 0
      %4350 = vmatpush1.bf16.msra.mxu0 0
      %4351 = vmatprep.subr.bf16.mxu0 0
      %4352 = vmatpush1.bf16.msra.mxu0 0
      %4353 = vmatprep.subr.bf16.mxu0 0
      %4354 = vmatpush1.bf16.msra.mxu0 0
      %4355 = vmatprep.mubr.bf16.mxu0 0
      %4356 = vmatmul.mubr.bf16.gmra.mrb[0].mxu0 %v4321
      %v4357 = vpop.f32.mrb[0].mxu0
      %v4358 = vadd.f32 0.0, %v4357
      %v4359 = vpop.f32.mrb[0].mxu0
      %v4360 = vpop.f32.mrb[0].mxu0
      %v4361 = vadd.f32 0.0, %v4360
      %v4362 = vpop.f32.mrb[0].mxu0
      %4363 = vdwg.mxu0
      %v4365 = vsel %vm2275, %v4305, 0
      %4367 = vmatprep.subr.bf16.mxu0 0
      %4368 = vmatpush1.bf16.msra.mxu0 %v4306
      %4369 = vmatprep.subr.bf16.mxu0 0
      %4370 = vmatpush1.bf16.msra.mxu0 0
      %4371 = vmatprep.subr.bf16.mxu0 0
      %4372 = vmatpush1.bf16.msra.mxu0 0
      %4373 = vmatprep.subr.bf16.mxu0 0
      %4374 = vmatpush1.bf16.msra.mxu0 0
      %4375 = vmatprep.subr.bf16.mxu0 0
      %4376 = vmatpush1.bf16.msra.mxu0 0
      %4377 = vmatprep.subr.bf16.mxu0 0
      %4378 = vmatpush1.bf16.msra.mxu0 0
      %4379 = vmatprep.subr.bf16.mxu0 0
      %4380 = vmatpush1.bf16.msra.mxu0 0
      %4381 = vmatprep.subr.bf16.mxu0 0
      %4382 = vmatpush1.bf16.msra.mxu0 0
      %4383 = vmatprep.subr.bf16.mxu0 0
      %4384 = vmatpush1.bf16.msra.mxu0 0
      %4385 = vmatprep.subr.bf16.mxu0 0
      %4386 = vmatpush1.bf16.msra.mxu0 0
      %4387 = vmatprep.subr.bf16.mxu0 0
      %4388 = vmatpush1.bf16.msra.mxu0 0
      %4389 = vmatprep.subr.bf16.mxu0 0
      %4390 = vmatpush1.bf16.msra.mxu0 0
      %4391 = vmatprep.subr.bf16.mxu0 0
      %4392 = vmatpush1.bf16.msra.mxu0 0
      %4393 = vmatprep.subr.bf16.mxu0 0
      %4394 = vmatpush1.bf16.msra.mxu0 0
      %4395 = vmatprep.subr.bf16.mxu0 0
      %4396 = vmatpush1.bf16.msra.mxu0 0
      %4397 = vmatprep.subr.bf16.mxu0 0
      %4398 = vmatpush1.bf16.msra.mxu0 0
      %4399 = vmatprep.mubr.bf16.mxu0 0
      %4400 = vmatmul.mubr.bf16.gmra.mrb[0].mxu0 %v4365
      %v4401 = vpop.f32.mrb[0].mxu0
      %v4402 = vadd.f32 %v4358, %v4401
      %v4403 = vpop.f32.mrb[0].mxu0
      %v4404 = vpop.f32.mrb[0].mxu0
      %v4405 = vadd.f32 %v4361, %v4404
      %v4406 = vpop.f32.mrb[0].mxu0
      %4407 = vdwg.mxu0
      %vm4408 = vmand %vm1747, %vm4294
      %vm4409 = vmand %vm1748, %vm4295
      %vm4410 = vmand %vm4408, %vm4298
      %vm4411 = vmand %vm4409, %vm4298
      %v4412 = vsel %vm4410, 1, 0
      %v4413 = vsel %vm4411, 1, 0
      %v4414 = vcvt.s32.f32 %v4412
      %v4415 = vcvt.s32.f32 %v4413
      %v4416 = vpack.c.bf16 %v4415, %v4414
      %v4417 = vpack.c.bf16 %v4292, %v4288
      %v4419 = vsel %vm2275, %v4416, 0
      %4421 = vmatprep.subr.bf16.mxu0 0
      %4422 = vmatpush1.bf16.msra.mxu0 %v4417
      %4423 = vmatprep.subr.bf16.mxu0 0
      %4424 = vmatpush1.bf16.msra.mxu0 0
      %4425 = vmatprep.subr.bf16.mxu0 0
      %4426 = vmatpush1.bf16.msra.mxu0 0
      %4427 = vmatprep.subr.bf16.mxu0 0
      %4428 = vmatpush1.bf16.msra.mxu0 0
      %4429 = vmatprep.subr.bf16.mxu0 0
      %4430 = vmatpush1.bf16.msra.mxu0 0
      %4431 = vmatprep.subr.bf16.mxu0 0
      %4432 = vmatpush1.bf16.msra.mxu0 0
      %4433 = vmatprep.subr.bf16.mxu0 0
      %4434 = vmatpush1.bf16.msra.mxu0 0
      %4435 = vmatprep.subr.bf16.mxu0 0
      %4436 = vmatpush1.bf16.msra.mxu0 0
      %4437 = vmatprep.subr.bf16.mxu0 0
      %4438 = vmatpush1.bf16.msra.mxu0 0
      %4439 = vmatprep.subr.bf16.mxu0 0
      %4440 = vmatpush1.bf16.msra.mxu0 0
      %4441 = vmatprep.subr.bf16.mxu0 0
      %4442 = vmatpush1.bf16.msra.mxu0 0
      %4443 = vmatprep.subr.bf16.mxu0 0
      %4444 = vmatpush1.bf16.msra.mxu0 0
      %4445 = vmatprep.subr.bf16.mxu0 0
      %4446 = vmatpush1.bf16.msra.mxu0 0
      %4447 = vmatprep.subr.bf16.mxu0 0
      %4448 = vmatpush1.bf16.msra.mxu0 0
      %4449 = vmatprep.subr.bf16.mxu0 0
      %4450 = vmatpush1.bf16.msra.mxu0 0
      %4451 = vmatprep.subr.bf16.mxu0 0
      %4452 = vmatpush1.bf16.msra.mxu0 0
      %4453 = vmatprep.mubr.bf16.mxu0 0
      %4454 = vmatmul.mubr.bf16.gmra.mrb[0].mxu0 %v4419
      %v4455 = vpop.f32.mrb[0].mxu0
      %v4456 = vadd.f32 0.0, %v4455
      %v4457 = vpop.f32.mrb[0].mxu0
      %v4458 = vpop.f32.mrb[0].mxu0
      %v4459 = vadd.f32 0.0, %v4458
      %v4460 = vpop.f32.mrb[0].mxu0
      %4461 = vdwg.mxu0
      %v4462 = vadd.f32 %v4402, %v4456
      %v4463 = vadd.f32 %v4405, %v4459
      %v4464 = vld [vmem:[%s61] sm:$0x1]
      %v4466 = vlaneseq
      %v4467 = vshrl.u32 %v4466, 7
      %v4468 = vsub.s32 0, %v4467
      %v4469 = vrot.slane %v4464, %v4468
      %v4471 = vadd.f32 %v4462, %v4469
      %v4472 = vadd.f32 %v4463, %v4469
      %v4473 = vtanh.pop %v4471
      %v4474 = vtanh.pop %v4472
      %v4475 = vmul.f32 %v4473, %v4473
      %v4476 = vmul.f32 %v4474, %v4474
      %4479 = vrot.lane.b32.xlu0 %v4475, 64
      %v4480 = vpop.permute.xlu0 %4479
      %4481 = vrot.lane.b32.xlu0 %v4476, 64
      %v4482 = vpop.permute.xlu0 %4481
      %v4485 = vsel %vm1442, %v4473, %v4480
      %v4486 = vsel %vm1442, %v4474, %v4482
      %v4487 = vpack.c.bf16 %v4486, %v4485
      %v4488 = vld [vmem:[%s63] sm:$0xff]
      %v4489 = vld [vmem:[%s63 + $0x8] sm:$0xff]
      %v4490 = vld [vmem:[%s63 + $0x10] sm:$0xff]
      %v4491 = vld [vmem:[%s63 + $0x18] sm:$0xff]
      %v4492 = vld [vmem:[%s63 + $0x20] sm:$0xff]
      %v4493 = vld [vmem:[%s63 + $0x28] sm:$0xff]
      %v4494 = vld [vmem:[%s63 + $0x30] sm:$0xff]
      %v4495 = vld [vmem:[%s63 + $0x38] sm:$0xff]
      %v4496 = vld [vmem:[%s63 + $0x40] sm:$0xff]
      %v4497 = vld [vmem:[%s63 + $0x48] sm:$0xff]
      %v4498 = vld [vmem:[%s63 + $0x50] sm:$0xff]
      %v4499 = vld [vmem:[%s63 + $0x58] sm:$0xff]
      %v4500 = vld [vmem:[%s63 + $0x60] sm:$0xff]
      %v4501 = vld [vmem:[%s63 + $0x68] sm:$0xff]
      %v4502 = vld [vmem:[%s63 + $0x70] sm:$0xff]
      %v4503 = vld [vmem:[%s63 + $0x78] sm:$0xff]
      %v4520 = vunpack.c.l.b16 %v4488
      %v4521 = vunpack.c.h.b16 %v4488
      %v4522 = vunpack.c.l.b16 %v4489
      %v4523 = vunpack.c.h.b16 %v4489
      %v4524 = vunpack.c.l.b16 %v4490
      %v4525 = vunpack.c.h.b16 %v4490
      %v4526 = vunpack.c.l.b16 %v4491
      %v4527 = vunpack.c.h.b16 %v4491
      %v4528 = vunpack.c.l.b16 %v4492
      %v4529 = vunpack.c.h.b16 %v4492
      %v4530 = vunpack.c.l.b16 %v4493
      %v4531 = vunpack.c.h.b16 %v4493
      %v4532 = vunpack.c.l.b16 %v4494
      %v4533 = vunpack.c.h.b16 %v4494
      %v4534 = vunpack.c.l.b16 %v4495
      %v4535 = vunpack.c.h.b16 %v4495
      %v4536 = vunpack.c.l.b16 %v4496
      %v4537 = vunpack.c.h.b16 %v4496
      %v4538 = vunpack.c.l.b16 %v4497
      %v4539 = vunpack.c.h.b16 %v4497
      %v4540 = vunpack.c.l.b16 %v4498
      %v4541 = vunpack.c.h.b16 %v4498
      %v4542 = vunpack.c.l.b16 %v4499
      %v4543 = vunpack.c.h.b16 %v4499
      %v4544 = vunpack.c.l.b16 %v4500
      %v4545 = vunpack.c.h.b16 %v4500
      %v4546 = vunpack.c.l.b16 %v4501
      %v4547 = vunpack.c.h.b16 %v4501
      %v4548 = vunpack.c.l.b16 %v4502
      %v4549 = vunpack.c.h.b16 %v4502
      %v4550 = vunpack.c.l.b16 %v4503
      %v4551 = vunpack.c.h.b16 %v4503
      %v4552 = vpack.c.b16 %v4522, %v4520
      %v4553 = vpack.c.b16 %v4523, %v4521
      %v4554 = vpack.c.b16 %v4526, %v4524
      %v4555 = vpack.c.b16 %v4527, %v4525
      %v4556 = vpack.c.b16 %v4530, %v4528
      %v4557 = vpack.c.b16 %v4531, %v4529
      %v4558 = vpack.c.b16 %v4534, %v4532
      %v4559 = vpack.c.b16 %v4535, %v4533
      %v4560 = vpack.c.b16 %v4538, %v4536
      %v4561 = vpack.c.b16 %v4539, %v4537
      %v4562 = vpack.c.b16 %v4542, %v4540
      %v4563 = vpack.c.b16 %v4543, %v4541
      %v4564 = vpack.c.b16 %v4546, %v4544
      %v4565 = vpack.c.b16 %v4547, %v4545
      %v4566 = vpack.c.b16 %v4550, %v4548
      %v4567 = vpack.c.b16 %v4551, %v4549
      %4584 = vmatprep.subr.bf16.mxu0 %v4553
      %4585 = vmatpush1.bf16.msra.mxu0 %v4552
      %4586 = vmatprep.subr.bf16.mxu0 %v4555
      %4587 = vmatpush1.bf16.msra.mxu0 %v4554
      %4588 = vmatprep.subr.bf16.mxu0 %v4557
      %4589 = vmatpush1.bf16.msra.mxu0 %v4556
      %4590 = vmatprep.subr.bf16.mxu0 %v4559
      %4591 = vmatpush1.bf16.msra.mxu0 %v4558
      %4592 = vmatprep.subr.bf16.mxu0 %v4561
      %4593 = vmatpush1.bf16.msra.mxu0 %v4560
      %4594 = vmatprep.subr.bf16.mxu0 %v4563
      %4595 = vmatpush1.bf16.msra.mxu0 %v4562
      %4596 = vmatprep.subr.bf16.mxu0 %v4565
      %4597 = vmatpush1.bf16.msra.mxu0 %v4564
      %4598 = vmatprep.subr.bf16.mxu0 %v4567
      %4599 = vmatpush1.bf16.msra.mxu0 %v4566
      %4600 = vmatprep.subr.bf16.mxu0 0
      %4601 = vmatpush1.bf16.msra.mxu0 0
      %4602 = vmatprep.subr.bf16.mxu0 0
      %4603 = vmatpush1.bf16.msra.mxu0 0
      %4604 = vmatprep.subr.bf16.mxu0 0
      %4605 = vmatpush1.bf16.msra.mxu0 0
      %4606 = vmatprep.subr.bf16.mxu0 0
      %4607 = vmatpush1.bf16.msra.mxu0 0
      %4608 = vmatprep.subr.bf16.mxu0 0
      %4609 = vmatpush1.bf16.msra.mxu0 0
      %4610 = vmatprep.subr.bf16.mxu0 0
      %4611 = vmatpush1.bf16.msra.mxu0 0
      %4612 = vmatprep.subr.bf16.mxu0 0
      %4613 = vmatpush1.bf16.msra.mxu0 0
      %4614 = vmatprep.subr.bf16.mxu0 0
      %4615 = vmatpush1.bf16.msra.mxu0 0
      %4616 = vmatprep.mubr.bf16.mxu0 0
      %4617 = vmatmul.mubr.bf16.gmra.mrb[0].mxu0 %v4487
      %v4618 = vpop.f32.mrb[0].mxu0
      %v4619 = vadd.f32 0.0, %v4618
      %v4620 = vpop.f32.mrb[0].mxu0
      %v4621 = vadd.f32 0.0, %v4620
      %v4622 = vpop.f32.mrb[0].mxu0
      %v4623 = vadd.f32 0.0, %v4622
      %v4624 = vpop.f32.mrb[0].mxu0
      %v4625 = vadd.f32 0.0, %v4624
      %4626 = vdwg.mxu0
      %v4627 = vrot.slane %v4619, 7
      %v4628 = vrot.slane %v4623, 7
      %v4629 = vsel %vm2322, %v4627, %v4628
      %v4630 = vsel %vm2322, %v4628, %v4627
      %vm4631 = vcmp.lt.s32.totalorder %v2325, 2
      %vm4632 = vcmp.lt.s32.totalorder %v2326, 2
      %vm4633 = vmand %vm2327, %vm4631
      %vm4634 = vmand %vm2328, %vm4632
      %v4635 = vsel %vm4633, 1, 0
      %v4636 = vsel %vm4634, 1, 0
      %vm4637 = vcmp.eq.s32.totalorder %v4635, 1
      %vm4638 = vcmp.eq.s32.totalorder %v4636, 1
      %v4639 = vsel %vm4637, %v4630, 0.0
      %v4640 = vsel %vm4638, %v4629, 0.0
      %4643 = vrot.lane.b32.xlu0 %v4619, 64
      %v4644 = vpop.permute.xlu0 %4643
      %4645 = vrot.lane.b32.xlu0 %v4623, 64
      %v4646 = vpop.permute.xlu0 %4645
      %v4649 = vadd.f32 %v4639, %v4644
      %v4650 = vadd.f32 %v4640, %v4646
      %v4651 = vrot.slane %v4621, 1
      %v4652 = vrot.slane %v4625, 1
      %v4653 = vsel %vm2357, %v4651, %v4652
      %v4654 = vsel %vm2357, %v4652, %v4651
      %vm4655 = vcmp.lt.s32.totalorder %v2360, 2
      %vm4656 = vcmp.lt.s32.totalorder %v2361, 2
      %vm4657 = vmand %vm2362, %vm4655
      %vm4658 = vmand %vm2363, %vm4656
      %v4659 = vsel %vm4657, 1, 0
      %v4660 = vsel %vm4658, 1, 0
      %vm4661 = vcmp.eq.s32.totalorder %v4659, 1
      %vm4662 = vcmp.eq.s32.totalorder %v4660, 1
      %v4663 = vsel %vm4661, %v4653, 0.0
      %v4664 = vsel %vm4662, %v4654, 0.0
      %v4665 = vadd.f32 %v4649, %v4663
      %v4666 = vadd.f32 %v4650, %v4664
      %v4667 = vld [vmem:[%s65] sm:$0x1]
      %v4669 = vlaneseq
      %v4670 = vshrl.u32 %v4669, 7
      %v4671 = vsub.s32 0, %v4670
      %v4672 = vrot.slane %v4667, %v4671
      %v4674 = vadd.f32 %v4665, %v4672
      %v4675 = vadd.f32 %v4666, %v4672
      %v4676 = vpack.c.bf16 %v4186, %v4185
      %v4677 = vld [vmem:[%s67] sm:$0xf]
      %v4678 = vld [vmem:[%s67 + $0x4] sm:$0xf]
      %v4679 = vld [vmem:[%s67 + $0x8] sm:$0xf]
      %v4680 = vld [vmem:[%s67 + $0xc] sm:$0xf]
      %v4685 = vunpack.c.l.b16 %v4677
      %v4686 = vunpack.c.l.b16 %v4678
      %v4687 = vunpack.c.l.b16 %v4679
      %v4688 = vunpack.c.l.b16 %v4680
      %v4689 = vpack.c.b16 %v4686, %v4685
      %v4690 = vpack.c.b16 %v4688, %v4687
      %v4694 = vsel %vm2063, %v4676, 0
      %4696 = vmatprep.subr.bf16.mxu0 0
      %4697 = vmatpush1.bf16.msra.mxu0 %v4689
      %4698 = vmatprep.subr.bf16.mxu0 0
      %4699 = vmatpush1.bf16.msra.mxu0 %v4690
      %4700 = vmatprep.subr.bf16.mxu0 0
      %4701 = vmatpush1.bf16.msra.mxu0 0
      %4702 = vmatprep.subr.bf16.mxu0 0
      %4703 = vmatpush1.bf16.msra.mxu0 0
      %4704 = vmatprep.subr.bf16.mxu0 0
      %4705 = vmatpush1.bf16.msra.mxu0 0
      %4706 = vmatprep.subr.bf16.mxu0 0
      %4707 = vmatpush1.bf16.msra.mxu0 0
      %4708 = vmatprep.subr.bf16.mxu0 0
      %4709 = vmatpush1.bf16.msra.mxu0 0
      %4710 = vmatprep.subr.bf16.mxu0 0
      %4711 = vmatpush1.bf16.msra.mxu0 0
      %4712 = vmatprep.subr.bf16.mxu0 0
      %4713 = vmatpush1.bf16.msra.mxu0 0
      %4714 = vmatprep.subr.bf16.mxu0 0
      %4715 = vmatpush1.bf16.msra.mxu0 0
      %4716 = vmatprep.subr.bf16.mxu0 0
      %4717 = vmatpush1.bf16.msra.mxu0 0
      %4718 = vmatprep.subr.bf16.mxu0 0
      %4719 = vmatpush1.bf16.msra.mxu0 0
      %4720 = vmatprep.subr.bf16.mxu0 0
      %4721 = vmatpush1.bf16.msra.mxu0 0
      %4722 = vmatprep.subr.bf16.mxu0 0
      %4723 = vmatpush1.bf16.msra.mxu0 0
      %4724 = vmatprep.subr.bf16.mxu0 0
      %4725 = vmatpush1.bf16.msra.mxu0 0
      %4726 = vmatprep.subr.bf16.mxu0 0
      %4727 = vmatpush1.bf16.msra.mxu0 0
      %4728 = vmatprep.mubr.bf16.mxu0 0
      %4729 = vmatmul.mubr.bf16.gmra.mrb[0].mxu0 %v4694
      %v4730 = vpop.f32.mrb[0].mxu0
      %v4731 = vadd.f32 0.0, %v4730
      %v4732 = vpop.f32.mrb[0].mxu0
      %v4733 = vpop.f32.mrb[0].mxu0
      %v4734 = vadd.f32 0.0, %v4733
      %v4735 = vpop.f32.mrb[0].mxu0
      %4736 = vdwg.mxu0
      %v4737 = vpack.c.bf16 %v4734, %v4731
      %4738 = vmatprep.subr.bf16.mxu0 0
      %4739 = vmatpush1.bf16.msra.mxu0 %v4737
      %4740 = vmatprep.subr.bf16.mxu0 0
      %4741 = vmatpush1.bf16.msra.mxu0 0
      %4742 = vmatprep.subr.bf16.mxu0 0
      %4743 = vmatpush1.bf16.msra.mxu0 0
      %4744 = vmatprep.subr.bf16.mxu0 0
      %4745 = vmatpush1.bf16.msra.mxu0 0
      %4746 = vmatprep.subr.bf16.mxu0 0
      %4747 = vmatpush1.bf16.msra.mxu0 0
      %4748 = vmatprep.subr.bf16.mxu0 0
      %4749 = vmatpush1.bf16.msra.mxu0 0
      %4750 = vmatprep.subr.bf16.mxu0 0
      %4751 = vmatpush1.bf16.msra.mxu0 0
      %4752 = vmatprep.subr.bf16.mxu0 0
      %4753 = vmatpush1.bf16.msra.mxu0 0
      %4754 = vmatprep.subr.bf16.mxu0 0
      %4755 = vmatpush1.bf16.msra.mxu0 0
      %4756 = vmatprep.subr.bf16.mxu0 0
      %4757 = vmatpush1.bf16.msra.mxu0 0
      %4758 = vmatprep.subr.bf16.mxu0 0
      %4759 = vmatpush1.bf16.msra.mxu0 0
      %4760 = vmatprep.subr.bf16.mxu0 0
      %4761 = vmatpush1.bf16.msra.mxu0 0
      %4762 = vmatprep.subr.bf16.mxu0 0
      %4763 = vmatpush1.bf16.msra.mxu0 0
      %4764 = vmatprep.subr.bf16.mxu0 0
      %4765 = vmatpush1.bf16.msra.mxu0 0
      %4766 = vmatprep.subr.bf16.mxu0 0
      %4767 = vmatpush1.bf16.msra.mxu0 0
      %4768 = vmatprep.subr.bf16.mxu0 0
      %4769 = vmatpush1.bf16.msra.mxu0 0
      %4770 = vmatprep.mubr.bf16.mxu0 0
      %4771 = vmatmul.mubr.bf16.gmra.mrb[0].mxu0 %v4321
      %v4772 = vpop.f32.mrb[0].mxu0
      %v4773 = vadd.f32 0.0, %v4772
      %v4774 = vpop.f32.mrb[0].mxu0
      %v4775 = vpop.f32.mrb[0].mxu0
      %v4776 = vadd.f32 0.0, %v4775
      %v4777 = vpop.f32.mrb[0].mxu0
      %4778 = vdwg.mxu0
      %v4779 = vadd.f32 %v4674, %v4773
      %v4780 = vadd.f32 %v4675, %v4776
      %v4781 = vtanh.pop %v4779
      %v4782 = vtanh.pop %v4780
      %v4783 = vsel %vm4294, 1, 0
      %v4784 = vsel %vm4295, 1, 0
      %vm4785 = vcmp.eq.s32.totalorder %v4783, 1
      %vm4786 = vcmp.eq.s32.totalorder %v4784, 1
      %v4787 = vsel %vm4785, %v4781, 0.0
      %v4788 = vsel %vm4786, %v4782, 0.0
      %v4789 = vmul.f32 %v4787, %v4787
      %v4790 = vmul.f32 %v4788, %v4788
      %4793 = vrot.lane.b32.xlu0 %v4789, 64
      %v4794 = vpop.permute.xlu0 %4793
      %4795 = vrot.lane.b32.xlu0 %v4790, 64
      %v4796 = vpop.permute.xlu0 %4795
      %v4799 = vsel %vm1442, %v4787, %v4794
      %v4800 = vsel %vm1442, %v4788, %v4796
      %v4801 = vpack.c.bf16 %v4800, %v4799
      %v4802 = vld [vmem:[%s69] sm:$0xff]
      %v4803 = vld [vmem:[%s69 + $0x8] sm:$0xff]
      %v4804 = vld [vmem:[%s69 + $0x10] sm:$0xff]
      %v4805 = vld [vmem:[%s69 + $0x18] sm:$0xff]
      %v4806 = vld [vmem:[%s69 + $0x20] sm:$0xff]
      %v4807 = vld [vmem:[%s69 + $0x28] sm:$0xff]
      %v4808 = vld [vmem:[%s69 + $0x30] sm:$0xff]
      %v4809 = vld [vmem:[%s69 + $0x38] sm:$0xff]
      %v4810 = vld [vmem:[%s69 + $0x40] sm:$0xff]
      %v4811 = vld [vmem:[%s69 + $0x48] sm:$0xff]
      %v4812 = vld [vmem:[%s69 + $0x50] sm:$0xff]
      %v4813 = vld [vmem:[%s69 + $0x58] sm:$0xff]
      %v4814 = vld [vmem:[%s69 + $0x60] sm:$0xff]
      %v4815 = vld [vmem:[%s69 + $0x68] sm:$0xff]
      %v4816 = vld [vmem:[%s69 + $0x70] sm:$0xff]
      %v4817 = vld [vmem:[%s69 + $0x78] sm:$0xff]
      %v4834 = vunpack.c.l.b16 %v4802
      %v4835 = vunpack.c.h.b16 %v4802
      %v4836 = vunpack.c.l.b16 %v4803
      %v4837 = vunpack.c.h.b16 %v4803
      %v4838 = vunpack.c.l.b16 %v4804
      %v4839 = vunpack.c.h.b16 %v4804
      %v4840 = vunpack.c.l.b16 %v4805
      %v4841 = vunpack.c.h.b16 %v4805
      %v4842 = vunpack.c.l.b16 %v4806
      %v4843 = vunpack.c.h.b16 %v4806
      %v4844 = vunpack.c.l.b16 %v4807
      %v4845 = vunpack.c.h.b16 %v4807
      %v4846 = vunpack.c.l.b16 %v4808
      %v4847 = vunpack.c.h.b16 %v4808
      %v4848 = vunpack.c.l.b16 %v4809
      %v4849 = vunpack.c.h.b16 %v4809
      %v4850 = vunpack.c.l.b16 %v4810
      %v4851 = vunpack.c.h.b16 %v4810
      %v4852 = vunpack.c.l.b16 %v4811
      %v4853 = vunpack.c.h.b16 %v4811
      %v4854 = vunpack.c.l.b16 %v4812
      %v4855 = vunpack.c.h.b16 %v4812
      %v4856 = vunpack.c.l.b16 %v4813
      %v4857 = vunpack.c.h.b16 %v4813
      %v4858 = vunpack.c.l.b16 %v4814
      %v4859 = vunpack.c.h.b16 %v4814
      %v4860 = vunpack.c.l.b16 %v4815
      %v4861 = vunpack.c.h.b16 %v4815
      %v4862 = vunpack.c.l.b16 %v4816
      %v4863 = vunpack.c.h.b16 %v4816
      %v4864 = vunpack.c.l.b16 %v4817
      %v4865 = vunpack.c.h.b16 %v4817
      %v4866 = vpack.c.b16 %v4836, %v4834
      %v4867 = vpack.c.b16 %v4837, %v4835
      %v4868 = vpack.c.b16 %v4840, %v4838
      %v4869 = vpack.c.b16 %v4841, %v4839
      %v4870 = vpack.c.b16 %v4844, %v4842
      %v4871 = vpack.c.b16 %v4845, %v4843
      %v4872 = vpack.c.b16 %v4848, %v4846
      %v4873 = vpack.c.b16 %v4849, %v4847
      %v4874 = vpack.c.b16 %v4852, %v4850
      %v4875 = vpack.c.b16 %v4853, %v4851
      %v4876 = vpack.c.b16 %v4856, %v4854
      %v4877 = vpack.c.b16 %v4857, %v4855
      %v4878 = vpack.c.b16 %v4860, %v4858
      %v4879 = vpack.c.b16 %v4861, %v4859
      %v4880 = vpack.c.b16 %v4864, %v4862
      %v4881 = vpack.c.b16 %v4865, %v4863
      %4898 = vmatprep.subr.bf16.mxu0 %v4867
      %4899 = vmatpush1.bf16.msra.mxu0 %v4866
      %4900 = vmatprep.subr.bf16.mxu0 %v4869
      %4901 = vmatpush1.bf16.msra.mxu0 %v4868
      %4902 = vmatprep.subr.bf16.mxu0 %v4871
      %4903 = vmatpush1.bf16.msra.mxu0 %v4870
      %4904 = vmatprep.subr.bf16.mxu0 %v4873
      %4905 = vmatpush1.bf16.msra.mxu0 %v4872
      %4906 = vmatprep.subr.bf16.mxu0 %v4875
      %4907 = vmatpush1.bf16.msra.mxu0 %v4874
      %4908 = vmatprep.subr.bf16.mxu0 %v4877
      %4909 = vmatpush1.bf16.msra.mxu0 %v4876
      %4910 = vmatprep.subr.bf16.mxu0 %v4879
      %4911 = vmatpush1.bf16.msra.mxu0 %v4878
      %4912 = vmatprep.subr.bf16.mxu0 %v4881
      %4913 = vmatpush1.bf16.msra.mxu0 %v4880
      %4914 = vmatprep.subr.bf16.mxu0 0
      %4915 = vmatpush1.bf16.msra.mxu0 0
      %4916 = vmatprep.subr.bf16.mxu0 0
      %4917 = vmatpush1.bf16.msra.mxu0 0
      %4918 = vmatprep.subr.bf16.mxu0 0
      %4919 = vmatpush1.bf16.msra.mxu0 0
      %4920 = vmatprep.subr.bf16.mxu0 0
      %4921 = vmatpush1.bf16.msra.mxu0 0
      %4922 = vmatprep.subr.bf16.mxu0 0
      %4923 = vmatpush1.bf16.msra.mxu0 0
      %4924 = vmatprep.subr.bf16.mxu0 0
      %4925 = vmatpush1.bf16.msra.mxu0 0
      %4926 = vmatprep.subr.bf16.mxu0 0
      %4927 = vmatpush1.bf16.msra.mxu0 0
      %4928 = vmatprep.subr.bf16.mxu0 0
      %4929 = vmatpush1.bf16.msra.mxu0 0
      %4930 = vmatprep.mubr.bf16.mxu0 0
      %4931 = vmatmul.mubr.bf16.gmra.mrb[0].mxu0 %v4801
      %v4932 = vpop.f32.mrb[0].mxu0
      %v4933 = vadd.f32 0.0, %v4932
      %v4934 = vpop.f32.mrb[0].mxu0
      %v4935 = vadd.f32 0.0, %v4934
      %v4936 = vpop.f32.mrb[0].mxu0
      %v4937 = vadd.f32 0.0, %v4936
      %v4938 = vpop.f32.mrb[0].mxu0
      %v4939 = vadd.f32 0.0, %v4938
      %4940 = vdwg.mxu0
      %v4941 = vrot.slane %v4933, 7
      %v4942 = vrot.slane %v4937, 7
      %v4943 = vsel %vm2322, %v4941, %v4942
      %v4944 = vsel %vm2322, %v4942, %v4941
      %v4945 = vsel %vm4637, %v4944, 0.0
      %v4946 = vsel %vm4638, %v4943, 0.0
      %4949 = vrot.lane.b32.xlu0 %v4933, 64
      %v4950 = vpop.permute.xlu0 %4949
      %4951 = vrot.lane.b32.xlu0 %v4937, 64
      %v4952 = vpop.permute.xlu0 %4951
      %v4955 = vadd.f32 %v4945, %v4950
      %v4956 = vadd.f32 %v4946, %v4952
      %v4957 = vrot.slane %v4935, 1
      %v4958 = vrot.slane %v4939, 1
      %v4959 = vsel %vm2357, %v4957, %v4958
      %v4960 = vsel %vm2357, %v4958, %v4957
      %v4961 = vsel %vm4661, %v4959, 0.0
      %v4962 = vsel %vm4662, %v4960, 0.0
      %v4963 = vadd.f32 %v4955, %v4961
      %v4964 = vadd.f32 %v4956, %v4962
      %v4965 = vld [vmem:[%s71] sm:$0x1]
      %v4967 = vlaneseq
      %v4968 = vshrl.u32 %v4967, 7
      %v4969 = vsub.s32 0, %v4968
      %v4970 = vrot.slane %v4965, %v4969
      %v4972 = vadd.f32 %v4963, %v4970
      %v4973 = vadd.f32 %v4964, %v4970
      %v4974 = vtanh.pop %v4972
      %v4975 = vtanh.pop %v4973
      %v4976 = vmul.f32 %v4974, %v4974
      %v4977 = vmul.f32 %v4975, %v4975
      %4980 = vrot.lane.b32.xlu0 %v4976, 64
      %v4981 = vpop.permute.xlu0 %4980
      %4982 = vrot.lane.b32.xlu0 %v4977, 64
      %v4983 = vpop.permute.xlu0 %4982
      %v4986 = vsel %vm1442, %v4974, %v4981
      %v4987 = vsel %vm1442, %v4975, %v4983
      %v4988 = vpack.c.bf16 %v4987, %v4986
      %v4989 = vld [vmem:[%s73] sm:$0xff]
      %v4990 = vld [vmem:[%s73 + $0x8] sm:$0xff]
      %v4991 = vld [vmem:[%s73 + $0x10] sm:$0xff]
      %v4992 = vld [vmem:[%s73 + $0x18] sm:$0xff]
      %v4993 = vld [vmem:[%s73 + $0x20] sm:$0xff]
      %v4994 = vld [vmem:[%s73 + $0x28] sm:$0xff]
      %v4995 = vld [vmem:[%s73 + $0x30] sm:$0xff]
      %v4996 = vld [vmem:[%s73 + $0x38] sm:$0xff]
      %v4997 = vld [vmem:[%s73 + $0x40] sm:$0xff]
      %v4998 = vld [vmem:[%s73 + $0x48] sm:$0xff]
      %v4999 = vld [vmem:[%s73 + $0x50] sm:$0xff]
      %v5000 = vld [vmem:[%s73 + $0x58] sm:$0xff]
      %v5001 = vld [vmem:[%s73 + $0x60] sm:$0xff]
      %v5002 = vld [vmem:[%s73 + $0x68] sm:$0xff]
      %v5003 = vld [vmem:[%s73 + $0x70] sm:$0xff]
      %v5004 = vld [vmem:[%s73 + $0x78] sm:$0xff]
      %v5021 = vunpack.c.l.b16 %v4989
      %v5022 = vunpack.c.h.b16 %v4989
      %v5023 = vunpack.c.l.b16 %v4990
      %v5024 = vunpack.c.h.b16 %v4990
      %v5025 = vunpack.c.l.b16 %v4991
      %v5026 = vunpack.c.h.b16 %v4991
      %v5027 = vunpack.c.l.b16 %v4992
      %v5028 = vunpack.c.h.b16 %v4992
      %v5029 = vunpack.c.l.b16 %v4993
      %v5030 = vunpack.c.h.b16 %v4993
      %v5031 = vunpack.c.l.b16 %v4994
      %v5032 = vunpack.c.h.b16 %v4994
      %v5033 = vunpack.c.l.b16 %v4995
      %v5034 = vunpack.c.h.b16 %v4995
      %v5035 = vunpack.c.l.b16 %v4996
      %v5036 = vunpack.c.h.b16 %v4996
      %v5037 = vunpack.c.l.b16 %v4997
      %v5038 = vunpack.c.h.b16 %v4997
      %v5039 = vunpack.c.l.b16 %v4998
      %v5040 = vunpack.c.h.b16 %v4998
      %v5041 = vunpack.c.l.b16 %v4999
      %v5042 = vunpack.c.h.b16 %v4999
      %v5043 = vunpack.c.l.b16 %v5000
      %v5044 = vunpack.c.h.b16 %v5000
      %v5045 = vunpack.c.l.b16 %v5001
      %v5046 = vunpack.c.h.b16 %v5001
      %v5047 = vunpack.c.l.b16 %v5002
      %v5048 = vunpack.c.h.b16 %v5002
      %v5049 = vunpack.c.l.b16 %v5003
      %v5050 = vunpack.c.h.b16 %v5003
      %v5051 = vunpack.c.l.b16 %v5004
      %v5052 = vunpack.c.h.b16 %v5004
      %v5053 = vpack.c.b16 %v5023, %v5021
      %v5054 = vpack.c.b16 %v5024, %v5022
      %v5055 = vpack.c.b16 %v5027, %v5025
      %v5056 = vpack.c.b16 %v5028, %v5026
      %v5057 = vpack.c.b16 %v5031, %v5029
      %v5058 = vpack.c.b16 %v5032, %v5030
      %v5059 = vpack.c.b16 %v5035, %v5033
      %v5060 = vpack.c.b16 %v5036, %v5034
      %v5061 = vpack.c.b16 %v5039, %v5037
      %v5062 = vpack.c.b16 %v5040, %v5038
      %v5063 = vpack.c.b16 %v5043, %v5041
      %v5064 = vpack.c.b16 %v5044, %v5042
      %v5065 = vpack.c.b16 %v5047, %v5045
      %v5066 = vpack.c.b16 %v5048, %v5046
      %v5067 = vpack.c.b16 %v5051, %v5049
      %v5068 = vpack.c.b16 %v5052, %v5050
      %5085 = vmatprep.subr.bf16.mxu0 %v5054
      %5086 = vmatpush1.bf16.msra.mxu0 %v5053
      %5087 = vmatprep.subr.bf16.mxu0 %v5056
      %5088 = vmatpush1.bf16.msra.mxu0 %v5055
      %5089 = vmatprep.subr.bf16.mxu0 %v5058
      %5090 = vmatpush1.bf16.msra.mxu0 %v5057
      %5091 = vmatprep.subr.bf16.mxu0 %v5060
      %5092 = vmatpush1.bf16.msra.mxu0 %v5059
      %5093 = vmatprep.subr.bf16.mxu0 %v5062
      %5094 = vmatpush1.bf16.msra.mxu0 %v5061
      %5095 = vmatprep.subr.bf16.mxu0 %v5064
      %5096 = vmatpush1.bf16.msra.mxu0 %v5063
      %5097 = vmatprep.subr.bf16.mxu0 %v5066
      %5098 = vmatpush1.bf16.msra.mxu0 %v5065
      %5099 = vmatprep.subr.bf16.mxu0 %v5068
      %5100 = vmatpush1.bf16.msra.mxu0 %v5067
      %5101 = vmatprep.subr.bf16.mxu0 0
      %5102 = vmatpush1.bf16.msra.mxu0 0
      %5103 = vmatprep.subr.bf16.mxu0 0
      %5104 = vmatpush1.bf16.msra.mxu0 0
      %5105 = vmatprep.subr.bf16.mxu0 0
      %5106 = vmatpush1.bf16.msra.mxu0 0
      %5107 = vmatprep.subr.bf16.mxu0 0
      %5108 = vmatpush1.bf16.msra.mxu0 0
      %5109 = vmatprep.subr.bf16.mxu0 0
      %5110 = vmatpush1.bf16.msra.mxu0 0
      %5111 = vmatprep.subr.bf16.mxu0 0
      %5112 = vmatpush1.bf16.msra.mxu0 0
      %5113 = vmatprep.subr.bf16.mxu0 0
      %5114 = vmatpush1.bf16.msra.mxu0 0
      %5115 = vmatprep.subr.bf16.mxu0 0
      %5116 = vmatpush1.bf16.msra.mxu0 0
      %5117 = vmatprep.mubr.bf16.mxu0 0
      %5118 = vmatmul.mubr.bf16.gmra.mrb[0].mxu0 %v4988
      %v5119 = vpop.f32.mrb[0].mxu0
      %v5120 = vadd.f32 0.0, %v5119
      %v5121 = vpop.f32.mrb[0].mxu0
      %v5122 = vadd.f32 0.0, %v5121
      %v5123 = vpop.f32.mrb[0].mxu0
      %v5124 = vadd.f32 0.0, %v5123
      %v5125 = vpop.f32.mrb[0].mxu0
      %v5126 = vadd.f32 0.0, %v5125
      %5127 = vdwg.mxu0
      %v5128 = vrot.slane %v5120, 7
      %v5129 = vrot.slane %v5124, 7
      %v5130 = vsel %vm2322, %v5128, %v5129
      %v5131 = vsel %vm2322, %v5129, %v5128
      %v5132 = vsel %vm4637, %v5131, 0.0
      %v5133 = vsel %vm4638, %v5130, 0.0
      %5136 = vrot.lane.b32.xlu0 %v5120, 64
      %v5137 = vpop.permute.xlu0 %5136
      %5138 = vrot.lane.b32.xlu0 %v5124, 64
      %v5139 = vpop.permute.xlu0 %5138
      %v5142 = vadd.f32 %v5132, %v5137
      %v5143 = vadd.f32 %v5133, %v5139
      %v5144 = vrot.slane %v5122, 1
      %v5145 = vrot.slane %v5126, 1
      %v5146 = vsel %vm2357, %v5144, %v5145
      %v5147 = vsel %vm2357, %v5145, %v5144
      %v5148 = vsel %vm4661, %v5146, 0.0
      %v5149 = vsel %vm4662, %v5147, 0.0
      %v5150 = vadd.f32 %v5142, %v5148
      %v5151 = vadd.f32 %v5143, %v5149
      %v5152 = vld [vmem:[%s75] sm:$0x1]
      %v5154 = vlaneseq
      %v5155 = vshrl.u32 %v5154, 7
      %v5156 = vsub.s32 0, %v5155
      %v5157 = vrot.slane %v5152, %v5156
      %v5159 = vadd.f32 %v5150, %v5157
      %v5160 = vadd.f32 %v5151, %v5157
      %v5161 = vadd.f32 %v5159, %v4787
      %v5162 = vadd.f32 %v5160, %v4788
      %v5163 = vtanh.pop %v5161
      %v5164 = vtanh.pop %v5162
      %v5165 = vsel %vm4785, %v5163, 0.0
      %v5166 = vsel %vm4786, %v5164, 0.0
      %v5167 = vsel %vm1442, %v5165, 0.0
      %v5168 = vsel %vm1442, %v5166, 0.0
      %v5169 = vadd.f32 %v5167, %v5168
      %v5170 = vrot.slane %v5169, 4
      %v5171 = vadd.f32 %v5169, %v5170
      %v5172 = vrot.slane %v5171, 2
      %v5173 = vadd.f32 %v5171, %v5172
      %v5174 = vrot.slane %v5173, 1
      %v5175 = vadd.f32 %v5173, %v5174
      %v5176 = vmul.f32 %v5175, 0.5
      %v5177 = vpack.c.bf16 %v5176, %v5176
      %v5178 = vld [vmem:[%s77] sm:$0xf]
      %v5179 = vld [vmem:[%s77 + $0x4] sm:$0xf]
      %v5180 = vld [vmem:[%s77 + $0x8] sm:$0xf]
      %v5181 = vld [vmem:[%s77 + $0xc] sm:$0xf]
      %v5182 = vld [vmem:[%s77 + $0x10] sm:$0xf]
      %v5183 = vld [vmem:[%s77 + $0x14] sm:$0xf]
      %v5184 = vld [vmem:[%s77 + $0x18] sm:$0xf]
      %v5185 = vld [vmem:[%s77 + $0x1c] sm:$0xf]
      %v5186 = vld [vmem:[%s79] sm:$0x1]
      %v5195 = vunpack.c.l.b16 %v5178
      %v5196 = vunpack.c.l.b16 %v5179
      %v5197 = vunpack.c.l.b16 %v5180
      %v5198 = vunpack.c.l.b16 %v5181
      %v5199 = vunpack.c.l.b16 %v5182
      %v5200 = vunpack.c.l.b16 %v5183
      %v5201 = vunpack.c.l.b16 %v5184
      %v5202 = vunpack.c.l.b16 %v5185
      %v5203 = vpack.c.b16 %v5196, %v5195
      %v5204 = vpack.c.b16 %v5198, %v5197
      %v5205 = vpack.c.b16 %v5200, %v5199
      %v5206 = vpack.c.b16 %v5202, %v5201
      %v5212 = vsel %vm1442, %v5177, 0
      %5214 = vmatprep.subr.bf16.mxu0 0
      %5215 = vmatpush1.bf16.msra.mxu0 %v5203
      %5216 = vmatprep.subr.bf16.mxu0 0
      %5217 = vmatpush1.bf16.msra.mxu0 %v5204
      %5218 = vmatprep.subr.bf16.mxu0 0
      %5219 = vmatpush1.bf16.msra.mxu0 %v5205
      %5220 = vmatprep.subr.bf16.mxu0 0
      %5221 = vmatpush1.bf16.msra.mxu0 %v5206
      %5222 = vmatprep.subr.bf16.mxu0 0
      %5223 = vmatpush1.bf16.msra.mxu0 0
      %5224 = vmatprep.subr.bf16.mxu0 0
      %5225 = vmatpush1.bf16.msra.mxu0 0
      %5226 = vmatprep.subr.bf16.mxu0 0
      %5227 = vmatpush1.bf16.msra.mxu0 0
      %5228 = vmatprep.subr.bf16.mxu0 0
      %5229 = vmatpush1.bf16.msra.mxu0 0
      %5230 = vmatprep.subr.bf16.mxu0 0
      %5231 = vmatpush1.bf16.msra.mxu0 0
      %5232 = vmatprep.subr.bf16.mxu0 0
      %5233 = vmatpush1.bf16.msra.mxu0 0
      %5234 = vmatprep.subr.bf16.mxu0 0
      %5235 = vmatpush1.bf16.msra.mxu0 0
      %5236 = vmatprep.subr.bf16.mxu0 0
      %5237 = vmatpush1.bf16.msra.mxu0 0
      %5238 = vmatprep.subr.bf16.mxu0 0
      %5239 = vmatpush1.bf16.msra.mxu0 0
      %5240 = vmatprep.subr.bf16.mxu0 0
      %5241 = vmatpush1.bf16.msra.mxu0 0
      %5242 = vmatprep.subr.bf16.mxu0 0
      %5243 = vmatpush1.bf16.msra.mxu0 0
      %5244 = vmatprep.subr.bf16.mxu0 0
      %5245 = vmatpush1.bf16.msra.mxu0 0
      %5246 = vmatprep.mubr.bf16.mxu0 0
      %5247 = vmatmul.mubr.bf16.gmra.mrb[0].mxu0 %v5212
      %v5248 = vpop.f32.mrb[0].mxu0
      %v5249 = vadd.f32 %v5186, %v5248
      %v5250 = vpop.f32.mrb[0].mxu0
      %v5251 = vpop.f32.mrb[0].mxu0
      %v5252 = vpop.f32.mrb[0].mxu0
      %5253 = vdwg.mxu0
      %vm5254 = vcmask 1040384
      %v5255 = vsel %vm5254, %v5249, -inf
      %5256 = vmax.xlane.f32.xlu0 %v5255
      %v5257 = vpop.xlane.xlu0 %5256
      %v5258 = vsub.f32 %v5249, %v5257
      %v5259 = vmul.f32 %v5258, 1.442695
      %v5260 = vpow.pop %v5259
      %v5261 = vsel %vm5254, %v5260, 0.0
      %5262 = vadd.xlane.f32.xlu0 %v5261
      %v5263 = vpop.xlane.xlu0 %5262
      %v5264 = vlog2.pop %v5263
      %v5265 = vmul.f32 %v5264, 0.6931472
      %v5266 = vsub.f32 %v5258, %v5265
      %v5267 = vlaneseq
      %v5268 = vshrl.u32 %v5267, 7
      %v5269 = vsub.s32 0, %v5268
      %v5270 = vrot.slane %v5266, %v5269
      %5271 = vst [vmem:[%s1208] sm:$0xff] %v5270
      %p5272 = scmp.lt.s32.totalorder %s92, 1
      %s5273 = scalar_select %p5272, %s92, 1
      %s5274 = smul.addr %s5273, 8
      %s5275 = scalar_lea.vmem %s81, %s5274
      // Predicated region
      $region181: #{selfresnet_forward.1} parent=179 // pred_check
        %p5276 = pneg %p955
      $region182: #{selfresnet_forward.1} parent=179 // pred_check_branch
        %5278 = sbr.rel (%p5276) target = $region184
      $region183: #{selfresnet_forward.1} parent=179 // pred_region
        _
      $region184: #{selfresnet_forward.1} parent=179 // pred_fallthru
        _
    $region180: #{selfresnet_forward.1} parent=5 // pred_fallthru
      _
    %p5279 = scmp.le.s32.totalorder 2, %s87
    // Predicated region
    $region185: #{selfresnet_forward.1} parent=5 // pred_check
      %p5280 = pneg %p5279
    $region186: #{selfresnet_forward.1} parent=5 // pred_check_branch
      %5282 = sbr.rel (%p5280) target = $region188
    $region187: #{selfresnet_forward.1} parent=5 // pred_region
      %s5283 = ssub.s32 %s87, 2
      // Predicated region
      $region189: #{selfresnet_forward.1} parent=187 // pred_check
        %p5284 = pneg %p961
      $region190: #{selfresnet_forward.1} parent=187 // pred_check_branch
        %5286 = sbr.rel (%p5284) target = $region192
      $region191: #{selfresnet_forward.1} parent=187 // pred_region
        %p5287 = scmp.lt.s32.totalorder %s93, 1
        %s5288 = scalar_select %p5287, %s93, 1
        %s5289 = smul.addr %s5288, 8
        %s5290 = scalar_lea.vmem %s81, %s5289
      $region192: #{selfresnet_forward.1} parent=187 // pred_fallthru
        _
    $region188: #{selfresnet_forward.1} parent=5 // pred_fallthru
      _
  $region6: #{selfresnet_forward.1} parent=0 // loop_footer
    %s91 = sadd.s32 1, %s87
  $region7: #{selfresnet_forward.1} parent=0 // loop_footer_branch
    %86 = sbr.rel target = $region3
  $region8: #{selfresnet_forward.1} parent=0 // loop_exit
    _

</llo_original>
